<compile_context>
chip_gen: v6e
topology: v6e:2x2x1
jax: 0.10.0
libtpu: 0.0.40
codegen_flags: <defaults>
</compile_context>

<pallas_src>
import functools

import jax
import jax.numpy as jnp
from jax.experimental import pallas as pl
from jax.experimental.pallas import tpu as pltpu


def _round_up(x: int, m: int) -> int:
    return (x + m - 1) // m * m


def _decoder_kernel(x_ref, h_ref, c_ref,
                    we_ref, be_ref,
                    wi1_ref, wh1_ref, b1_ref,
                    w2_ref, b2_ref, w3_ref, b3_ref,
                    hout_ref, cout_ref):
    f32 = jnp.float32
    hp = hout_ref.shape[-1] // 3          # lane-padded hidden size (k * 128)
    wdt = we_ref.dtype                    # weight dtype (bf16 in prod, f32 for check)

    def sigmoid(z):
        # sigmoid(z) == 0.5 * tanh(0.5 * z) + 0.5 : one EUP push (tanh) instead
        # of exp + reciprocal; the scale/shift co-issue on spare VALU slots.
        return 0.5 * jnp.tanh(0.5 * z) + 0.5

    def cell(gates, c_old, k):
        # PyTorch gate order i, f, g, o; hp is a multiple of 128 so every slice
        # and every output store is lane-aligned and unmasked.
        i = sigmoid(gates[:, 0 * hp:1 * hp])
        f = sigmoid(gates[:, 1 * hp:2 * hp])
        g = jnp.tanh(gates[:, 2 * hp:3 * hp])
        o = sigmoid(gates[:, 3 * hp:4 * hp])
        c_new = f * c_old + i * g
        h_new = o * jnp.tanh(c_new)
        cout_ref[:, k * hp:(k + 1) * hp] = c_new.astype(cout_ref.dtype)
        hout_ref[:, k * hp:(k + 1) * hp] = h_new.astype(hout_ref.dtype)

    h_w = h_ref[...].astype(wdt)          # [h0||h1||h2] as MXU operand dtype
    c_all = c_ref[...].astype(f32)        # [c0||c1||c2], state math stays f32

    # tgt_emb: Linear(input_size -> d_word_vec).
    emb = (jnp.dot(x_ref[...].astype(wdt), we_ref[...], preferred_element_type=f32)
           + be_ref[...])
    # TODO(synk): dropout(p=0.1) is identity at inference; training mode would
    # draw a keep-mask here via pltpu.prng_seed / pltpu.prng_random_bits.

    # lstm1: input = emb, hidden = old h0 (two K=256 dots).
    g1 = (jnp.dot(emb.astype(wdt), wi1_ref[...], preferred_element_type=f32)
          + jnp.dot(h_w[:, 0:hp], wh1_ref[...], preferred_element_type=f32)
          + b1_ref[...])
    cell(g1, c_all[:, 0:hp], 0)

    # lstm2: input = old h0, hidden = old h1 -> ONE fused dot over [h0||h1].
    g2 = (jnp.dot(h_w[:, 0:2 * hp], w2_ref[...], preferred_element_type=f32)
          + b2_ref[...])
    cell(g2, c_all[:, hp:2 * hp], 1)

    # lstm3: input = old h1, hidden = old h2 -> ONE fused dot over [h1||h2].
    g3 = (jnp.dot(h_w[:, hp:3 * hp], w3_ref[...], preferred_element_type=f32)
          + b3_ref[...])
    cell(g3, c_all[:, 2 * hp:3 * hp], 2)


def _pack_lstm(w_ih, w_hh, b_ih, b_hh, in_pad, hp, wdt):
    """PyTorch LSTMCell params -> zero-padded 'x @ W' layout, gate-blocked [i|f|g|o].

    w_ih: (4H, in), w_hh: (4H, H), b_*: (4H,).
    Returns W_ih (in_pad, 4*hp), W_hh (hp, 4*hp) in `wdt`, bias (1, 4*hp) in f32.
    """
    four_h, in_dim = w_ih.shape
    h = four_h // 4
    w_ih_t = jnp.transpose(w_ih.reshape(4, h, in_dim), (2, 0, 1))      # (in, 4, H)
    w_ih_p = jnp.zeros((in_pad, 4, hp), wdt).at[:in_dim, :, :h].set(w_ih_t.astype(wdt))
    w_hh_t = jnp.transpose(w_hh.reshape(4, h, h), (2, 0, 1))           # (H, 4, H)
    w_hh_p = jnp.zeros((hp, 4, hp), wdt).at[:h, :, :h].set(w_hh_t.astype(wdt))
    b_p = jnp.zeros((4, hp), jnp.float32).at[:, :h].set(
        (b_ih + b_hh).astype(jnp.float32).reshape(4, h))
    return (w_ih_p.reshape(in_pad, 4 * hp),
            w_hh_p.reshape(hp, 4 * hp),
            b_p.reshape(1, 4 * hp))


def decoder_forward(x, vec_h, vec_c, params, *,
                    weight_dtype=jnp.bfloat16, single_buffer_weights=True):
    """Pallas equivalent of Decoder.forward: (h2', [h0',h1',h2'], [c0',c1',c2'])."""
    b, input_size = x.shape
    h = vec_h[0].shape[-1]
    d = params["w_emb"].shape[0]          # d_word_vec
    dtype = x.dtype

    hp = _round_up(h, 128)                # 200 -> 256
    dp = _round_up(d, 128)                # 150 -> 256
    in_p = _round_up(input_size, 128)     # 274 -> 384

    # ---- batch tiling: 8-aligned tiles capped near 256, padded via cdiv ----
    n_tiles = pl.cdiv(b, 256)
    bt = _round_up(pl.cdiv(b, n_tiles), 8)
    b_pad = bt * n_tiles
    grid = (n_tiles,)

    # ---- weight / bias packing (wrapper-side, XLA-fusable) -----------------
    wdt = weight_dtype
    we = jnp.zeros((in_p, dp), wdt).at[:input_size, :d].set(
        jnp.transpose(params["w_emb"]).astype(wdt))
    be = jnp.zeros((1, dp), jnp.float32).at[0, :d].set(
        params["b_emb"].astype(jnp.float32))
    wi1, wh1, b1 = _pack_lstm(params["lstm1"]["w_ih"], params["lstm1"]["w_hh"],
                              params["lstm1"]["b_ih"], params["lstm1"]["b_hh"],
                              in_pad=dp, hp=hp, wdt=wdt)
    wi2, wh2, b2 = _pack_lstm(params["lstm2"]["w_ih"], params["lstm2"]["w_hh"],
                              params["lstm2"]["b_ih"], params["lstm2"]["b_hh"],
                              in_pad=hp, hp=hp, wdt=wdt)
    wi3, wh3, b3 = _pack_lstm(params["lstm3"]["w_ih"], params["lstm3"]["w_hh"],
                              params["lstm3"]["b_ih"], params["lstm3"]["b_hh"],
                              in_pad=hp, hp=hp, wdt=wdt)
    w2 = jnp.concatenate([wi2, wh2], axis=0)   # (2*hp, 4*hp): gates = [h0||h1] @ w2
    w3 = jnp.concatenate([wi3, wh3], axis=0)   # (2*hp, 4*hp): gates = [h1||h2] @ w3

    # ---- state packing: [h0||h1||h2], [c0||c1||c2]; batch + lane padded ----
    def pack_states(states):
        out = jnp.zeros((b_pad, 3 * hp), dtype)
        for k, s in enumerate(states):
            out = out.at[:b, k * hp:k * hp + h].set(s)
        return out

    h_all = pack_states(vec_h)
    c_all = pack_states(vec_c)
    xp = jnp.zeros((b_pad, in_p), dtype).at[:b, :input_size].set(x)

    row = lambda i: (i, 0)     # tiled over batch
    rep = lambda i: (0, 0)     # resident (weights / biases, constant index_map)

    # Single-buffer the resident operands if this jax build supports it.
    wkw = {}
    if single_buffer_weights and hasattr(pl, "Buffered"):
        wkw = dict(pipeline_mode=pl.Buffered(1))

    state_spec = pl.BlockSpec((bt, 3 * hp), row)
    in_specs = [
        pl.BlockSpec((bt, in_p), row),                 # x (feature-padded)
        state_spec, state_spec,                        # packed h, packed c
        pl.BlockSpec((in_p, dp), rep, **wkw),          # w_emb^T
        pl.BlockSpec((1, dp), rep, **wkw),             # b_emb
        pl.BlockSpec((dp, 4 * hp), rep, **wkw),        # lstm1 W_ih
        pl.BlockSpec((hp, 4 * hp), rep, **wkw),        # lstm1 W_hh
        pl.BlockSpec((1, 4 * hp), rep, **wkw),         # lstm1 bias (b_ih + b_hh)
        pl.BlockSpec((2 * hp, 4 * hp), rep, **wkw),    # lstm2 [W_ih; W_hh]
        pl.BlockSpec((1, 4 * hp), rep, **wkw),         # lstm2 bias
        pl.BlockSpec((2 * hp, 4 * hp), rep, **wkw),    # lstm3 [W_ih; W_hh]
        pl.BlockSpec((1, 4 * hp), rep, **wkw),         # lstm3 bias
    ]
    out_specs = [pl.BlockSpec((bt, 3 * hp), row)] * 2
    out_shape = [jax.ShapeDtypeStruct((b_pad, 3 * hp), dtype)] * 2

    # Cost hint with padded dims; weights are fetched once (constant index_map).
    flops = (2 * b_pad * (in_p * dp + (dp + hp) * 4 * hp + 2 * (2 * hp) * 4 * hp)
             + 36 * b_pad * hp)
    weight_bytes = sum(int(a.size) * a.dtype.itemsize
                       for a in (we, be, wi1, wh1, b1, w2, b2, w3, b3))
    state_bytes = (sum(int(a.size) * a.dtype.itemsize for a in (xp, h_all, c_all))
                   + 2 * b_pad * 3 * hp * jnp.dtype(dtype).itemsize)
    cost = pl.CostEstimate(flops=flops, transcendentals=15 * b_pad * hp,
                           bytes_accessed=weight_bytes + state_bytes)

    h_out, c_out = pl.pallas_call(
        _decoder_kernel,
        grid=grid,
        in_specs=in_specs,
        out_specs=out_specs,
        out_shape=out_shape,
        compiler_params=pltpu.CompilerParams(
            dimension_semantics=("parallel",),
            vmem_limit_bytes=48 * 1024 * 1024,
        ),
        cost_estimate=cost,
    )(xp, h_all, c_all, we, be, wi1, wh1, b1, w2, b2, w3, b3)

    h_new = [h_out[:b, k * hp:k * hp + h] for k in range(3)]
    c_new = [c_out[:b, k * hp:k * hp + h] for k in range(3)]
    return h_new[2], h_new, c_new


if __name__ == "__main__":
    key = jax.random.PRNGKey(0)
    B = 2
    INPUT_SIZE, D_WORD_VEC, HIDDEN = 274, 150, 200
    s = 0.08  # modest init scale keeps gate pre-activations in a sane range

    ks = jax.random.split(key, 12)

    def lstm_params(k, in_dim, hidden):
        k1, k2, k3, k4 = jax.random.split(k, 4)
        return {
            "w_ih": s * jax.random.normal(k1, (4 * hidden, in_dim), jnp.float32),
            "w_hh": s * jax.random.normal(k2, (4 * hidden, hidden), jnp.float32),
            "b_ih": s * jax.random.normal(k3, (4 * hidden,), jnp.float32),
            "b_hh": s * jax.random.normal(k4, (4 * hidden,), jnp.float32),
        }

    params = {
        "w_emb": s * jax.random.normal(ks[0], (D_WORD_VEC, INPUT_SIZE), jnp.float32),
        "b_emb": s * jax.random.normal(ks[1], (D_WORD_VEC,), jnp.float32),
        "lstm1": lstm_params(ks[2], D_WORD_VEC, HIDDEN),
        "lstm2": lstm_params(ks[3], HIDDEN, HIDDEN),
        "lstm3": lstm_params(ks[4], HIDDEN, HIDDEN),
    }

    x = jax.random.normal(ks[5], (B, INPUT_SIZE), jnp.float32)
    vec_h = [jax.random.normal(ks[6 + i], (B, HIDDEN), jnp.float32) for i in range(3)]
    vec_c = [jax.random.normal(ks[9 + i], (B, HIDDEN), jnp.float32) for i in range(3)]

    def run(weight_dtype, single_buffer):
        f = jax.jit(functools.partial(decoder_forward,
                                      weight_dtype=weight_dtype,
                                      single_buffer_weights=single_buffer))
        out, hs, cs = f(x, vec_h, vec_c, params)
        jax.block_until_ready(out)
        return out, hs, cs

    # Production config: bf16 weights + single-buffered resident operands.
    try:
        out_bf, h_bf, c_bf = run(jnp.bfloat16, True)
    except Exception:
        # pl.Buffered(1) not supported on this jax build -> default buffering.
        out_bf, h_bf, c_bf = run(jnp.bfloat16, False)

    # Exact-math config: f32 weights (validates kernel math at tight tolerance).
    out32, h32, c32 = run(jnp.float32, False)

    # ---- pure-JAX reference (same math as nn.Linear + nn.LSTMCell, eval) ----
    def ref_cell(xx, hh, cc, p):
        gates = xx @ p["w_ih"].T + p["b_ih"] + hh @ p["w_hh"].T + p["b_hh"]
        i, f, g, o = jnp.split(gates, 4, axis=-1)
        i, f, o = jax.nn.sigmoid(i), jax.nn.sigmoid(f), jax.nn.sigmoid(o)
        g = jnp.tanh(g)
        c_new = f * cc + i * g
        return o * jnp.tanh(c_new), c_new

    emb = x @ params["w_emb"].T + params["b_emb"]
    rh0, rc0 = ref_cell(emb, vec_h[0], vec_c[0], params["lstm1"])
    rh1, rc1 = ref_cell(vec_h[0], vec_h[1], vec_c[1], params["lstm2"])
    rh2, rc2 = ref_cell(vec_h[1], vec_h[2], vec_c[2], params["lstm3"])

    names = ["h0", "h1", "h2", "c0", "c1", "c2"]
    refs = [rh0, rh1, rh2, rc0, rc1, rc2]

    # f32 weights: exact kernel math, tight tolerance.
    got32 = list(h32) + list(c32)
    for name, r, g in zip(names, refs, got32):
        assert g.shape == (B, HIDDEN), (name, g.shape)
        err = float(jnp.max(jnp.abs(g - r)))
        assert jnp.allclose(g, r, rtol=1e-3, atol=1e-3), f"{name} f32 mismatch {err}"
    assert out32.shape == (B, HIDDEN)
    assert jnp.allclose(out32, rh2, rtol=1e-3, atol=1e-3)

    # bf16 weights: looser tolerance covering bf16 weight/operand rounding.
    got_bf = list(h_bf) + list(c_bf)
    for name, r, g in zip(names, refs, got_bf):
        assert g.shape == (B, HIDDEN), (name, g.shape)
        err = float(jnp.max(jnp.abs(g - r)))
        assert jnp.allclose(g, r, rtol=4e-2, atol=4e-2), f"{name} bf16 mismatch {err}"
    assert out_bf.shape == (B, HIDDEN)

    print("KERNEL_OK")
</pallas_src>

<mosaic_0001>
module attributes {stable_mosaic.version = 11 : i64} {
  func.func @_decoder_kernel(%arg0: i32, %arg1: memref<8x384xf32, #tpu.memory_space<vmem>>, %arg2: memref<8x768xf32, #tpu.memory_space<vmem>>, %arg3: memref<8x768xf32, #tpu.memory_space<vmem>>, %arg4: memref<384x256xbf16, #tpu.memory_space<vmem>>, %arg5: memref<1x256xf32, #tpu.memory_space<vmem>>, %arg6: memref<256x1024xbf16, #tpu.memory_space<vmem>>, %arg7: memref<256x1024xbf16, #tpu.memory_space<vmem>>, %arg8: memref<1x1024xf32, #tpu.memory_space<vmem>>, %arg9: memref<512x1024xbf16, #tpu.memory_space<vmem>>, %arg10: memref<1x1024xf32, #tpu.memory_space<vmem>>, %arg11: memref<512x1024xbf16, #tpu.memory_space<vmem>>, %arg12: memref<1x1024xf32, #tpu.memory_space<vmem>>, %arg13: memref<8x768xf32, #tpu.memory_space<vmem>>, %arg14: memref<8x768xf32, #tpu.memory_space<vmem>>) attributes {dimension_semantics = [#tpu.dimension_semantics<parallel>], iteration_bounds = array<i64: 1>, scalar_prefetch = 0 : i64, scratch_operands = 0 : i64, tpu.core_type = #tpu.core_type<tc>, window_params = [{transform_indices = @transform_0, window_bounds = array<i64: 8, 384>}, {transform_indices = @transform_1, window_bounds = array<i64: 8, 768>}, {transform_indices = @transform_2, window_bounds = array<i64: 8, 768>}, {pipeline_mode = #tpu.pipeline_mode<synchronous>, transform_indices = @transform_3, window_bounds = array<i64: 384, 256>}, {pipeline_mode = #tpu.pipeline_mode<synchronous>, transform_indices = @transform_4, window_bounds = array<i64: 1, 256>}, {pipeline_mode = #tpu.pipeline_mode<synchronous>, transform_indices = @transform_5, window_bounds = array<i64: 256, 1024>}, {pipeline_mode = #tpu.pipeline_mode<synchronous>, transform_indices = @transform_6, window_bounds = array<i64: 256, 1024>}, {pipeline_mode = #tpu.pipeline_mode<synchronous>, transform_indices = @transform_7, window_bounds = array<i64: 1, 1024>}, {pipeline_mode = #tpu.pipeline_mode<synchronous>, transform_indices = @transform_8, window_bounds = array<i64: 512, 1024>}, {pipeline_mode = #tpu.pipeline_mode<synchronous>, transform_indices = @transform_9, window_bounds = array<i64: 1, 1024>}, {pipeline_mode = #tpu.pipeline_mode<synchronous>, transform_indices = @transform_10, window_bounds = array<i64: 512, 1024>}, {pipeline_mode = #tpu.pipeline_mode<synchronous>, transform_indices = @transform_11, window_bounds = array<i64: 1, 1024>}, {transform_indices = @transform_12, window_bounds = array<i64: 8, 768>}, {transform_indices = @transform_13, window_bounds = array<i64: 8, 768>}]} {
    %c0 = arith.constant 0 : index
    %c0_0 = arith.constant 0 : index
    %0 = vector.load %arg2[%c0, %c0_0] : memref<8x768xf32, #tpu.memory_space<vmem>>, vector<8x768xf32>
    %1 = arith.truncf %0 : vector<8x768xf32> to vector<8x768xbf16>
    %c0_1 = arith.constant 0 : index
    %c0_2 = arith.constant 0 : index
    %2 = vector.load %arg3[%c0_1, %c0_2] : memref<8x768xf32, #tpu.memory_space<vmem>>, vector<8x768xf32>
    %c0_3 = arith.constant 0 : index
    %c0_4 = arith.constant 0 : index
    %3 = vector.load %arg1[%c0_3, %c0_4] : memref<8x384xf32, #tpu.memory_space<vmem>>, vector<8x384xf32>
    %4 = arith.truncf %3 : vector<8x384xf32> to vector<8x384xbf16>
    %c0_5 = arith.constant 0 : index
    %c0_6 = arith.constant 0 : index
    %5 = vector.load %arg4[%c0_5, %c0_6] : memref<384x256xbf16, #tpu.memory_space<vmem>>, vector<384x256xbf16>
    %cst = arith.constant dense<0.000000e+00> : vector<8x256xf32>
    %6 = tpu.matmul %4, %5, %cst {dimension_numbers = #tpu.dot_dimension_numbers<[1], [0], [0], [1], [0, 0, 1, 1], [], []>} : vector<8x384xbf16>, vector<384x256xbf16>, vector<8x256xf32> -> vector<8x256xf32>
    %c0_7 = arith.constant 0 : index
    %c0_8 = arith.constant 0 : index
    %7 = vector.load %arg5[%c0_7, %c0_8] : memref<1x256xf32, #tpu.memory_space<vmem>>, vector<1x256xf32>
    %8 = vector.broadcast %7 : vector<1x256xf32> to vector<8x256xf32>
    %9 = arith.addf %6, %8 : vector<8x256xf32>
    %10 = arith.truncf %9 : vector<8x256xf32> to vector<8x256xbf16>
    %c0_9 = arith.constant 0 : index
    %c0_10 = arith.constant 0 : index
    %11 = vector.load %arg6[%c0_9, %c0_10] : memref<256x1024xbf16, #tpu.memory_space<vmem>>, vector<256x1024xbf16>
    %cst_11 = arith.constant dense<0.000000e+00> : vector<8x1024xf32>
    %12 = tpu.matmul %10, %11, %cst_11 {dimension_numbers = #tpu.dot_dimension_numbers<[1], [0], [0], [1], [0, 0, 1, 1], [], []>} : vector<8x256xbf16>, vector<256x1024xbf16>, vector<8x1024xf32> -> vector<8x1024xf32>
    %13 = vector.extract_strided_slice %1 {offsets = [0, 0], sizes = [8, 256], strides = [1, 1]} : vector<8x768xbf16> to vector<8x256xbf16>
    %c0_12 = arith.constant 0 : index
    %c0_13 = arith.constant 0 : index
    %14 = vector.load %arg7[%c0_12, %c0_13] : memref<256x1024xbf16, #tpu.memory_space<vmem>>, vector<256x1024xbf16>
    %cst_14 = arith.constant dense<0.000000e+00> : vector<8x1024xf32>
    %15 = tpu.matmul %13, %14, %cst_14 {dimension_numbers = #tpu.dot_dimension_numbers<[1], [0], [0], [1], [0, 0, 1, 1], [], []>} : vector<8x256xbf16>, vector<256x1024xbf16>, vector<8x1024xf32> -> vector<8x1024xf32>
    %16 = arith.addf %12, %15 : vector<8x1024xf32>
    %c0_15 = arith.constant 0 : index
    %c0_16 = arith.constant 0 : index
    %17 = vector.load %arg8[%c0_15, %c0_16] : memref<1x1024xf32, #tpu.memory_space<vmem>>, vector<1x1024xf32>
    %18 = vector.broadcast %17 : vector<1x1024xf32> to vector<8x1024xf32>
    %19 = arith.addf %16, %18 : vector<8x1024xf32>
    %20 = vector.extract_strided_slice %2 {offsets = [0, 0], sizes = [8, 256], strides = [1, 1]} : vector<8x768xf32> to vector<8x256xf32>
    %21 = vector.extract_strided_slice %19 {offsets = [0, 0], sizes = [8, 256], strides = [1, 1]} : vector<8x1024xf32> to vector<8x256xf32>
    %cst_17 = arith.constant 5.000000e-01 : f32
    %22 = vector.broadcast %cst_17 : f32 to vector<8x256xf32>
    %23 = arith.mulf %22, %21 : vector<8x256xf32>
    %24 = math.tanh %23 : vector<8x256xf32>
    %cst_18 = arith.constant 5.000000e-01 : f32
    %25 = vector.broadcast %cst_18 : f32 to vector<8x256xf32>
    %26 = arith.mulf %25, %24 : vector<8x256xf32>
    %cst_19 = arith.constant 5.000000e-01 : f32
    %27 = vector.broadcast %cst_19 : f32 to vector<8x256xf32>
    %28 = arith.addf %26, %27 : vector<8x256xf32>
    %29 = vector.extract_strided_slice %19 {offsets = [0, 256], sizes = [8, 256], strides = [1, 1]} : vector<8x1024xf32> to vector<8x256xf32>
    %cst_20 = arith.constant 5.000000e-01 : f32
    %30 = vector.broadcast %cst_20 : f32 to vector<8x256xf32>
    %31 = arith.mulf %30, %29 : vector<8x256xf32>
    %32 = math.tanh %31 : vector<8x256xf32>
    %cst_21 = arith.constant 5.000000e-01 : f32
    %33 = vector.broadcast %cst_21 : f32 to vector<8x256xf32>
    %34 = arith.mulf %33, %32 : vector<8x256xf32>
    %cst_22 = arith.constant 5.000000e-01 : f32
    %35 = vector.broadcast %cst_22 : f32 to vector<8x256xf32>
    %36 = arith.addf %34, %35 : vector<8x256xf32>
    %37 = vector.extract_strided_slice %19 {offsets = [0, 512], sizes = [8, 256], strides = [1, 1]} : vector<8x1024xf32> to vector<8x256xf32>
    %38 = math.tanh %37 : vector<8x256xf32>
    %39 = vector.extract_strided_slice %19 {offsets = [0, 768], sizes = [8, 256], strides = [1, 1]} : vector<8x1024xf32> to vector<8x256xf32>
    %cst_23 = arith.constant 5.000000e-01 : f32
    %40 = vector.broadcast %cst_23 : f32 to vector<8x256xf32>
    %41 = arith.mulf %40, %39 : vector<8x256xf32>
    %42 = math.tanh %41 : vector<8x256xf32>
    %cst_24 = arith.constant 5.000000e-01 : f32
    %43 = vector.broadcast %cst_24 : f32 to vector<8x256xf32>
    %44 = arith.mulf %43, %42 : vector<8x256xf32>
    %cst_25 = arith.constant 5.000000e-01 : f32
    %45 = vector.broadcast %cst_25 : f32 to vector<8x256xf32>
    %46 = arith.addf %44, %45 : vector<8x256xf32>
    %47 = arith.mulf %36, %20 : vector<8x256xf32>
    %48 = arith.mulf %28, %38 : vector<8x256xf32>
    %49 = arith.addf %47, %48 : vector<8x256xf32>
    %50 = math.tanh %49 : vector<8x256xf32>
    %51 = arith.mulf %46, %50 : vector<8x256xf32>
    %c0_26 = arith.constant 0 : index
    %c0_27 = arith.constant 0 : index
    %52 = vector.load %arg14[%c0_26, %c0_27] : memref<8x768xf32, #tpu.memory_space<vmem>>, vector<8x256xf32>
    tpu.vector_store %arg14[%c0_26, %c0_27], %49 {strides = array<i32>} : memref<8x768xf32, #tpu.memory_space<vmem>>, vector<8x256xf32>,
    %c0_28 = arith.constant 0 : index
    %c0_29 = arith.constant 0 : index
    %53 = vector.load %arg13[%c0_28, %c0_29] : memref<8x768xf32, #tpu.memory_space<vmem>>, vector<8x256xf32>
    tpu.vector_store %arg13[%c0_28, %c0_29], %51 {strides = array<i32>} : memref<8x768xf32, #tpu.memory_space<vmem>>, vector<8x256xf32>,
    %54 = vector.extract_strided_slice %1 {offsets = [0, 0], sizes = [8, 512], strides = [1, 1]} : vector<8x768xbf16> to vector<8x512xbf16>
    %c0_30 = arith.constant 0 : index
    %c0_31 = arith.constant 0 : index
    %55 = vector.load %arg9[%c0_30, %c0_31] : memref<512x1024xbf16, #tpu.memory_space<vmem>>, vector<512x1024xbf16>
    %cst_32 = arith.constant dense<0.000000e+00> : vector<8x1024xf32>
    %56 = tpu.matmul %54, %55, %cst_32 {dimension_numbers = #tpu.dot_dimension_numbers<[1], [0], [0], [1], [0, 0, 1, 1], [], []>} : vector<8x512xbf16>, vector<512x1024xbf16>, vector<8x1024xf32> -> vector<8x1024xf32>
    %c0_33 = arith.constant 0 : index
    %c0_34 = arith.constant 0 : index
    %57 = vector.load %arg10[%c0_33, %c0_34] : memref<1x1024xf32, #tpu.memory_space<vmem>>, vector<1x1024xf32>
    %58 = vector.broadcast %57 : vector<1x1024xf32> to vector<8x1024xf32>
    %59 = arith.addf %56, %58 : vector<8x1024xf32>
    %60 = vector.extract_strided_slice %2 {offsets = [0, 256], sizes = [8, 256], strides = [1, 1]} : vector<8x768xf32> to vector<8x256xf32>
    %61 = vector.extract_strided_slice %59 {offsets = [0, 0], sizes = [8, 256], strides = [1, 1]} : vector<8x1024xf32> to vector<8x256xf32>
    %cst_35 = arith.constant 5.000000e-01 : f32
    %62 = vector.broadcast %cst_35 : f32 to vector<8x256xf32>
    %63 = arith.mulf %62, %61 : vector<8x256xf32>
    %64 = math.tanh %63 : vector<8x256xf32>
    %cst_36 = arith.constant 5.000000e-01 : f32
    %65 = vector.broadcast %cst_36 : f32 to vector<8x256xf32>
    %66 = arith.mulf %65, %64 : vector<8x256xf32>
    %cst_37 = arith.constant 5.000000e-01 : f32
    %67 = vector.broadcast %cst_37 : f32 to vector<8x256xf32>
    %68 = arith.addf %66, %67 : vector<8x256xf32>
    %69 = vector.extract_strided_slice %59 {offsets = [0, 256], sizes = [8, 256], strides = [1, 1]} : vector<8x1024xf32> to vector<8x256xf32>
    %cst_38 = arith.constant 5.000000e-01 : f32
    %70 = vector.broadcast %cst_38 : f32 to vector<8x256xf32>
    %71 = arith.mulf %70, %69 : vector<8x256xf32>
    %72 = math.tanh %71 : vector<8x256xf32>
    %cst_39 = arith.constant 5.000000e-01 : f32
    %73 = vector.broadcast %cst_39 : f32 to vector<8x256xf32>
    %74 = arith.mulf %73, %72 : vector<8x256xf32>
    %cst_40 = arith.constant 5.000000e-01 : f32
    %75 = vector.broadcast %cst_40 : f32 to vector<8x256xf32>
    %76 = arith.addf %74, %75 : vector<8x256xf32>
    %77 = vector.extract_strided_slice %59 {offsets = [0, 512], sizes = [8, 256], strides = [1, 1]} : vector<8x1024xf32> to vector<8x256xf32>
    %78 = math.tanh %77 : vector<8x256xf32>
    %79 = vector.extract_strided_slice %59 {offsets = [0, 768], sizes = [8, 256], strides = [1, 1]} : vector<8x1024xf32> to vector<8x256xf32>
    %cst_41 = arith.constant 5.000000e-01 : f32
    %80 = vector.broadcast %cst_41 : f32 to vector<8x256xf32>
    %81 = arith.mulf %80, %79 : vector<8x256xf32>
    %82 = math.tanh %81 : vector<8x256xf32>
    %cst_42 = arith.constant 5.000000e-01 : f32
    %83 = vector.broadcast %cst_42 : f32 to vector<8x256xf32>
    %84 = arith.mulf %83, %82 : vector<8x256xf32>
    %cst_43 = arith.constant 5.000000e-01 : f32
    %85 = vector.broadcast %cst_43 : f32 to vector<8x256xf32>
    %86 = arith.addf %84, %85 : vector<8x256xf32>
    %87 = arith.mulf %76, %60 : vector<8x256xf32>
    %88 = arith.mulf %68, %78 : vector<8x256xf32>
    %89 = arith.addf %87, %88 : vector<8x256xf32>
    %90 = math.tanh %89 : vector<8x256xf32>
    %91 = arith.mulf %86, %90 : vector<8x256xf32>
    %c0_44 = arith.constant 0 : index
    %c256 = arith.constant 256 : index
    %92 = vector.load %arg14[%c0_44, %c256] : memref<8x768xf32, #tpu.memory_space<vmem>>, vector<8x256xf32>
    tpu.vector_store %arg14[%c0_44, %c256], %89 {strides = array<i32>} : memref<8x768xf32, #tpu.memory_space<vmem>>, vector<8x256xf32>,
    %c0_45 = arith.constant 0 : index
    %c256_46 = arith.constant 256 : index
    %93 = vector.load %arg13[%c0_45, %c256_46] : memref<8x768xf32, #tpu.memory_space<vmem>>, vector<8x256xf32>
    tpu.vector_store %arg13[%c0_45, %c256_46], %91 {strides = array<i32>} : memref<8x768xf32, #tpu.memory_space<vmem>>, vector<8x256xf32>,
    %94 = vector.extract_strided_slice %1 {offsets = [0, 256], sizes = [8, 512], strides = [1, 1]} : vector<8x768xbf16> to vector<8x512xbf16>
    %c0_47 = arith.constant 0 : index
    %c0_48 = arith.constant 0 : index
    %95 = vector.load %arg11[%c0_47, %c0_48] : memref<512x1024xbf16, #tpu.memory_space<vmem>>, vector<512x1024xbf16>
    %cst_49 = arith.constant dense<0.000000e+00> : vector<8x1024xf32>
    %96 = tpu.matmul %94, %95, %cst_49 {dimension_numbers = #tpu.dot_dimension_numbers<[1], [0], [0], [1], [0, 0, 1, 1], [], []>} : vector<8x512xbf16>, vector<512x1024xbf16>, vector<8x1024xf32> -> vector<8x1024xf32>
    %c0_50 = arith.constant 0 : index
    %c0_51 = arith.constant 0 : index
    %97 = vector.load %arg12[%c0_50, %c0_51] : memref<1x1024xf32, #tpu.memory_space<vmem>>, vector<1x1024xf32>
    %98 = vector.broadcast %97 : vector<1x1024xf32> to vector<8x1024xf32>
    %99 = arith.addf %96, %98 : vector<8x1024xf32>
    %100 = vector.extract_strided_slice %2 {offsets = [0, 512], sizes = [8, 256], strides = [1, 1]} : vector<8x768xf32> to vector<8x256xf32>
    %101 = vector.extract_strided_slice %99 {offsets = [0, 0], sizes = [8, 256], strides = [1, 1]} : vector<8x1024xf32> to vector<8x256xf32>
    %cst_52 = arith.constant 5.000000e-01 : f32
    %102 = vector.broadcast %cst_52 : f32 to vector<8x256xf32>
    %103 = arith.mulf %102, %101 : vector<8x256xf32>
    %104 = math.tanh %103 : vector<8x256xf32>
    %cst_53 = arith.constant 5.000000e-01 : f32
    %105 = vector.broadcast %cst_53 : f32 to vector<8x256xf32>
    %106 = arith.mulf %105, %104 : vector<8x256xf32>
    %cst_54 = arith.constant 5.000000e-01 : f32
    %107 = vector.broadcast %cst_54 : f32 to vector<8x256xf32>
    %108 = arith.addf %106, %107 : vector<8x256xf32>
    %109 = vector.extract_strided_slice %99 {offsets = [0, 256], sizes = [8, 256], strides = [1, 1]} : vector<8x1024xf32> to vector<8x256xf32>
    %cst_55 = arith.constant 5.000000e-01 : f32
    %110 = vector.broadcast %cst_55 : f32 to vector<8x256xf32>
    %111 = arith.mulf %110, %109 : vector<8x256xf32>
    %112 = math.tanh %111 : vector<8x256xf32>
    %cst_56 = arith.constant 5.000000e-01 : f32
    %113 = vector.broadcast %cst_56 : f32 to vector<8x256xf32>
    %114 = arith.mulf %113, %112 : vector<8x256xf32>
    %cst_57 = arith.constant 5.000000e-01 : f32
    %115 = vector.broadcast %cst_57 : f32 to vector<8x256xf32>
    %116 = arith.addf %114, %115 : vector<8x256xf32>
    %117 = vector.extract_strided_slice %99 {offsets = [0, 512], sizes = [8, 256], strides = [1, 1]} : vector<8x1024xf32> to vector<8x256xf32>
    %118 = math.tanh %117 : vector<8x256xf32>
    %119 = vector.extract_strided_slice %99 {offsets = [0, 768], sizes = [8, 256], strides = [1, 1]} : vector<8x1024xf32> to vector<8x256xf32>
    %cst_58 = arith.constant 5.000000e-01 : f32
    %120 = vector.broadcast %cst_58 : f32 to vector<8x256xf32>
    %121 = arith.mulf %120, %119 : vector<8x256xf32>
    %122 = math.tanh %121 : vector<8x256xf32>
    %cst_59 = arith.constant 5.000000e-01 : f32
    %123 = vector.broadcast %cst_59 : f32 to vector<8x256xf32>
    %124 = arith.mulf %123, %122 : vector<8x256xf32>
    %cst_60 = arith.constant 5.000000e-01 : f32
    %125 = vector.broadcast %cst_60 : f32 to vector<8x256xf32>
    %126 = arith.addf %124, %125 : vector<8x256xf32>
    %127 = arith.mulf %116, %100 : vector<8x256xf32>
    %128 = arith.mulf %108, %118 : vector<8x256xf32>
    %129 = arith.addf %127, %128 : vector<8x256xf32>
    %130 = math.tanh %129 : vector<8x256xf32>
    %131 = arith.mulf %126, %130 : vector<8x256xf32>
    %c0_61 = arith.constant 0 : index
    %c512 = arith.constant 512 : index
    %132 = vector.load %arg14[%c0_61, %c512] : memref<8x768xf32, #tpu.memory_space<vmem>>, vector<8x256xf32>
    tpu.vector_store %arg14[%c0_61, %c512], %129 {strides = array<i32>} : memref<8x768xf32, #tpu.memory_space<vmem>>, vector<8x256xf32>,
    %c0_62 = arith.constant 0 : index
    %c512_63 = arith.constant 512 : index
    %133 = vector.load %arg13[%c0_62, %c512_63] : memref<8x768xf32, #tpu.memory_space<vmem>>, vector<8x256xf32>
    tpu.vector_store %arg13[%c0_62, %c512_63], %131 {strides = array<i32>} : memref<8x768xf32, #tpu.memory_space<vmem>>, vector<8x256xf32>,
    return
  }
  func.func @transform_0(%arg0: i32) -> (i32, i32) {
    %c0_i32 = arith.constant 0 : i32
    %c0_i32_0 = arith.constant 0 : i32
    return %arg0, %c0_i32 : i32, i32
  }
  func.func @transform_1(%arg0: i32) -> (i32, i32) {
    %c0_i32 = arith.constant 0 : i32
    %c0_i32_0 = arith.constant 0 : i32
    return %arg0, %c0_i32 : i32, i32
  }
  func.func @transform_2(%arg0: i32) -> (i32, i32) {
    %c0_i32 = arith.constant 0 : i32
    %c0_i32_0 = arith.constant 0 : i32
    return %arg0, %c0_i32 : i32, i32
  }
  func.func @transform_3(%arg0: i32) -> (i32, i32) {
    %c0_i32 = arith.constant 0 : i32
    %c0_i32_0 = arith.constant 0 : i32
    %c0_i32_1 = arith.constant 0 : i32
    return %c0_i32, %c0_i32_0 : i32, i32
  }
  func.func @transform_4(%arg0: i32) -> (i32, i32) {
    %c0_i32 = arith.constant 0 : i32
    %c0_i32_0 = arith.constant 0 : i32
    %c0_i32_1 = arith.constant 0 : i32
    return %c0_i32, %c0_i32_0 : i32, i32
  }
  func.func @transform_5(%arg0: i32) -> (i32, i32) {
    %c0_i32 = arith.constant 0 : i32
    %c0_i32_0 = arith.constant 0 : i32
    %c0_i32_1 = arith.constant 0 : i32
    return %c0_i32, %c0_i32_0 : i32, i32
  }
  func.func @transform_6(%arg0: i32) -> (i32, i32) {
    %c0_i32 = arith.constant 0 : i32
    %c0_i32_0 = arith.constant 0 : i32
    %c0_i32_1 = arith.constant 0 : i32
    return %c0_i32, %c0_i32_0 : i32, i32
  }
  func.func @transform_7(%arg0: i32) -> (i32, i32) {
    %c0_i32 = arith.constant 0 : i32
    %c0_i32_0 = arith.constant 0 : i32
    %c0_i32_1 = arith.constant 0 : i32
    return %c0_i32, %c0_i32_0 : i32, i32
  }
  func.func @transform_8(%arg0: i32) -> (i32, i32) {
    %c0_i32 = arith.constant 0 : i32
    %c0_i32_0 = arith.constant 0 : i32
    %c0_i32_1 = arith.constant 0 : i32
    return %c0_i32, %c0_i32_0 : i32, i32
  }
  func.func @transform_9(%arg0: i32) -> (i32, i32) {
    %c0_i32 = arith.constant 0 : i32
    %c0_i32_0 = arith.constant 0 : i32
    %c0_i32_1 = arith.constant 0 : i32
    return %c0_i32, %c0_i32_0 : i32, i32
  }
  func.func @transform_10(%arg0: i32) -> (i32, i32) {
    %c0_i32 = arith.constant 0 : i32
    %c0_i32_0 = arith.constant 0 : i32
    %c0_i32_1 = arith.constant 0 : i32
    return %c0_i32, %c0_i32_0 : i32, i32
  }
  func.func @transform_11(%arg0: i32) -> (i32, i32) {
    %c0_i32 = arith.constant 0 : i32
    %c0_i32_0 = arith.constant 0 : i32
    %c0_i32_1 = arith.constant 0 : i32
    return %c0_i32, %c0_i32_0 : i32, i32
  }
  func.func @transform_12(%arg0: i32) -> (i32, i32) {
    %c0_i32 = arith.constant 0 : i32
    %c0_i32_0 = arith.constant 0 : i32
    return %arg0, %c0_i32 : i32, i32
  }
  func.func @transform_13(%arg0: i32) -> (i32, i32) {
    %c0_i32 = arith.constant 0 : i32
    %c0_i32_0 = arith.constant 0 : i32
    return %arg0, %c0_i32 : i32, i32
  }
}

module attributes {stable_mosaic.version = 11 : i64} {
  func.func @_decoder_kernel(%arg0: i32, %arg1: memref<8x384xf32, #tpu.memory_space<vmem>>, %arg2: memref<8x768xf32, #tpu.memory_space<vmem>>, %arg3: memref<8x768xf32, #tpu.memory_space<vmem>>, %arg4: memref<384x256xbf16, #tpu.memory_space<vmem>>, %arg5: memref<1x256xf32, #tpu.memory_space<vmem>>, %arg6: memref<256x1024xbf16, #tpu.memory_space<vmem>>, %arg7: memref<256x1024xbf16, #tpu.memory_space<vmem>>, %arg8: memref<1x1024xf32, #tpu.memory_space<vmem>>, %arg9: memref<512x1024xbf16, #tpu.memory_space<vmem>>, %arg10: memref<1x1024xf32, #tpu.memory_space<vmem>>, %arg11: memref<512x1024xbf16, #tpu.memory_space<vmem>>, %arg12: memref<1x1024xf32, #tpu.memory_space<vmem>>, %arg13: memref<8x768xf32, #tpu.memory_space<vmem>>, %arg14: memref<8x768xf32, #tpu.memory_space<vmem>>) attributes {dimension_semantics = [#tpu.dimension_semantics<parallel>], iteration_bounds = array<i64: 1>, scalar_prefetch = 0 : i64, scratch_operands = 0 : i64, tpu.core_type = #tpu.core_type<tc>, window_params = [{transform_indices = @transform_0, window_bounds = array<i64: 8, 384>}, {transform_indices = @transform_1, window_bounds = array<i64: 8, 768>}, {transform_indices = @transform_2, window_bounds = array<i64: 8, 768>}, {pipeline_mode = #tpu.pipeline_mode<synchronous>, transform_indices = @transform_3, window_bounds = array<i64: 384, 256>}, {pipeline_mode = #tpu.pipeline_mode<synchronous>, transform_indices = @transform_4, window_bounds = array<i64: 1, 256>}, {pipeline_mode = #tpu.pipeline_mode<synchronous>, transform_indices = @transform_5, window_bounds = array<i64: 256, 1024>}, {pipeline_mode = #tpu.pipeline_mode<synchronous>, transform_indices = @transform_6, window_bounds = array<i64: 256, 1024>}, {pipeline_mode = #tpu.pipeline_mode<synchronous>, transform_indices = @transform_7, window_bounds = array<i64: 1, 1024>}, {pipeline_mode = #tpu.pipeline_mode<synchronous>, transform_indices = @transform_8, window_bounds = array<i64: 512, 1024>}, {pipeline_mode = #tpu.pipeline_mode<synchronous>, transform_indices = @transform_9, window_bounds = array<i64: 1, 1024>}, {pipeline_mode = #tpu.pipeline_mode<synchronous>, transform_indices = @transform_10, window_bounds = array<i64: 512, 1024>}, {pipeline_mode = #tpu.pipeline_mode<synchronous>, transform_indices = @transform_11, window_bounds = array<i64: 1, 1024>}, {transform_indices = @transform_12, window_bounds = array<i64: 8, 768>}, {transform_indices = @transform_13, window_bounds = array<i64: 8, 768>}]} {
    %c0 = arith.constant 0 : index
    %c0_0 = arith.constant 0 : index
    %0 = vector.load %arg2[%c0, %c0_0] : memref<8x768xf32, #tpu.memory_space<vmem>>, vector<8x768xf32>
    %1 = arith.truncf %0 : vector<8x768xf32> to vector<8x768xbf16>
    %c0_1 = arith.constant 0 : index
    %c0_2 = arith.constant 0 : index
    %2 = vector.load %arg3[%c0_1, %c0_2] : memref<8x768xf32, #tpu.memory_space<vmem>>, vector<8x768xf32>
    %c0_3 = arith.constant 0 : index
    %c0_4 = arith.constant 0 : index
    %3 = vector.load %arg1[%c0_3, %c0_4] : memref<8x384xf32, #tpu.memory_space<vmem>>, vector<8x384xf32>
    %4 = arith.truncf %3 : vector<8x384xf32> to vector<8x384xbf16>
    %c0_5 = arith.constant 0 : index
    %c0_6 = arith.constant 0 : index
    %5 = vector.load %arg4[%c0_5, %c0_6] : memref<384x256xbf16, #tpu.memory_space<vmem>>, vector<384x256xbf16>
    %cst = arith.constant dense<0.000000e+00> : vector<8x256xf32>
    %6 = tpu.matmul %4, %5, %cst {dimension_numbers = #tpu.dot_dimension_numbers<[1], [0], [0], [1], [0, 0, 1, 1], [], []>} : vector<8x384xbf16>, vector<384x256xbf16>, vector<8x256xf32> -> vector<8x256xf32>
    %c0_7 = arith.constant 0 : index
    %c0_8 = arith.constant 0 : index
    %7 = vector.load %arg5[%c0_7, %c0_8] : memref<1x256xf32, #tpu.memory_space<vmem>>, vector<1x256xf32>
    %8 = vector.broadcast %7 : vector<1x256xf32> to vector<8x256xf32>
    %9 = arith.addf %6, %8 : vector<8x256xf32>
    %10 = arith.truncf %9 : vector<8x256xf32> to vector<8x256xbf16>
    %c0_9 = arith.constant 0 : index
    %c0_10 = arith.constant 0 : index
    %11 = vector.load %arg6[%c0_9, %c0_10] : memref<256x1024xbf16, #tpu.memory_space<vmem>>, vector<256x1024xbf16>
    %cst_11 = arith.constant dense<0.000000e+00> : vector<8x1024xf32>
    %12 = tpu.matmul %10, %11, %cst_11 {dimension_numbers = #tpu.dot_dimension_numbers<[1], [0], [0], [1], [0, 0, 1, 1], [], []>} : vector<8x256xbf16>, vector<256x1024xbf16>, vector<8x1024xf32> -> vector<8x1024xf32>
    %13 = vector.extract_strided_slice %1 {offsets = [0, 0], sizes = [8, 256], strides = [1, 1]} : vector<8x768xbf16> to vector<8x256xbf16>
    %c0_12 = arith.constant 0 : index
    %c0_13 = arith.constant 0 : index
    %14 = vector.load %arg7[%c0_12, %c0_13] : memref<256x1024xbf16, #tpu.memory_space<vmem>>, vector<256x1024xbf16>
    %cst_14 = arith.constant dense<0.000000e+00> : vector<8x1024xf32>
    %15 = tpu.matmul %13, %14, %cst_14 {dimension_numbers = #tpu.dot_dimension_numbers<[1], [0], [0], [1], [0, 0, 1, 1], [], []>} : vector<8x256xbf16>, vector<256x1024xbf16>, vector<8x1024xf32> -> vector<8x1024xf32>
    %16 = arith.addf %12, %15 : vector<8x1024xf32>
    %c0_15 = arith.constant 0 : index
    %c0_16 = arith.constant 0 : index
    %17 = vector.load %arg8[%c0_15, %c0_16] : memref<1x1024xf32, #tpu.memory_space<vmem>>, vector<1x1024xf32>
    %18 = vector.broadcast %17 : vector<1x1024xf32> to vector<8x1024xf32>
    %19 = arith.addf %16, %18 : vector<8x1024xf32>
    %20 = vector.extract_strided_slice %2 {offsets = [0, 0], sizes = [8, 256], strides = [1, 1]} : vector<8x768xf32> to vector<8x256xf32>
    %21 = vector.extract_strided_slice %19 {offsets = [0, 0], sizes = [8, 256], strides = [1, 1]} : vector<8x1024xf32> to vector<8x256xf32>
    %cst_17 = arith.constant 5.000000e-01 : f32
    %22 = vector.broadcast %cst_17 : f32 to vector<8x256xf32>
    %23 = arith.mulf %22, %21 : vector<8x256xf32>
    %24 = math.tanh %23 : vector<8x256xf32>
    %cst_18 = arith.constant 5.000000e-01 : f32
    %25 = vector.broadcast %cst_18 : f32 to vector<8x256xf32>
    %26 = arith.mulf %25, %24 : vector<8x256xf32>
    %cst_19 = arith.constant 5.000000e-01 : f32
    %27 = vector.broadcast %cst_19 : f32 to vector<8x256xf32>
    %28 = arith.addf %26, %27 : vector<8x256xf32>
    %29 = vector.extract_strided_slice %19 {offsets = [0, 256], sizes = [8, 256], strides = [1, 1]} : vector<8x1024xf32> to vector<8x256xf32>
    %cst_20 = arith.constant 5.000000e-01 : f32
    %30 = vector.broadcast %cst_20 : f32 to vector<8x256xf32>
    %31 = arith.mulf %30, %29 : vector<8x256xf32>
    %32 = math.tanh %31 : vector<8x256xf32>
    %cst_21 = arith.constant 5.000000e-01 : f32
    %33 = vector.broadcast %cst_21 : f32 to vector<8x256xf32>
    %34 = arith.mulf %33, %32 : vector<8x256xf32>
    %cst_22 = arith.constant 5.000000e-01 : f32
    %35 = vector.broadcast %cst_22 : f32 to vector<8x256xf32>
    %36 = arith.addf %34, %35 : vector<8x256xf32>
    %37 = vector.extract_strided_slice %19 {offsets = [0, 512], sizes = [8, 256], strides = [1, 1]} : vector<8x1024xf32> to vector<8x256xf32>
    %38 = math.tanh %37 : vector<8x256xf32>
    %39 = vector.extract_strided_slice %19 {offsets = [0, 768], sizes = [8, 256], strides = [1, 1]} : vector<8x1024xf32> to vector<8x256xf32>
    %cst_23 = arith.constant 5.000000e-01 : f32
    %40 = vector.broadcast %cst_23 : f32 to vector<8x256xf32>
    %41 = arith.mulf %40, %39 : vector<8x256xf32>
    %42 = math.tanh %41 : vector<8x256xf32>
    %cst_24 = arith.constant 5.000000e-01 : f32
    %43 = vector.broadcast %cst_24 : f32 to vector<8x256xf32>
    %44 = arith.mulf %43, %42 : vector<8x256xf32>
    %cst_25 = arith.constant 5.000000e-01 : f32
    %45 = vector.broadcast %cst_25 : f32 to vector<8x256xf32>
    %46 = arith.addf %44, %45 : vector<8x256xf32>
    %47 = arith.mulf %36, %20 : vector<8x256xf32>
    %48 = arith.mulf %28, %38 : vector<8x256xf32>
    %49 = arith.addf %47, %48 : vector<8x256xf32>
    %50 = math.tanh %49 : vector<8x256xf32>
    %51 = arith.mulf %46, %50 : vector<8x256xf32>
    %c0_26 = arith.constant 0 : index
    %c0_27 = arith.constant 0 : index
    %52 = vector.load %arg14[%c0_26, %c0_27] : memref<8x768xf32, #tpu.memory_space<vmem>>, vector<8x256xf32>
    tpu.vector_store %arg14[%c0_26, %c0_27], %49 {strides = array<i32>} : memref<8x768xf32, #tpu.memory_space<vmem>>, vector<8x256xf32>,
    %c0_28 = arith.constant 0 : index
    %c0_29 = arith.constant 0 : index
    %53 = vector.load %arg13[%c0_28, %c0_29] : memref<8x768xf32, #tpu.memory_space<vmem>>, vector<8x256xf32>
    tpu.vector_store %arg13[%c0_28, %c0_29], %51 {strides = array<i32>} : memref<8x768xf32, #tpu.memory_space<vmem>>, vector<8x256xf32>,
    %54 = vector.extract_strided_slice %1 {offsets = [0, 0], sizes = [8, 512], strides = [1, 1]} : vector<8x768xbf16> to vector<8x512xbf16>
    %c0_30 = arith.constant 0 : index
    %c0_31 = arith.constant 0 : index
    %55 = vector.load %arg9[%c0_30, %c0_31] : memref<512x1024xbf16, #tpu.memory_space<vmem>>, vector<512x1024xbf16>
    %cst_32 = arith.constant dense<0.000000e+00> : vector<8x1024xf32>
    %56 = tpu.matmul %54, %55, %cst_32 {dimension_numbers = #tpu.dot_dimension_numbers<[1], [0], [0], [1], [0, 0, 1, 1], [], []>} : vector<8x512xbf16>, vector<512x1024xbf16>, vector<8x1024xf32> -> vector<8x1024xf32>
    %c0_33 = arith.constant 0 : index
    %c0_34 = arith.constant 0 : index
    %57 = vector.load %arg10[%c0_33, %c0_34] : memref<1x1024xf32, #tpu.memory_space<vmem>>, vector<1x1024xf32>
    %58 = vector.broadcast %57 : vector<1x1024xf32> to vector<8x1024xf32>
    %59 = arith.addf %56, %58 : vector<8x1024xf32>
    %60 = vector.extract_strided_slice %2 {offsets = [0, 256], sizes = [8, 256], strides = [1, 1]} : vector<8x768xf32> to vector<8x256xf32>
    %61 = vector.extract_strided_slice %59 {offsets = [0, 0], sizes = [8, 256], strides = [1, 1]} : vector<8x1024xf32> to vector<8x256xf32>
    %cst_35 = arith.constant 5.000000e-01 : f32
    %62 = vector.broadcast %cst_35 : f32 to vector<8x256xf32>
    %63 = arith.mulf %62, %61 : vector<8x256xf32>
    %64 = math.tanh %63 : vector<8x256xf32>
    %cst_36 = arith.constant 5.000000e-01 : f32
    %65 = vector.broadcast %cst_36 : f32 to vector<8x256xf32>
    %66 = arith.mulf %65, %64 : vector<8x256xf32>
    %cst_37 = arith.constant 5.000000e-01 : f32
    %67 = vector.broadcast %cst_37 : f32 to vector<8x256xf32>
    %68 = arith.addf %66, %67 : vector<8x256xf32>
    %69 = vector.extract_strided_slice %59 {offsets = [0, 256], sizes = [8, 256], strides = [1, 1]} : vector<8x1024xf32> to vector<8x256xf32>
    %cst_38 = arith.constant 5.000000e-01 : f32
    %70 = vector.broadcast %cst_38 : f32 to vector<8x256xf32>
    %71 = arith.mulf %70, %69 : vector<8x256xf32>
    %72 = math.tanh %71 : vector<8x256xf32>
    %cst_39 = arith.constant 5.000000e-01 : f32
    %73 = vector.broadcast %cst_39 : f32 to vector<8x256xf32>
    %74 = arith.mulf %73, %72 : vector<8x256xf32>
    %cst_40 = arith.constant 5.000000e-01 : f32
    %75 = vector.broadcast %cst_40 : f32 to vector<8x256xf32>
    %76 = arith.addf %74, %75 : vector<8x256xf32>
    %77 = vector.extract_strided_slice %59 {offsets = [0, 512], sizes = [8, 256], strides = [1, 1]} : vector<8x1024xf32> to vector<8x256xf32>
    %78 = math.tanh %77 : vector<8x256xf32>
    %79 = vector.extract_strided_slice %59 {offsets = [0, 768], sizes = [8, 256], strides = [1, 1]} : vector<8x1024xf32> to vector<8x256xf32>
    %cst_41 = arith.constant 5.000000e-01 : f32
    %80 = vector.broadcast %cst_41 : f32 to vector<8x256xf32>
    %81 = arith.mulf %80, %79 : vector<8x256xf32>
    %82 = math.tanh %81 : vector<8x256xf32>
    %cst_42 = arith.constant 5.000000e-01 : f32
    %83 = vector.broadcast %cst_42 : f32 to vector<8x256xf32>
    %84 = arith.mulf %83, %82 : vector<8x256xf32>
    %cst_43 = arith.constant 5.000000e-01 : f32
    %85 = vector.broadcast %cst_43 : f32 to vector<8x256xf32>
    %86 = arith.addf %84, %85 : vector<8x256xf32>
    %87 = arith.mulf %76, %60 : vector<8x256xf32>
    %88 = arith.mulf %68, %78 : vector<8x256xf32>
    %89 = arith.addf %87, %88 : vector<8x256xf32>
    %90 = math.tanh %89 : vector<8x256xf32>
    %91 = arith.mulf %86, %90 : vector<8x256xf32>
    %c0_44 = arith.constant 0 : index
    %c256 = arith.constant 256 : index
    %92 = vector.load %arg14[%c0_44, %c256] : memref<8x768xf32, #tpu.memory_space<vmem>>, vector<8x256xf32>
    tpu.vector_store %arg14[%c0_44, %c256], %89 {strides = array<i32>} : memref<8x768xf32, #tpu.memory_space<vmem>>, vector<8x256xf32>,
    %c0_45 = arith.constant 0 : index
    %c256_46 = arith.constant 256 : index
    %93 = vector.load %arg13[%c0_45, %c256_46] : memref<8x768xf32, #tpu.memory_space<vmem>>, vector<8x256xf32>
    tpu.vector_store %arg13[%c0_45, %c256_46], %91 {strides = array<i32>} : memref<8x768xf32, #tpu.memory_space<vmem>>, vector<8x256xf32>,
    %94 = vector.extract_strided_slice %1 {offsets = [0, 256], sizes = [8, 512], strides = [1, 1]} : vector<8x768xbf16> to vector<8x512xbf16>
    %c0_47 = arith.constant 0 : index
    %c0_48 = arith.constant 0 : index
    %95 = vector.load %arg11[%c0_47, %c0_48] : memref<512x1024xbf16, #tpu.memory_space<vmem>>, vector<512x1024xbf16>
    %cst_49 = arith.constant dense<0.000000e+00> : vector<8x1024xf32>
    %96 = tpu.matmul %94, %95, %cst_49 {dimension_numbers = #tpu.dot_dimension_numbers<[1], [0], [0], [1], [0, 0, 1, 1], [], []>} : vector<8x512xbf16>, vector<512x1024xbf16>, vector<8x1024xf32> -> vector<8x1024xf32>
    %c0_50 = arith.constant 0 : index
    %c0_51 = arith.constant 0 : index
    %97 = vector.load %arg12[%c0_50, %c0_51] : memref<1x1024xf32, #tpu.memory_space<vmem>>, vector<1x1024xf32>
    %98 = vector.broadcast %97 : vector<1x1024xf32> to vector<8x1024xf32>
    %99 = arith.addf %96, %98 : vector<8x1024xf32>
    %100 = vector.extract_strided_slice %2 {offsets = [0, 512], sizes = [8, 256], strides = [1, 1]} : vector<8x768xf32> to vector<8x256xf32>
    %101 = vector.extract_strided_slice %99 {offsets = [0, 0], sizes = [8, 256], strides = [1, 1]} : vector<8x1024xf32> to vector<8x256xf32>
    %cst_52 = arith.constant 5.000000e-01 : f32
    %102 = vector.broadcast %cst_52 : f32 to vector<8x256xf32>
    %103 = arith.mulf %102, %101 : vector<8x256xf32>
    %104 = math.tanh %103 : vector<8x256xf32>
    %cst_53 = arith.constant 5.000000e-01 : f32
    %105 = vector.broadcast %cst_53 : f32 to vector<8x256xf32>
    %106 = arith.mulf %105, %104 : vector<8x256xf32>
    %cst_54 = arith.constant 5.000000e-01 : f32
    %107 = vector.broadcast %cst_54 : f32 to vector<8x256xf32>
    %108 = arith.addf %106, %107 : vector<8x256xf32>
    %109 = vector.extract_strided_slice %99 {offsets = [0, 256], sizes = [8, 256], strides = [1, 1]} : vector<8x1024xf32> to vector<8x256xf32>
    %cst_55 = arith.constant 5.000000e-01 : f32
    %110 = vector.broadcast %cst_55 : f32 to vector<8x256xf32>
    %111 = arith.mulf %110, %109 : vector<8x256xf32>
    %112 = math.tanh %111 : vector<8x256xf32>
    %cst_56 = arith.constant 5.000000e-01 : f32
    %113 = vector.broadcast %cst_56 : f32 to vector<8x256xf32>
    %114 = arith.mulf %113, %112 : vector<8x256xf32>
    %cst_57 = arith.constant 5.000000e-01 : f32
    %115 = vector.broadcast %cst_57 : f32 to vector<8x256xf32>
    %116 = arith.addf %114, %115 : vector<8x256xf32>
    %117 = vector.extract_strided_slice %99 {offsets = [0, 512], sizes = [8, 256], strides = [1, 1]} : vector<8x1024xf32> to vector<8x256xf32>
    %118 = math.tanh %117 : vector<8x256xf32>
    %119 = vector.extract_strided_slice %99 {offsets = [0, 768], sizes = [8, 256], strides = [1, 1]} : vector<8x1024xf32> to vector<8x256xf32>
    %cst_58 = arith.constant 5.000000e-01 : f32
    %120 = vector.broadcast %cst_58 : f32 to vector<8x256xf32>
    %121 = arith.mulf %120, %119 : vector<8x256xf32>
    %122 = math.tanh %121 : vector<8x256xf32>
    %cst_59 = arith.constant 5.000000e-01 : f32
    %123 = vector.broadcast %cst_59 : f32 to vector<8x256xf32>
    %124 = arith.mulf %123, %122 : vector<8x256xf32>
    %cst_60 = arith.constant 5.000000e-01 : f32
    %125 = vector.broadcast %cst_60 : f32 to vector<8x256xf32>
    %126 = arith.addf %124, %125 : vector<8x256xf32>
    %127 = arith.mulf %116, %100 : vector<8x256xf32>
    %128 = arith.mulf %108, %118 : vector<8x256xf32>
    %129 = arith.addf %127, %128 : vector<8x256xf32>
    %130 = math.tanh %129 : vector<8x256xf32>
    %131 = arith.mulf %126, %130 : vector<8x256xf32>
    %c0_61 = arith.constant 0 : index
    %c512 = arith.constant 512 : index
    %132 = vector.load %arg14[%c0_61, %c512] : memref<8x768xf32, #tpu.memory_space<vmem>>, vector<8x256xf32>
    tpu.vector_store %arg14[%c0_61, %c512], %129 {strides = array<i32>} : memref<8x768xf32, #tpu.memory_space<vmem>>, vector<8x256xf32>,
    %c0_62 = arith.constant 0 : index
    %c512_63 = arith.constant 512 : index
    %133 = vector.load %arg13[%c0_62, %c512_63] : memref<8x768xf32, #tpu.memory_space<vmem>>, vector<8x256xf32>
    tpu.vector_store %arg13[%c0_62, %c512_63], %131 {strides = array<i32>} : memref<8x768xf32, #tpu.memory_space<vmem>>, vector<8x256xf32>,
    return
  }
  func.func @transform_0(%arg0: i32) -> (i32, i32) {
    %c0_i32 = arith.constant 0 : i32
    %c0_i32_0 = arith.constant 0 : i32
    return %arg0, %c0_i32 : i32, i32
  }
  func.func @transform_1(%arg0: i32) -> (i32, i32) {
    %c0_i32 = arith.constant 0 : i32
    %c0_i32_0 = arith.constant 0 : i32
    return %arg0, %c0_i32 : i32, i32
  }
  func.func @transform_2(%arg0: i32) -> (i32, i32) {
    %c0_i32 = arith.constant 0 : i32
    %c0_i32_0 = arith.constant 0 : i32
    return %arg0, %c0_i32 : i32, i32
  }
  func.func @transform_3(%arg0: i32) -> (i32, i32) {
    %c0_i32 = arith.constant 0 : i32
    %c0_i32_0 = arith.constant 0 : i32
    %c0_i32_1 = arith.constant 0 : i32
    return %c0_i32, %c0_i32_0 : i32, i32
  }
  func.func @transform_4(%arg0: i32) -> (i32, i32) {
    %c0_i32 = arith.constant 0 : i32
    %c0_i32_0 = arith.constant 0 : i32
    %c0_i32_1 = arith.constant 0 : i32
    return %c0_i32, %c0_i32_0 : i32, i32
  }
  func.func @transform_5(%arg0: i32) -> (i32, i32) {
    %c0_i32 = arith.constant 0 : i32
    %c0_i32_0 = arith.constant 0 : i32
    %c0_i32_1 = arith.constant 0 : i32
    return %c0_i32, %c0_i32_0 : i32, i32
  }
  func.func @transform_6(%arg0: i32) -> (i32, i32) {
    %c0_i32 = arith.constant 0 : i32
    %c0_i32_0 = arith.constant 0 : i32
    %c0_i32_1 = arith.constant 0 : i32
    return %c0_i32, %c0_i32_0 : i32, i32
  }
  func.func @transform_7(%arg0: i32) -> (i32, i32) {
    %c0_i32 = arith.constant 0 : i32
    %c0_i32_0 = arith.constant 0 : i32
    %c0_i32_1 = arith.constant 0 : i32
    return %c0_i32, %c0_i32_0 : i32, i32
  }
  func.func @transform_8(%arg0: i32) -> (i32, i32) {
    %c0_i32 = arith.constant 0 : i32
    %c0_i32_0 = arith.constant 0 : i32
    %c0_i32_1 = arith.constant 0 : i32
    return %c0_i32, %c0_i32_0 : i32, i32
  }
  func.func @transform_9(%arg0: i32) -> (i32, i32) {
    %c0_i32 = arith.constant 0 : i32
    %c0_i32_0 = arith.constant 0 : i32
    %c0_i32_1 = arith.constant 0 : i32
    return %c0_i32, %c0_i32_0 : i32, i32
  }
  func.func @transform_10(%arg0: i32) -> (i32, i32) {
    %c0_i32 = arith.constant 0 : i32
    %c0_i32_0 = arith.constant 0 : i32
    %c0_i32_1 = arith.constant 0 : i32
    return %c0_i32, %c0_i32_0 : i32, i32
  }
  func.func @transform_11(%arg0: i32) -> (i32, i32) {
    %c0_i32 = arith.constant 0 : i32
    %c0_i32_0 = arith.constant 0 : i32
    %c0_i32_1 = arith.constant 0 : i32
    return %c0_i32, %c0_i32_0 : i32, i32
  }
  func.func @transform_12(%arg0: i32) -> (i32, i32) {
    %c0_i32 = arith.constant 0 : i32
    %c0_i32_0 = arith.constant 0 : i32
    return %arg0, %c0_i32 : i32, i32
  }
  func.func @transform_13(%arg0: i32) -> (i32, i32) {
    %c0_i32 = arith.constant 0 : i32
    %c0_i32_0 = arith.constant 0 : i32
    return %arg0, %c0_i32 : i32, i32
  }
}

</mosaic_0001>

<llo_original>
// kernel: decoder_forward.1
$region0: #{decoder_forward.1}
  #allocation0 [shape = 'u32[]', space=smem, size = 0x4, offset = 0x4, fixed_abs, tag = 'smem constant byte address 0x4 - core index']
  #allocation1 [shape = 'u32[144,128]{1,0:T(1,128)}', space=vmem, size = 0x12000, scoped, tag = 'internal scratch']
  %s0 = inlined_call_operand.vmem [shape: f32[8,384], index: 0, kind: input, shape index: {}]
  %s1 = inlined_call_operand.vmem [shape: f32[8,768], index: 1, kind: input, shape index: {}]
  %s2 = inlined_call_operand.vmem [shape: f32[8,768], index: 2, kind: input, shape index: {}]
  %s3 = inlined_call_operand.vmem [shape: bf16[384,256], index: 3, kind: input, shape index: {}]
  %s4 = inlined_call_operand.vmem [shape: f32[1,256], index: 4, kind: input, shape index: {}]
  %s5 = inlined_call_operand.vmem [shape: bf16[256,1024], index: 5, kind: input, shape index: {}]
  %s6 = inlined_call_operand.vmem [shape: bf16[256,1024], index: 6, kind: input, shape index: {}]
  %s7 = inlined_call_operand.vmem [shape: f32[1,1024], index: 7, kind: input, shape index: {}]
  %s8 = inlined_call_operand.vmem [shape: bf16[512,1024], index: 8, kind: input, shape index: {}]
  %s9 = inlined_call_operand.vmem [shape: f32[1,1024], index: 9, kind: input, shape index: {}]
  %s10 = inlined_call_operand.vmem [shape: bf16[512,1024], index: 10, kind: input, shape index: {}]
  %s11 = inlined_call_operand.vmem [shape: f32[1,1024], index: 11, kind: input, shape index: {}]
  %s12 = inlined_call_operand.vmem [shape: f32[8,768], index: 12, kind: output, shape index: {0}]
  %s13 = inlined_call_operand.vmem [shape: f32[8,768], index: 13, kind: output, shape index: {1}]
  %14 = xla_tuple %s12, %s13
  %s15 = sld [smem:[#allocation0]]
  $region66: #{decoder_forward.1} parent=0
    _
  %s17 = ssub.s32 1, %s15
  %s18 = scalar_select 0, %s17, %s15
  // Predicated region
  $region2: #{decoder_forward.1} parent=0 // pred_check
    _
  $region3: #{decoder_forward.1} parent=0 // pred_check_branch
    %20 = sbr.rel (0) target = $region5
  $region4: #{decoder_forward.1} parent=0 // pred_region
    _
  $region5: #{decoder_forward.1} parent=0 // pred_fallthru
    _
  // Predicated region
  $region6: #{decoder_forward.1} parent=0 // pred_check
    _
  $region7: #{decoder_forward.1} parent=0 // pred_check_branch
    %22 = sbr.rel (0) target = $region9
  $region8: #{decoder_forward.1} parent=0 // pred_region
    _
  $region9: #{decoder_forward.1} parent=0 // pred_fallthru
    _
  // Predicated region
  $region10: #{decoder_forward.1} parent=0 // pred_check
    _
  $region11: #{decoder_forward.1} parent=0 // pred_check_branch
    %24 = sbr.rel (0) target = $region13
  $region12: #{decoder_forward.1} parent=0 // pred_region
    _
  $region13: #{decoder_forward.1} parent=0 // pred_fallthru
    _
  // Predicated region
  $region14: #{decoder_forward.1} parent=0 // pred_check
    _
  $region15: #{decoder_forward.1} parent=0 // pred_check_branch
    %26 = sbr.rel (0) target = $region17
  $region16: #{decoder_forward.1} parent=0 // pred_region
    _
  $region17: #{decoder_forward.1} parent=0 // pred_fallthru
    _
  // Predicated region
  $region18: #{decoder_forward.1} parent=0 // pred_check
    _
  $region19: #{decoder_forward.1} parent=0 // pred_check_branch
    %28 = sbr.rel (0) target = $region21
  $region20: #{decoder_forward.1} parent=0 // pred_region
    _
  $region21: #{decoder_forward.1} parent=0 // pred_fallthru
    _
  // Predicated region
  $region22: #{decoder_forward.1} parent=0 // pred_check
    _
  $region23: #{decoder_forward.1} parent=0 // pred_check_branch
    %30 = sbr.rel (0) target = $region25
  $region24: #{decoder_forward.1} parent=0 // pred_region
    _
  $region25: #{decoder_forward.1} parent=0 // pred_fallthru
    _
  // Predicated region
  $region26: #{decoder_forward.1} parent=0 // pred_check
    _
  $region27: #{decoder_forward.1} parent=0 // pred_check_branch
    %32 = sbr.rel (0) target = $region29
  $region28: #{decoder_forward.1} parent=0 // pred_region
    _
  $region29: #{decoder_forward.1} parent=0 // pred_fallthru
    _
  // Predicated region
  $region30: #{decoder_forward.1} parent=0 // pred_check
    _
  $region31: #{decoder_forward.1} parent=0 // pred_check_branch
    %34 = sbr.rel (0) target = $region33
  $region32: #{decoder_forward.1} parent=0 // pred_region
    _
  $region33: #{decoder_forward.1} parent=0 // pred_fallthru
    _
  // Predicated region
  $region34: #{decoder_forward.1} parent=0 // pred_check
    _
  $region35: #{decoder_forward.1} parent=0 // pred_check_branch
    %36 = sbr.rel (0) target = $region37
  $region36: #{decoder_forward.1} parent=0 // pred_region
    _
  $region37: #{decoder_forward.1} parent=0 // pred_fallthru
    _
  // Predicated region
  $region38: #{decoder_forward.1} parent=0 // pred_check
    _
  $region39: #{decoder_forward.1} parent=0 // pred_check_branch
    %38 = sbr.rel (0) target = $region41
  $region40: #{decoder_forward.1} parent=0 // pred_region
    _
  $region41: #{decoder_forward.1} parent=0 // pred_fallthru
    _
  // Predicated region
  $region42: #{decoder_forward.1} parent=0 // pred_check
    _
  $region43: #{decoder_forward.1} parent=0 // pred_check_branch
    %40 = sbr.rel (0) target = $region45
  $region44: #{decoder_forward.1} parent=0 // pred_region
    _
  $region45: #{decoder_forward.1} parent=0 // pred_fallthru
    _
  // Predicated region
  $region46: #{decoder_forward.1} parent=0 // pred_check
    _
  $region47: #{decoder_forward.1} parent=0 // pred_check_branch
    %42 = sbr.rel (0) target = $region49
  $region48: #{decoder_forward.1} parent=0 // pred_region
    _
  $region49: #{decoder_forward.1} parent=0 // pred_fallthru
    _
  %v44 = vld [vmem:[%s1] sm:$0xff]
  %v45 = vld [vmem:[%s1 + $0x8] sm:$0xff]
  %v46 = vld [vmem:[%s1 + $0x10] sm:$0xff]
  %v47 = vld [vmem:[%s1 + $0x18] sm:$0xff]
  %v48 = vld [vmem:[%s1 + $0x20] sm:$0xff]
  %v49 = vld [vmem:[%s1 + $0x28] sm:$0xff]
  %v50 = vpack.c.bf16 %v44, %v44
  %v51 = vpack.c.bf16 %v45, %v45
  %v52 = vpack.c.bf16 %v46, %v46
  %v53 = vpack.c.bf16 %v47, %v47
  %v54 = vpack.c.bf16 %v48, %v48
  %v55 = vpack.c.bf16 %v49, %v49
  %v56 = vld [vmem:[%s2] sm:$0xff]
  %v57 = vld [vmem:[%s2 + $0x8] sm:$0xff]
  %v58 = vld [vmem:[%s2 + $0x10] sm:$0xff]
  %v59 = vld [vmem:[%s2 + $0x18] sm:$0xff]
  %v60 = vld [vmem:[%s2 + $0x20] sm:$0xff]
  %v61 = vld [vmem:[%s2 + $0x28] sm:$0xff]
  %v62 = vld [vmem:[%s0] sm:$0xff]
  %v63 = vld [vmem:[%s0 + $0x8] sm:$0xff]
  %v64 = vld [vmem:[%s0 + $0x10] sm:$0xff]
  %v65 = vpack.c.bf16 %v62, %v62
  %v66 = vpack.c.bf16 %v63, %v63
  %v67 = vpack.c.bf16 %v64, %v64
  %v68 = vld [vmem:[%s3] sm:$0xff]
  %v69 = vld [vmem:[%s3 + $0x8] sm:$0xff]
  %v70 = vld [vmem:[%s3 + $0x10] sm:$0xff]
  %v71 = vld [vmem:[%s3 + $0x18] sm:$0xff]
  %v72 = vld [vmem:[%s3 + $0x20] sm:$0xff]
  %v73 = vld [vmem:[%s3 + $0x28] sm:$0xff]
  %v74 = vld [vmem:[%s3 + $0x30] sm:$0xff]
  %v75 = vld [vmem:[%s3 + $0x38] sm:$0xff]
  %v76 = vld [vmem:[%s3 + $0x40] sm:$0xff]
  %v77 = vld [vmem:[%s3 + $0x48] sm:$0xff]
  %v78 = vld [vmem:[%s3 + $0x50] sm:$0xff]
  %v79 = vld [vmem:[%s3 + $0x58] sm:$0xff]
  %v80 = vld [vmem:[%s3 + $0x60] sm:$0xff]
  %v81 = vld [vmem:[%s3 + $0x68] sm:$0xff]
  %v82 = vld [vmem:[%s3 + $0x70] sm:$0xff]
  %v83 = vld [vmem:[%s3 + $0x78] sm:$0xff]
  %v84 = vld [vmem:[%s3 + $0x80] sm:$0xff]
  %v85 = vld [vmem:[%s3 + $0x88] sm:$0xff]
  %v86 = vld [vmem:[%s3 + $0x90] sm:$0xff]
  %v87 = vld [vmem:[%s3 + $0x98] sm:$0xff]
  %v88 = vld [vmem:[%s3 + $0xa0] sm:$0xff]
  %v89 = vld [vmem:[%s3 + $0xa8] sm:$0xff]
  %v90 = vld [vmem:[%s3 + $0xb0] sm:$0xff]
  %v91 = vld [vmem:[%s3 + $0xb8] sm:$0xff]
  %v92 = vld [vmem:[%s3 + $0xc0] sm:$0xff]
  %v93 = vld [vmem:[%s3 + $0xc8] sm:$0xff]
  %v94 = vld [vmem:[%s3 + $0xd0] sm:$0xff]
  %v95 = vld [vmem:[%s3 + $0xd8] sm:$0xff]
  %v96 = vld [vmem:[%s3 + $0xe0] sm:$0xff]
  %v97 = vld [vmem:[%s3 + $0xe8] sm:$0xff]
  %v98 = vld [vmem:[%s3 + $0xf0] sm:$0xff]
  %v99 = vld [vmem:[%s3 + $0xf8] sm:$0xff]
  %v100 = vld [vmem:[%s3 + $0x100] sm:$0xff]
  %v101 = vld [vmem:[%s3 + $0x108] sm:$0xff]
  %v102 = vld [vmem:[%s3 + $0x110] sm:$0xff]
  %v103 = vld [vmem:[%s3 + $0x118] sm:$0xff]
  %v104 = vld [vmem:[%s3 + $0x120] sm:$0xff]
  %v105 = vld [vmem:[%s3 + $0x128] sm:$0xff]
  %v106 = vld [vmem:[%s3 + $0x130] sm:$0xff]
  %v107 = vld [vmem:[%s3 + $0x138] sm:$0xff]
  %v108 = vld [vmem:[%s3 + $0x140] sm:$0xff]
  %v109 = vld [vmem:[%s3 + $0x148] sm:$0xff]
  %v110 = vld [vmem:[%s3 + $0x150] sm:$0xff]
  %v111 = vld [vmem:[%s3 + $0x158] sm:$0xff]
  %v112 = vld [vmem:[%s3 + $0x160] sm:$0xff]
  %v113 = vld [vmem:[%s3 + $0x168] sm:$0xff]
  %v114 = vld [vmem:[%s3 + $0x170] sm:$0xff]
  %v115 = vld [vmem:[%s3 + $0x178] sm:$0xff]
  %v116 = vld [vmem:[%s4] sm:$0x3]
  %v118 = vlaneseq
  %v119 = vshrl.u32 %v118, 7
  %v120 = vsub.s32 0, %v119
  %v121 = vrot.slane %v116, %v120
  %v122 = vlaneseq
  %v123 = vshrl.u32 %v122, 7
  %v124 = vsub.s32 1, %v123
  %v125 = vrot.slane %v116, %v124
  %v176 = vunpack.c.l.b16 %v68
  %v177 = vunpack.c.h.b16 %v68
  %v178 = vunpack.c.l.b16 %v69
  %v179 = vunpack.c.h.b16 %v69
  %v180 = vunpack.c.l.b16 %v70
  %v181 = vunpack.c.h.b16 %v70
  %v182 = vunpack.c.l.b16 %v71
  %v183 = vunpack.c.h.b16 %v71
  %v184 = vunpack.c.l.b16 %v72
  %v185 = vunpack.c.h.b16 %v72
  %v186 = vunpack.c.l.b16 %v73
  %v187 = vunpack.c.h.b16 %v73
  %v188 = vunpack.c.l.b16 %v74
  %v189 = vunpack.c.h.b16 %v74
  %v190 = vunpack.c.l.b16 %v75
  %v191 = vunpack.c.h.b16 %v75
  %v192 = vunpack.c.l.b16 %v76
  %v193 = vunpack.c.h.b16 %v76
  %v194 = vunpack.c.l.b16 %v77
  %v195 = vunpack.c.h.b16 %v77
  %v196 = vunpack.c.l.b16 %v78
  %v197 = vunpack.c.h.b16 %v78
  %v198 = vunpack.c.l.b16 %v79
  %v199 = vunpack.c.h.b16 %v79
  %v200 = vunpack.c.l.b16 %v80
  %v201 = vunpack.c.h.b16 %v80
  %v202 = vunpack.c.l.b16 %v81
  %v203 = vunpack.c.h.b16 %v81
  %v204 = vunpack.c.l.b16 %v82
  %v205 = vunpack.c.h.b16 %v82
  %v206 = vunpack.c.l.b16 %v83
  %v207 = vunpack.c.h.b16 %v83
  %v208 = vunpack.c.l.b16 %v84
  %v209 = vunpack.c.h.b16 %v84
  %v210 = vunpack.c.l.b16 %v85
  %v211 = vunpack.c.h.b16 %v85
  %v212 = vunpack.c.l.b16 %v86
  %v213 = vunpack.c.h.b16 %v86
  %v214 = vunpack.c.l.b16 %v87
  %v215 = vunpack.c.h.b16 %v87
  %v216 = vunpack.c.l.b16 %v88
  %v217 = vunpack.c.h.b16 %v88
  %v218 = vunpack.c.l.b16 %v89
  %v219 = vunpack.c.h.b16 %v89
  %v220 = vunpack.c.l.b16 %v90
  %v221 = vunpack.c.h.b16 %v90
  %v222 = vunpack.c.l.b16 %v91
  %v223 = vunpack.c.h.b16 %v91
  %v224 = vunpack.c.l.b16 %v92
  %v225 = vunpack.c.h.b16 %v92
  %v226 = vunpack.c.l.b16 %v93
  %v227 = vunpack.c.h.b16 %v93
  %v228 = vunpack.c.l.b16 %v94
  %v229 = vunpack.c.h.b16 %v94
  %v230 = vunpack.c.l.b16 %v95
  %v231 = vunpack.c.h.b16 %v95
  %v232 = vunpack.c.l.b16 %v96
  %v233 = vunpack.c.h.b16 %v96
  %v234 = vunpack.c.l.b16 %v97
  %v235 = vunpack.c.h.b16 %v97
  %v236 = vunpack.c.l.b16 %v98
  %v237 = vunpack.c.h.b16 %v98
  %v238 = vunpack.c.l.b16 %v99
  %v239 = vunpack.c.h.b16 %v99
  %v240 = vunpack.c.l.b16 %v100
  %v241 = vunpack.c.h.b16 %v100
  %v242 = vunpack.c.l.b16 %v101
  %v243 = vunpack.c.h.b16 %v101
  %v244 = vunpack.c.l.b16 %v102
  %v245 = vunpack.c.h.b16 %v102
  %v246 = vunpack.c.l.b16 %v103
  %v247 = vunpack.c.h.b16 %v103
  %v248 = vunpack.c.l.b16 %v104
  %v249 = vunpack.c.h.b16 %v104
  %v250 = vunpack.c.l.b16 %v105
  %v251 = vunpack.c.h.b16 %v105
  %v252 = vunpack.c.l.b16 %v106
  %v253 = vunpack.c.h.b16 %v106
  %v254 = vunpack.c.l.b16 %v107
  %v255 = vunpack.c.h.b16 %v107
  %v256 = vunpack.c.l.b16 %v108
  %v257 = vunpack.c.h.b16 %v108
  %v258 = vunpack.c.l.b16 %v109
  %v259 = vunpack.c.h.b16 %v109
  %v260 = vunpack.c.l.b16 %v110
  %v261 = vunpack.c.h.b16 %v110
  %v262 = vunpack.c.l.b16 %v111
  %v263 = vunpack.c.h.b16 %v111
  %v264 = vunpack.c.l.b16 %v112
  %v265 = vunpack.c.h.b16 %v112
  %v266 = vunpack.c.l.b16 %v113
  %v267 = vunpack.c.h.b16 %v113
  %v268 = vunpack.c.l.b16 %v114
  %v269 = vunpack.c.h.b16 %v114
  %v270 = vunpack.c.l.b16 %v115
  %v271 = vunpack.c.h.b16 %v115
  %v272 = vpack.c.b16 %v178, %v176
  %v273 = vpack.c.b16 %v179, %v177
  %v274 = vpack.c.b16 %v182, %v180
  %v275 = vpack.c.b16 %v183, %v181
  %v276 = vpack.c.b16 %v186, %v184
  %v277 = vpack.c.b16 %v187, %v185
  %v278 = vpack.c.b16 %v190, %v188
  %v279 = vpack.c.b16 %v191, %v189
  %v280 = vpack.c.b16 %v194, %v192
  %v281 = vpack.c.b16 %v195, %v193
  %v282 = vpack.c.b16 %v198, %v196
  %v283 = vpack.c.b16 %v199, %v197
  %v284 = vpack.c.b16 %v202, %v200
  %v285 = vpack.c.b16 %v203, %v201
  %v286 = vpack.c.b16 %v206, %v204
  %v287 = vpack.c.b16 %v207, %v205
  %v288 = vpack.c.b16 %v210, %v208
  %v289 = vpack.c.b16 %v211, %v209
  %v290 = vpack.c.b16 %v214, %v212
  %v291 = vpack.c.b16 %v215, %v213
  %v292 = vpack.c.b16 %v218, %v216
  %v293 = vpack.c.b16 %v219, %v217
  %v294 = vpack.c.b16 %v222, %v220
  %v295 = vpack.c.b16 %v223, %v221
  %v296 = vpack.c.b16 %v226, %v224
  %v297 = vpack.c.b16 %v227, %v225
  %v298 = vpack.c.b16 %v230, %v228
  %v299 = vpack.c.b16 %v231, %v229
  %v300 = vpack.c.b16 %v234, %v232
  %v301 = vpack.c.b16 %v235, %v233
  %v302 = vpack.c.b16 %v238, %v236
  %v303 = vpack.c.b16 %v239, %v237
  %v304 = vpack.c.b16 %v242, %v240
  %v305 = vpack.c.b16 %v243, %v241
  %v306 = vpack.c.b16 %v246, %v244
  %v307 = vpack.c.b16 %v247, %v245
  %v308 = vpack.c.b16 %v250, %v248
  %v309 = vpack.c.b16 %v251, %v249
  %v310 = vpack.c.b16 %v254, %v252
  %v311 = vpack.c.b16 %v255, %v253
  %v312 = vpack.c.b16 %v258, %v256
  %v313 = vpack.c.b16 %v259, %v257
  %v314 = vpack.c.b16 %v262, %v260
  %v315 = vpack.c.b16 %v263, %v261
  %v316 = vpack.c.b16 %v266, %v264
  %v317 = vpack.c.b16 %v267, %v265
  %v318 = vpack.c.b16 %v270, %v268
  %v319 = vpack.c.b16 %v271, %v269
  %368 = vmatprep.subr.bf16.mxu0 %v287
  %369 = vmatpush1.bf16.msra.mxu0 %v286
  %370 = vmatprep.subr.bf16.mxu0 %v285
  %371 = vmatpush1.bf16.msra.mxu0 %v284
  %372 = vmatprep.subr.bf16.mxu0 %v283
  %373 = vmatpush1.bf16.msra.mxu0 %v282
  %374 = vmatprep.subr.bf16.mxu0 %v281
  %375 = vmatpush1.bf16.msra.mxu0 %v280
  %376 = vmatprep.subr.bf16.mxu0 %v279
  %377 = vmatpush1.bf16.msra.mxu0 %v278
  %378 = vmatprep.subr.bf16.mxu0 %v277
  %379 = vmatpush1.bf16.msra.mxu0 %v276
  %380 = vmatprep.subr.bf16.mxu0 %v275
  %381 = vmatpush1.bf16.msra.mxu0 %v274
  %382 = vmatprep.subr.bf16.mxu0 %v273
  %383 = vmatpush1.bf16.msra.mxu0 %v272
  %384 = vmatprep.subr.bf16.mxu0 %v303
  %385 = vmatpush2.bf16.msra.mxu0 %v302
  %386 = vmatprep.subr.bf16.mxu0 %v301
  %387 = vmatpush2.bf16.msra.mxu0 %v300
  %388 = vmatprep.subr.bf16.mxu0 %v299
  %389 = vmatpush2.bf16.msra.mxu0 %v298
  %390 = vmatprep.subr.bf16.mxu0 %v297
  %391 = vmatpush2.bf16.msra.mxu0 %v296
  %392 = vmatprep.subr.bf16.mxu0 %v295
  %393 = vmatpush2.bf16.msra.mxu0 %v294
  %394 = vmatprep.subr.bf16.mxu0 %v293
  %395 = vmatpush2.bf16.msra.mxu0 %v292
  %396 = vmatprep.subr.bf16.mxu0 %v291
  %397 = vmatpush2.bf16.msra.mxu0 %v290
  %398 = vmatprep.subr.bf16.mxu0 %v289
  %399 = vmatpush2.bf16.msra.mxu0 %v288
  %400 = vmatprep.mubr.bf16.mxu0 %v66
  %401 = vmatmul.mubr.bf16.gmra.mxu0 %v65
  %v402 = vpop.f32.mrf.mxu0
  %v403 = vadd.f32 %v121, %v402
  %v404 = vpop.f32.mrf.mxu0
  %v405 = vadd.f32 %v125, %v404
  %v406 = vpop.f32.mrf.mxu0
  %v407 = vpop.f32.mrf.mxu0
  %408 = vdwg.mxu0
  %409 = vmatprep.subr.bf16.mxu0 %v319
  %410 = vmatpush1.bf16.msra.mxu0 %v318
  %411 = vmatprep.subr.bf16.mxu0 %v317
  %412 = vmatpush1.bf16.msra.mxu0 %v316
  %413 = vmatprep.subr.bf16.mxu0 %v315
  %414 = vmatpush1.bf16.msra.mxu0 %v314
  %415 = vmatprep.subr.bf16.mxu0 %v313
  %416 = vmatpush1.bf16.msra.mxu0 %v312
  %417 = vmatprep.subr.bf16.mxu0 %v311
  %418 = vmatpush1.bf16.msra.mxu0 %v310
  %419 = vmatprep.subr.bf16.mxu0 %v309
  %420 = vmatpush1.bf16.msra.mxu0 %v308
  %421 = vmatprep.subr.bf16.mxu0 %v307
  %422 = vmatpush1.bf16.msra.mxu0 %v306
  %423 = vmatprep.subr.bf16.mxu0 %v305
  %424 = vmatpush1.bf16.msra.mxu0 %v304
  %425 = vmatprep.subr.bf16.mxu0 0
  %426 = vmatpush2.bf16.msra.mxu0 0
  %427 = vmatprep.subr.bf16.mxu0 0
  %428 = vmatpush2.bf16.msra.mxu0 0
  %429 = vmatprep.subr.bf16.mxu0 0
  %430 = vmatpush2.bf16.msra.mxu0 0
  %431 = vmatprep.subr.bf16.mxu0 0
  %432 = vmatpush2.bf16.msra.mxu0 0
  %433 = vmatprep.subr.bf16.mxu0 0
  %434 = vmatpush2.bf16.msra.mxu0 0
  %435 = vmatprep.subr.bf16.mxu0 0
  %436 = vmatpush2.bf16.msra.mxu0 0
  %437 = vmatprep.subr.bf16.mxu0 0
  %438 = vmatpush2.bf16.msra.mxu0 0
  %439 = vmatprep.subr.bf16.mxu0 0
  %440 = vmatpush2.bf16.msra.mxu0 0
  %441 = vmatprep.mubr.bf16.mxu0 0
  %442 = vmatmul.mubr.bf16.gmra.mxu0 %v67
  %v443 = vpop.f32.mrf.mxu0
  %v444 = vadd.f32 %v403, %v443
  %v445 = vpop.f32.mrf.mxu0
  %v446 = vadd.f32 %v405, %v445
  %v447 = vpop.f32.mrf.mxu0
  %v448 = vpop.f32.mrf.mxu0
  %449 = vdwg.mxu0
  %v450 = vpack.c.bf16 %v444, %v444
  %v451 = vpack.c.bf16 %v446, %v446
  %v452 = vld [vmem:[%s5] sm:$0xff]
  %v453 = vld [vmem:[%s5 + $0x8] sm:$0xff]
  %v454 = vld [vmem:[%s5 + $0x10] sm:$0xff]
  %v455 = vld [vmem:[%s5 + $0x18] sm:$0xff]
  %v456 = vld [vmem:[%s5 + $0x20] sm:$0xff]
  %v457 = vld [vmem:[%s5 + $0x28] sm:$0xff]
  %v458 = vld [vmem:[%s5 + $0x30] sm:$0xff]
  %v459 = vld [vmem:[%s5 + $0x38] sm:$0xff]
  %v460 = vld [vmem:[%s5 + $0x40] sm:$0xff]
  %v461 = vld [vmem:[%s5 + $0x48] sm:$0xff]
  %v462 = vld [vmem:[%s5 + $0x50] sm:$0xff]
  %v463 = vld [vmem:[%s5 + $0x58] sm:$0xff]
  %v464 = vld [vmem:[%s5 + $0x60] sm:$0xff]
  %v465 = vld [vmem:[%s5 + $0x68] sm:$0xff]
  %v466 = vld [vmem:[%s5 + $0x70] sm:$0xff]
  %v467 = vld [vmem:[%s5 + $0x78] sm:$0xff]
  %v468 = vld [vmem:[%s5 + $0x80] sm:$0xff]
  %v469 = vld [vmem:[%s5 + $0x88] sm:$0xff]
  %v470 = vld [vmem:[%s5 + $0x90] sm:$0xff]
  %v471 = vld [vmem:[%s5 + $0x98] sm:$0xff]
  %v472 = vld [vmem:[%s5 + $0xa0] sm:$0xff]
  %v473 = vld [vmem:[%s5 + $0xa8] sm:$0xff]
  %v474 = vld [vmem:[%s5 + $0xb0] sm:$0xff]
  %v475 = vld [vmem:[%s5 + $0xb8] sm:$0xff]
  %v476 = vld [vmem:[%s5 + $0xc0] sm:$0xff]
  %v477 = vld [vmem:[%s5 + $0xc8] sm:$0xff]
  %v478 = vld [vmem:[%s5 + $0xd0] sm:$0xff]
  %v479 = vld [vmem:[%s5 + $0xd8] sm:$0xff]
  %v480 = vld [vmem:[%s5 + $0xe0] sm:$0xff]
  %v481 = vld [vmem:[%s5 + $0xe8] sm:$0xff]
  %v482 = vld [vmem:[%s5 + $0xf0] sm:$0xff]
  %v483 = vld [vmem:[%s5 + $0xf8] sm:$0xff]
  %v484 = vld [vmem:[%s5 + $0x100] sm:$0xff]
  %v485 = vld [vmem:[%s5 + $0x108] sm:$0xff]
  %v486 = vld [vmem:[%s5 + $0x110] sm:$0xff]
  %v487 = vld [vmem:[%s5 + $0x118] sm:$0xff]
  %v488 = vld [vmem:[%s5 + $0x120] sm:$0xff]
  %v489 = vld [vmem:[%s5 + $0x128] sm:$0xff]
  %v490 = vld [vmem:[%s5 + $0x130] sm:$0xff]
  %v491 = vld [vmem:[%s5 + $0x138] sm:$0xff]
  %v492 = vld [vmem:[%s5 + $0x140] sm:$0xff]
  %v493 = vld [vmem:[%s5 + $0x148] sm:$0xff]
  %v494 = vld [vmem:[%s5 + $0x150] sm:$0xff]
  %v495 = vld [vmem:[%s5 + $0x158] sm:$0xff]
  %v496 = vld [vmem:[%s5 + $0x160] sm:$0xff]
  %v497 = vld [vmem:[%s5 + $0x168] sm:$0xff]
  %v498 = vld [vmem:[%s5 + $0x170] sm:$0xff]
  %v499 = vld [vmem:[%s5 + $0x178] sm:$0xff]
  %v500 = vld [vmem:[%s5 + $0x180] sm:$0xff]
  %v501 = vld [vmem:[%s5 + $0x188] sm:$0xff]
  %v502 = vld [vmem:[%s5 + $0x190] sm:$0xff]
  %v503 = vld [vmem:[%s5 + $0x198] sm:$0xff]
  %v504 = vld [vmem:[%s5 + $0x1a0] sm:$0xff]
  %v505 = vld [vmem:[%s5 + $0x1a8] sm:$0xff]
  %v506 = vld [vmem:[%s5 + $0x1b0] sm:$0xff]
  %v507 = vld [vmem:[%s5 + $0x1b8] sm:$0xff]
  %v508 = vld [vmem:[%s5 + $0x1c0] sm:$0xff]
  %v509 = vld [vmem:[%s5 + $0x1c8] sm:$0xff]
  %v510 = vld [vmem:[%s5 + $0x1d0] sm:$0xff]
  %v511 = vld [vmem:[%s5 + $0x1d8] sm:$0xff]
  %v512 = vld [vmem:[%s5 + $0x1e0] sm:$0xff]
  %v513 = vld [vmem:[%s5 + $0x1e8] sm:$0xff]
  %v514 = vld [vmem:[%s5 + $0x1f0] sm:$0xff]
  %v515 = vld [vmem:[%s5 + $0x1f8] sm:$0xff]
  %v516 = vld [vmem:[%s5 + $0x200] sm:$0xff]
  %v517 = vld [vmem:[%s5 + $0x208] sm:$0xff]
  %v518 = vld [vmem:[%s5 + $0x210] sm:$0xff]
  %v519 = vld [vmem:[%s5 + $0x218] sm:$0xff]
  %v520 = vld [vmem:[%s5 + $0x220] sm:$0xff]
  %v521 = vld [vmem:[%s5 + $0x228] sm:$0xff]
  %v522 = vld [vmem:[%s5 + $0x230] sm:$0xff]
  %v523 = vld [vmem:[%s5 + $0x238] sm:$0xff]
  %v524 = vld [vmem:[%s5 + $0x240] sm:$0xff]
  %v525 = vld [vmem:[%s5 + $0x248] sm:$0xff]
  %v526 = vld [vmem:[%s5 + $0x250] sm:$0xff]
  %v527 = vld [vmem:[%s5 + $0x258] sm:$0xff]
  %v528 = vld [vmem:[%s5 + $0x260] sm:$0xff]
  %v529 = vld [vmem:[%s5 + $0x268] sm:$0xff]
  %v530 = vld [vmem:[%s5 + $0x270] sm:$0xff]
  %v531 = vld [vmem:[%s5 + $0x278] sm:$0xff]
  %v532 = vld [vmem:[%s5 + $0x280] sm:$0xff]
  %v533 = vld [vmem:[%s5 + $0x288] sm:$0xff]
  %v534 = vld [vmem:[%s5 + $0x290] sm:$0xff]
  %v535 = vld [vmem:[%s5 + $0x298] sm:$0xff]
  %v536 = vld [vmem:[%s5 + $0x2a0] sm:$0xff]
  %v537 = vld [vmem:[%s5 + $0x2a8] sm:$0xff]
  %v538 = vld [vmem:[%s5 + $0x2b0] sm:$0xff]
  %v539 = vld [vmem:[%s5 + $0x2b8] sm:$0xff]
  %v540 = vld [vmem:[%s5 + $0x2c0] sm:$0xff]
  %v541 = vld [vmem:[%s5 + $0x2c8] sm:$0xff]
  %v542 = vld [vmem:[%s5 + $0x2d0] sm:$0xff]
  %v543 = vld [vmem:[%s5 + $0x2d8] sm:$0xff]
  %v544 = vld [vmem:[%s5 + $0x2e0] sm:$0xff]
  %v545 = vld [vmem:[%s5 + $0x2e8] sm:$0xff]
  %v546 = vld [vmem:[%s5 + $0x2f0] sm:$0xff]
  %v547 = vld [vmem:[%s5 + $0x2f8] sm:$0xff]
  %v548 = vld [vmem:[%s5 + $0x300] sm:$0xff]
  %v549 = vld [vmem:[%s5 + $0x308] sm:$0xff]
  %v550 = vld [vmem:[%s5 + $0x310] sm:$0xff]
  %v551 = vld [vmem:[%s5 + $0x318] sm:$0xff]
  %v552 = vld [vmem:[%s5 + $0x320] sm:$0xff]
  %v553 = vld [vmem:[%s5 + $0x328] sm:$0xff]
  %v554 = vld [vmem:[%s5 + $0x330] sm:$0xff]
  %v555 = vld [vmem:[%s5 + $0x338] sm:$0xff]
  %v556 = vld [vmem:[%s5 + $0x340] sm:$0xff]
  %v557 = vld [vmem:[%s5 + $0x348] sm:$0xff]
  %v558 = vld [vmem:[%s5 + $0x350] sm:$0xff]
  %v559 = vld [vmem:[%s5 + $0x358] sm:$0xff]
  %v560 = vld [vmem:[%s5 + $0x360] sm:$0xff]
  %v561 = vld [vmem:[%s5 + $0x368] sm:$0xff]
  %v562 = vld [vmem:[%s5 + $0x370] sm:$0xff]
  %v563 = vld [vmem:[%s5 + $0x378] sm:$0xff]
  %v564 = vld [vmem:[%s5 + $0x380] sm:$0xff]
  %v565 = vld [vmem:[%s5 + $0x388] sm:$0xff]
  %v566 = vld [vmem:[%s5 + $0x390] sm:$0xff]
  %v567 = vld [vmem:[%s5 + $0x398] sm:$0xff]
  %v568 = vld [vmem:[%s5 + $0x3a0] sm:$0xff]
  %v569 = vld [vmem:[%s5 + $0x3a8] sm:$0xff]
  %v570 = vld [vmem:[%s5 + $0x3b0] sm:$0xff]
  %v571 = vld [vmem:[%s5 + $0x3b8] sm:$0xff]
  %v572 = vld [vmem:[%s5 + $0x3c0] sm:$0xff]
  %v573 = vld [vmem:[%s5 + $0x3c8] sm:$0xff]
  %v574 = vld [vmem:[%s5 + $0x3d0] sm:$0xff]
  %v575 = vld [vmem:[%s5 + $0x3d8] sm:$0xff]
  %v576 = vld [vmem:[%s5 + $0x3e0] sm:$0xff]
  %v577 = vld [vmem:[%s5 + $0x3e8] sm:$0xff]
  %v578 = vld [vmem:[%s5 + $0x3f0] sm:$0xff]
  %v579 = vld [vmem:[%s5 + $0x3f8] sm:$0xff]
  %v580 = vld [vmem:[%s6] sm:$0xff]
  %v581 = vld [vmem:[%s6 + $0x8] sm:$0xff]
  %v582 = vld [vmem:[%s6 + $0x10] sm:$0xff]
  %v583 = vld [vmem:[%s6 + $0x18] sm:$0xff]
  %v584 = vld [vmem:[%s6 + $0x20] sm:$0xff]
  %v585 = vld [vmem:[%s6 + $0x28] sm:$0xff]
  %v586 = vld [vmem:[%s6 + $0x30] sm:$0xff]
  %v587 = vld [vmem:[%s6 + $0x38] sm:$0xff]
  %v588 = vld [vmem:[%s6 + $0x40] sm:$0xff]
  %v589 = vld [vmem:[%s6 + $0x48] sm:$0xff]
  %v590 = vld [vmem:[%s6 + $0x50] sm:$0xff]
  %v591 = vld [vmem:[%s6 + $0x58] sm:$0xff]
  %v592 = vld [vmem:[%s6 + $0x60] sm:$0xff]
  %v593 = vld [vmem:[%s6 + $0x68] sm:$0xff]
  %v594 = vld [vmem:[%s6 + $0x70] sm:$0xff]
  %v595 = vld [vmem:[%s6 + $0x78] sm:$0xff]
  %v596 = vld [vmem:[%s6 + $0x80] sm:$0xff]
  %v597 = vld [vmem:[%s6 + $0x88] sm:$0xff]
  %v598 = vld [vmem:[%s6 + $0x90] sm:$0xff]
  %v599 = vld [vmem:[%s6 + $0x98] sm:$0xff]
  %v600 = vld [vmem:[%s6 + $0xa0] sm:$0xff]
  %v601 = vld [vmem:[%s6 + $0xa8] sm:$0xff]
  %v602 = vld [vmem:[%s6 + $0xb0] sm:$0xff]
  %v603 = vld [vmem:[%s6 + $0xb8] sm:$0xff]
  %v604 = vld [vmem:[%s6 + $0xc0] sm:$0xff]
  %v605 = vld [vmem:[%s6 + $0xc8] sm:$0xff]
  %v606 = vld [vmem:[%s6 + $0xd0] sm:$0xff]
  %v607 = vld [vmem:[%s6 + $0xd8] sm:$0xff]
  %v608 = vld [vmem:[%s6 + $0xe0] sm:$0xff]
  %v609 = vld [vmem:[%s6 + $0xe8] sm:$0xff]
  %v610 = vld [vmem:[%s6 + $0xf0] sm:$0xff]
  %v611 = vld [vmem:[%s6 + $0xf8] sm:$0xff]
  %v612 = vld [vmem:[%s6 + $0x100] sm:$0xff]
  %v613 = vld [vmem:[%s6 + $0x108] sm:$0xff]
  %v614 = vld [vmem:[%s6 + $0x110] sm:$0xff]
  %v615 = vld [vmem:[%s6 + $0x118] sm:$0xff]
  %v616 = vld [vmem:[%s6 + $0x120] sm:$0xff]
  %v617 = vld [vmem:[%s6 + $0x128] sm:$0xff]
  %v618 = vld [vmem:[%s6 + $0x130] sm:$0xff]
  %v619 = vld [vmem:[%s6 + $0x138] sm:$0xff]
  %v620 = vld [vmem:[%s6 + $0x140] sm:$0xff]
  %v621 = vld [vmem:[%s6 + $0x148] sm:$0xff]
  %v622 = vld [vmem:[%s6 + $0x150] sm:$0xff]
  %v623 = vld [vmem:[%s6 + $0x158] sm:$0xff]
  %v624 = vld [vmem:[%s6 + $0x160] sm:$0xff]
  %v625 = vld [vmem:[%s6 + $0x168] sm:$0xff]
  %v626 = vld [vmem:[%s6 + $0x170] sm:$0xff]
  %v627 = vld [vmem:[%s6 + $0x178] sm:$0xff]
  %v628 = vld [vmem:[%s6 + $0x180] sm:$0xff]
  %v629 = vld [vmem:[%s6 + $0x188] sm:$0xff]
  %v630 = vld [vmem:[%s6 + $0x190] sm:$0xff]
  %v631 = vld [vmem:[%s6 + $0x198] sm:$0xff]
  %v632 = vld [vmem:[%s6 + $0x1a0] sm:$0xff]
  %v633 = vld [vmem:[%s6 + $0x1a8] sm:$0xff]
  %v634 = vld [vmem:[%s6 + $0x1b0] sm:$0xff]
  %v635 = vld [vmem:[%s6 + $0x1b8] sm:$0xff]
  %v636 = vld [vmem:[%s6 + $0x1c0] sm:$0xff]
  %v637 = vld [vmem:[%s6 + $0x1c8] sm:$0xff]
  %v638 = vld [vmem:[%s6 + $0x1d0] sm:$0xff]
  %v639 = vld [vmem:[%s6 + $0x1d8] sm:$0xff]
  %v640 = vld [vmem:[%s6 + $0x1e0] sm:$0xff]
  %v641 = vld [vmem:[%s6 + $0x1e8] sm:$0xff]
  %v642 = vld [vmem:[%s6 + $0x1f0] sm:$0xff]
  %v643 = vld [vmem:[%s6 + $0x1f8] sm:$0xff]
  %v644 = vld [vmem:[%s6 + $0x200] sm:$0xff]
  %v645 = vld [vmem:[%s6 + $0x208] sm:$0xff]
  %v646 = vld [vmem:[%s6 + $0x210] sm:$0xff]
  %v647 = vld [vmem:[%s6 + $0x218] sm:$0xff]
  %v648 = vld [vmem:[%s6 + $0x220] sm:$0xff]
  %v649 = vld [vmem:[%s6 + $0x228] sm:$0xff]
  %v650 = vld [vmem:[%s6 + $0x230] sm:$0xff]
  %v651 = vld [vmem:[%s6 + $0x238] sm:$0xff]
  %v652 = vld [vmem:[%s6 + $0x240] sm:$0xff]
  %v653 = vld [vmem:[%s6 + $0x248] sm:$0xff]
  %v654 = vld [vmem:[%s6 + $0x250] sm:$0xff]
  %v655 = vld [vmem:[%s6 + $0x258] sm:$0xff]
  %v656 = vld [vmem:[%s6 + $0x260] sm:$0xff]
  %v657 = vld [vmem:[%s6 + $0x268] sm:$0xff]
  %v658 = vld [vmem:[%s6 + $0x270] sm:$0xff]
  %v659 = vld [vmem:[%s6 + $0x278] sm:$0xff]
  %v660 = vld [vmem:[%s6 + $0x280] sm:$0xff]
  %v661 = vld [vmem:[%s6 + $0x288] sm:$0xff]
  %v662 = vld [vmem:[%s6 + $0x290] sm:$0xff]
  %v663 = vld [vmem:[%s6 + $0x298] sm:$0xff]
  %v664 = vld [vmem:[%s6 + $0x2a0] sm:$0xff]
  %v665 = vld [vmem:[%s6 + $0x2a8] sm:$0xff]
  %v666 = vld [vmem:[%s6 + $0x2b0] sm:$0xff]
  %v667 = vld [vmem:[%s6 + $0x2b8] sm:$0xff]
  %v668 = vld [vmem:[%s6 + $0x2c0] sm:$0xff]
  %v669 = vld [vmem:[%s6 + $0x2c8] sm:$0xff]
  %v670 = vld [vmem:[%s6 + $0x2d0] sm:$0xff]
  %v671 = vld [vmem:[%s6 + $0x2d8] sm:$0xff]
  %v672 = vld [vmem:[%s6 + $0x2e0] sm:$0xff]
  %v673 = vld [vmem:[%s6 + $0x2e8] sm:$0xff]
  %v674 = vld [vmem:[%s6 + $0x2f0] sm:$0xff]
  %v675 = vld [vmem:[%s6 + $0x2f8] sm:$0xff]
  %v676 = vld [vmem:[%s6 + $0x300] sm:$0xff]
  %v677 = vld [vmem:[%s6 + $0x308] sm:$0xff]
  %v678 = vld [vmem:[%s6 + $0x310] sm:$0xff]
  %v679 = vld [vmem:[%s6 + $0x318] sm:$0xff]
  %v680 = vld [vmem:[%s6 + $0x320] sm:$0xff]
  %v681 = vld [vmem:[%s6 + $0x328] sm:$0xff]
  %v682 = vld [vmem:[%s6 + $0x330] sm:$0xff]
  %v683 = vld [vmem:[%s6 + $0x338] sm:$0xff]
  %v684 = vld [vmem:[%s6 + $0x340] sm:$0xff]
  %v685 = vld [vmem:[%s6 + $0x348] sm:$0xff]
  %v686 = vld [vmem:[%s6 + $0x350] sm:$0xff]
  %v687 = vld [vmem:[%s6 + $0x358] sm:$0xff]
  %v688 = vld [vmem:[%s6 + $0x360] sm:$0xff]
  %v689 = vld [vmem:[%s6 + $0x368] sm:$0xff]
  %v690 = vld [vmem:[%s6 + $0x370] sm:$0xff]
  %v691 = vld [vmem:[%s6 + $0x378] sm:$0xff]
  %v692 = vld [vmem:[%s6 + $0x380] sm:$0xff]
  %v693 = vld [vmem:[%s6 + $0x388] sm:$0xff]
  %v694 = vld [vmem:[%s6 + $0x390] sm:$0xff]
  %v695 = vld [vmem:[%s6 + $0x398] sm:$0xff]
  %v696 = vld [vmem:[%s6 + $0x3a0] sm:$0xff]
  %v697 = vld [vmem:[%s6 + $0x3a8] sm:$0xff]
  %v698 = vld [vmem:[%s6 + $0x3b0] sm:$0xff]
  %v699 = vld [vmem:[%s6 + $0x3b8] sm:$0xff]
  %v700 = vld [vmem:[%s6 + $0x3c0] sm:$0xff]
  %v701 = vld [vmem:[%s6 + $0x3c8] sm:$0xff]
  %v702 = vld [vmem:[%s6 + $0x3d0] sm:$0xff]
  %v703 = vld [vmem:[%s6 + $0x3d8] sm:$0xff]
  %v704 = vld [vmem:[%s6 + $0x3e0] sm:$0xff]
  %v705 = vld [vmem:[%s6 + $0x3e8] sm:$0xff]
  %v706 = vld [vmem:[%s6 + $0x3f0] sm:$0xff]
  %v707 = vld [vmem:[%s6 + $0x3f8] sm:$0xff]
  %v836 = vunpack.c.l.b16 %v580
  %v837 = vunpack.c.h.b16 %v580
  %v838 = vunpack.c.l.b16 %v581
  %v839 = vunpack.c.h.b16 %v581
  %v840 = vunpack.c.l.b16 %v582
  %v841 = vunpack.c.h.b16 %v582
  %v842 = vunpack.c.l.b16 %v583
  %v843 = vunpack.c.h.b16 %v583
  %v844 = vunpack.c.l.b16 %v584
  %v845 = vunpack.c.h.b16 %v584
  %v846 = vunpack.c.l.b16 %v585
  %v847 = vunpack.c.h.b16 %v585
  %v848 = vunpack.c.l.b16 %v586
  %v849 = vunpack.c.h.b16 %v586
  %v850 = vunpack.c.l.b16 %v587
  %v851 = vunpack.c.h.b16 %v587
  %v852 = vunpack.c.l.b16 %v588
  %v853 = vunpack.c.h.b16 %v588
  %v854 = vunpack.c.l.b16 %v589
  %v855 = vunpack.c.h.b16 %v589
  %v856 = vunpack.c.l.b16 %v590
  %v857 = vunpack.c.h.b16 %v590
  %v858 = vunpack.c.l.b16 %v591
  %v859 = vunpack.c.h.b16 %v591
  %v860 = vunpack.c.l.b16 %v592
  %v861 = vunpack.c.h.b16 %v592
  %v862 = vunpack.c.l.b16 %v593
  %v863 = vunpack.c.h.b16 %v593
  %v864 = vunpack.c.l.b16 %v594
  %v865 = vunpack.c.h.b16 %v594
  %v866 = vunpack.c.l.b16 %v595
  %v867 = vunpack.c.h.b16 %v595
  %v868 = vunpack.c.l.b16 %v596
  %v869 = vunpack.c.h.b16 %v596
  %v870 = vunpack.c.l.b16 %v597
  %v871 = vunpack.c.h.b16 %v597
  %v872 = vunpack.c.l.b16 %v598
  %v873 = vunpack.c.h.b16 %v598
  %v874 = vunpack.c.l.b16 %v599
  %v875 = vunpack.c.h.b16 %v599
  %v876 = vunpack.c.l.b16 %v600
  %v877 = vunpack.c.h.b16 %v600
  %v878 = vunpack.c.l.b16 %v601
  %v879 = vunpack.c.h.b16 %v601
  %v880 = vunpack.c.l.b16 %v602
  %v881 = vunpack.c.h.b16 %v602
  %v882 = vunpack.c.l.b16 %v603
  %v883 = vunpack.c.h.b16 %v603
  %v884 = vunpack.c.l.b16 %v604
  %v885 = vunpack.c.h.b16 %v604
  %v886 = vunpack.c.l.b16 %v605
  %v887 = vunpack.c.h.b16 %v605
  %v888 = vunpack.c.l.b16 %v606
  %v889 = vunpack.c.h.b16 %v606
  %v890 = vunpack.c.l.b16 %v607
  %v891 = vunpack.c.h.b16 %v607
  %v892 = vunpack.c.l.b16 %v608
  %v893 = vunpack.c.h.b16 %v608
  %v894 = vunpack.c.l.b16 %v609
  %v895 = vunpack.c.h.b16 %v609
  %v896 = vunpack.c.l.b16 %v610
  %v897 = vunpack.c.h.b16 %v610
  %v898 = vunpack.c.l.b16 %v611
  %v899 = vunpack.c.h.b16 %v611
  %v900 = vunpack.c.l.b16 %v612
  %v901 = vunpack.c.h.b16 %v612
  %v902 = vunpack.c.l.b16 %v613
  %v903 = vunpack.c.h.b16 %v613
  %v904 = vunpack.c.l.b16 %v614
  %v905 = vunpack.c.h.b16 %v614
  %v906 = vunpack.c.l.b16 %v615
  %v907 = vunpack.c.h.b16 %v615
  %v908 = vunpack.c.l.b16 %v616
  %v909 = vunpack.c.h.b16 %v616
  %v910 = vunpack.c.l.b16 %v617
  %v911 = vunpack.c.h.b16 %v617
  %v912 = vunpack.c.l.b16 %v618
  %v913 = vunpack.c.h.b16 %v618
  %v914 = vunpack.c.l.b16 %v619
  %v915 = vunpack.c.h.b16 %v619
  %v916 = vunpack.c.l.b16 %v620
  %v917 = vunpack.c.h.b16 %v620
  %v918 = vunpack.c.l.b16 %v621
  %v919 = vunpack.c.h.b16 %v621
  %v920 = vunpack.c.l.b16 %v622
  %v921 = vunpack.c.h.b16 %v622
  %v922 = vunpack.c.l.b16 %v623
  %v923 = vunpack.c.h.b16 %v623
  %v924 = vunpack.c.l.b16 %v624
  %v925 = vunpack.c.h.b16 %v624
  %v926 = vunpack.c.l.b16 %v625
  %v927 = vunpack.c.h.b16 %v625
  %v928 = vunpack.c.l.b16 %v626
  %v929 = vunpack.c.h.b16 %v626
  %v930 = vunpack.c.l.b16 %v627
  %v931 = vunpack.c.h.b16 %v627
  %v932 = vunpack.c.l.b16 %v628
  %v933 = vunpack.c.h.b16 %v628
  %v934 = vunpack.c.l.b16 %v629
  %v935 = vunpack.c.h.b16 %v629
  %v936 = vunpack.c.l.b16 %v630
  %v937 = vunpack.c.h.b16 %v630
  %v938 = vunpack.c.l.b16 %v631
  %v939 = vunpack.c.h.b16 %v631
  %v940 = vunpack.c.l.b16 %v632
  %v941 = vunpack.c.h.b16 %v632
  %v942 = vunpack.c.l.b16 %v633
  %v943 = vunpack.c.h.b16 %v633
  %v944 = vunpack.c.l.b16 %v634
  %v945 = vunpack.c.h.b16 %v634
  %v946 = vunpack.c.l.b16 %v635
  %v947 = vunpack.c.h.b16 %v635
  %v948 = vunpack.c.l.b16 %v636
  %v949 = vunpack.c.h.b16 %v636
  %v950 = vunpack.c.l.b16 %v637
  %v951 = vunpack.c.h.b16 %v637
  %v952 = vunpack.c.l.b16 %v638
  %v953 = vunpack.c.h.b16 %v638
  %v954 = vunpack.c.l.b16 %v639
  %v955 = vunpack.c.h.b16 %v639
  %v956 = vunpack.c.l.b16 %v640
  %v957 = vunpack.c.h.b16 %v640
  %v958 = vunpack.c.l.b16 %v641
  %v959 = vunpack.c.h.b16 %v641
  %v960 = vunpack.c.l.b16 %v642
  %v961 = vunpack.c.h.b16 %v642
  %v962 = vunpack.c.l.b16 %v643
  %v963 = vunpack.c.h.b16 %v643
  %v964 = vunpack.c.l.b16 %v644
  %v965 = vunpack.c.h.b16 %v644
  %v966 = vunpack.c.l.b16 %v645
  %v967 = vunpack.c.h.b16 %v645
  %v968 = vunpack.c.l.b16 %v646
  %v969 = vunpack.c.h.b16 %v646
  %v970 = vunpack.c.l.b16 %v647
  %v971 = vunpack.c.h.b16 %v647
  %v972 = vunpack.c.l.b16 %v648
  %v973 = vunpack.c.h.b16 %v648
  %v974 = vunpack.c.l.b16 %v649
  %v975 = vunpack.c.h.b16 %v649
  %v976 = vunpack.c.l.b16 %v650
  %v977 = vunpack.c.h.b16 %v650
  %v978 = vunpack.c.l.b16 %v651
  %v979 = vunpack.c.h.b16 %v651
  %v980 = vunpack.c.l.b16 %v652
  %v981 = vunpack.c.h.b16 %v652
  %v982 = vunpack.c.l.b16 %v653
  %v983 = vunpack.c.h.b16 %v653
  %v984 = vunpack.c.l.b16 %v654
  %v985 = vunpack.c.h.b16 %v654
  %v986 = vunpack.c.l.b16 %v655
  %v987 = vunpack.c.h.b16 %v655
  %v988 = vunpack.c.l.b16 %v656
  %v989 = vunpack.c.h.b16 %v656
  %v990 = vunpack.c.l.b16 %v657
  %v991 = vunpack.c.h.b16 %v657
  %v992 = vunpack.c.l.b16 %v658
  %v993 = vunpack.c.h.b16 %v658
  %v994 = vunpack.c.l.b16 %v659
  %v995 = vunpack.c.h.b16 %v659
  %v996 = vunpack.c.l.b16 %v660
  %v997 = vunpack.c.h.b16 %v660
  %v998 = vunpack.c.l.b16 %v661
  %v999 = vunpack.c.h.b16 %v661
  %v1000 = vunpack.c.l.b16 %v662
  %v1001 = vunpack.c.h.b16 %v662
  %v1002 = vunpack.c.l.b16 %v663
  %v1003 = vunpack.c.h.b16 %v663
  %v1004 = vunpack.c.l.b16 %v664
  %v1005 = vunpack.c.h.b16 %v664
  %v1006 = vunpack.c.l.b16 %v665
  %v1007 = vunpack.c.h.b16 %v665
  %v1008 = vunpack.c.l.b16 %v666
  %v1009 = vunpack.c.h.b16 %v666
  %v1010 = vunpack.c.l.b16 %v667
  %v1011 = vunpack.c.h.b16 %v667
  %v1012 = vunpack.c.l.b16 %v668
  %v1013 = vunpack.c.h.b16 %v668
  %v1014 = vunpack.c.l.b16 %v669
  %v1015 = vunpack.c.h.b16 %v669
  %v1016 = vunpack.c.l.b16 %v670
  %v1017 = vunpack.c.h.b16 %v670
  %v1018 = vunpack.c.l.b16 %v671
  %v1019 = vunpack.c.h.b16 %v671
  %v1020 = vunpack.c.l.b16 %v672
  %v1021 = vunpack.c.h.b16 %v672
  %v1022 = vunpack.c.l.b16 %v673
  %v1023 = vunpack.c.h.b16 %v673
  %v1024 = vunpack.c.l.b16 %v674
  %v1025 = vunpack.c.h.b16 %v674
  %v1026 = vunpack.c.l.b16 %v675
  %v1027 = vunpack.c.h.b16 %v675
  %v1028 = vunpack.c.l.b16 %v676
  %v1029 = vunpack.c.h.b16 %v676
  %v1030 = vunpack.c.l.b16 %v677
  %v1031 = vunpack.c.h.b16 %v677
  %v1032 = vunpack.c.l.b16 %v678
  %v1033 = vunpack.c.h.b16 %v678
  %v1034 = vunpack.c.l.b16 %v679
  %v1035 = vunpack.c.h.b16 %v679
  %v1036 = vunpack.c.l.b16 %v680
  %v1037 = vunpack.c.h.b16 %v680
  %v1038 = vunpack.c.l.b16 %v681
  %v1039 = vunpack.c.h.b16 %v681
  %v1040 = vunpack.c.l.b16 %v682
  %v1041 = vunpack.c.h.b16 %v682
  %v1042 = vunpack.c.l.b16 %v683
  %v1043 = vunpack.c.h.b16 %v683
  %v1044 = vunpack.c.l.b16 %v684
  %v1045 = vunpack.c.h.b16 %v684
  %v1046 = vunpack.c.l.b16 %v685
  %v1047 = vunpack.c.h.b16 %v685
  %v1048 = vunpack.c.l.b16 %v686
  %v1049 = vunpack.c.h.b16 %v686
  %v1050 = vunpack.c.l.b16 %v687
  %v1051 = vunpack.c.h.b16 %v687
  %v1052 = vunpack.c.l.b16 %v688
  %v1053 = vunpack.c.h.b16 %v688
  %v1054 = vunpack.c.l.b16 %v689
  %v1055 = vunpack.c.h.b16 %v689
  %v1056 = vunpack.c.l.b16 %v690
  %v1057 = vunpack.c.h.b16 %v690
  %v1058 = vunpack.c.l.b16 %v691
  %v1059 = vunpack.c.h.b16 %v691
  %v1060 = vunpack.c.l.b16 %v692
  %v1061 = vunpack.c.h.b16 %v692
  %v1062 = vunpack.c.l.b16 %v693
  %v1063 = vunpack.c.h.b16 %v693
  %v1064 = vunpack.c.l.b16 %v694
  %v1065 = vunpack.c.h.b16 %v694
  %v1066 = vunpack.c.l.b16 %v695
  %v1067 = vunpack.c.h.b16 %v695
  %v1068 = vunpack.c.l.b16 %v696
  %v1069 = vunpack.c.h.b16 %v696
  %v1070 = vunpack.c.l.b16 %v697
  %v1071 = vunpack.c.h.b16 %v697
  %v1072 = vunpack.c.l.b16 %v698
  %v1073 = vunpack.c.h.b16 %v698
  %v1074 = vunpack.c.l.b16 %v699
  %v1075 = vunpack.c.h.b16 %v699
  %v1076 = vunpack.c.l.b16 %v700
  %v1077 = vunpack.c.h.b16 %v700
  %v1078 = vunpack.c.l.b16 %v701
  %v1079 = vunpack.c.h.b16 %v701
  %v1080 = vunpack.c.l.b16 %v702
  %v1081 = vunpack.c.h.b16 %v702
  %v1082 = vunpack.c.l.b16 %v703
  %v1083 = vunpack.c.h.b16 %v703
  %v1084 = vunpack.c.l.b16 %v704
  %v1085 = vunpack.c.h.b16 %v704
  %v1086 = vunpack.c.l.b16 %v705
  %v1087 = vunpack.c.h.b16 %v705
  %v1088 = vunpack.c.l.b16 %v706
  %v1089 = vunpack.c.h.b16 %v706
  %v1090 = vunpack.c.l.b16 %v707
  %v1091 = vunpack.c.h.b16 %v707
  %v1092 = vpack.c.b16 %v844, %v836
  %v1093 = vpack.c.b16 %v845, %v837
  %v1094 = vpack.c.b16 %v846, %v838
  %v1095 = vpack.c.b16 %v847, %v839
  %v1096 = vpack.c.b16 %v848, %v840
  %v1097 = vpack.c.b16 %v849, %v841
  %v1098 = vpack.c.b16 %v850, %v842
  %v1099 = vpack.c.b16 %v851, %v843
  %v1100 = vpack.c.b16 %v860, %v852
  %v1101 = vpack.c.b16 %v861, %v853
  %v1102 = vpack.c.b16 %v862, %v854
  %v1103 = vpack.c.b16 %v863, %v855
  %v1104 = vpack.c.b16 %v864, %v856
  %v1105 = vpack.c.b16 %v865, %v857
  %v1106 = vpack.c.b16 %v866, %v858
  %v1107 = vpack.c.b16 %v867, %v859
  %v1108 = vpack.c.b16 %v876, %v868
  %v1109 = vpack.c.b16 %v877, %v869
  %v1110 = vpack.c.b16 %v878, %v870
  %v1111 = vpack.c.b16 %v879, %v871
  %v1112 = vpack.c.b16 %v880, %v872
  %v1113 = vpack.c.b16 %v881, %v873
  %v1114 = vpack.c.b16 %v882, %v874
  %v1115 = vpack.c.b16 %v883, %v875
  %v1116 = vpack.c.b16 %v892, %v884
  %v1117 = vpack.c.b16 %v893, %v885
  %v1118 = vpack.c.b16 %v894, %v886
  %v1119 = vpack.c.b16 %v895, %v887
  %v1120 = vpack.c.b16 %v896, %v888
  %v1121 = vpack.c.b16 %v897, %v889
  %v1122 = vpack.c.b16 %v898, %v890
  %v1123 = vpack.c.b16 %v899, %v891
  %v1124 = vpack.c.b16 %v908, %v900
  %v1125 = vpack.c.b16 %v909, %v901
  %v1126 = vpack.c.b16 %v910, %v902
  %v1127 = vpack.c.b16 %v911, %v903
  %v1128 = vpack.c.b16 %v912, %v904
  %v1129 = vpack.c.b16 %v913, %v905
  %v1130 = vpack.c.b16 %v914, %v906
  %v1131 = vpack.c.b16 %v915, %v907
  %v1132 = vpack.c.b16 %v924, %v916
  %v1133 = vpack.c.b16 %v925, %v917
  %v1134 = vpack.c.b16 %v926, %v918
  %v1135 = vpack.c.b16 %v927, %v919
  %v1136 = vpack.c.b16 %v928, %v920
  %v1137 = vpack.c.b16 %v929, %v921
  %v1138 = vpack.c.b16 %v930, %v922
  %v1139 = vpack.c.b16 %v931, %v923
  %v1140 = vpack.c.b16 %v940, %v932
  %v1141 = vpack.c.b16 %v941, %v933
  %v1142 = vpack.c.b16 %v942, %v934
  %v1143 = vpack.c.b16 %v943, %v935
  %v1144 = vpack.c.b16 %v944, %v936
  %v1145 = vpack.c.b16 %v945, %v937
  %v1146 = vpack.c.b16 %v946, %v938
  %v1147 = vpack.c.b16 %v947, %v939
  %v1148 = vpack.c.b16 %v956, %v948
  %v1149 = vpack.c.b16 %v957, %v949
  %v1150 = vpack.c.b16 %v958, %v950
  %v1151 = vpack.c.b16 %v959, %v951
  %v1152 = vpack.c.b16 %v960, %v952
  %v1153 = vpack.c.b16 %v961, %v953
  %v1154 = vpack.c.b16 %v962, %v954
  %v1155 = vpack.c.b16 %v963, %v955
  %v1156 = vpack.c.b16 %v972, %v964
  %v1157 = vpack.c.b16 %v973, %v965
  %v1158 = vpack.c.b16 %v974, %v966
  %v1159 = vpack.c.b16 %v975, %v967
  %v1160 = vpack.c.b16 %v976, %v968
  %v1161 = vpack.c.b16 %v977, %v969
  %v1162 = vpack.c.b16 %v978, %v970
  %v1163 = vpack.c.b16 %v979, %v971
  %v1164 = vpack.c.b16 %v988, %v980
  %v1165 = vpack.c.b16 %v989, %v981
  %v1166 = vpack.c.b16 %v990, %v982
  %v1167 = vpack.c.b16 %v991, %v983
  %v1168 = vpack.c.b16 %v992, %v984
  %v1169 = vpack.c.b16 %v993, %v985
  %v1170 = vpack.c.b16 %v994, %v986
  %v1171 = vpack.c.b16 %v995, %v987
  %v1172 = vpack.c.b16 %v1004, %v996
  %v1173 = vpack.c.b16 %v1005, %v997
  %v1174 = vpack.c.b16 %v1006, %v998
  %v1175 = vpack.c.b16 %v1007, %v999
  %v1176 = vpack.c.b16 %v1008, %v1000
  %v1177 = vpack.c.b16 %v1009, %v1001
  %v1178 = vpack.c.b16 %v1010, %v1002
  %v1179 = vpack.c.b16 %v1011, %v1003
  %v1180 = vpack.c.b16 %v1020, %v1012
  %v1181 = vpack.c.b16 %v1021, %v1013
  %v1182 = vpack.c.b16 %v1022, %v1014
  %v1183 = vpack.c.b16 %v1023, %v1015
  %v1184 = vpack.c.b16 %v1024, %v1016
  %v1185 = vpack.c.b16 %v1025, %v1017
  %v1186 = vpack.c.b16 %v1026, %v1018
  %v1187 = vpack.c.b16 %v1027, %v1019
  %v1188 = vpack.c.b16 %v1036, %v1028
  %v1189 = vpack.c.b16 %v1037, %v1029
  %v1190 = vpack.c.b16 %v1038, %v1030
  %v1191 = vpack.c.b16 %v1039, %v1031
  %v1192 = vpack.c.b16 %v1040, %v1032
  %v1193 = vpack.c.b16 %v1041, %v1033
  %v1194 = vpack.c.b16 %v1042, %v1034
  %v1195 = vpack.c.b16 %v1043, %v1035
  %v1196 = vpack.c.b16 %v1052, %v1044
  %v1197 = vpack.c.b16 %v1053, %v1045
  %v1198 = vpack.c.b16 %v1054, %v1046
  %v1199 = vpack.c.b16 %v1055, %v1047
  %v1200 = vpack.c.b16 %v1056, %v1048
  %v1201 = vpack.c.b16 %v1057, %v1049
  %v1202 = vpack.c.b16 %v1058, %v1050
  %v1203 = vpack.c.b16 %v1059, %v1051
  %v1204 = vpack.c.b16 %v1068, %v1060
  %v1205 = vpack.c.b16 %v1069, %v1061
  %v1206 = vpack.c.b16 %v1070, %v1062
  %v1207 = vpack.c.b16 %v1071, %v1063
  %v1208 = vpack.c.b16 %v1072, %v1064
  %v1209 = vpack.c.b16 %v1073, %v1065
  %v1210 = vpack.c.b16 %v1074, %v1066
  %v1211 = vpack.c.b16 %v1075, %v1067
  %v1212 = vpack.c.b16 %v1084, %v1076
  %v1213 = vpack.c.b16 %v1085, %v1077
  %v1214 = vpack.c.b16 %v1086, %v1078
  %v1215 = vpack.c.b16 %v1087, %v1079
  %v1216 = vpack.c.b16 %v1088, %v1080
  %v1217 = vpack.c.b16 %v1089, %v1081
  %v1218 = vpack.c.b16 %v1090, %v1082
  %v1219 = vpack.c.b16 %v1091, %v1083
  %1348 = vmatprep.subr.bf16.mxu0 %v1149
  %1349 = vmatpush1.bf16.msra.mxu0 %v1148
  %1350 = vmatprep.subr.bf16.mxu0 %v1141
  %1351 = vmatpush1.bf16.msra.mxu0 %v1140
  %1352 = vmatprep.subr.bf16.mxu0 %v1133
  %1353 = vmatpush1.bf16.msra.mxu0 %v1132
  %1354 = vmatprep.subr.bf16.mxu0 %v1125
  %1355 = vmatpush1.bf16.msra.mxu0 %v1124
  %1356 = vmatprep.subr.bf16.mxu0 %v1117
  %1357 = vmatpush1.bf16.msra.mxu0 %v1116
  %1358 = vmatprep.subr.bf16.mxu0 %v1109
  %1359 = vmatpush1.bf16.msra.mxu0 %v1108
  %1360 = vmatprep.subr.bf16.mxu0 %v1101
  %1361 = vmatpush1.bf16.msra.mxu0 %v1100
  %1362 = vmatprep.subr.bf16.mxu0 %v1093
  %1363 = vmatpush1.bf16.msra.mxu0 %v1092
  %1364 = vmatprep.subr.bf16.mxu0 %v1213
  %1365 = vmatpush2.bf16.msra.mxu0 %v1212
  %1366 = vmatprep.subr.bf16.mxu0 %v1205
  %1367 = vmatpush2.bf16.msra.mxu0 %v1204
  %1368 = vmatprep.subr.bf16.mxu0 %v1197
  %1369 = vmatpush2.bf16.msra.mxu0 %v1196
  %1370 = vmatprep.subr.bf16.mxu0 %v1189
  %1371 = vmatpush2.bf16.msra.mxu0 %v1188
  %1372 = vmatprep.subr.bf16.mxu0 %v1181
  %1373 = vmatpush2.bf16.msra.mxu0 %v1180
  %1374 = vmatprep.subr.bf16.mxu0 %v1173
  %1375 = vmatpush2.bf16.msra.mxu0 %v1172
  %1376 = vmatprep.subr.bf16.mxu0 %v1165
  %1377 = vmatpush2.bf16.msra.mxu0 %v1164
  %1378 = vmatprep.subr.bf16.mxu0 %v1157
  %1379 = vmatpush2.bf16.msra.mxu0 %v1156
  %1380 = vmatprep.mubr.bf16.mxu0 %v51
  %1381 = vmatmul.mubr.bf16.gmra.mxu0 %v50
  %v1382 = vpop.f32.mrf.mxu0
  %v1383 = vadd.f32 0.0, %v1382
  %v1384 = vpop.f32.mrf.mxu0
  %v1385 = vadd.f32 0.0, %v1384
  %v1386 = vpop.f32.mrf.mxu0
  %v1387 = vpop.f32.mrf.mxu0
  %1388 = vdwg.mxu0
  %1389 = vmatprep.subr.bf16.mxu0 %v1151
  %1390 = vmatpush1.bf16.msra.mxu0 %v1150
  %1391 = vmatprep.subr.bf16.mxu0 %v1143
  %1392 = vmatpush1.bf16.msra.mxu0 %v1142
  %1393 = vmatprep.subr.bf16.mxu0 %v1135
  %1394 = vmatpush1.bf16.msra.mxu0 %v1134
  %1395 = vmatprep.subr.bf16.mxu0 %v1127
  %1396 = vmatpush1.bf16.msra.mxu0 %v1126
  %1397 = vmatprep.subr.bf16.mxu0 %v1119
  %1398 = vmatpush1.bf16.msra.mxu0 %v1118
  %1399 = vmatprep.subr.bf16.mxu0 %v1111
  %1400 = vmatpush1.bf16.msra.mxu0 %v1110
  %1401 = vmatprep.subr.bf16.mxu0 %v1103
  %1402 = vmatpush1.bf16.msra.mxu0 %v1102
  %1403 = vmatprep.subr.bf16.mxu0 %v1095
  %1404 = vmatpush1.bf16.msra.mxu0 %v1094
  %1405 = vmatprep.subr.bf16.mxu0 %v1215
  %1406 = vmatpush2.bf16.msra.mxu0 %v1214
  %1407 = vmatprep.subr.bf16.mxu0 %v1207
  %1408 = vmatpush2.bf16.msra.mxu0 %v1206
  %1409 = vmatprep.subr.bf16.mxu0 %v1199
  %1410 = vmatpush2.bf16.msra.mxu0 %v1198
  %1411 = vmatprep.subr.bf16.mxu0 %v1191
  %1412 = vmatpush2.bf16.msra.mxu0 %v1190
  %1413 = vmatprep.subr.bf16.mxu0 %v1183
  %1414 = vmatpush2.bf16.msra.mxu0 %v1182
  %1415 = vmatprep.subr.bf16.mxu0 %v1175
  %1416 = vmatpush2.bf16.msra.mxu0 %v1174
  %1417 = vmatprep.subr.bf16.mxu0 %v1167
  %1418 = vmatpush2.bf16.msra.mxu0 %v1166
  %1419 = vmatprep.subr.bf16.mxu0 %v1159
  %1420 = vmatpush2.bf16.msra.mxu0 %v1158
  %1421 = vmatprep.mubr.bf16.mxu0 %v51
  %1422 = vmatmul.mubr.bf16.gmra.mxu0 %v50
  %v1423 = vpop.f32.mrf.mxu0
  %v1424 = vadd.f32 0.0, %v1423
  %v1425 = vpop.f32.mrf.mxu0
  %v1426 = vadd.f32 0.0, %v1425
  %v1427 = vpop.f32.mrf.mxu0
  %v1428 = vpop.f32.mrf.mxu0
  %1429 = vdwg.mxu0
  %1430 = vmatprep.subr.bf16.mxu0 %v1153
  %1431 = vmatpush1.bf16.msra.mxu0 %v1152
  %1432 = vmatprep.subr.bf16.mxu0 %v1145
  %1433 = vmatpush1.bf16.msra.mxu0 %v1144
  %1434 = vmatprep.subr.bf16.mxu0 %v1137
  %1435 = vmatpush1.bf16.msra.mxu0 %v1136
  %1436 = vmatprep.subr.bf16.mxu0 %v1129
  %1437 = vmatpush1.bf16.msra.mxu0 %v1128
  %1438 = vmatprep.subr.bf16.mxu0 %v1121
  %1439 = vmatpush1.bf16.msra.mxu0 %v1120
  %1440 = vmatprep.subr.bf16.mxu0 %v1113
  %1441 = vmatpush1.bf16.msra.mxu0 %v1112
  %1442 = vmatprep.subr.bf16.mxu0 %v1105
  %1443 = vmatpush1.bf16.msra.mxu0 %v1104
  %1444 = vmatprep.subr.bf16.mxu0 %v1097
  %1445 = vmatpush1.bf16.msra.mxu0 %v1096
  %1446 = vmatprep.subr.bf16.mxu0 %v1217
  %1447 = vmatpush2.bf16.msra.mxu0 %v1216
  %1448 = vmatprep.subr.bf16.mxu0 %v1209
  %1449 = vmatpush2.bf16.msra.mxu0 %v1208
  %1450 = vmatprep.subr.bf16.mxu0 %v1201
  %1451 = vmatpush2.bf16.msra.mxu0 %v1200
  %1452 = vmatprep.subr.bf16.mxu0 %v1193
  %1453 = vmatpush2.bf16.msra.mxu0 %v1192
  %1454 = vmatprep.subr.bf16.mxu0 %v1185
  %1455 = vmatpush2.bf16.msra.mxu0 %v1184
  %1456 = vmatprep.subr.bf16.mxu0 %v1177
  %1457 = vmatpush2.bf16.msra.mxu0 %v1176
  %1458 = vmatprep.subr.bf16.mxu0 %v1169
  %1459 = vmatpush2.bf16.msra.mxu0 %v1168
  %1460 = vmatprep.subr.bf16.mxu0 %v1161
  %1461 = vmatpush2.bf16.msra.mxu0 %v1160
  %1462 = vmatprep.mubr.bf16.mxu0 %v51
  %1463 = vmatmul.mubr.bf16.gmra.mxu0 %v50
  %v1464 = vpop.f32.mrf.mxu0
  %v1465 = vadd.f32 0.0, %v1464
  %v1466 = vpop.f32.mrf.mxu0
  %v1467 = vadd.f32 0.0, %v1466
  %v1468 = vpop.f32.mrf.mxu0
  %v1469 = vpop.f32.mrf.mxu0
  %1470 = vdwg.mxu0
  %1471 = vmatprep.subr.bf16.mxu0 %v1155
  %1472 = vmatpush1.bf16.msra.mxu0 %v1154
  %1473 = vmatprep.subr.bf16.mxu0 %v1147
  %1474 = vmatpush1.bf16.msra.mxu0 %v1146
  %1475 = vmatprep.subr.bf16.mxu0 %v1139
  %1476 = vmatpush1.bf16.msra.mxu0 %v1138
  %1477 = vmatprep.subr.bf16.mxu0 %v1131
  %1478 = vmatpush1.bf16.msra.mxu0 %v1130
  %1479 = vmatprep.subr.bf16.mxu0 %v1123
  %1480 = vmatpush1.bf16.msra.mxu0 %v1122
  %1481 = vmatprep.subr.bf16.mxu0 %v1115
  %1482 = vmatpush1.bf16.msra.mxu0 %v1114
  %1483 = vmatprep.subr.bf16.mxu0 %v1107
  %1484 = vmatpush1.bf16.msra.mxu0 %v1106
  %1485 = vmatprep.subr.bf16.mxu0 %v1099
  %1486 = vmatpush1.bf16.msra.mxu0 %v1098
  %1487 = vmatprep.subr.bf16.mxu0 %v1219
  %1488 = vmatpush2.bf16.msra.mxu0 %v1218
  %1489 = vmatprep.subr.bf16.mxu0 %v1211
  %1490 = vmatpush2.bf16.msra.mxu0 %v1210
  %1491 = vmatprep.subr.bf16.mxu0 %v1203
  %1492 = vmatpush2.bf16.msra.mxu0 %v1202
  %1493 = vmatprep.subr.bf16.mxu0 %v1195
  %1494 = vmatpush2.bf16.msra.mxu0 %v1194
  %1495 = vmatprep.subr.bf16.mxu0 %v1187
  %1496 = vmatpush2.bf16.msra.mxu0 %v1186
  %1497 = vmatprep.subr.bf16.mxu0 %v1179
  %1498 = vmatpush2.bf16.msra.mxu0 %v1178
  %1499 = vmatprep.subr.bf16.mxu0 %v1171
  %1500 = vmatpush2.bf16.msra.mxu0 %v1170
  %1501 = vmatprep.subr.bf16.mxu0 %v1163
  %1502 = vmatpush2.bf16.msra.mxu0 %v1162
  %1503 = vmatprep.mubr.bf16.mxu0 %v51
  %1504 = vmatmul.mubr.bf16.gmra.mxu0 %v50
  %v1505 = vpop.f32.mrf.mxu0
  %v1506 = vadd.f32 0.0, %v1505
  %v1507 = vpop.f32.mrf.mxu0
  %v1508 = vadd.f32 0.0, %v1507
  %v1509 = vpop.f32.mrf.mxu0
  %v1510 = vpop.f32.mrf.mxu0
  %1511 = vdwg.mxu0
  %v1640 = vunpack.c.l.b16 %v452
  %v1641 = vunpack.c.h.b16 %v452
  %v1642 = vunpack.c.l.b16 %v453
  %v1643 = vunpack.c.h.b16 %v453
  %v1644 = vunpack.c.l.b16 %v454
  %v1645 = vunpack.c.h.b16 %v454
  %v1646 = vunpack.c.l.b16 %v455
  %v1647 = vunpack.c.h.b16 %v455
  %v1648 = vunpack.c.l.b16 %v456
  %v1649 = vunpack.c.h.b16 %v456
  %v1650 = vunpack.c.l.b16 %v457
  %v1651 = vunpack.c.h.b16 %v457
  %v1652 = vunpack.c.l.b16 %v458
  %v1653 = vunpack.c.h.b16 %v458
  %v1654 = vunpack.c.l.b16 %v459
  %v1655 = vunpack.c.h.b16 %v459
  %v1656 = vunpack.c.l.b16 %v460
  %v1657 = vunpack.c.h.b16 %v460
  %v1658 = vunpack.c.l.b16 %v461
  %v1659 = vunpack.c.h.b16 %v461
  %v1660 = vunpack.c.l.b16 %v462
  %v1661 = vunpack.c.h.b16 %v462
  %v1662 = vunpack.c.l.b16 %v463
  %v1663 = vunpack.c.h.b16 %v463
  %v1664 = vunpack.c.l.b16 %v464
  %v1665 = vunpack.c.h.b16 %v464
  %v1666 = vunpack.c.l.b16 %v465
  %v1667 = vunpack.c.h.b16 %v465
  %v1668 = vunpack.c.l.b16 %v466
  %v1669 = vunpack.c.h.b16 %v466
  %v1670 = vunpack.c.l.b16 %v467
  %v1671 = vunpack.c.h.b16 %v467
  %v1672 = vunpack.c.l.b16 %v468
  %v1673 = vunpack.c.h.b16 %v468
  %v1674 = vunpack.c.l.b16 %v469
  %v1675 = vunpack.c.h.b16 %v469
  %v1676 = vunpack.c.l.b16 %v470
  %v1677 = vunpack.c.h.b16 %v470
  %v1678 = vunpack.c.l.b16 %v471
  %v1679 = vunpack.c.h.b16 %v471
  %v1680 = vunpack.c.l.b16 %v472
  %v1681 = vunpack.c.h.b16 %v472
  %v1682 = vunpack.c.l.b16 %v473
  %v1683 = vunpack.c.h.b16 %v473
  %v1684 = vunpack.c.l.b16 %v474
  %v1685 = vunpack.c.h.b16 %v474
  %v1686 = vunpack.c.l.b16 %v475
  %v1687 = vunpack.c.h.b16 %v475
  %v1688 = vunpack.c.l.b16 %v476
  %v1689 = vunpack.c.h.b16 %v476
  %v1690 = vunpack.c.l.b16 %v477
  %v1691 = vunpack.c.h.b16 %v477
  %v1692 = vunpack.c.l.b16 %v478
  %v1693 = vunpack.c.h.b16 %v478
  %v1694 = vunpack.c.l.b16 %v479
  %v1695 = vunpack.c.h.b16 %v479
  %v1696 = vunpack.c.l.b16 %v480
  %v1697 = vunpack.c.h.b16 %v480
  %v1698 = vunpack.c.l.b16 %v481
  %v1699 = vunpack.c.h.b16 %v481
  %v1700 = vunpack.c.l.b16 %v482
  %v1701 = vunpack.c.h.b16 %v482
  %v1702 = vunpack.c.l.b16 %v483
  %v1703 = vunpack.c.h.b16 %v483
  %v1704 = vunpack.c.l.b16 %v484
  %v1705 = vunpack.c.h.b16 %v484
  %v1706 = vunpack.c.l.b16 %v485
  %v1707 = vunpack.c.h.b16 %v485
  %v1708 = vunpack.c.l.b16 %v486
  %v1709 = vunpack.c.h.b16 %v486
  %v1710 = vunpack.c.l.b16 %v487
  %v1711 = vunpack.c.h.b16 %v487
  %v1712 = vunpack.c.l.b16 %v488
  %v1713 = vunpack.c.h.b16 %v488
  %v1714 = vunpack.c.l.b16 %v489
  %v1715 = vunpack.c.h.b16 %v489
  %v1716 = vunpack.c.l.b16 %v490
  %v1717 = vunpack.c.h.b16 %v490
  %v1718 = vunpack.c.l.b16 %v491
  %v1719 = vunpack.c.h.b16 %v491
  %v1720 = vunpack.c.l.b16 %v492
  %v1721 = vunpack.c.h.b16 %v492
  %v1722 = vunpack.c.l.b16 %v493
  %v1723 = vunpack.c.h.b16 %v493
  %v1724 = vunpack.c.l.b16 %v494
  %v1725 = vunpack.c.h.b16 %v494
  %v1726 = vunpack.c.l.b16 %v495
  %v1727 = vunpack.c.h.b16 %v495
  %v1728 = vunpack.c.l.b16 %v496
  %v1729 = vunpack.c.h.b16 %v496
  %v1730 = vunpack.c.l.b16 %v497
  %v1731 = vunpack.c.h.b16 %v497
  %v1732 = vunpack.c.l.b16 %v498
  %v1733 = vunpack.c.h.b16 %v498
  %v1734 = vunpack.c.l.b16 %v499
  %v1735 = vunpack.c.h.b16 %v499
  %v1736 = vunpack.c.l.b16 %v500
  %v1737 = vunpack.c.h.b16 %v500
  %v1738 = vunpack.c.l.b16 %v501
  %v1739 = vunpack.c.h.b16 %v501
  %v1740 = vunpack.c.l.b16 %v502
  %v1741 = vunpack.c.h.b16 %v502
  %v1742 = vunpack.c.l.b16 %v503
  %v1743 = vunpack.c.h.b16 %v503
  %v1744 = vunpack.c.l.b16 %v504
  %v1745 = vunpack.c.h.b16 %v504
  %v1746 = vunpack.c.l.b16 %v505
  %v1747 = vunpack.c.h.b16 %v505
  %v1748 = vunpack.c.l.b16 %v506
  %v1749 = vunpack.c.h.b16 %v506
  %v1750 = vunpack.c.l.b16 %v507
  %v1751 = vunpack.c.h.b16 %v507
  %v1752 = vunpack.c.l.b16 %v508
  %v1753 = vunpack.c.h.b16 %v508
  %v1754 = vunpack.c.l.b16 %v509
  %v1755 = vunpack.c.h.b16 %v509
  %v1756 = vunpack.c.l.b16 %v510
  %v1757 = vunpack.c.h.b16 %v510
  %v1758 = vunpack.c.l.b16 %v511
  %v1759 = vunpack.c.h.b16 %v511
  %v1760 = vunpack.c.l.b16 %v512
  %v1761 = vunpack.c.h.b16 %v512
  %v1762 = vunpack.c.l.b16 %v513
  %v1763 = vunpack.c.h.b16 %v513
  %v1764 = vunpack.c.l.b16 %v514
  %v1765 = vunpack.c.h.b16 %v514
  %v1766 = vunpack.c.l.b16 %v515
  %v1767 = vunpack.c.h.b16 %v515
  %v1768 = vunpack.c.l.b16 %v516
  %v1769 = vunpack.c.h.b16 %v516
  %v1770 = vunpack.c.l.b16 %v517
  %v1771 = vunpack.c.h.b16 %v517
  %v1772 = vunpack.c.l.b16 %v518
  %v1773 = vunpack.c.h.b16 %v518
  %v1774 = vunpack.c.l.b16 %v519
  %v1775 = vunpack.c.h.b16 %v519
  %v1776 = vunpack.c.l.b16 %v520
  %v1777 = vunpack.c.h.b16 %v520
  %v1778 = vunpack.c.l.b16 %v521
  %v1779 = vunpack.c.h.b16 %v521
  %v1780 = vunpack.c.l.b16 %v522
  %v1781 = vunpack.c.h.b16 %v522
  %v1782 = vunpack.c.l.b16 %v523
  %v1783 = vunpack.c.h.b16 %v523
  %v1784 = vunpack.c.l.b16 %v524
  %v1785 = vunpack.c.h.b16 %v524
  %v1786 = vunpack.c.l.b16 %v525
  %v1787 = vunpack.c.h.b16 %v525
  %v1788 = vunpack.c.l.b16 %v526
  %v1789 = vunpack.c.h.b16 %v526
  %v1790 = vunpack.c.l.b16 %v527
  %v1791 = vunpack.c.h.b16 %v527
  %v1792 = vunpack.c.l.b16 %v528
  %v1793 = vunpack.c.h.b16 %v528
  %v1794 = vunpack.c.l.b16 %v529
  %v1795 = vunpack.c.h.b16 %v529
  %v1796 = vunpack.c.l.b16 %v530
  %v1797 = vunpack.c.h.b16 %v530
  %v1798 = vunpack.c.l.b16 %v531
  %v1799 = vunpack.c.h.b16 %v531
  %v1800 = vunpack.c.l.b16 %v532
  %v1801 = vunpack.c.h.b16 %v532
  %v1802 = vunpack.c.l.b16 %v533
  %v1803 = vunpack.c.h.b16 %v533
  %v1804 = vunpack.c.l.b16 %v534
  %v1805 = vunpack.c.h.b16 %v534
  %v1806 = vunpack.c.l.b16 %v535
  %v1807 = vunpack.c.h.b16 %v535
  %v1808 = vunpack.c.l.b16 %v536
  %v1809 = vunpack.c.h.b16 %v536
  %v1810 = vunpack.c.l.b16 %v537
  %v1811 = vunpack.c.h.b16 %v537
  %v1812 = vunpack.c.l.b16 %v538
  %v1813 = vunpack.c.h.b16 %v538
  %v1814 = vunpack.c.l.b16 %v539
  %v1815 = vunpack.c.h.b16 %v539
  %v1816 = vunpack.c.l.b16 %v540
  %v1817 = vunpack.c.h.b16 %v540
  %v1818 = vunpack.c.l.b16 %v541
  %v1819 = vunpack.c.h.b16 %v541
  %v1820 = vunpack.c.l.b16 %v542
  %v1821 = vunpack.c.h.b16 %v542
  %v1822 = vunpack.c.l.b16 %v543
  %v1823 = vunpack.c.h.b16 %v543
  %v1824 = vunpack.c.l.b16 %v544
  %v1825 = vunpack.c.h.b16 %v544
  %v1826 = vunpack.c.l.b16 %v545
  %v1827 = vunpack.c.h.b16 %v545
  %v1828 = vunpack.c.l.b16 %v546
  %v1829 = vunpack.c.h.b16 %v546
  %v1830 = vunpack.c.l.b16 %v547
  %v1831 = vunpack.c.h.b16 %v547
  %v1832 = vunpack.c.l.b16 %v548
  %v1833 = vunpack.c.h.b16 %v548
  %v1834 = vunpack.c.l.b16 %v549
  %v1835 = vunpack.c.h.b16 %v549
  %v1836 = vunpack.c.l.b16 %v550
  %v1837 = vunpack.c.h.b16 %v550
  %v1838 = vunpack.c.l.b16 %v551
  %v1839 = vunpack.c.h.b16 %v551
  %v1840 = vunpack.c.l.b16 %v552
  %v1841 = vunpack.c.h.b16 %v552
  %v1842 = vunpack.c.l.b16 %v553
  %v1843 = vunpack.c.h.b16 %v553
  %v1844 = vunpack.c.l.b16 %v554
  %v1845 = vunpack.c.h.b16 %v554
  %v1846 = vunpack.c.l.b16 %v555
  %v1847 = vunpack.c.h.b16 %v555
  %v1848 = vunpack.c.l.b16 %v556
  %v1849 = vunpack.c.h.b16 %v556
  %v1850 = vunpack.c.l.b16 %v557
  %v1851 = vunpack.c.h.b16 %v557
  %v1852 = vunpack.c.l.b16 %v558
  %v1853 = vunpack.c.h.b16 %v558
  %v1854 = vunpack.c.l.b16 %v559
  %v1855 = vunpack.c.h.b16 %v559
  %v1856 = vunpack.c.l.b16 %v560
  %v1857 = vunpack.c.h.b16 %v560
  %v1858 = vunpack.c.l.b16 %v561
  %v1859 = vunpack.c.h.b16 %v561
  %v1860 = vunpack.c.l.b16 %v562
  %v1861 = vunpack.c.h.b16 %v562
  %v1862 = vunpack.c.l.b16 %v563
  %v1863 = vunpack.c.h.b16 %v563
  %v1864 = vunpack.c.l.b16 %v564
  %v1865 = vunpack.c.h.b16 %v564
  %v1866 = vunpack.c.l.b16 %v565
  %v1867 = vunpack.c.h.b16 %v565
  %v1868 = vunpack.c.l.b16 %v566
  %v1869 = vunpack.c.h.b16 %v566
  %v1870 = vunpack.c.l.b16 %v567
  %v1871 = vunpack.c.h.b16 %v567
  %v1872 = vunpack.c.l.b16 %v568
  %v1873 = vunpack.c.h.b16 %v568
  %v1874 = vunpack.c.l.b16 %v569
  %v1875 = vunpack.c.h.b16 %v569
  %v1876 = vunpack.c.l.b16 %v570
  %v1877 = vunpack.c.h.b16 %v570
  %v1878 = vunpack.c.l.b16 %v571
  %v1879 = vunpack.c.h.b16 %v571
  %v1880 = vunpack.c.l.b16 %v572
  %v1881 = vunpack.c.h.b16 %v572
  %v1882 = vunpack.c.l.b16 %v573
  %v1883 = vunpack.c.h.b16 %v573
  %v1884 = vunpack.c.l.b16 %v574
  %v1885 = vunpack.c.h.b16 %v574
  %v1886 = vunpack.c.l.b16 %v575
  %v1887 = vunpack.c.h.b16 %v575
  %v1888 = vunpack.c.l.b16 %v576
  %v1889 = vunpack.c.h.b16 %v576
  %v1890 = vunpack.c.l.b16 %v577
  %v1891 = vunpack.c.h.b16 %v577
  %v1892 = vunpack.c.l.b16 %v578
  %v1893 = vunpack.c.h.b16 %v578
  %v1894 = vunpack.c.l.b16 %v579
  %v1895 = vunpack.c.h.b16 %v579
  %v1896 = vpack.c.b16 %v1648, %v1640
  %v1897 = vpack.c.b16 %v1649, %v1641
  %v1898 = vpack.c.b16 %v1650, %v1642
  %v1899 = vpack.c.b16 %v1651, %v1643
  %v1900 = vpack.c.b16 %v1652, %v1644
  %v1901 = vpack.c.b16 %v1653, %v1645
  %v1902 = vpack.c.b16 %v1654, %v1646
  %v1903 = vpack.c.b16 %v1655, %v1647
  %v1904 = vpack.c.b16 %v1664, %v1656
  %v1905 = vpack.c.b16 %v1665, %v1657
  %v1906 = vpack.c.b16 %v1666, %v1658
  %v1907 = vpack.c.b16 %v1667, %v1659
  %v1908 = vpack.c.b16 %v1668, %v1660
  %v1909 = vpack.c.b16 %v1669, %v1661
  %v1910 = vpack.c.b16 %v1670, %v1662
  %v1911 = vpack.c.b16 %v1671, %v1663
  %v1912 = vpack.c.b16 %v1680, %v1672
  %v1913 = vpack.c.b16 %v1681, %v1673
  %v1914 = vpack.c.b16 %v1682, %v1674
  %v1915 = vpack.c.b16 %v1683, %v1675
  %v1916 = vpack.c.b16 %v1684, %v1676
  %v1917 = vpack.c.b16 %v1685, %v1677
  %v1918 = vpack.c.b16 %v1686, %v1678
  %v1919 = vpack.c.b16 %v1687, %v1679
  %v1920 = vpack.c.b16 %v1696, %v1688
  %v1921 = vpack.c.b16 %v1697, %v1689
  %v1922 = vpack.c.b16 %v1698, %v1690
  %v1923 = vpack.c.b16 %v1699, %v1691
  %v1924 = vpack.c.b16 %v1700, %v1692
  %v1925 = vpack.c.b16 %v1701, %v1693
  %v1926 = vpack.c.b16 %v1702, %v1694
  %v1927 = vpack.c.b16 %v1703, %v1695
  %v1928 = vpack.c.b16 %v1712, %v1704
  %v1929 = vpack.c.b16 %v1713, %v1705
  %v1930 = vpack.c.b16 %v1714, %v1706
  %v1931 = vpack.c.b16 %v1715, %v1707
  %v1932 = vpack.c.b16 %v1716, %v1708
  %v1933 = vpack.c.b16 %v1717, %v1709
  %v1934 = vpack.c.b16 %v1718, %v1710
  %v1935 = vpack.c.b16 %v1719, %v1711
  %v1936 = vpack.c.b16 %v1728, %v1720
  %v1937 = vpack.c.b16 %v1729, %v1721
  %v1938 = vpack.c.b16 %v1730, %v1722
  %v1939 = vpack.c.b16 %v1731, %v1723
  %v1940 = vpack.c.b16 %v1732, %v1724
  %v1941 = vpack.c.b16 %v1733, %v1725
  %v1942 = vpack.c.b16 %v1734, %v1726
  %v1943 = vpack.c.b16 %v1735, %v1727
  %v1944 = vpack.c.b16 %v1744, %v1736
  %v1945 = vpack.c.b16 %v1745, %v1737
  %v1946 = vpack.c.b16 %v1746, %v1738
  %v1947 = vpack.c.b16 %v1747, %v1739
  %v1948 = vpack.c.b16 %v1748, %v1740
  %v1949 = vpack.c.b16 %v1749, %v1741
  %v1950 = vpack.c.b16 %v1750, %v1742
  %v1951 = vpack.c.b16 %v1751, %v1743
  %v1952 = vpack.c.b16 %v1760, %v1752
  %v1953 = vpack.c.b16 %v1761, %v1753
  %v1954 = vpack.c.b16 %v1762, %v1754
  %v1955 = vpack.c.b16 %v1763, %v1755
  %v1956 = vpack.c.b16 %v1764, %v1756
  %v1957 = vpack.c.b16 %v1765, %v1757
  %v1958 = vpack.c.b16 %v1766, %v1758
  %v1959 = vpack.c.b16 %v1767, %v1759
  %v1960 = vpack.c.b16 %v1776, %v1768
  %v1961 = vpack.c.b16 %v1777, %v1769
  %v1962 = vpack.c.b16 %v1778, %v1770
  %v1963 = vpack.c.b16 %v1779, %v1771
  %v1964 = vpack.c.b16 %v1780, %v1772
  %v1965 = vpack.c.b16 %v1781, %v1773
  %v1966 = vpack.c.b16 %v1782, %v1774
  %v1967 = vpack.c.b16 %v1783, %v1775
  %v1968 = vpack.c.b16 %v1792, %v1784
  %v1969 = vpack.c.b16 %v1793, %v1785
  %v1970 = vpack.c.b16 %v1794, %v1786
  %v1971 = vpack.c.b16 %v1795, %v1787
  %v1972 = vpack.c.b16 %v1796, %v1788
  %v1973 = vpack.c.b16 %v1797, %v1789
  %v1974 = vpack.c.b16 %v1798, %v1790
  %v1975 = vpack.c.b16 %v1799, %v1791
  %v1976 = vpack.c.b16 %v1808, %v1800
  %v1977 = vpack.c.b16 %v1809, %v1801
  %v1978 = vpack.c.b16 %v1810, %v1802
  %v1979 = vpack.c.b16 %v1811, %v1803
  %v1980 = vpack.c.b16 %v1812, %v1804
  %v1981 = vpack.c.b16 %v1813, %v1805
  %v1982 = vpack.c.b16 %v1814, %v1806
  %v1983 = vpack.c.b16 %v1815, %v1807
  %v1984 = vpack.c.b16 %v1824, %v1816
  %v1985 = vpack.c.b16 %v1825, %v1817
  %v1986 = vpack.c.b16 %v1826, %v1818
  %v1987 = vpack.c.b16 %v1827, %v1819
  %v1988 = vpack.c.b16 %v1828, %v1820
  %v1989 = vpack.c.b16 %v1829, %v1821
  %v1990 = vpack.c.b16 %v1830, %v1822
  %v1991 = vpack.c.b16 %v1831, %v1823
  %v1992 = vpack.c.b16 %v1840, %v1832
  %v1993 = vpack.c.b16 %v1841, %v1833
  %v1994 = vpack.c.b16 %v1842, %v1834
  %v1995 = vpack.c.b16 %v1843, %v1835
  %v1996 = vpack.c.b16 %v1844, %v1836
  %v1997 = vpack.c.b16 %v1845, %v1837
  %v1998 = vpack.c.b16 %v1846, %v1838
  %v1999 = vpack.c.b16 %v1847, %v1839
  %v2000 = vpack.c.b16 %v1856, %v1848
  %v2001 = vpack.c.b16 %v1857, %v1849
  %v2002 = vpack.c.b16 %v1858, %v1850
  %v2003 = vpack.c.b16 %v1859, %v1851
  %v2004 = vpack.c.b16 %v1860, %v1852
  %v2005 = vpack.c.b16 %v1861, %v1853
  %v2006 = vpack.c.b16 %v1862, %v1854
  %v2007 = vpack.c.b16 %v1863, %v1855
  %v2008 = vpack.c.b16 %v1872, %v1864
  %v2009 = vpack.c.b16 %v1873, %v1865
  %v2010 = vpack.c.b16 %v1874, %v1866
  %v2011 = vpack.c.b16 %v1875, %v1867
  %v2012 = vpack.c.b16 %v1876, %v1868
  %v2013 = vpack.c.b16 %v1877, %v1869
  %v2014 = vpack.c.b16 %v1878, %v1870
  %v2015 = vpack.c.b16 %v1879, %v1871
  %v2016 = vpack.c.b16 %v1888, %v1880
  %v2017 = vpack.c.b16 %v1889, %v1881
  %v2018 = vpack.c.b16 %v1890, %v1882
  %v2019 = vpack.c.b16 %v1891, %v1883
  %v2020 = vpack.c.b16 %v1892, %v1884
  %v2021 = vpack.c.b16 %v1893, %v1885
  %v2022 = vpack.c.b16 %v1894, %v1886
  %v2023 = vpack.c.b16 %v1895, %v1887
  %2152 = vmatprep.subr.bf16.mxu0 %v1953
  %2153 = vmatpush1.bf16.msra.mxu0 %v1952
  %2154 = vmatprep.subr.bf16.mxu0 %v1945
  %2155 = vmatpush1.bf16.msra.mxu0 %v1944
  %2156 = vmatprep.subr.bf16.mxu0 %v1937
  %2157 = vmatpush1.bf16.msra.mxu0 %v1936
  %2158 = vmatprep.subr.bf16.mxu0 %v1929
  %2159 = vmatpush1.bf16.msra.mxu0 %v1928
  %2160 = vmatprep.subr.bf16.mxu0 %v1921
  %2161 = vmatpush1.bf16.msra.mxu0 %v1920
  %2162 = vmatprep.subr.bf16.mxu0 %v1913
  %2163 = vmatpush1.bf16.msra.mxu0 %v1912
  %2164 = vmatprep.subr.bf16.mxu0 %v1905
  %2165 = vmatpush1.bf16.msra.mxu0 %v1904
  %2166 = vmatprep.subr.bf16.mxu0 %v1897
  %2167 = vmatpush1.bf16.msra.mxu0 %v1896
  %2168 = vmatprep.subr.bf16.mxu0 %v2017
  %2169 = vmatpush2.bf16.msra.mxu0 %v2016
  %2170 = vmatprep.subr.bf16.mxu0 %v2009
  %2171 = vmatpush2.bf16.msra.mxu0 %v2008
  %2172 = vmatprep.subr.bf16.mxu0 %v2001
  %2173 = vmatpush2.bf16.msra.mxu0 %v2000
  %2174 = vmatprep.subr.bf16.mxu0 %v1993
  %2175 = vmatpush2.bf16.msra.mxu0 %v1992
  %2176 = vmatprep.subr.bf16.mxu0 %v1985
  %2177 = vmatpush2.bf16.msra.mxu0 %v1984
  %2178 = vmatprep.subr.bf16.mxu0 %v1977
  %2179 = vmatpush2.bf16.msra.mxu0 %v1976
  %2180 = vmatprep.subr.bf16.mxu0 %v1969
  %2181 = vmatpush2.bf16.msra.mxu0 %v1968
  %2182 = vmatprep.subr.bf16.mxu0 %v1961
  %2183 = vmatpush2.bf16.msra.mxu0 %v1960
  %2184 = vmatprep.mubr.bf16.mxu0 %v451
  %2185 = vmatmul.mubr.bf16.gmra.mxu0 %v450
  %v2186 = vpop.f32.mrf.mxu0
  %v2187 = vadd.f32 %v1383, %v2186
  %v2188 = vpop.f32.mrf.mxu0
  %v2189 = vadd.f32 %v1385, %v2188
  %v2190 = vpop.f32.mrf.mxu0
  %v2191 = vpop.f32.mrf.mxu0
  %2192 = vdwg.mxu0
  %2193 = vmatprep.subr.bf16.mxu0 %v1955
  %2194 = vmatpush1.bf16.msra.mxu0 %v1954
  %2195 = vmatprep.subr.bf16.mxu0 %v1947
  %2196 = vmatpush1.bf16.msra.mxu0 %v1946
  %2197 = vmatprep.subr.bf16.mxu0 %v1939
  %2198 = vmatpush1.bf16.msra.mxu0 %v1938
  %2199 = vmatprep.subr.bf16.mxu0 %v1931
  %2200 = vmatpush1.bf16.msra.mxu0 %v1930
  %2201 = vmatprep.subr.bf16.mxu0 %v1923
  %2202 = vmatpush1.bf16.msra.mxu0 %v1922
  %2203 = vmatprep.subr.bf16.mxu0 %v1915
  %2204 = vmatpush1.bf16.msra.mxu0 %v1914
  %2205 = vmatprep.subr.bf16.mxu0 %v1907
  %2206 = vmatpush1.bf16.msra.mxu0 %v1906
  %2207 = vmatprep.subr.bf16.mxu0 %v1899
  %2208 = vmatpush1.bf16.msra.mxu0 %v1898
  %2209 = vmatprep.subr.bf16.mxu0 %v2019
  %2210 = vmatpush2.bf16.msra.mxu0 %v2018
  %2211 = vmatprep.subr.bf16.mxu0 %v2011
  %2212 = vmatpush2.bf16.msra.mxu0 %v2010
  %2213 = vmatprep.subr.bf16.mxu0 %v2003
  %2214 = vmatpush2.bf16.msra.mxu0 %v2002
  %2215 = vmatprep.subr.bf16.mxu0 %v1995
  %2216 = vmatpush2.bf16.msra.mxu0 %v1994
  %2217 = vmatprep.subr.bf16.mxu0 %v1987
  %2218 = vmatpush2.bf16.msra.mxu0 %v1986
  %2219 = vmatprep.subr.bf16.mxu0 %v1979
  %2220 = vmatpush2.bf16.msra.mxu0 %v1978
  %2221 = vmatprep.subr.bf16.mxu0 %v1971
  %2222 = vmatpush2.bf16.msra.mxu0 %v1970
  %2223 = vmatprep.subr.bf16.mxu0 %v1963
  %2224 = vmatpush2.bf16.msra.mxu0 %v1962
  %2225 = vmatprep.mubr.bf16.mxu0 %v451
  %2226 = vmatmul.mubr.bf16.gmra.mxu0 %v450
  %v2227 = vpop.f32.mrf.mxu0
  %v2228 = vadd.f32 %v1424, %v2227
  %v2229 = vpop.f32.mrf.mxu0
  %v2230 = vadd.f32 %v1426, %v2229
  %v2231 = vpop.f32.mrf.mxu0
  %v2232 = vpop.f32.mrf.mxu0
  %2233 = vdwg.mxu0
  %2234 = vmatprep.subr.bf16.mxu0 %v1957
  %2235 = vmatpush1.bf16.msra.mxu0 %v1956
  %2236 = vmatprep.subr.bf16.mxu0 %v1949
  %2237 = vmatpush1.bf16.msra.mxu0 %v1948
  %2238 = vmatprep.subr.bf16.mxu0 %v1941
  %2239 = vmatpush1.bf16.msra.mxu0 %v1940
  %2240 = vmatprep.subr.bf16.mxu0 %v1933
  %2241 = vmatpush1.bf16.msra.mxu0 %v1932
  %2242 = vmatprep.subr.bf16.mxu0 %v1925
  %2243 = vmatpush1.bf16.msra.mxu0 %v1924
  %2244 = vmatprep.subr.bf16.mxu0 %v1917
  %2245 = vmatpush1.bf16.msra.mxu0 %v1916
  %2246 = vmatprep.subr.bf16.mxu0 %v1909
  %2247 = vmatpush1.bf16.msra.mxu0 %v1908
  %2248 = vmatprep.subr.bf16.mxu0 %v1901
  %2249 = vmatpush1.bf16.msra.mxu0 %v1900
  %2250 = vmatprep.subr.bf16.mxu0 %v2021
  %2251 = vmatpush2.bf16.msra.mxu0 %v2020
  %2252 = vmatprep.subr.bf16.mxu0 %v2013
  %2253 = vmatpush2.bf16.msra.mxu0 %v2012
  %2254 = vmatprep.subr.bf16.mxu0 %v2005
  %2255 = vmatpush2.bf16.msra.mxu0 %v2004
  %2256 = vmatprep.subr.bf16.mxu0 %v1997
  %2257 = vmatpush2.bf16.msra.mxu0 %v1996
  %2258 = vmatprep.subr.bf16.mxu0 %v1989
  %2259 = vmatpush2.bf16.msra.mxu0 %v1988
  %2260 = vmatprep.subr.bf16.mxu0 %v1981
  %2261 = vmatpush2.bf16.msra.mxu0 %v1980
  %2262 = vmatprep.subr.bf16.mxu0 %v1973
  %2263 = vmatpush2.bf16.msra.mxu0 %v1972
  %2264 = vmatprep.subr.bf16.mxu0 %v1965
  %2265 = vmatpush2.bf16.msra.mxu0 %v1964
  %2266 = vmatprep.mubr.bf16.mxu0 %v451
  %2267 = vmatmul.mubr.bf16.gmra.mxu0 %v450
  %v2268 = vpop.f32.mrf.mxu0
  %v2269 = vadd.f32 %v1465, %v2268
  %v2270 = vpop.f32.mrf.mxu0
  %v2271 = vadd.f32 %v1467, %v2270
  %v2272 = vpop.f32.mrf.mxu0
  %v2273 = vpop.f32.mrf.mxu0
  %2274 = vdwg.mxu0
  %2275 = vmatprep.subr.bf16.mxu0 %v1959
  %2276 = vmatpush1.bf16.msra.mxu0 %v1958
  %2277 = vmatprep.subr.bf16.mxu0 %v1951
  %2278 = vmatpush1.bf16.msra.mxu0 %v1950
  %2279 = vmatprep.subr.bf16.mxu0 %v1943
  %2280 = vmatpush1.bf16.msra.mxu0 %v1942
  %2281 = vmatprep.subr.bf16.mxu0 %v1935
  %2282 = vmatpush1.bf16.msra.mxu0 %v1934
  %2283 = vmatprep.subr.bf16.mxu0 %v1927
  %2284 = vmatpush1.bf16.msra.mxu0 %v1926
  %2285 = vmatprep.subr.bf16.mxu0 %v1919
  %2286 = vmatpush1.bf16.msra.mxu0 %v1918
  %2287 = vmatprep.subr.bf16.mxu0 %v1911
  %2288 = vmatpush1.bf16.msra.mxu0 %v1910
  %2289 = vmatprep.subr.bf16.mxu0 %v1903
  %2290 = vmatpush1.bf16.msra.mxu0 %v1902
  %2291 = vmatprep.subr.bf16.mxu0 %v2023
  %2292 = vmatpush2.bf16.msra.mxu0 %v2022
  %2293 = vmatprep.subr.bf16.mxu0 %v2015
  %2294 = vmatpush2.bf16.msra.mxu0 %v2014
  %2295 = vmatprep.subr.bf16.mxu0 %v2007
  %2296 = vmatpush2.bf16.msra.mxu0 %v2006
  %2297 = vmatprep.subr.bf16.mxu0 %v1999
  %2298 = vmatpush2.bf16.msra.mxu0 %v1998
  %2299 = vmatprep.subr.bf16.mxu0 %v1991
  %2300 = vmatpush2.bf16.msra.mxu0 %v1990
  %2301 = vmatprep.subr.bf16.mxu0 %v1983
  %2302 = vmatpush2.bf16.msra.mxu0 %v1982
  %2303 = vmatprep.subr.bf16.mxu0 %v1975
  %2304 = vmatpush2.bf16.msra.mxu0 %v1974
  %2305 = vmatprep.subr.bf16.mxu0 %v1967
  %2306 = vmatpush2.bf16.msra.mxu0 %v1966
  %2307 = vmatprep.mubr.bf16.mxu0 %v451
  %2308 = vmatmul.mubr.bf16.gmra.mxu0 %v450
  %v2309 = vpop.f32.mrf.mxu0
  %v2310 = vadd.f32 %v1506, %v2309
  %v2311 = vpop.f32.mrf.mxu0
  %v2312 = vadd.f32 %v1508, %v2311
  %v2313 = vpop.f32.mrf.mxu0
  %v2314 = vpop.f32.mrf.mxu0
  %2315 = vdwg.mxu0
  %v2316 = vld [vmem:[%s7] sm:$0xff]
  %v2318 = vlaneseq
  %v2319 = vshrl.u32 %v2318, 7
  %v2320 = vsub.s32 0, %v2319
  %v2321 = vrot.slane %v2316, %v2320
  %v2322 = vlaneseq
  %v2323 = vshrl.u32 %v2322, 7
  %v2324 = vsub.s32 1, %v2323
  %v2325 = vrot.slane %v2316, %v2324
  %v2326 = vlaneseq
  %v2327 = vshrl.u32 %v2326, 7
  %v2328 = vsub.s32 2, %v2327
  %v2329 = vrot.slane %v2316, %v2328
  %v2330 = vlaneseq
  %v2331 = vshrl.u32 %v2330, 7
  %v2332 = vsub.s32 3, %v2331
  %v2333 = vrot.slane %v2316, %v2332
  %v2334 = vlaneseq
  %v2335 = vshrl.u32 %v2334, 7
  %v2336 = vsub.s32 4, %v2335
  %v2337 = vrot.slane %v2316, %v2336
  %v2338 = vlaneseq
  %v2339 = vshrl.u32 %v2338, 7
  %v2340 = vsub.s32 5, %v2339
  %v2341 = vrot.slane %v2316, %v2340
  %v2342 = vlaneseq
  %v2343 = vshrl.u32 %v2342, 7
  %v2344 = vsub.s32 6, %v2343
  %v2345 = vrot.slane %v2316, %v2344
  %v2346 = vlaneseq
  %v2347 = vshrl.u32 %v2346, 7
  %v2348 = vsub.s32 7, %v2347
  %v2349 = vrot.slane %v2316, %v2348
  %v2358 = vadd.f32 %v2187, %v2321
  %v2359 = vadd.f32 %v2189, %v2325
  %v2360 = vadd.f32 %v2228, %v2329
  %v2361 = vadd.f32 %v2230, %v2333
  %v2362 = vadd.f32 %v2269, %v2337
  %v2363 = vadd.f32 %v2271, %v2341
  %v2364 = vadd.f32 %v2310, %v2345
  %v2365 = vadd.f32 %v2312, %v2349
  %v2366 = vmul.f32 %v2358, 0.5
  %v2367 = vmul.f32 %v2359, 0.5
  %v2368 = vtanh.pop %v2366
  %v2369 = vtanh.pop %v2367
  %v2370 = vmul.f32 %v2368, 0.5
  %v2371 = vmul.f32 %v2369, 0.5
  %v2372 = vadd.f32 %v2370, 0.5
  %v2373 = vadd.f32 %v2371, 0.5
  %v2374 = vmul.f32 %v2360, 0.5
  %v2375 = vmul.f32 %v2361, 0.5
  %v2376 = vtanh.pop %v2374
  %v2377 = vtanh.pop %v2375
  %v2378 = vmul.f32 %v2376, 0.5
  %v2379 = vmul.f32 %v2377, 0.5
  %v2380 = vadd.f32 %v2378, 0.5
  %v2381 = vadd.f32 %v2379, 0.5
  %v2382 = vtanh.pop %v2362
  %v2383 = vtanh.pop %v2363
  %v2384 = vmul.f32 %v2364, 0.5
  %v2385 = vmul.f32 %v2365, 0.5
  %v2386 = vtanh.pop %v2384
  %v2387 = vtanh.pop %v2385
  %v2388 = vmul.f32 %v2386, 0.5
  %v2389 = vmul.f32 %v2387, 0.5
  %v2390 = vadd.f32 %v2388, 0.5
  %v2391 = vadd.f32 %v2389, 0.5
  %v2392 = vmul.f32 %v2380, %v56
  %v2393 = vmul.f32 %v2381, %v57
  %v2394 = vmul.f32 %v2372, %v2382
  %v2395 = vmul.f32 %v2373, %v2383
  %v2396 = vadd.f32 %v2392, %v2394
  %v2397 = vadd.f32 %v2393, %v2395
  %v2398 = vtanh.pop %v2396
  %v2399 = vtanh.pop %v2397
  %v2400 = vmul.f32 %v2390, %v2398
  %v2401 = vmul.f32 %v2391, %v2399
  %2402 = vst [vmem:[%s13] sm:$0xff] %v2396
  %2403 = vst [vmem:[%s13 + $0x8] sm:$0xff] %v2397
  %2404 = vst [vmem:[%s12] sm:$0xff] %v2400
  %2405 = vst [vmem:[%s12 + $0x8] sm:$0xff] %v2401
  %v2406 = vld [vmem:[%s8] sm:$0xff]
  %v2407 = vld [vmem:[%s8 + $0x8] sm:$0xff]
  %v2408 = vld [vmem:[%s8 + $0x10] sm:$0xff]
  %v2409 = vld [vmem:[%s8 + $0x18] sm:$0xff]
  %v2410 = vld [vmem:[%s8 + $0x20] sm:$0xff]
  %v2411 = vld [vmem:[%s8 + $0x28] sm:$0xff]
  %v2412 = vld [vmem:[%s8 + $0x30] sm:$0xff]
  %v2413 = vld [vmem:[%s8 + $0x38] sm:$0xff]
  %v2414 = vld [vmem:[%s8 + $0x40] sm:$0xff]
  %v2415 = vld [vmem:[%s8 + $0x48] sm:$0xff]
  %v2416 = vld [vmem:[%s8 + $0x50] sm:$0xff]
  %v2417 = vld [vmem:[%s8 + $0x58] sm:$0xff]
  %v2418 = vld [vmem:[%s8 + $0x60] sm:$0xff]
  %v2419 = vld [vmem:[%s8 + $0x68] sm:$0xff]
  %v2420 = vld [vmem:[%s8 + $0x70] sm:$0xff]
  %v2421 = vld [vmem:[%s8 + $0x78] sm:$0xff]
  %v2422 = vld [vmem:[%s8 + $0x80] sm:$0xff]
  %v2423 = vld [vmem:[%s8 + $0x88] sm:$0xff]
  %v2424 = vld [vmem:[%s8 + $0x90] sm:$0xff]
  %v2425 = vld [vmem:[%s8 + $0x98] sm:$0xff]
  %v2426 = vld [vmem:[%s8 + $0xa0] sm:$0xff]
  %v2427 = vld [vmem:[%s8 + $0xa8] sm:$0xff]
  %v2428 = vld [vmem:[%s8 + $0xb0] sm:$0xff]
  %v2429 = vld [vmem:[%s8 + $0xb8] sm:$0xff]
  %v2430 = vld [vmem:[%s8 + $0xc0] sm:$0xff]
  %v2431 = vld [vmem:[%s8 + $0xc8] sm:$0xff]
  %v2432 = vld [vmem:[%s8 + $0xd0] sm:$0xff]
  %v2433 = vld [vmem:[%s8 + $0xd8] sm:$0xff]
  %v2434 = vld [vmem:[%s8 + $0xe0] sm:$0xff]
  %v2435 = vld [vmem:[%s8 + $0xe8] sm:$0xff]
  %v2436 = vld [vmem:[%s8 + $0xf0] sm:$0xff]
  %v2437 = vld [vmem:[%s8 + $0xf8] sm:$0xff]
  %v2438 = vld [vmem:[%s8 + $0x100] sm:$0xff]
  %v2439 = vld [vmem:[%s8 + $0x108] sm:$0xff]
  %v2440 = vld [vmem:[%s8 + $0x110] sm:$0xff]
  %v2441 = vld [vmem:[%s8 + $0x118] sm:$0xff]
  %v2442 = vld [vmem:[%s8 + $0x120] sm:$0xff]
  %v2443 = vld [vmem:[%s8 + $0x128] sm:$0xff]
  %v2444 = vld [vmem:[%s8 + $0x130] sm:$0xff]
  %v2445 = vld [vmem:[%s8 + $0x138] sm:$0xff]
  %v2446 = vld [vmem:[%s8 + $0x140] sm:$0xff]
  %v2447 = vld [vmem:[%s8 + $0x148] sm:$0xff]
  %v2448 = vld [vmem:[%s8 + $0x150] sm:$0xff]
  %v2449 = vld [vmem:[%s8 + $0x158] sm:$0xff]
  %v2450 = vld [vmem:[%s8 + $0x160] sm:$0xff]
  %v2451 = vld [vmem:[%s8 + $0x168] sm:$0xff]
  %v2452 = vld [vmem:[%s8 + $0x170] sm:$0xff]
  %v2453 = vld [vmem:[%s8 + $0x178] sm:$0xff]
  %v2454 = vld [vmem:[%s8 + $0x180] sm:$0xff]
  %v2455 = vld [vmem:[%s8 + $0x188] sm:$0xff]
  %v2456 = vld [vmem:[%s8 + $0x190] sm:$0xff]
  %v2457 = vld [vmem:[%s8 + $0x198] sm:$0xff]
  %v2458 = vld [vmem:[%s8 + $0x1a0] sm:$0xff]
  %v2459 = vld [vmem:[%s8 + $0x1a8] sm:$0xff]
  %v2460 = vld [vmem:[%s8 + $0x1b0] sm:$0xff]
  %v2461 = vld [vmem:[%s8 + $0x1b8] sm:$0xff]
  %v2462 = vld [vmem:[%s8 + $0x1c0] sm:$0xff]
  %v2463 = vld [vmem:[%s8 + $0x1c8] sm:$0xff]
  %v2464 = vld [vmem:[%s8 + $0x1d0] sm:$0xff]
  %v2465 = vld [vmem:[%s8 + $0x1d8] sm:$0xff]
  %v2466 = vld [vmem:[%s8 + $0x1e0] sm:$0xff]
  %v2467 = vld [vmem:[%s8 + $0x1e8] sm:$0xff]
  %v2468 = vld [vmem:[%s8 + $0x1f0] sm:$0xff]
  %v2469 = vld [vmem:[%s8 + $0x1f8] sm:$0xff]
  %v2470 = vld [vmem:[%s8 + $0x200] sm:$0xff]
  %v2471 = vld [vmem:[%s8 + $0x208] sm:$0xff]
  %v2472 = vld [vmem:[%s8 + $0x210] sm:$0xff]
  %v2473 = vld [vmem:[%s8 + $0x218] sm:$0xff]
  %v2474 = vld [vmem:[%s8 + $0x220] sm:$0xff]
  %v2475 = vld [vmem:[%s8 + $0x228] sm:$0xff]
  %v2476 = vld [vmem:[%s8 + $0x230] sm:$0xff]
  %v2477 = vld [vmem:[%s8 + $0x238] sm:$0xff]
  %v2478 = vld [vmem:[%s8 + $0x240] sm:$0xff]
  %v2479 = vld [vmem:[%s8 + $0x248] sm:$0xff]
  %v2480 = vld [vmem:[%s8 + $0x250] sm:$0xff]
  %v2481 = vld [vmem:[%s8 + $0x258] sm:$0xff]
  %v2482 = vld [vmem:[%s8 + $0x260] sm:$0xff]
  %v2483 = vld [vmem:[%s8 + $0x268] sm:$0xff]
  %v2484 = vld [vmem:[%s8 + $0x270] sm:$0xff]
  %v2485 = vld [vmem:[%s8 + $0x278] sm:$0xff]
  %v2486 = vld [vmem:[%s8 + $0x280] sm:$0xff]
  %v2487 = vld [vmem:[%s8 + $0x288] sm:$0xff]
  %v2488 = vld [vmem:[%s8 + $0x290] sm:$0xff]
  %v2489 = vld [vmem:[%s8 + $0x298] sm:$0xff]
  %v2490 = vld [vmem:[%s8 + $0x2a0] sm:$0xff]
  %v2491 = vld [vmem:[%s8 + $0x2a8] sm:$0xff]
  %v2492 = vld [vmem:[%s8 + $0x2b0] sm:$0xff]
  %v2493 = vld [vmem:[%s8 + $0x2b8] sm:$0xff]
  %v2494 = vld [vmem:[%s8 + $0x2c0] sm:$0xff]
  %v2495 = vld [vmem:[%s8 + $0x2c8] sm:$0xff]
  %v2496 = vld [vmem:[%s8 + $0x2d0] sm:$0xff]
  %v2497 = vld [vmem:[%s8 + $0x2d8] sm:$0xff]
  %v2498 = vld [vmem:[%s8 + $0x2e0] sm:$0xff]
  %v2499 = vld [vmem:[%s8 + $0x2e8] sm:$0xff]
  %v2500 = vld [vmem:[%s8 + $0x2f0] sm:$0xff]
  %v2501 = vld [vmem:[%s8 + $0x2f8] sm:$0xff]
  %v2502 = vld [vmem:[%s8 + $0x300] sm:$0xff]
  %v2503 = vld [vmem:[%s8 + $0x308] sm:$0xff]
  %v2504 = vld [vmem:[%s8 + $0x310] sm:$0xff]
  %v2505 = vld [vmem:[%s8 + $0x318] sm:$0xff]
  %v2506 = vld [vmem:[%s8 + $0x320] sm:$0xff]
  %v2507 = vld [vmem:[%s8 + $0x328] sm:$0xff]
  %v2508 = vld [vmem:[%s8 + $0x330] sm:$0xff]
  %v2509 = vld [vmem:[%s8 + $0x338] sm:$0xff]
  %v2510 = vld [vmem:[%s8 + $0x340] sm:$0xff]
  %v2511 = vld [vmem:[%s8 + $0x348] sm:$0xff]
  %v2512 = vld [vmem:[%s8 + $0x350] sm:$0xff]
  %v2513 = vld [vmem:[%s8 + $0x358] sm:$0xff]
  %v2514 = vld [vmem:[%s8 + $0x360] sm:$0xff]
  %v2515 = vld [vmem:[%s8 + $0x368] sm:$0xff]
  %v2516 = vld [vmem:[%s8 + $0x370] sm:$0xff]
  %v2517 = vld [vmem:[%s8 + $0x378] sm:$0xff]
  %v2518 = vld [vmem:[%s8 + $0x380] sm:$0xff]
  %v2519 = vld [vmem:[%s8 + $0x388] sm:$0xff]
  %v2520 = vld [vmem:[%s8 + $0x390] sm:$0xff]
  %v2521 = vld [vmem:[%s8 + $0x398] sm:$0xff]
  %v2522 = vld [vmem:[%s8 + $0x3a0] sm:$0xff]
  %v2523 = vld [vmem:[%s8 + $0x3a8] sm:$0xff]
  %v2524 = vld [vmem:[%s8 + $0x3b0] sm:$0xff]
  %v2525 = vld [vmem:[%s8 + $0x3b8] sm:$0xff]
  %v2526 = vld [vmem:[%s8 + $0x3c0] sm:$0xff]
  %v2527 = vld [vmem:[%s8 + $0x3c8] sm:$0xff]
  %v2528 = vld [vmem:[%s8 + $0x3d0] sm:$0xff]
  %v2529 = vld [vmem:[%s8 + $0x3d8] sm:$0xff]
  %v2530 = vld [vmem:[%s8 + $0x3e0] sm:$0xff]
  %v2531 = vld [vmem:[%s8 + $0x3e8] sm:$0xff]
  %v2532 = vld [vmem:[%s8 + $0x3f0] sm:$0xff]
  %v2533 = vld [vmem:[%s8 + $0x3f8] sm:$0xff]
  %v2534 = vld [vmem:[%s8 + $0x400] sm:$0xff]
  %v2535 = vld [vmem:[%s8 + $0x408] sm:$0xff]
  %v2536 = vld [vmem:[%s8 + $0x410] sm:$0xff]
  %v2537 = vld [vmem:[%s8 + $0x418] sm:$0xff]
  %v2538 = vld [vmem:[%s8 + $0x420] sm:$0xff]
  %v2539 = vld [vmem:[%s8 + $0x428] sm:$0xff]
  %v2540 = vld [vmem:[%s8 + $0x430] sm:$0xff]
  %v2541 = vld [vmem:[%s8 + $0x438] sm:$0xff]
  %v2542 = vld [vmem:[%s8 + $0x440] sm:$0xff]
  %v2543 = vld [vmem:[%s8 + $0x448] sm:$0xff]
  %v2544 = vld [vmem:[%s8 + $0x450] sm:$0xff]
  %v2545 = vld [vmem:[%s8 + $0x458] sm:$0xff]
  %v2546 = vld [vmem:[%s8 + $0x460] sm:$0xff]
  %v2547 = vld [vmem:[%s8 + $0x468] sm:$0xff]
  %v2548 = vld [vmem:[%s8 + $0x470] sm:$0xff]
  %v2549 = vld [vmem:[%s8 + $0x478] sm:$0xff]
  %v2550 = vld [vmem:[%s8 + $0x480] sm:$0xff]
  %v2551 = vld [vmem:[%s8 + $0x488] sm:$0xff]
  %v2552 = vld [vmem:[%s8 + $0x490] sm:$0xff]
  %v2553 = vld [vmem:[%s8 + $0x498] sm:$0xff]
  %v2554 = vld [vmem:[%s8 + $0x4a0] sm:$0xff]
  %v2555 = vld [vmem:[%s8 + $0x4a8] sm:$0xff]
  %v2556 = vld [vmem:[%s8 + $0x4b0] sm:$0xff]
  %v2557 = vld [vmem:[%s8 + $0x4b8] sm:$0xff]
  %v2558 = vld [vmem:[%s8 + $0x4c0] sm:$0xff]
  %v2559 = vld [vmem:[%s8 + $0x4c8] sm:$0xff]
  %v2560 = vld [vmem:[%s8 + $0x4d0] sm:$0xff]
  %v2561 = vld [vmem:[%s8 + $0x4d8] sm:$0xff]
  %v2562 = vld [vmem:[%s8 + $0x4e0] sm:$0xff]
  %v2563 = vld [vmem:[%s8 + $0x4e8] sm:$0xff]
  %v2564 = vld [vmem:[%s8 + $0x4f0] sm:$0xff]
  %v2565 = vld [vmem:[%s8 + $0x4f8] sm:$0xff]
  %v2566 = vld [vmem:[%s8 + $0x500] sm:$0xff]
  %v2567 = vld [vmem:[%s8 + $0x508] sm:$0xff]
  %v2568 = vld [vmem:[%s8 + $0x510] sm:$0xff]
  %v2569 = vld [vmem:[%s8 + $0x518] sm:$0xff]
  %v2570 = vld [vmem:[%s8 + $0x520] sm:$0xff]
  %v2571 = vld [vmem:[%s8 + $0x528] sm:$0xff]
  %v2572 = vld [vmem:[%s8 + $0x530] sm:$0xff]
  %v2573 = vld [vmem:[%s8 + $0x538] sm:$0xff]
  %v2574 = vld [vmem:[%s8 + $0x540] sm:$0xff]
  %v2575 = vld [vmem:[%s8 + $0x548] sm:$0xff]
  %v2576 = vld [vmem:[%s8 + $0x550] sm:$0xff]
  %v2577 = vld [vmem:[%s8 + $0x558] sm:$0xff]
  %v2578 = vld [vmem:[%s8 + $0x560] sm:$0xff]
  %v2579 = vld [vmem:[%s8 + $0x568] sm:$0xff]
  %v2580 = vld [vmem:[%s8 + $0x570] sm:$0xff]
  %v2581 = vld [vmem:[%s8 + $0x578] sm:$0xff]
  %v2582 = vld [vmem:[%s8 + $0x580] sm:$0xff]
  %v2583 = vld [vmem:[%s8 + $0x588] sm:$0xff]
  %v2584 = vld [vmem:[%s8 + $0x590] sm:$0xff]
  %v2585 = vld [vmem:[%s8 + $0x598] sm:$0xff]
  %v2586 = vld [vmem:[%s8 + $0x5a0] sm:$0xff]
  %v2587 = vld [vmem:[%s8 + $0x5a8] sm:$0xff]
  %v2588 = vld [vmem:[%s8 + $0x5b0] sm:$0xff]
  %v2589 = vld [vmem:[%s8 + $0x5b8] sm:$0xff]
  %v2590 = vld [vmem:[%s8 + $0x5c0] sm:$0xff]
  %v2591 = vld [vmem:[%s8 + $0x5c8] sm:$0xff]
  %v2592 = vld [vmem:[%s8 + $0x5d0] sm:$0xff]
  %v2593 = vld [vmem:[%s8 + $0x5d8] sm:$0xff]
  %v2594 = vld [vmem:[%s8 + $0x5e0] sm:$0xff]
  %v2595 = vld [vmem:[%s8 + $0x5e8] sm:$0xff]
  %v2596 = vld [vmem:[%s8 + $0x5f0] sm:$0xff]
  %v2597 = vld [vmem:[%s8 + $0x5f8] sm:$0xff]
  %v2598 = vld [vmem:[%s8 + $0x600] sm:$0xff]
  %v2599 = vld [vmem:[%s8 + $0x608] sm:$0xff]
  %v2600 = vld [vmem:[%s8 + $0x610] sm:$0xff]
  %v2601 = vld [vmem:[%s8 + $0x618] sm:$0xff]
  %v2602 = vld [vmem:[%s8 + $0x620] sm:$0xff]
  %v2603 = vld [vmem:[%s8 + $0x628] sm:$0xff]
  %v2604 = vld [vmem:[%s8 + $0x630] sm:$0xff]
  %v2605 = vld [vmem:[%s8 + $0x638] sm:$0xff]
  %v2606 = vld [vmem:[%s8 + $0x640] sm:$0xff]
  %v2607 = vld [vmem:[%s8 + $0x648] sm:$0xff]
  %v2608 = vld [vmem:[%s8 + $0x650] sm:$0xff]
  %v2609 = vld [vmem:[%s8 + $0x658] sm:$0xff]
  %v2610 = vld [vmem:[%s8 + $0x660] sm:$0xff]
  %v2611 = vld [vmem:[%s8 + $0x668] sm:$0xff]
  %v2612 = vld [vmem:[%s8 + $0x670] sm:$0xff]
  %v2613 = vld [vmem:[%s8 + $0x678] sm:$0xff]
  %v2614 = vld [vmem:[%s8 + $0x680] sm:$0xff]
  %v2615 = vld [vmem:[%s8 + $0x688] sm:$0xff]
  %v2616 = vld [vmem:[%s8 + $0x690] sm:$0xff]
  %v2617 = vld [vmem:[%s8 + $0x698] sm:$0xff]
  %v2618 = vld [vmem:[%s8 + $0x6a0] sm:$0xff]
  %v2619 = vld [vmem:[%s8 + $0x6a8] sm:$0xff]
  %v2620 = vld [vmem:[%s8 + $0x6b0] sm:$0xff]
  %v2621 = vld [vmem:[%s8 + $0x6b8] sm:$0xff]
  %v2622 = vld [vmem:[%s8 + $0x6c0] sm:$0xff]
  %v2623 = vld [vmem:[%s8 + $0x6c8] sm:$0xff]
  %v2624 = vld [vmem:[%s8 + $0x6d0] sm:$0xff]
  %v2625 = vld [vmem:[%s8 + $0x6d8] sm:$0xff]
  %v2626 = vld [vmem:[%s8 + $0x6e0] sm:$0xff]
  %v2627 = vld [vmem:[%s8 + $0x6e8] sm:$0xff]
  %v2628 = vld [vmem:[%s8 + $0x6f0] sm:$0xff]
  %v2629 = vld [vmem:[%s8 + $0x6f8] sm:$0xff]
  %v2630 = vld [vmem:[%s8 + $0x700] sm:$0xff]
  %v2631 = vld [vmem:[%s8 + $0x708] sm:$0xff]
  %v2632 = vld [vmem:[%s8 + $0x710] sm:$0xff]
  %v2633 = vld [vmem:[%s8 + $0x718] sm:$0xff]
  %v2634 = vld [vmem:[%s8 + $0x720] sm:$0xff]
  %v2635 = vld [vmem:[%s8 + $0x728] sm:$0xff]
  %v2636 = vld [vmem:[%s8 + $0x730] sm:$0xff]
  %v2637 = vld [vmem:[%s8 + $0x738] sm:$0xff]
  %v2638 = vld [vmem:[%s8 + $0x740] sm:$0xff]
  %v2639 = vld [vmem:[%s8 + $0x748] sm:$0xff]
  %v2640 = vld [vmem:[%s8 + $0x750] sm:$0xff]
  %v2641 = vld [vmem:[%s8 + $0x758] sm:$0xff]
  %v2642 = vld [vmem:[%s8 + $0x760] sm:$0xff]
  %v2643 = vld [vmem:[%s8 + $0x768] sm:$0xff]
  %v2644 = vld [vmem:[%s8 + $0x770] sm:$0xff]
  %v2645 = vld [vmem:[%s8 + $0x778] sm:$0xff]
  %v2646 = vld [vmem:[%s8 + $0x780] sm:$0xff]
  %v2647 = vld [vmem:[%s8 + $0x788] sm:$0xff]
  %v2648 = vld [vmem:[%s8 + $0x790] sm:$0xff]
  %v2649 = vld [vmem:[%s8 + $0x798] sm:$0xff]
  %v2650 = vld [vmem:[%s8 + $0x7a0] sm:$0xff]
  %v2651 = vld [vmem:[%s8 + $0x7a8] sm:$0xff]
  %v2652 = vld [vmem:[%s8 + $0x7b0] sm:$0xff]
  %v2653 = vld [vmem:[%s8 + $0x7b8] sm:$0xff]
  %v2654 = vld [vmem:[%s8 + $0x7c0] sm:$0xff]
  %v2655 = vld [vmem:[%s8 + $0x7c8] sm:$0xff]
  %v2656 = vld [vmem:[%s8 + $0x7d0] sm:$0xff]
  %v2657 = vld [vmem:[%s8 + $0x7d8] sm:$0xff]
  %v2658 = vld [vmem:[%s8 + $0x7e0] sm:$0xff]
  %v2659 = vld [vmem:[%s8 + $0x7e8] sm:$0xff]
  %v2660 = vld [vmem:[%s8 + $0x7f0] sm:$0xff]
  %v2661 = vld [vmem:[%s8 + $0x7f8] sm:$0xff]
  %v2662 = vld [vmem:[%s9] sm:$0xff]
  %v2664 = vlaneseq
  %v2665 = vshrl.u32 %v2664, 7
  %v2666 = vsub.s32 0, %v2665
  %v2667 = vrot.slane %v2662, %v2666
  %v2668 = vlaneseq
  %v2669 = vshrl.u32 %v2668, 7
  %v2670 = vsub.s32 1, %v2669
  %v2671 = vrot.slane %v2662, %v2670
  %v2672 = vlaneseq
  %v2673 = vshrl.u32 %v2672, 7
  %v2674 = vsub.s32 2, %v2673
  %v2675 = vrot.slane %v2662, %v2674
  %v2676 = vlaneseq
  %v2677 = vshrl.u32 %v2676, 7
  %v2678 = vsub.s32 3, %v2677
  %v2679 = vrot.slane %v2662, %v2678
  %v2680 = vlaneseq
  %v2681 = vshrl.u32 %v2680, 7
  %v2682 = vsub.s32 4, %v2681
  %v2683 = vrot.slane %v2662, %v2682
  %v2684 = vlaneseq
  %v2685 = vshrl.u32 %v2684, 7
  %v2686 = vsub.s32 5, %v2685
  %v2687 = vrot.slane %v2662, %v2686
  %v2688 = vlaneseq
  %v2689 = vshrl.u32 %v2688, 7
  %v2690 = vsub.s32 6, %v2689
  %v2691 = vrot.slane %v2662, %v2690
  %v2692 = vlaneseq
  %v2693 = vshrl.u32 %v2692, 7
  %v2694 = vsub.s32 7, %v2693
  %v2695 = vrot.slane %v2662, %v2694
  %v2960 = vunpack.c.l.b16 %v2406
  %v2961 = vunpack.c.h.b16 %v2406
  %v2962 = vunpack.c.l.b16 %v2407
  %v2963 = vunpack.c.h.b16 %v2407
  %v2964 = vunpack.c.l.b16 %v2408
  %v2965 = vunpack.c.h.b16 %v2408
  %v2966 = vunpack.c.l.b16 %v2409
  %v2967 = vunpack.c.h.b16 %v2409
  %v2968 = vunpack.c.l.b16 %v2410
  %v2969 = vunpack.c.h.b16 %v2410
  %v2970 = vunpack.c.l.b16 %v2411
  %v2971 = vunpack.c.h.b16 %v2411
  %v2972 = vunpack.c.l.b16 %v2412
  %v2973 = vunpack.c.h.b16 %v2412
  %v2974 = vunpack.c.l.b16 %v2413
  %v2975 = vunpack.c.h.b16 %v2413
  %v2976 = vunpack.c.l.b16 %v2414
  %v2977 = vunpack.c.h.b16 %v2414
  %v2978 = vunpack.c.l.b16 %v2415
  %v2979 = vunpack.c.h.b16 %v2415
  %v2980 = vunpack.c.l.b16 %v2416
  %v2981 = vunpack.c.h.b16 %v2416
  %v2982 = vunpack.c.l.b16 %v2417
  %v2983 = vunpack.c.h.b16 %v2417
  %v2984 = vunpack.c.l.b16 %v2418
  %v2985 = vunpack.c.h.b16 %v2418
  %v2986 = vunpack.c.l.b16 %v2419
  %v2987 = vunpack.c.h.b16 %v2419
  %v2988 = vunpack.c.l.b16 %v2420
  %v2989 = vunpack.c.h.b16 %v2420
  %v2990 = vunpack.c.l.b16 %v2421
  %v2991 = vunpack.c.h.b16 %v2421
  %v2992 = vunpack.c.l.b16 %v2422
  %v2993 = vunpack.c.h.b16 %v2422
  %v2994 = vunpack.c.l.b16 %v2423
  %v2995 = vunpack.c.h.b16 %v2423
  %v2996 = vunpack.c.l.b16 %v2424
  %v2997 = vunpack.c.h.b16 %v2424
  %v2998 = vunpack.c.l.b16 %v2425
  %v2999 = vunpack.c.h.b16 %v2425
  %v3000 = vunpack.c.l.b16 %v2426
  %v3001 = vunpack.c.h.b16 %v2426
  %v3002 = vunpack.c.l.b16 %v2427
  %v3003 = vunpack.c.h.b16 %v2427
  %v3004 = vunpack.c.l.b16 %v2428
  %v3005 = vunpack.c.h.b16 %v2428
  %v3006 = vunpack.c.l.b16 %v2429
  %v3007 = vunpack.c.h.b16 %v2429
  %v3008 = vunpack.c.l.b16 %v2430
  %v3009 = vunpack.c.h.b16 %v2430
  %v3010 = vunpack.c.l.b16 %v2431
  %v3011 = vunpack.c.h.b16 %v2431
  %v3012 = vunpack.c.l.b16 %v2432
  %v3013 = vunpack.c.h.b16 %v2432
  %v3014 = vunpack.c.l.b16 %v2433
  %v3015 = vunpack.c.h.b16 %v2433
  %v3016 = vunpack.c.l.b16 %v2434
  %v3017 = vunpack.c.h.b16 %v2434
  %v3018 = vunpack.c.l.b16 %v2435
  %v3019 = vunpack.c.h.b16 %v2435
  %v3020 = vunpack.c.l.b16 %v2436
  %v3021 = vunpack.c.h.b16 %v2436
  %v3022 = vunpack.c.l.b16 %v2437
  %v3023 = vunpack.c.h.b16 %v2437
  %v3024 = vunpack.c.l.b16 %v2438
  %v3025 = vunpack.c.h.b16 %v2438
  %v3026 = vunpack.c.l.b16 %v2439
  %v3027 = vunpack.c.h.b16 %v2439
  %v3028 = vunpack.c.l.b16 %v2440
  %v3029 = vunpack.c.h.b16 %v2440
  %v3030 = vunpack.c.l.b16 %v2441
  %v3031 = vunpack.c.h.b16 %v2441
  %v3032 = vunpack.c.l.b16 %v2442
  %v3033 = vunpack.c.h.b16 %v2442
  %v3034 = vunpack.c.l.b16 %v2443
  %v3035 = vunpack.c.h.b16 %v2443
  %v3036 = vunpack.c.l.b16 %v2444
  %v3037 = vunpack.c.h.b16 %v2444
  %v3038 = vunpack.c.l.b16 %v2445
  %v3039 = vunpack.c.h.b16 %v2445
  %v3040 = vunpack.c.l.b16 %v2446
  %v3041 = vunpack.c.h.b16 %v2446
  %v3042 = vunpack.c.l.b16 %v2447
  %v3043 = vunpack.c.h.b16 %v2447
  %v3044 = vunpack.c.l.b16 %v2448
  %v3045 = vunpack.c.h.b16 %v2448
  %v3046 = vunpack.c.l.b16 %v2449
  %v3047 = vunpack.c.h.b16 %v2449
  %v3048 = vunpack.c.l.b16 %v2450
  %v3049 = vunpack.c.h.b16 %v2450
  %v3050 = vunpack.c.l.b16 %v2451
  %v3051 = vunpack.c.h.b16 %v2451
  %v3052 = vunpack.c.l.b16 %v2452
  %v3053 = vunpack.c.h.b16 %v2452
  %v3054 = vunpack.c.l.b16 %v2453
  %v3055 = vunpack.c.h.b16 %v2453
  %v3056 = vunpack.c.l.b16 %v2454
  %v3057 = vunpack.c.h.b16 %v2454
  %v3058 = vunpack.c.l.b16 %v2455
  %v3059 = vunpack.c.h.b16 %v2455
  %v3060 = vunpack.c.l.b16 %v2456
  %v3061 = vunpack.c.h.b16 %v2456
  %v3062 = vunpack.c.l.b16 %v2457
  %v3063 = vunpack.c.h.b16 %v2457
  %v3064 = vunpack.c.l.b16 %v2458
  %v3065 = vunpack.c.h.b16 %v2458
  %v3066 = vunpack.c.l.b16 %v2459
  %v3067 = vunpack.c.h.b16 %v2459
  %v3068 = vunpack.c.l.b16 %v2460
  %v3069 = vunpack.c.h.b16 %v2460
  %v3070 = vunpack.c.l.b16 %v2461
  %v3071 = vunpack.c.h.b16 %v2461
  %v3072 = vunpack.c.l.b16 %v2462
  %v3073 = vunpack.c.h.b16 %v2462
  %v3074 = vunpack.c.l.b16 %v2463
  %v3075 = vunpack.c.h.b16 %v2463
  %v3076 = vunpack.c.l.b16 %v2464
  %v3077 = vunpack.c.h.b16 %v2464
  %v3078 = vunpack.c.l.b16 %v2465
  %v3079 = vunpack.c.h.b16 %v2465
  %v3080 = vunpack.c.l.b16 %v2466
  %v3081 = vunpack.c.h.b16 %v2466
  %v3082 = vunpack.c.l.b16 %v2467
  %v3083 = vunpack.c.h.b16 %v2467
  %v3084 = vunpack.c.l.b16 %v2468
  %v3085 = vunpack.c.h.b16 %v2468
  %v3086 = vunpack.c.l.b16 %v2469
  %v3087 = vunpack.c.h.b16 %v2469
  %v3088 = vunpack.c.l.b16 %v2470
  %v3089 = vunpack.c.h.b16 %v2470
  %v3090 = vunpack.c.l.b16 %v2471
  %v3091 = vunpack.c.h.b16 %v2471
  %v3092 = vunpack.c.l.b16 %v2472
  %v3093 = vunpack.c.h.b16 %v2472
  %v3094 = vunpack.c.l.b16 %v2473
  %v3095 = vunpack.c.h.b16 %v2473
  %v3096 = vunpack.c.l.b16 %v2474
  %v3097 = vunpack.c.h.b16 %v2474
  %v3098 = vunpack.c.l.b16 %v2475
  %v3099 = vunpack.c.h.b16 %v2475
  %v3100 = vunpack.c.l.b16 %v2476
  %v3101 = vunpack.c.h.b16 %v2476
  %v3102 = vunpack.c.l.b16 %v2477
  %v3103 = vunpack.c.h.b16 %v2477
  %v3104 = vunpack.c.l.b16 %v2478
  %v3105 = vunpack.c.h.b16 %v2478
  %v3106 = vunpack.c.l.b16 %v2479
  %v3107 = vunpack.c.h.b16 %v2479
  %v3108 = vunpack.c.l.b16 %v2480
  %v3109 = vunpack.c.h.b16 %v2480
  %v3110 = vunpack.c.l.b16 %v2481
  %v3111 = vunpack.c.h.b16 %v2481
  %v3112 = vunpack.c.l.b16 %v2482
  %v3113 = vunpack.c.h.b16 %v2482
  %v3114 = vunpack.c.l.b16 %v2483
  %v3115 = vunpack.c.h.b16 %v2483
  %v3116 = vunpack.c.l.b16 %v2484
  %v3117 = vunpack.c.h.b16 %v2484
  %v3118 = vunpack.c.l.b16 %v2485
  %v3119 = vunpack.c.h.b16 %v2485
  %v3120 = vunpack.c.l.b16 %v2486
  %v3121 = vunpack.c.h.b16 %v2486
  %v3122 = vunpack.c.l.b16 %v2487
  %v3123 = vunpack.c.h.b16 %v2487
  %v3124 = vunpack.c.l.b16 %v2488
  %v3125 = vunpack.c.h.b16 %v2488
  %v3126 = vunpack.c.l.b16 %v2489
  %v3127 = vunpack.c.h.b16 %v2489
  %v3128 = vunpack.c.l.b16 %v2490
  %v3129 = vunpack.c.h.b16 %v2490
  %v3130 = vunpack.c.l.b16 %v2491
  %v3131 = vunpack.c.h.b16 %v2491
  %v3132 = vunpack.c.l.b16 %v2492
  %v3133 = vunpack.c.h.b16 %v2492
  %v3134 = vunpack.c.l.b16 %v2493
  %v3135 = vunpack.c.h.b16 %v2493
  %v3136 = vunpack.c.l.b16 %v2494
  %v3137 = vunpack.c.h.b16 %v2494
  %v3138 = vunpack.c.l.b16 %v2495
  %v3139 = vunpack.c.h.b16 %v2495
  %v3140 = vunpack.c.l.b16 %v2496
  %v3141 = vunpack.c.h.b16 %v2496
  %v3142 = vunpack.c.l.b16 %v2497
  %v3143 = vunpack.c.h.b16 %v2497
  %v3144 = vunpack.c.l.b16 %v2498
  %v3145 = vunpack.c.h.b16 %v2498
  %v3146 = vunpack.c.l.b16 %v2499
  %v3147 = vunpack.c.h.b16 %v2499
  %v3148 = vunpack.c.l.b16 %v2500
  %v3149 = vunpack.c.h.b16 %v2500
  %v3150 = vunpack.c.l.b16 %v2501
  %v3151 = vunpack.c.h.b16 %v2501
  %v3152 = vunpack.c.l.b16 %v2502
  %v3153 = vunpack.c.h.b16 %v2502
  %v3154 = vunpack.c.l.b16 %v2503
  %v3155 = vunpack.c.h.b16 %v2503
  %v3156 = vunpack.c.l.b16 %v2504
  %v3157 = vunpack.c.h.b16 %v2504
  %v3158 = vunpack.c.l.b16 %v2505
  %v3159 = vunpack.c.h.b16 %v2505
  %v3160 = vunpack.c.l.b16 %v2506
  %v3161 = vunpack.c.h.b16 %v2506
  %v3162 = vunpack.c.l.b16 %v2507
  %v3163 = vunpack.c.h.b16 %v2507
  %v3164 = vunpack.c.l.b16 %v2508
  %v3165 = vunpack.c.h.b16 %v2508
  %v3166 = vunpack.c.l.b16 %v2509
  %v3167 = vunpack.c.h.b16 %v2509
  %v3168 = vunpack.c.l.b16 %v2510
  %v3169 = vunpack.c.h.b16 %v2510
  %v3170 = vunpack.c.l.b16 %v2511
  %v3171 = vunpack.c.h.b16 %v2511
  %v3172 = vunpack.c.l.b16 %v2512
  %v3173 = vunpack.c.h.b16 %v2512
  %v3174 = vunpack.c.l.b16 %v2513
  %v3175 = vunpack.c.h.b16 %v2513
  %v3176 = vunpack.c.l.b16 %v2514
  %v3177 = vunpack.c.h.b16 %v2514
  %v3178 = vunpack.c.l.b16 %v2515
  %v3179 = vunpack.c.h.b16 %v2515
  %v3180 = vunpack.c.l.b16 %v2516
  %v3181 = vunpack.c.h.b16 %v2516
  %v3182 = vunpack.c.l.b16 %v2517
  %v3183 = vunpack.c.h.b16 %v2517
  %v3184 = vunpack.c.l.b16 %v2518
  %v3185 = vunpack.c.h.b16 %v2518
  %v3186 = vunpack.c.l.b16 %v2519
  %v3187 = vunpack.c.h.b16 %v2519
  %v3188 = vunpack.c.l.b16 %v2520
  %v3189 = vunpack.c.h.b16 %v2520
  %v3190 = vunpack.c.l.b16 %v2521
  %v3191 = vunpack.c.h.b16 %v2521
  %v3192 = vunpack.c.l.b16 %v2522
  %v3193 = vunpack.c.h.b16 %v2522
  %v3194 = vunpack.c.l.b16 %v2523
  %v3195 = vunpack.c.h.b16 %v2523
  %v3196 = vunpack.c.l.b16 %v2524
  %v3197 = vunpack.c.h.b16 %v2524
  %v3198 = vunpack.c.l.b16 %v2525
  %v3199 = vunpack.c.h.b16 %v2525
  %v3200 = vunpack.c.l.b16 %v2526
  %v3201 = vunpack.c.h.b16 %v2526
  %v3202 = vunpack.c.l.b16 %v2527
  %v3203 = vunpack.c.h.b16 %v2527
  %v3204 = vunpack.c.l.b16 %v2528
  %v3205 = vunpack.c.h.b16 %v2528
  %v3206 = vunpack.c.l.b16 %v2529
  %v3207 = vunpack.c.h.b16 %v2529
  %v3208 = vunpack.c.l.b16 %v2530
  %v3209 = vunpack.c.h.b16 %v2530
  %v3210 = vunpack.c.l.b16 %v2531
  %v3211 = vunpack.c.h.b16 %v2531
  %v3212 = vunpack.c.l.b16 %v2532
  %v3213 = vunpack.c.h.b16 %v2532
  %v3214 = vunpack.c.l.b16 %v2533
  %v3215 = vunpack.c.h.b16 %v2533
  %v3216 = vunpack.c.l.b16 %v2534
  %v3217 = vunpack.c.h.b16 %v2534
  %v3218 = vunpack.c.l.b16 %v2535
  %v3219 = vunpack.c.h.b16 %v2535
  %v3220 = vunpack.c.l.b16 %v2536
  %v3221 = vunpack.c.h.b16 %v2536
  %v3222 = vunpack.c.l.b16 %v2537
  %v3223 = vunpack.c.h.b16 %v2537
  %v3224 = vunpack.c.l.b16 %v2538
  %v3225 = vunpack.c.h.b16 %v2538
  %v3226 = vunpack.c.l.b16 %v2539
  %v3227 = vunpack.c.h.b16 %v2539
  %v3228 = vunpack.c.l.b16 %v2540
  %v3229 = vunpack.c.h.b16 %v2540
  %v3230 = vunpack.c.l.b16 %v2541
  %v3231 = vunpack.c.h.b16 %v2541
  %v3232 = vunpack.c.l.b16 %v2542
  %v3233 = vunpack.c.h.b16 %v2542
  %v3234 = vunpack.c.l.b16 %v2543
  %v3235 = vunpack.c.h.b16 %v2543
  %v3236 = vunpack.c.l.b16 %v2544
  %v3237 = vunpack.c.h.b16 %v2544
  %v3238 = vunpack.c.l.b16 %v2545
  %v3239 = vunpack.c.h.b16 %v2545
  %v3240 = vunpack.c.l.b16 %v2546
  %v3241 = vunpack.c.h.b16 %v2546
  %v3242 = vunpack.c.l.b16 %v2547
  %v3243 = vunpack.c.h.b16 %v2547
  %v3244 = vunpack.c.l.b16 %v2548
  %v3245 = vunpack.c.h.b16 %v2548
  %v3246 = vunpack.c.l.b16 %v2549
  %v3247 = vunpack.c.h.b16 %v2549
  %v3248 = vunpack.c.l.b16 %v2550
  %v3249 = vunpack.c.h.b16 %v2550
  %v3250 = vunpack.c.l.b16 %v2551
  %v3251 = vunpack.c.h.b16 %v2551
  %v3252 = vunpack.c.l.b16 %v2552
  %v3253 = vunpack.c.h.b16 %v2552
  %v3254 = vunpack.c.l.b16 %v2553
  %v3255 = vunpack.c.h.b16 %v2553
  %v3256 = vunpack.c.l.b16 %v2554
  %v3257 = vunpack.c.h.b16 %v2554
  %v3258 = vunpack.c.l.b16 %v2555
  %v3259 = vunpack.c.h.b16 %v2555
  %v3260 = vunpack.c.l.b16 %v2556
  %v3261 = vunpack.c.h.b16 %v2556
  %v3262 = vunpack.c.l.b16 %v2557
  %v3263 = vunpack.c.h.b16 %v2557
  %v3264 = vunpack.c.l.b16 %v2558
  %v3265 = vunpack.c.h.b16 %v2558
  %v3266 = vunpack.c.l.b16 %v2559
  %v3267 = vunpack.c.h.b16 %v2559
  %v3268 = vunpack.c.l.b16 %v2560
  %v3269 = vunpack.c.h.b16 %v2560
  %v3270 = vunpack.c.l.b16 %v2561
  %v3271 = vunpack.c.h.b16 %v2561
  %v3272 = vunpack.c.l.b16 %v2562
  %v3273 = vunpack.c.h.b16 %v2562
  %v3274 = vunpack.c.l.b16 %v2563
  %v3275 = vunpack.c.h.b16 %v2563
  %v3276 = vunpack.c.l.b16 %v2564
  %v3277 = vunpack.c.h.b16 %v2564
  %v3278 = vunpack.c.l.b16 %v2565
  %v3279 = vunpack.c.h.b16 %v2565
  %v3280 = vunpack.c.l.b16 %v2566
  %v3281 = vunpack.c.h.b16 %v2566
  %v3282 = vunpack.c.l.b16 %v2567
  %v3283 = vunpack.c.h.b16 %v2567
  %v3284 = vunpack.c.l.b16 %v2568
  %v3285 = vunpack.c.h.b16 %v2568
  %v3286 = vunpack.c.l.b16 %v2569
  %v3287 = vunpack.c.h.b16 %v2569
  %v3288 = vunpack.c.l.b16 %v2570
  %v3289 = vunpack.c.h.b16 %v2570
  %v3290 = vunpack.c.l.b16 %v2571
  %v3291 = vunpack.c.h.b16 %v2571
  %v3292 = vunpack.c.l.b16 %v2572
  %v3293 = vunpack.c.h.b16 %v2572
  %v3294 = vunpack.c.l.b16 %v2573
  %v3295 = vunpack.c.h.b16 %v2573
  %v3296 = vunpack.c.l.b16 %v2574
  %v3297 = vunpack.c.h.b16 %v2574
  %v3298 = vunpack.c.l.b16 %v2575
  %v3299 = vunpack.c.h.b16 %v2575
  %v3300 = vunpack.c.l.b16 %v2576
  %v3301 = vunpack.c.h.b16 %v2576
  %v3302 = vunpack.c.l.b16 %v2577
  %v3303 = vunpack.c.h.b16 %v2577
  %v3304 = vunpack.c.l.b16 %v2578
  %v3305 = vunpack.c.h.b16 %v2578
  %v3306 = vunpack.c.l.b16 %v2579
  %v3307 = vunpack.c.h.b16 %v2579
  %v3308 = vunpack.c.l.b16 %v2580
  %v3309 = vunpack.c.h.b16 %v2580
  %v3310 = vunpack.c.l.b16 %v2581
  %v3311 = vunpack.c.h.b16 %v2581
  %v3312 = vunpack.c.l.b16 %v2582
  %v3313 = vunpack.c.h.b16 %v2582
  %v3314 = vunpack.c.l.b16 %v2583
  %v3315 = vunpack.c.h.b16 %v2583
  %v3316 = vunpack.c.l.b16 %v2584
  %v3317 = vunpack.c.h.b16 %v2584
  %v3318 = vunpack.c.l.b16 %v2585
  %v3319 = vunpack.c.h.b16 %v2585
  %v3320 = vunpack.c.l.b16 %v2586
  %v3321 = vunpack.c.h.b16 %v2586
  %v3322 = vunpack.c.l.b16 %v2587
  %v3323 = vunpack.c.h.b16 %v2587
  %v3324 = vunpack.c.l.b16 %v2588
  %v3325 = vunpack.c.h.b16 %v2588
  %v3326 = vunpack.c.l.b16 %v2589
  %v3327 = vunpack.c.h.b16 %v2589
  %v3328 = vunpack.c.l.b16 %v2590
  %v3329 = vunpack.c.h.b16 %v2590
  %v3330 = vunpack.c.l.b16 %v2591
  %v3331 = vunpack.c.h.b16 %v2591
  %v3332 = vunpack.c.l.b16 %v2592
  %v3333 = vunpack.c.h.b16 %v2592
  %v3334 = vunpack.c.l.b16 %v2593
  %v3335 = vunpack.c.h.b16 %v2593
  %v3336 = vunpack.c.l.b16 %v2594
  %v3337 = vunpack.c.h.b16 %v2594
  %v3338 = vunpack.c.l.b16 %v2595
  %v3339 = vunpack.c.h.b16 %v2595
  %v3340 = vunpack.c.l.b16 %v2596
  %v3341 = vunpack.c.h.b16 %v2596
  %v3342 = vunpack.c.l.b16 %v2597
  %v3343 = vunpack.c.h.b16 %v2597
  %v3344 = vunpack.c.l.b16 %v2598
  %v3345 = vunpack.c.h.b16 %v2598
  %v3346 = vunpack.c.l.b16 %v2599
  %v3347 = vunpack.c.h.b16 %v2599
  %v3348 = vunpack.c.l.b16 %v2600
  %v3349 = vunpack.c.h.b16 %v2600
  %v3350 = vunpack.c.l.b16 %v2601
  %v3351 = vunpack.c.h.b16 %v2601
  %v3352 = vunpack.c.l.b16 %v2602
  %v3353 = vunpack.c.h.b16 %v2602
  %v3354 = vunpack.c.l.b16 %v2603
  %v3355 = vunpack.c.h.b16 %v2603
  %v3356 = vunpack.c.l.b16 %v2604
  %v3357 = vunpack.c.h.b16 %v2604
  %v3358 = vunpack.c.l.b16 %v2605
  %v3359 = vunpack.c.h.b16 %v2605
  %v3360 = vunpack.c.l.b16 %v2606
  %v3361 = vunpack.c.h.b16 %v2606
  %v3362 = vunpack.c.l.b16 %v2607
  %v3363 = vunpack.c.h.b16 %v2607
  %v3364 = vunpack.c.l.b16 %v2608
  %v3365 = vunpack.c.h.b16 %v2608
  %v3366 = vunpack.c.l.b16 %v2609
  %v3367 = vunpack.c.h.b16 %v2609
  %v3368 = vunpack.c.l.b16 %v2610
  %v3369 = vunpack.c.h.b16 %v2610
  %v3370 = vunpack.c.l.b16 %v2611
  %v3371 = vunpack.c.h.b16 %v2611
  %v3372 = vunpack.c.l.b16 %v2612
  %v3373 = vunpack.c.h.b16 %v2612
  %v3374 = vunpack.c.l.b16 %v2613
  %v3375 = vunpack.c.h.b16 %v2613
  %v3376 = vunpack.c.l.b16 %v2614
  %v3377 = vunpack.c.h.b16 %v2614
  %v3378 = vunpack.c.l.b16 %v2615
  %v3379 = vunpack.c.h.b16 %v2615
  %v3380 = vunpack.c.l.b16 %v2616
  %v3381 = vunpack.c.h.b16 %v2616
  %v3382 = vunpack.c.l.b16 %v2617
  %v3383 = vunpack.c.h.b16 %v2617
  %v3384 = vunpack.c.l.b16 %v2618
  %v3385 = vunpack.c.h.b16 %v2618
  %v3386 = vunpack.c.l.b16 %v2619
  %v3387 = vunpack.c.h.b16 %v2619
  %v3388 = vunpack.c.l.b16 %v2620
  %v3389 = vunpack.c.h.b16 %v2620
  %v3390 = vunpack.c.l.b16 %v2621
  %v3391 = vunpack.c.h.b16 %v2621
  %v3392 = vunpack.c.l.b16 %v2622
  %v3393 = vunpack.c.h.b16 %v2622
  %v3394 = vunpack.c.l.b16 %v2623
  %v3395 = vunpack.c.h.b16 %v2623
  %v3396 = vunpack.c.l.b16 %v2624
  %v3397 = vunpack.c.h.b16 %v2624
  %v3398 = vunpack.c.l.b16 %v2625
  %v3399 = vunpack.c.h.b16 %v2625
  %v3400 = vunpack.c.l.b16 %v2626
  %v3401 = vunpack.c.h.b16 %v2626
  %v3402 = vunpack.c.l.b16 %v2627
  %v3403 = vunpack.c.h.b16 %v2627
  %v3404 = vunpack.c.l.b16 %v2628
  %v3405 = vunpack.c.h.b16 %v2628
  %v3406 = vunpack.c.l.b16 %v2629
  %v3407 = vunpack.c.h.b16 %v2629
  %v3408 = vunpack.c.l.b16 %v2630
  %v3409 = vunpack.c.h.b16 %v2630
  %v3410 = vunpack.c.l.b16 %v2631
  %v3411 = vunpack.c.h.b16 %v2631
  %v3412 = vunpack.c.l.b16 %v2632
  %v3413 = vunpack.c.h.b16 %v2632
  %v3414 = vunpack.c.l.b16 %v2633
  %v3415 = vunpack.c.h.b16 %v2633
  %v3416 = vunpack.c.l.b16 %v2634
  %v3417 = vunpack.c.h.b16 %v2634
  %v3418 = vunpack.c.l.b16 %v2635
  %v3419 = vunpack.c.h.b16 %v2635
  %v3420 = vunpack.c.l.b16 %v2636
  %v3421 = vunpack.c.h.b16 %v2636
  %v3422 = vunpack.c.l.b16 %v2637
  %v3423 = vunpack.c.h.b16 %v2637
  %v3424 = vunpack.c.l.b16 %v2638
  %v3425 = vunpack.c.h.b16 %v2638
  %v3426 = vunpack.c.l.b16 %v2639
  %v3427 = vunpack.c.h.b16 %v2639
  %v3428 = vunpack.c.l.b16 %v2640
  %v3429 = vunpack.c.h.b16 %v2640
  %v3430 = vunpack.c.l.b16 %v2641
  %v3431 = vunpack.c.h.b16 %v2641
  %v3432 = vunpack.c.l.b16 %v2642
  %v3433 = vunpack.c.h.b16 %v2642
  %v3434 = vunpack.c.l.b16 %v2643
  %v3435 = vunpack.c.h.b16 %v2643
  %v3436 = vunpack.c.l.b16 %v2644
  %v3437 = vunpack.c.h.b16 %v2644
  %v3438 = vunpack.c.l.b16 %v2645
  %v3439 = vunpack.c.h.b16 %v2645
  %v3440 = vunpack.c.l.b16 %v2646
  %v3441 = vunpack.c.h.b16 %v2646
  %v3442 = vunpack.c.l.b16 %v2647
  %v3443 = vunpack.c.h.b16 %v2647
  %v3444 = vunpack.c.l.b16 %v2648
  %v3445 = vunpack.c.h.b16 %v2648
  %v3446 = vunpack.c.l.b16 %v2649
  %v3447 = vunpack.c.h.b16 %v2649
  %v3448 = vunpack.c.l.b16 %v2650
  %v3449 = vunpack.c.h.b16 %v2650
  %v3450 = vunpack.c.l.b16 %v2651
  %v3451 = vunpack.c.h.b16 %v2651
  %v3452 = vunpack.c.l.b16 %v2652
  %v3453 = vunpack.c.h.b16 %v2652
  %v3454 = vunpack.c.l.b16 %v2653
  %v3455 = vunpack.c.h.b16 %v2653
  %v3456 = vunpack.c.l.b16 %v2654
  %v3457 = vunpack.c.h.b16 %v2654
  %v3458 = vunpack.c.l.b16 %v2655
  %v3459 = vunpack.c.h.b16 %v2655
  %v3460 = vunpack.c.l.b16 %v2656
  %v3461 = vunpack.c.h.b16 %v2656
  %v3462 = vunpack.c.l.b16 %v2657
  %v3463 = vunpack.c.h.b16 %v2657
  %v3464 = vunpack.c.l.b16 %v2658
  %v3465 = vunpack.c.h.b16 %v2658
  %v3466 = vunpack.c.l.b16 %v2659
  %v3467 = vunpack.c.h.b16 %v2659
  %v3468 = vunpack.c.l.b16 %v2660
  %v3469 = vunpack.c.h.b16 %v2660
  %v3470 = vunpack.c.l.b16 %v2661
  %v3471 = vunpack.c.h.b16 %v2661
  %v3472 = vpack.c.b16 %v2968, %v2960
  %v3473 = vpack.c.b16 %v2969, %v2961
  %v3474 = vpack.c.b16 %v2970, %v2962
  %v3475 = vpack.c.b16 %v2971, %v2963
  %v3476 = vpack.c.b16 %v2972, %v2964
  %v3477 = vpack.c.b16 %v2973, %v2965
  %v3478 = vpack.c.b16 %v2974, %v2966
  %v3479 = vpack.c.b16 %v2975, %v2967
  %v3480 = vpack.c.b16 %v2984, %v2976
  %v3481 = vpack.c.b16 %v2985, %v2977
  %v3482 = vpack.c.b16 %v2986, %v2978
  %v3483 = vpack.c.b16 %v2987, %v2979
  %v3484 = vpack.c.b16 %v2988, %v2980
  %v3485 = vpack.c.b16 %v2989, %v2981
  %v3486 = vpack.c.b16 %v2990, %v2982
  %v3487 = vpack.c.b16 %v2991, %v2983
  %v3488 = vpack.c.b16 %v3000, %v2992
  %v3489 = vpack.c.b16 %v3001, %v2993
  %v3490 = vpack.c.b16 %v3002, %v2994
  %v3491 = vpack.c.b16 %v3003, %v2995
  %v3492 = vpack.c.b16 %v3004, %v2996
  %v3493 = vpack.c.b16 %v3005, %v2997
  %v3494 = vpack.c.b16 %v3006, %v2998
  %v3495 = vpack.c.b16 %v3007, %v2999
  %v3496 = vpack.c.b16 %v3016, %v3008
  %v3497 = vpack.c.b16 %v3017, %v3009
  %v3498 = vpack.c.b16 %v3018, %v3010
  %v3499 = vpack.c.b16 %v3019, %v3011
  %v3500 = vpack.c.b16 %v3020, %v3012
  %v3501 = vpack.c.b16 %v3021, %v3013
  %v3502 = vpack.c.b16 %v3022, %v3014
  %v3503 = vpack.c.b16 %v3023, %v3015
  %v3504 = vpack.c.b16 %v3032, %v3024
  %v3505 = vpack.c.b16 %v3033, %v3025
  %v3506 = vpack.c.b16 %v3034, %v3026
  %v3507 = vpack.c.b16 %v3035, %v3027
  %v3508 = vpack.c.b16 %v3036, %v3028
  %v3509 = vpack.c.b16 %v3037, %v3029
  %v3510 = vpack.c.b16 %v3038, %v3030
  %v3511 = vpack.c.b16 %v3039, %v3031
  %v3512 = vpack.c.b16 %v3048, %v3040
  %v3513 = vpack.c.b16 %v3049, %v3041
  %v3514 = vpack.c.b16 %v3050, %v3042
  %v3515 = vpack.c.b16 %v3051, %v3043
  %v3516 = vpack.c.b16 %v3052, %v3044
  %v3517 = vpack.c.b16 %v3053, %v3045
  %v3518 = vpack.c.b16 %v3054, %v3046
  %v3519 = vpack.c.b16 %v3055, %v3047
  %v3520 = vpack.c.b16 %v3064, %v3056
  %v3521 = vpack.c.b16 %v3065, %v3057
  %v3522 = vpack.c.b16 %v3066, %v3058
  %v3523 = vpack.c.b16 %v3067, %v3059
  %v3524 = vpack.c.b16 %v3068, %v3060
  %v3525 = vpack.c.b16 %v3069, %v3061
  %v3526 = vpack.c.b16 %v3070, %v3062
  %v3527 = vpack.c.b16 %v3071, %v3063
  %v3528 = vpack.c.b16 %v3080, %v3072
  %v3529 = vpack.c.b16 %v3081, %v3073
  %v3530 = vpack.c.b16 %v3082, %v3074
  %v3531 = vpack.c.b16 %v3083, %v3075
  %v3532 = vpack.c.b16 %v3084, %v3076
  %v3533 = vpack.c.b16 %v3085, %v3077
  %v3534 = vpack.c.b16 %v3086, %v3078
  %v3535 = vpack.c.b16 %v3087, %v3079
  %v3536 = vpack.c.b16 %v3096, %v3088
  %v3537 = vpack.c.b16 %v3097, %v3089
  %v3538 = vpack.c.b16 %v3098, %v3090
  %v3539 = vpack.c.b16 %v3099, %v3091
  %v3540 = vpack.c.b16 %v3100, %v3092
  %v3541 = vpack.c.b16 %v3101, %v3093
  %v3542 = vpack.c.b16 %v3102, %v3094
  %v3543 = vpack.c.b16 %v3103, %v3095
  %v3544 = vpack.c.b16 %v3112, %v3104
  %v3545 = vpack.c.b16 %v3113, %v3105
  %v3546 = vpack.c.b16 %v3114, %v3106
  %v3547 = vpack.c.b16 %v3115, %v3107
  %v3548 = vpack.c.b16 %v3116, %v3108
  %v3549 = vpack.c.b16 %v3117, %v3109
  %v3550 = vpack.c.b16 %v3118, %v3110
  %v3551 = vpack.c.b16 %v3119, %v3111
  %v3552 = vpack.c.b16 %v3128, %v3120
  %v3553 = vpack.c.b16 %v3129, %v3121
  %v3554 = vpack.c.b16 %v3130, %v3122
  %v3555 = vpack.c.b16 %v3131, %v3123
  %v3556 = vpack.c.b16 %v3132, %v3124
  %v3557 = vpack.c.b16 %v3133, %v3125
  %v3558 = vpack.c.b16 %v3134, %v3126
  %v3559 = vpack.c.b16 %v3135, %v3127
  %v3560 = vpack.c.b16 %v3144, %v3136
  %v3561 = vpack.c.b16 %v3145, %v3137
  %v3562 = vpack.c.b16 %v3146, %v3138
  %v3563 = vpack.c.b16 %v3147, %v3139
  %v3564 = vpack.c.b16 %v3148, %v3140
  %v3565 = vpack.c.b16 %v3149, %v3141
  %v3566 = vpack.c.b16 %v3150, %v3142
  %v3567 = vpack.c.b16 %v3151, %v3143
  %v3568 = vpack.c.b16 %v3160, %v3152
  %v3569 = vpack.c.b16 %v3161, %v3153
  %v3570 = vpack.c.b16 %v3162, %v3154
  %v3571 = vpack.c.b16 %v3163, %v3155
  %v3572 = vpack.c.b16 %v3164, %v3156
  %v3573 = vpack.c.b16 %v3165, %v3157
  %v3574 = vpack.c.b16 %v3166, %v3158
  %v3575 = vpack.c.b16 %v3167, %v3159
  %v3576 = vpack.c.b16 %v3176, %v3168
  %v3577 = vpack.c.b16 %v3177, %v3169
  %v3578 = vpack.c.b16 %v3178, %v3170
  %v3579 = vpack.c.b16 %v3179, %v3171
  %v3580 = vpack.c.b16 %v3180, %v3172
  %v3581 = vpack.c.b16 %v3181, %v3173
  %v3582 = vpack.c.b16 %v3182, %v3174
  %v3583 = vpack.c.b16 %v3183, %v3175
  %v3584 = vpack.c.b16 %v3192, %v3184
  %v3585 = vpack.c.b16 %v3193, %v3185
  %v3586 = vpack.c.b16 %v3194, %v3186
  %v3587 = vpack.c.b16 %v3195, %v3187
  %v3588 = vpack.c.b16 %v3196, %v3188
  %v3589 = vpack.c.b16 %v3197, %v3189
  %v3590 = vpack.c.b16 %v3198, %v3190
  %v3591 = vpack.c.b16 %v3199, %v3191
  %v3592 = vpack.c.b16 %v3208, %v3200
  %v3593 = vpack.c.b16 %v3209, %v3201
  %v3594 = vpack.c.b16 %v3210, %v3202
  %v3595 = vpack.c.b16 %v3211, %v3203
  %v3596 = vpack.c.b16 %v3212, %v3204
  %v3597 = vpack.c.b16 %v3213, %v3205
  %v3598 = vpack.c.b16 %v3214, %v3206
  %v3599 = vpack.c.b16 %v3215, %v3207
  %v3600 = vpack.c.b16 %v3224, %v3216
  %v3601 = vpack.c.b16 %v3225, %v3217
  %v3602 = vpack.c.b16 %v3226, %v3218
  %v3603 = vpack.c.b16 %v3227, %v3219
  %v3604 = vpack.c.b16 %v3228, %v3220
  %v3605 = vpack.c.b16 %v3229, %v3221
  %v3606 = vpack.c.b16 %v3230, %v3222
  %v3607 = vpack.c.b16 %v3231, %v3223
  %v3608 = vpack.c.b16 %v3240, %v3232
  %v3609 = vpack.c.b16 %v3241, %v3233
  %v3610 = vpack.c.b16 %v3242, %v3234
  %v3611 = vpack.c.b16 %v3243, %v3235
  %v3612 = vpack.c.b16 %v3244, %v3236
  %v3613 = vpack.c.b16 %v3245, %v3237
  %v3614 = vpack.c.b16 %v3246, %v3238
  %v3615 = vpack.c.b16 %v3247, %v3239
  %v3616 = vpack.c.b16 %v3256, %v3248
  %v3617 = vpack.c.b16 %v3257, %v3249
  %v3618 = vpack.c.b16 %v3258, %v3250
  %v3619 = vpack.c.b16 %v3259, %v3251
  %v3620 = vpack.c.b16 %v3260, %v3252
  %v3621 = vpack.c.b16 %v3261, %v3253
  %v3622 = vpack.c.b16 %v3262, %v3254
  %v3623 = vpack.c.b16 %v3263, %v3255
  %v3624 = vpack.c.b16 %v3272, %v3264
  %v3625 = vpack.c.b16 %v3273, %v3265
  %v3626 = vpack.c.b16 %v3274, %v3266
  %v3627 = vpack.c.b16 %v3275, %v3267
  %v3628 = vpack.c.b16 %v3276, %v3268
  %v3629 = vpack.c.b16 %v3277, %v3269
  %v3630 = vpack.c.b16 %v3278, %v3270
  %v3631 = vpack.c.b16 %v3279, %v3271
  %v3632 = vpack.c.b16 %v3288, %v3280
  %v3633 = vpack.c.b16 %v3289, %v3281
  %v3634 = vpack.c.b16 %v3290, %v3282
  %v3635 = vpack.c.b16 %v3291, %v3283
  %v3636 = vpack.c.b16 %v3292, %v3284
  %v3637 = vpack.c.b16 %v3293, %v3285
  %v3638 = vpack.c.b16 %v3294, %v3286
  %v3639 = vpack.c.b16 %v3295, %v3287
  %v3640 = vpack.c.b16 %v3304, %v3296
  %v3641 = vpack.c.b16 %v3305, %v3297
  %v3642 = vpack.c.b16 %v3306, %v3298
  %v3643 = vpack.c.b16 %v3307, %v3299
  %v3644 = vpack.c.b16 %v3308, %v3300
  %v3645 = vpack.c.b16 %v3309, %v3301
  %v3646 = vpack.c.b16 %v3310, %v3302
  %v3647 = vpack.c.b16 %v3311, %v3303
  %v3648 = vpack.c.b16 %v3320, %v3312
  %v3649 = vpack.c.b16 %v3321, %v3313
  %v3650 = vpack.c.b16 %v3322, %v3314
  %v3651 = vpack.c.b16 %v3323, %v3315
  %v3652 = vpack.c.b16 %v3324, %v3316
  %v3653 = vpack.c.b16 %v3325, %v3317
  %v3654 = vpack.c.b16 %v3326, %v3318
  %v3655 = vpack.c.b16 %v3327, %v3319
  %v3656 = vpack.c.b16 %v3336, %v3328
  %v3657 = vpack.c.b16 %v3337, %v3329
  %v3658 = vpack.c.b16 %v3338, %v3330
  %v3659 = vpack.c.b16 %v3339, %v3331
  %v3660 = vpack.c.b16 %v3340, %v3332
  %v3661 = vpack.c.b16 %v3341, %v3333
  %v3662 = vpack.c.b16 %v3342, %v3334
  %v3663 = vpack.c.b16 %v3343, %v3335
  %v3664 = vpack.c.b16 %v3352, %v3344
  %v3665 = vpack.c.b16 %v3353, %v3345
  %v3666 = vpack.c.b16 %v3354, %v3346
  %v3667 = vpack.c.b16 %v3355, %v3347
  %v3668 = vpack.c.b16 %v3356, %v3348
  %v3669 = vpack.c.b16 %v3357, %v3349
  %v3670 = vpack.c.b16 %v3358, %v3350
  %v3671 = vpack.c.b16 %v3359, %v3351
  %v3672 = vpack.c.b16 %v3368, %v3360
  %v3673 = vpack.c.b16 %v3369, %v3361
  %v3674 = vpack.c.b16 %v3370, %v3362
  %v3675 = vpack.c.b16 %v3371, %v3363
  %v3676 = vpack.c.b16 %v3372, %v3364
  %v3677 = vpack.c.b16 %v3373, %v3365
  %v3678 = vpack.c.b16 %v3374, %v3366
  %v3679 = vpack.c.b16 %v3375, %v3367
  %v3680 = vpack.c.b16 %v3384, %v3376
  %v3681 = vpack.c.b16 %v3385, %v3377
  %v3682 = vpack.c.b16 %v3386, %v3378
  %v3683 = vpack.c.b16 %v3387, %v3379
  %v3684 = vpack.c.b16 %v3388, %v3380
  %v3685 = vpack.c.b16 %v3389, %v3381
  %v3686 = vpack.c.b16 %v3390, %v3382
  %v3687 = vpack.c.b16 %v3391, %v3383
  %v3688 = vpack.c.b16 %v3400, %v3392
  %v3689 = vpack.c.b16 %v3401, %v3393
  %v3690 = vpack.c.b16 %v3402, %v3394
  %v3691 = vpack.c.b16 %v3403, %v3395
  %v3692 = vpack.c.b16 %v3404, %v3396
  %v3693 = vpack.c.b16 %v3405, %v3397
  %v3694 = vpack.c.b16 %v3406, %v3398
  %v3695 = vpack.c.b16 %v3407, %v3399
  %v3696 = vpack.c.b16 %v3416, %v3408
  %v3697 = vpack.c.b16 %v3417, %v3409
  %v3698 = vpack.c.b16 %v3418, %v3410
  %v3699 = vpack.c.b16 %v3419, %v3411
  %v3700 = vpack.c.b16 %v3420, %v3412
  %v3701 = vpack.c.b16 %v3421, %v3413
  %v3702 = vpack.c.b16 %v3422, %v3414
  %v3703 = vpack.c.b16 %v3423, %v3415
  %v3704 = vpack.c.b16 %v3432, %v3424
  %v3705 = vpack.c.b16 %v3433, %v3425
  %v3706 = vpack.c.b16 %v3434, %v3426
  %v3707 = vpack.c.b16 %v3435, %v3427
  %v3708 = vpack.c.b16 %v3436, %v3428
  %v3709 = vpack.c.b16 %v3437, %v3429
  %v3710 = vpack.c.b16 %v3438, %v3430
  %v3711 = vpack.c.b16 %v3439, %v3431
  %v3712 = vpack.c.b16 %v3448, %v3440
  %v3713 = vpack.c.b16 %v3449, %v3441
  %v3714 = vpack.c.b16 %v3450, %v3442
  %v3715 = vpack.c.b16 %v3451, %v3443
  %v3716 = vpack.c.b16 %v3452, %v3444
  %v3717 = vpack.c.b16 %v3453, %v3445
  %v3718 = vpack.c.b16 %v3454, %v3446
  %v3719 = vpack.c.b16 %v3455, %v3447
  %v3720 = vpack.c.b16 %v3464, %v3456
  %v3721 = vpack.c.b16 %v3465, %v3457
  %v3722 = vpack.c.b16 %v3466, %v3458
  %v3723 = vpack.c.b16 %v3467, %v3459
  %v3724 = vpack.c.b16 %v3468, %v3460
  %v3725 = vpack.c.b16 %v3469, %v3461
  %v3726 = vpack.c.b16 %v3470, %v3462
  %v3727 = vpack.c.b16 %v3471, %v3463
  %3984 = vmatprep.subr.bf16.mxu0 %v3529
  %3985 = vmatpush1.bf16.msra.mxu0 %v3528
  %3986 = vmatprep.subr.bf16.mxu0 %v3521
  %3987 = vmatpush1.bf16.msra.mxu0 %v3520
  %3988 = vmatprep.subr.bf16.mxu0 %v3513
  %3989 = vmatpush1.bf16.msra.mxu0 %v3512
  %3990 = vmatprep.subr.bf16.mxu0 %v3505
  %3991 = vmatpush1.bf16.msra.mxu0 %v3504
  %3992 = vmatprep.subr.bf16.mxu0 %v3497
  %3993 = vmatpush1.bf16.msra.mxu0 %v3496
  %3994 = vmatprep.subr.bf16.mxu0 %v3489
  %3995 = vmatpush1.bf16.msra.mxu0 %v3488
  %3996 = vmatprep.subr.bf16.mxu0 %v3481
  %3997 = vmatpush1.bf16.msra.mxu0 %v3480
  %3998 = vmatprep.subr.bf16.mxu0 %v3473
  %3999 = vmatpush1.bf16.msra.mxu0 %v3472
  %4000 = vmatprep.subr.bf16.mxu0 %v3593
  %4001 = vmatpush2.bf16.msra.mxu0 %v3592
  %4002 = vmatprep.subr.bf16.mxu0 %v3585
  %4003 = vmatpush2.bf16.msra.mxu0 %v3584
  %4004 = vmatprep.subr.bf16.mxu0 %v3577
  %4005 = vmatpush2.bf16.msra.mxu0 %v3576
  %4006 = vmatprep.subr.bf16.mxu0 %v3569
  %4007 = vmatpush2.bf16.msra.mxu0 %v3568
  %4008 = vmatprep.subr.bf16.mxu0 %v3561
  %4009 = vmatpush2.bf16.msra.mxu0 %v3560
  %4010 = vmatprep.subr.bf16.mxu0 %v3553
  %4011 = vmatpush2.bf16.msra.mxu0 %v3552
  %4012 = vmatprep.subr.bf16.mxu0 %v3545
  %4013 = vmatpush2.bf16.msra.mxu0 %v3544
  %4014 = vmatprep.subr.bf16.mxu0 %v3537
  %4015 = vmatpush2.bf16.msra.mxu0 %v3536
  %4016 = vmatprep.mubr.bf16.mxu0 %v51
  %4017 = vmatmul.mubr.bf16.gmra.mxu0 %v50
  %v4018 = vpop.f32.mrf.mxu0
  %v4019 = vadd.f32 %v2667, %v4018
  %v4020 = vpop.f32.mrf.mxu0
  %v4021 = vadd.f32 %v2671, %v4020
  %v4022 = vpop.f32.mrf.mxu0
  %v4023 = vpop.f32.mrf.mxu0
  %4024 = vdwg.mxu0
  %4025 = vmatprep.subr.bf16.mxu0 %v3657
  %4026 = vmatpush1.bf16.msra.mxu0 %v3656
  %4027 = vmatprep.subr.bf16.mxu0 %v3649
  %4028 = vmatpush1.bf16.msra.mxu0 %v3648
  %4029 = vmatprep.subr.bf16.mxu0 %v3641
  %4030 = vmatpush1.bf16.msra.mxu0 %v3640
  %4031 = vmatprep.subr.bf16.mxu0 %v3633
  %4032 = vmatpush1.bf16.msra.mxu0 %v3632
  %4033 = vmatprep.subr.bf16.mxu0 %v3625
  %4034 = vmatpush1.bf16.msra.mxu0 %v3624
  %4035 = vmatprep.subr.bf16.mxu0 %v3617
  %4036 = vmatpush1.bf16.msra.mxu0 %v3616
  %4037 = vmatprep.subr.bf16.mxu0 %v3609
  %4038 = vmatpush1.bf16.msra.mxu0 %v3608
  %4039 = vmatprep.subr.bf16.mxu0 %v3601
  %4040 = vmatpush1.bf16.msra.mxu0 %v3600
  %4041 = vmatprep.subr.bf16.mxu0 %v3721
  %4042 = vmatpush2.bf16.msra.mxu0 %v3720
  %4043 = vmatprep.subr.bf16.mxu0 %v3713
  %4044 = vmatpush2.bf16.msra.mxu0 %v3712
  %4045 = vmatprep.subr.bf16.mxu0 %v3705
  %4046 = vmatpush2.bf16.msra.mxu0 %v3704
  %4047 = vmatprep.subr.bf16.mxu0 %v3697
  %4048 = vmatpush2.bf16.msra.mxu0 %v3696
  %4049 = vmatprep.subr.bf16.mxu0 %v3689
  %4050 = vmatpush2.bf16.msra.mxu0 %v3688
  %4051 = vmatprep.subr.bf16.mxu0 %v3681
  %4052 = vmatpush2.bf16.msra.mxu0 %v3680
  %4053 = vmatprep.subr.bf16.mxu0 %v3673
  %4054 = vmatpush2.bf16.msra.mxu0 %v3672
  %4055 = vmatprep.subr.bf16.mxu0 %v3665
  %4056 = vmatpush2.bf16.msra.mxu0 %v3664
  %4057 = vmatprep.mubr.bf16.mxu0 %v53
  %4058 = vmatmul.mubr.bf16.gmra.mxu0 %v52
  %v4059 = vpop.f32.mrf.mxu0
  %v4060 = vadd.f32 %v4019, %v4059
  %v4061 = vpop.f32.mrf.mxu0
  %v4062 = vadd.f32 %v4021, %v4061
  %v4063 = vpop.f32.mrf.mxu0
  %v4064 = vpop.f32.mrf.mxu0
  %4065 = vdwg.mxu0
  %4066 = vmatprep.subr.bf16.mxu0 %v3531
  %4067 = vmatpush1.bf16.msra.mxu0 %v3530
  %4068 = vmatprep.subr.bf16.mxu0 %v3523
  %4069 = vmatpush1.bf16.msra.mxu0 %v3522
  %4070 = vmatprep.subr.bf16.mxu0 %v3515
  %4071 = vmatpush1.bf16.msra.mxu0 %v3514
  %4072 = vmatprep.subr.bf16.mxu0 %v3507
  %4073 = vmatpush1.bf16.msra.mxu0 %v3506
  %4074 = vmatprep.subr.bf16.mxu0 %v3499
  %4075 = vmatpush1.bf16.msra.mxu0 %v3498
  %4076 = vmatprep.subr.bf16.mxu0 %v3491
  %4077 = vmatpush1.bf16.msra.mxu0 %v3490
  %4078 = vmatprep.subr.bf16.mxu0 %v3483
  %4079 = vmatpush1.bf16.msra.mxu0 %v3482
  %4080 = vmatprep.subr.bf16.mxu0 %v3475
  %4081 = vmatpush1.bf16.msra.mxu0 %v3474
  %4082 = vmatprep.subr.bf16.mxu0 %v3595
  %4083 = vmatpush2.bf16.msra.mxu0 %v3594
  %4084 = vmatprep.subr.bf16.mxu0 %v3587
  %4085 = vmatpush2.bf16.msra.mxu0 %v3586
  %4086 = vmatprep.subr.bf16.mxu0 %v3579
  %4087 = vmatpush2.bf16.msra.mxu0 %v3578
  %4088 = vmatprep.subr.bf16.mxu0 %v3571
  %4089 = vmatpush2.bf16.msra.mxu0 %v3570
  %4090 = vmatprep.subr.bf16.mxu0 %v3563
  %4091 = vmatpush2.bf16.msra.mxu0 %v3562
  %4092 = vmatprep.subr.bf16.mxu0 %v3555
  %4093 = vmatpush2.bf16.msra.mxu0 %v3554
  %4094 = vmatprep.subr.bf16.mxu0 %v3547
  %4095 = vmatpush2.bf16.msra.mxu0 %v3546
  %4096 = vmatprep.subr.bf16.mxu0 %v3539
  %4097 = vmatpush2.bf16.msra.mxu0 %v3538
  %4098 = vmatprep.mubr.bf16.mxu0 %v51
  %4099 = vmatmul.mubr.bf16.gmra.mxu0 %v50
  %v4100 = vpop.f32.mrf.mxu0
  %v4101 = vadd.f32 %v2675, %v4100
  %v4102 = vpop.f32.mrf.mxu0
  %v4103 = vadd.f32 %v2679, %v4102
  %v4104 = vpop.f32.mrf.mxu0
  %v4105 = vpop.f32.mrf.mxu0
  %4106 = vdwg.mxu0
  %4107 = vmatprep.subr.bf16.mxu0 %v3659
  %4108 = vmatpush1.bf16.msra.mxu0 %v3658
  %4109 = vmatprep.subr.bf16.mxu0 %v3651
  %4110 = vmatpush1.bf16.msra.mxu0 %v3650
  %4111 = vmatprep.subr.bf16.mxu0 %v3643
  %4112 = vmatpush1.bf16.msra.mxu0 %v3642
  %4113 = vmatprep.subr.bf16.mxu0 %v3635
  %4114 = vmatpush1.bf16.msra.mxu0 %v3634
  %4115 = vmatprep.subr.bf16.mxu0 %v3627
  %4116 = vmatpush1.bf16.msra.mxu0 %v3626
  %4117 = vmatprep.subr.bf16.mxu0 %v3619
  %4118 = vmatpush1.bf16.msra.mxu0 %v3618
  %4119 = vmatprep.subr.bf16.mxu0 %v3611
  %4120 = vmatpush1.bf16.msra.mxu0 %v3610
  %4121 = vmatprep.subr.bf16.mxu0 %v3603
  %4122 = vmatpush1.bf16.msra.mxu0 %v3602
  %4123 = vmatprep.subr.bf16.mxu0 %v3723
  %4124 = vmatpush2.bf16.msra.mxu0 %v3722
  %4125 = vmatprep.subr.bf16.mxu0 %v3715
  %4126 = vmatpush2.bf16.msra.mxu0 %v3714
  %4127 = vmatprep.subr.bf16.mxu0 %v3707
  %4128 = vmatpush2.bf16.msra.mxu0 %v3706
  %4129 = vmatprep.subr.bf16.mxu0 %v3699
  %4130 = vmatpush2.bf16.msra.mxu0 %v3698
  %4131 = vmatprep.subr.bf16.mxu0 %v3691
  %4132 = vmatpush2.bf16.msra.mxu0 %v3690
  %4133 = vmatprep.subr.bf16.mxu0 %v3683
  %4134 = vmatpush2.bf16.msra.mxu0 %v3682
  %4135 = vmatprep.subr.bf16.mxu0 %v3675
  %4136 = vmatpush2.bf16.msra.mxu0 %v3674
  %4137 = vmatprep.subr.bf16.mxu0 %v3667
  %4138 = vmatpush2.bf16.msra.mxu0 %v3666
  %4139 = vmatprep.mubr.bf16.mxu0 %v53
  %4140 = vmatmul.mubr.bf16.gmra.mxu0 %v52
  %v4141 = vpop.f32.mrf.mxu0
  %v4142 = vadd.f32 %v4101, %v4141
  %v4143 = vpop.f32.mrf.mxu0
  %v4144 = vadd.f32 %v4103, %v4143
  %v4145 = vpop.f32.mrf.mxu0
  %v4146 = vpop.f32.mrf.mxu0
  %4147 = vdwg.mxu0
  %4148 = vmatprep.subr.bf16.mxu0 %v3533
  %4149 = vmatpush1.bf16.msra.mxu0 %v3532
  %4150 = vmatprep.subr.bf16.mxu0 %v3525
  %4151 = vmatpush1.bf16.msra.mxu0 %v3524
  %4152 = vmatprep.subr.bf16.mxu0 %v3517
  %4153 = vmatpush1.bf16.msra.mxu0 %v3516
  %4154 = vmatprep.subr.bf16.mxu0 %v3509
  %4155 = vmatpush1.bf16.msra.mxu0 %v3508
  %4156 = vmatprep.subr.bf16.mxu0 %v3501
  %4157 = vmatpush1.bf16.msra.mxu0 %v3500
  %4158 = vmatprep.subr.bf16.mxu0 %v3493
  %4159 = vmatpush1.bf16.msra.mxu0 %v3492
  %4160 = vmatprep.subr.bf16.mxu0 %v3485
  %4161 = vmatpush1.bf16.msra.mxu0 %v3484
  %4162 = vmatprep.subr.bf16.mxu0 %v3477
  %4163 = vmatpush1.bf16.msra.mxu0 %v3476
  %4164 = vmatprep.subr.bf16.mxu0 %v3597
  %4165 = vmatpush2.bf16.msra.mxu0 %v3596
  %4166 = vmatprep.subr.bf16.mxu0 %v3589
  %4167 = vmatpush2.bf16.msra.mxu0 %v3588
  %4168 = vmatprep.subr.bf16.mxu0 %v3581
  %4169 = vmatpush2.bf16.msra.mxu0 %v3580
  %4170 = vmatprep.subr.bf16.mxu0 %v3573
  %4171 = vmatpush2.bf16.msra.mxu0 %v3572
  %4172 = vmatprep.subr.bf16.mxu0 %v3565
  %4173 = vmatpush2.bf16.msra.mxu0 %v3564
  %4174 = vmatprep.subr.bf16.mxu0 %v3557
  %4175 = vmatpush2.bf16.msra.mxu0 %v3556
  %4176 = vmatprep.subr.bf16.mxu0 %v3549
  %4177 = vmatpush2.bf16.msra.mxu0 %v3548
  %4178 = vmatprep.subr.bf16.mxu0 %v3541
  %4179 = vmatpush2.bf16.msra.mxu0 %v3540
  %4180 = vmatprep.mubr.bf16.mxu0 %v51
  %4181 = vmatmul.mubr.bf16.gmra.mxu0 %v50
  %v4182 = vpop.f32.mrf.mxu0
  %v4183 = vadd.f32 %v2683, %v4182
  %v4184 = vpop.f32.mrf.mxu0
  %v4185 = vadd.f32 %v2687, %v4184
  %v4186 = vpop.f32.mrf.mxu0
  %v4187 = vpop.f32.mrf.mxu0
  %4188 = vdwg.mxu0
  %4189 = vmatprep.subr.bf16.mxu0 %v3661
  %4190 = vmatpush1.bf16.msra.mxu0 %v3660
  %4191 = vmatprep.subr.bf16.mxu0 %v3653
  %4192 = vmatpush1.bf16.msra.mxu0 %v3652
  %4193 = vmatprep.subr.bf16.mxu0 %v3645
  %4194 = vmatpush1.bf16.msra.mxu0 %v3644
  %4195 = vmatprep.subr.bf16.mxu0 %v3637
  %4196 = vmatpush1.bf16.msra.mxu0 %v3636
  %4197 = vmatprep.subr.bf16.mxu0 %v3629
  %4198 = vmatpush1.bf16.msra.mxu0 %v3628
  %4199 = vmatprep.subr.bf16.mxu0 %v3621
  %4200 = vmatpush1.bf16.msra.mxu0 %v3620
  %4201 = vmatprep.subr.bf16.mxu0 %v3613
  %4202 = vmatpush1.bf16.msra.mxu0 %v3612
  %4203 = vmatprep.subr.bf16.mxu0 %v3605
  %4204 = vmatpush1.bf16.msra.mxu0 %v3604
  %4205 = vmatprep.subr.bf16.mxu0 %v3725
  %4206 = vmatpush2.bf16.msra.mxu0 %v3724
  %4207 = vmatprep.subr.bf16.mxu0 %v3717
  %4208 = vmatpush2.bf16.msra.mxu0 %v3716
  %4209 = vmatprep.subr.bf16.mxu0 %v3709
  %4210 = vmatpush2.bf16.msra.mxu0 %v3708
  %4211 = vmatprep.subr.bf16.mxu0 %v3701
  %4212 = vmatpush2.bf16.msra.mxu0 %v3700
  %4213 = vmatprep.subr.bf16.mxu0 %v3693
  %4214 = vmatpush2.bf16.msra.mxu0 %v3692
  %4215 = vmatprep.subr.bf16.mxu0 %v3685
  %4216 = vmatpush2.bf16.msra.mxu0 %v3684
  %4217 = vmatprep.subr.bf16.mxu0 %v3677
  %4218 = vmatpush2.bf16.msra.mxu0 %v3676
  %4219 = vmatprep.subr.bf16.mxu0 %v3669
  %4220 = vmatpush2.bf16.msra.mxu0 %v3668
  %4221 = vmatprep.mubr.bf16.mxu0 %v53
  %4222 = vmatmul.mubr.bf16.gmra.mxu0 %v52
  %v4223 = vpop.f32.mrf.mxu0
  %v4224 = vadd.f32 %v4183, %v4223
  %v4225 = vpop.f32.mrf.mxu0
  %v4226 = vadd.f32 %v4185, %v4225
  %v4227 = vpop.f32.mrf.mxu0
  %v4228 = vpop.f32.mrf.mxu0
  %4229 = vdwg.mxu0
  %4230 = vmatprep.subr.bf16.mxu0 %v3535
  %4231 = vmatpush1.bf16.msra.mxu0 %v3534
  %4232 = vmatprep.subr.bf16.mxu0 %v3527
  %4233 = vmatpush1.bf16.msra.mxu0 %v3526
  %4234 = vmatprep.subr.bf16.mxu0 %v3519
  %4235 = vmatpush1.bf16.msra.mxu0 %v3518
  %4236 = vmatprep.subr.bf16.mxu0 %v3511
  %4237 = vmatpush1.bf16.msra.mxu0 %v3510
  %4238 = vmatprep.subr.bf16.mxu0 %v3503
  %4239 = vmatpush1.bf16.msra.mxu0 %v3502
  %4240 = vmatprep.subr.bf16.mxu0 %v3495
  %4241 = vmatpush1.bf16.msra.mxu0 %v3494
  %4242 = vmatprep.subr.bf16.mxu0 %v3487
  %4243 = vmatpush1.bf16.msra.mxu0 %v3486
  %4244 = vmatprep.subr.bf16.mxu0 %v3479
  %4245 = vmatpush1.bf16.msra.mxu0 %v3478
  %4246 = vmatprep.subr.bf16.mxu0 %v3599
  %4247 = vmatpush2.bf16.msra.mxu0 %v3598
  %4248 = vmatprep.subr.bf16.mxu0 %v3591
  %4249 = vmatpush2.bf16.msra.mxu0 %v3590
  %4250 = vmatprep.subr.bf16.mxu0 %v3583
  %4251 = vmatpush2.bf16.msra.mxu0 %v3582
  %4252 = vmatprep.subr.bf16.mxu0 %v3575
  %4253 = vmatpush2.bf16.msra.mxu0 %v3574
  %4254 = vmatprep.subr.bf16.mxu0 %v3567
  %4255 = vmatpush2.bf16.msra.mxu0 %v3566
  %4256 = vmatprep.subr.bf16.mxu0 %v3559
  %4257 = vmatpush2.bf16.msra.mxu0 %v3558
  %4258 = vmatprep.subr.bf16.mxu0 %v3551
  %4259 = vmatpush2.bf16.msra.mxu0 %v3550
  %4260 = vmatprep.subr.bf16.mxu0 %v3543
  %4261 = vmatpush2.bf16.msra.mxu0 %v3542
  %4262 = vmatprep.mubr.bf16.mxu0 %v51
  %4263 = vmatmul.mubr.bf16.gmra.mxu0 %v50
  %v4264 = vpop.f32.mrf.mxu0
  %v4265 = vadd.f32 %v2691, %v4264
  %v4266 = vpop.f32.mrf.mxu0
  %v4267 = vadd.f32 %v2695, %v4266
  %v4268 = vpop.f32.mrf.mxu0
  %v4269 = vpop.f32.mrf.mxu0
  %4270 = vdwg.mxu0
  %4271 = vmatprep.subr.bf16.mxu0 %v3663
  %4272 = vmatpush1.bf16.msra.mxu0 %v3662
  %4273 = vmatprep.subr.bf16.mxu0 %v3655
  %4274 = vmatpush1.bf16.msra.mxu0 %v3654
  %4275 = vmatprep.subr.bf16.mxu0 %v3647
  %4276 = vmatpush1.bf16.msra.mxu0 %v3646
  %4277 = vmatprep.subr.bf16.mxu0 %v3639
  %4278 = vmatpush1.bf16.msra.mxu0 %v3638
  %4279 = vmatprep.subr.bf16.mxu0 %v3631
  %4280 = vmatpush1.bf16.msra.mxu0 %v3630
  %4281 = vmatprep.subr.bf16.mxu0 %v3623
  %4282 = vmatpush1.bf16.msra.mxu0 %v3622
  %4283 = vmatprep.subr.bf16.mxu0 %v3615
  %4284 = vmatpush1.bf16.msra.mxu0 %v3614
  %4285 = vmatprep.subr.bf16.mxu0 %v3607
  %4286 = vmatpush1.bf16.msra.mxu0 %v3606
  %4287 = vmatprep.subr.bf16.mxu0 %v3727
  %4288 = vmatpush2.bf16.msra.mxu0 %v3726
  %4289 = vmatprep.subr.bf16.mxu0 %v3719
  %4290 = vmatpush2.bf16.msra.mxu0 %v3718
  %4291 = vmatprep.subr.bf16.mxu0 %v3711
  %4292 = vmatpush2.bf16.msra.mxu0 %v3710
  %4293 = vmatprep.subr.bf16.mxu0 %v3703
  %4294 = vmatpush2.bf16.msra.mxu0 %v3702
  %4295 = vmatprep.subr.bf16.mxu0 %v3695
  %4296 = vmatpush2.bf16.msra.mxu0 %v3694
  %4297 = vmatprep.subr.bf16.mxu0 %v3687
  %4298 = vmatpush2.bf16.msra.mxu0 %v3686
  %4299 = vmatprep.subr.bf16.mxu0 %v3679
  %4300 = vmatpush2.bf16.msra.mxu0 %v3678
  %4301 = vmatprep.subr.bf16.mxu0 %v3671
  %4302 = vmatpush2.bf16.msra.mxu0 %v3670
  %4303 = vmatprep.mubr.bf16.mxu0 %v53
  %4304 = vmatmul.mubr.bf16.gmra.mxu0 %v52
  %v4305 = vpop.f32.mrf.mxu0
  %v4306 = vadd.f32 %v4265, %v4305
  %v4307 = vpop.f32.mrf.mxu0
  %v4308 = vadd.f32 %v4267, %v4307
  %v4309 = vpop.f32.mrf.mxu0
  %v4310 = vpop.f32.mrf.mxu0
  %4311 = vdwg.mxu0
  %v4312 = vmul.f32 %v4060, 0.5
  %v4313 = vmul.f32 %v4062, 0.5
  %v4314 = vtanh.pop %v4312
  %v4315 = vtanh.pop %v4313
  %v4316 = vmul.f32 %v4314, 0.5
  %v4317 = vmul.f32 %v4315, 0.5
  %v4318 = vadd.f32 %v4316, 0.5
  %v4319 = vadd.f32 %v4317, 0.5
  %v4320 = vmul.f32 %v4142, 0.5
  %v4321 = vmul.f32 %v4144, 0.5
  %v4322 = vtanh.pop %v4320
  %v4323 = vtanh.pop %v4321
  %v4324 = vmul.f32 %v4322, 0.5
  %v4325 = vmul.f32 %v4323, 0.5
  %v4326 = vadd.f32 %v4324, 0.5
  %v4327 = vadd.f32 %v4325, 0.5
  %v4328 = vtanh.pop %v4224
  %v4329 = vtanh.pop %v4226
  %v4330 = vmul.f32 %v4306, 0.5
  %v4331 = vmul.f32 %v4308, 0.5
  %v4332 = vtanh.pop %v4330
  %v4333 = vtanh.pop %v4331
  %v4334 = vmul.f32 %v4332, 0.5
  %v4335 = vmul.f32 %v4333, 0.5
  %v4336 = vadd.f32 %v4334, 0.5
  %v4337 = vadd.f32 %v4335, 0.5
  %v4338 = vmul.f32 %v4326, %v58
  %v4339 = vmul.f32 %v4327, %v59
  %v4340 = vmul.f32 %v4318, %v4328
  %v4341 = vmul.f32 %v4319, %v4329
  %v4342 = vadd.f32 %v4338, %v4340
  %v4343 = vadd.f32 %v4339, %v4341
  %v4344 = vtanh.pop %v4342
  %v4345 = vtanh.pop %v4343
  %v4346 = vmul.f32 %v4336, %v4344
  %v4347 = vmul.f32 %v4337, %v4345
  %4348 = vst [vmem:[%s13 + $0x10] sm:$0xff] %v4342
  %4349 = vst [vmem:[%s13 + $0x18] sm:$0xff] %v4343
  %4350 = vst [vmem:[%s12 + $0x10] sm:$0xff] %v4346
  %4351 = vst [vmem:[%s12 + $0x18] sm:$0xff] %v4347
  %v4352 = vld [vmem:[%s10] sm:$0xff]
  %v4353 = vld [vmem:[%s10 + $0x8] sm:$0xff]
  %v4354 = vld [vmem:[%s10 + $0x10] sm:$0xff]
  %v4355 = vld [vmem:[%s10 + $0x18] sm:$0xff]
  %v4356 = vld [vmem:[%s10 + $0x20] sm:$0xff]
  %v4357 = vld [vmem:[%s10 + $0x28] sm:$0xff]
  %v4358 = vld [vmem:[%s10 + $0x30] sm:$0xff]
  %v4359 = vld [vmem:[%s10 + $0x38] sm:$0xff]
  %v4360 = vld [vmem:[%s10 + $0x40] sm:$0xff]
  %v4361 = vld [vmem:[%s10 + $0x48] sm:$0xff]
  %v4362 = vld [vmem:[%s10 + $0x50] sm:$0xff]
  %v4363 = vld [vmem:[%s10 + $0x58] sm:$0xff]
  %v4364 = vld [vmem:[%s10 + $0x60] sm:$0xff]
  %v4365 = vld [vmem:[%s10 + $0x68] sm:$0xff]
  %v4366 = vld [vmem:[%s10 + $0x70] sm:$0xff]
  %v4367 = vld [vmem:[%s10 + $0x78] sm:$0xff]
  %v4368 = vld [vmem:[%s10 + $0x80] sm:$0xff]
  %v4369 = vld [vmem:[%s10 + $0x88] sm:$0xff]
  %v4370 = vld [vmem:[%s10 + $0x90] sm:$0xff]
  %v4371 = vld [vmem:[%s10 + $0x98] sm:$0xff]
  %v4372 = vld [vmem:[%s10 + $0xa0] sm:$0xff]
  %v4373 = vld [vmem:[%s10 + $0xa8] sm:$0xff]
  %v4374 = vld [vmem:[%s10 + $0xb0] sm:$0xff]
  %v4375 = vld [vmem:[%s10 + $0xb8] sm:$0xff]
  %v4376 = vld [vmem:[%s10 + $0xc0] sm:$0xff]
  %v4377 = vld [vmem:[%s10 + $0xc8] sm:$0xff]
  %v4378 = vld [vmem:[%s10 + $0xd0] sm:$0xff]
  %v4379 = vld [vmem:[%s10 + $0xd8] sm:$0xff]
  %v4380 = vld [vmem:[%s10 + $0xe0] sm:$0xff]
  %v4381 = vld [vmem:[%s10 + $0xe8] sm:$0xff]
  %v4382 = vld [vmem:[%s10 + $0xf0] sm:$0xff]
  %v4383 = vld [vmem:[%s10 + $0xf8] sm:$0xff]
  %v4384 = vld [vmem:[%s10 + $0x100] sm:$0xff]
  %v4385 = vld [vmem:[%s10 + $0x108] sm:$0xff]
  %v4386 = vld [vmem:[%s10 + $0x110] sm:$0xff]
  %v4387 = vld [vmem:[%s10 + $0x118] sm:$0xff]
  %v4388 = vld [vmem:[%s10 + $0x120] sm:$0xff]
  %v4389 = vld [vmem:[%s10 + $0x128] sm:$0xff]
  %v4390 = vld [vmem:[%s10 + $0x130] sm:$0xff]
  %v4391 = vld [vmem:[%s10 + $0x138] sm:$0xff]
  %v4392 = vld [vmem:[%s10 + $0x140] sm:$0xff]
  %v4393 = vld [vmem:[%s10 + $0x148] sm:$0xff]
  %v4394 = vld [vmem:[%s10 + $0x150] sm:$0xff]
  %v4395 = vld [vmem:[%s10 + $0x158] sm:$0xff]
  %v4396 = vld [vmem:[%s10 + $0x160] sm:$0xff]
  %v4397 = vld [vmem:[%s10 + $0x168] sm:$0xff]
  %v4398 = vld [vmem:[%s10 + $0x170] sm:$0xff]
  %v4399 = vld [vmem:[%s10 + $0x178] sm:$0xff]
  %v4400 = vld [vmem:[%s10 + $0x180] sm:$0xff]
  %v4401 = vld [vmem:[%s10 + $0x188] sm:$0xff]
  %v4402 = vld [vmem:[%s10 + $0x190] sm:$0xff]
  %v4403 = vld [vmem:[%s10 + $0x198] sm:$0xff]
  %v4404 = vld [vmem:[%s10 + $0x1a0] sm:$0xff]
  %v4405 = vld [vmem:[%s10 + $0x1a8] sm:$0xff]
  %v4406 = vld [vmem:[%s10 + $0x1b0] sm:$0xff]
  %v4407 = vld [vmem:[%s10 + $0x1b8] sm:$0xff]
  %v4408 = vld [vmem:[%s10 + $0x1c0] sm:$0xff]
  %v4409 = vld [vmem:[%s10 + $0x1c8] sm:$0xff]
  %v4410 = vld [vmem:[%s10 + $0x1d0] sm:$0xff]
  %v4411 = vld [vmem:[%s10 + $0x1d8] sm:$0xff]
  %v4412 = vld [vmem:[%s10 + $0x1e0] sm:$0xff]
  %v4413 = vld [vmem:[%s10 + $0x1e8] sm:$0xff]
  %v4414 = vld [vmem:[%s10 + $0x1f0] sm:$0xff]
  %v4415 = vld [vmem:[%s10 + $0x1f8] sm:$0xff]
  %v4416 = vld [vmem:[%s10 + $0x200] sm:$0xff]
  %v4417 = vld [vmem:[%s10 + $0x208] sm:$0xff]
  %v4418 = vld [vmem:[%s10 + $0x210] sm:$0xff]
  %v4419 = vld [vmem:[%s10 + $0x218] sm:$0xff]
  %v4420 = vld [vmem:[%s10 + $0x220] sm:$0xff]
  %v4421 = vld [vmem:[%s10 + $0x228] sm:$0xff]
  %v4422 = vld [vmem:[%s10 + $0x230] sm:$0xff]
  %v4423 = vld [vmem:[%s10 + $0x238] sm:$0xff]
  %v4424 = vld [vmem:[%s10 + $0x240] sm:$0xff]
  %v4425 = vld [vmem:[%s10 + $0x248] sm:$0xff]
  %v4426 = vld [vmem:[%s10 + $0x250] sm:$0xff]
  %v4427 = vld [vmem:[%s10 + $0x258] sm:$0xff]
  %v4428 = vld [vmem:[%s10 + $0x260] sm:$0xff]
  %v4429 = vld [vmem:[%s10 + $0x268] sm:$0xff]
  %v4430 = vld [vmem:[%s10 + $0x270] sm:$0xff]
  %v4431 = vld [vmem:[%s10 + $0x278] sm:$0xff]
  %v4432 = vld [vmem:[%s10 + $0x280] sm:$0xff]
  %v4433 = vld [vmem:[%s10 + $0x288] sm:$0xff]
  %v4434 = vld [vmem:[%s10 + $0x290] sm:$0xff]
  %v4435 = vld [vmem:[%s10 + $0x298] sm:$0xff]
  %v4436 = vld [vmem:[%s10 + $0x2a0] sm:$0xff]
  %v4437 = vld [vmem:[%s10 + $0x2a8] sm:$0xff]
  %v4438 = vld [vmem:[%s10 + $0x2b0] sm:$0xff]
  %v4439 = vld [vmem:[%s10 + $0x2b8] sm:$0xff]
  %v4440 = vld [vmem:[%s10 + $0x2c0] sm:$0xff]
  %v4441 = vld [vmem:[%s10 + $0x2c8] sm:$0xff]
  %v4442 = vld [vmem:[%s10 + $0x2d0] sm:$0xff]
  %v4443 = vld [vmem:[%s10 + $0x2d8] sm:$0xff]
  %v4444 = vld [vmem:[%s10 + $0x2e0] sm:$0xff]
  %v4445 = vld [vmem:[%s10 + $0x2e8] sm:$0xff]
  %v4446 = vld [vmem:[%s10 + $0x2f0] sm:$0xff]
  %v4447 = vld [vmem:[%s10 + $0x2f8] sm:$0xff]
  %v4448 = vld [vmem:[%s10 + $0x300] sm:$0xff]
  %v4449 = vld [vmem:[%s10 + $0x308] sm:$0xff]
  %v4450 = vld [vmem:[%s10 + $0x310] sm:$0xff]
  %v4451 = vld [vmem:[%s10 + $0x318] sm:$0xff]
  %v4452 = vld [vmem:[%s10 + $0x320] sm:$0xff]
  %v4453 = vld [vmem:[%s10 + $0x328] sm:$0xff]
  %v4454 = vld [vmem:[%s10 + $0x330] sm:$0xff]
  %v4455 = vld [vmem:[%s10 + $0x338] sm:$0xff]
  %v4456 = vld [vmem:[%s10 + $0x340] sm:$0xff]
  %v4457 = vld [vmem:[%s10 + $0x348] sm:$0xff]
  %v4458 = vld [vmem:[%s10 + $0x350] sm:$0xff]
  %v4459 = vld [vmem:[%s10 + $0x358] sm:$0xff]
  %v4460 = vld [vmem:[%s10 + $0x360] sm:$0xff]
  %v4461 = vld [vmem:[%s10 + $0x368] sm:$0xff]
  %v4462 = vld [vmem:[%s10 + $0x370] sm:$0xff]
  %v4463 = vld [vmem:[%s10 + $0x378] sm:$0xff]
  %v4464 = vld [vmem:[%s10 + $0x380] sm:$0xff]
  %v4465 = vld [vmem:[%s10 + $0x388] sm:$0xff]
  %v4466 = vld [vmem:[%s10 + $0x390] sm:$0xff]
  %v4467 = vld [vmem:[%s10 + $0x398] sm:$0xff]
  %v4468 = vld [vmem:[%s10 + $0x3a0] sm:$0xff]
  %v4469 = vld [vmem:[%s10 + $0x3a8] sm:$0xff]
  %v4470 = vld [vmem:[%s10 + $0x3b0] sm:$0xff]
  %v4471 = vld [vmem:[%s10 + $0x3b8] sm:$0xff]
  %v4472 = vld [vmem:[%s10 + $0x3c0] sm:$0xff]
  %v4473 = vld [vmem:[%s10 + $0x3c8] sm:$0xff]
  %v4474 = vld [vmem:[%s10 + $0x3d0] sm:$0xff]
  %v4475 = vld [vmem:[%s10 + $0x3d8] sm:$0xff]
  %v4476 = vld [vmem:[%s10 + $0x3e0] sm:$0xff]
  %v4477 = vld [vmem:[%s10 + $0x3e8] sm:$0xff]
  %v4478 = vld [vmem:[%s10 + $0x3f0] sm:$0xff]
  %v4479 = vld [vmem:[%s10 + $0x3f8] sm:$0xff]
  %v4480 = vld [vmem:[%s10 + $0x400] sm:$0xff]
  %v4481 = vld [vmem:[%s10 + $0x408] sm:$0xff]
  %v4482 = vld [vmem:[%s10 + $0x410] sm:$0xff]
  %v4483 = vld [vmem:[%s10 + $0x418] sm:$0xff]
  %v4484 = vld [vmem:[%s10 + $0x420] sm:$0xff]
  %v4485 = vld [vmem:[%s10 + $0x428] sm:$0xff]
  %v4486 = vld [vmem:[%s10 + $0x430] sm:$0xff]
  %v4487 = vld [vmem:[%s10 + $0x438] sm:$0xff]
  %v4488 = vld [vmem:[%s10 + $0x440] sm:$0xff]
  %v4489 = vld [vmem:[%s10 + $0x448] sm:$0xff]
  %v4490 = vld [vmem:[%s10 + $0x450] sm:$0xff]
  %v4491 = vld [vmem:[%s10 + $0x458] sm:$0xff]
  %v4492 = vld [vmem:[%s10 + $0x460] sm:$0xff]
  %v4493 = vld [vmem:[%s10 + $0x468] sm:$0xff]
  %v4494 = vld [vmem:[%s10 + $0x470] sm:$0xff]
  %v4495 = vld [vmem:[%s10 + $0x478] sm:$0xff]
  %v4496 = vld [vmem:[%s10 + $0x480] sm:$0xff]
  %v4497 = vld [vmem:[%s10 + $0x488] sm:$0xff]
  %v4498 = vld [vmem:[%s10 + $0x490] sm:$0xff]
  %v4499 = vld [vmem:[%s10 + $0x498] sm:$0xff]
  %v4500 = vld [vmem:[%s10 + $0x4a0] sm:$0xff]
  %v4501 = vld [vmem:[%s10 + $0x4a8] sm:$0xff]
  %v4502 = vld [vmem:[%s10 + $0x4b0] sm:$0xff]
  %v4503 = vld [vmem:[%s10 + $0x4b8] sm:$0xff]
  %v4504 = vld [vmem:[%s10 + $0x4c0] sm:$0xff]
  %v4505 = vld [vmem:[%s10 + $0x4c8] sm:$0xff]
  %v4506 = vld [vmem:[%s10 + $0x4d0] sm:$0xff]
  %v4507 = vld [vmem:[%s10 + $0x4d8] sm:$0xff]
  %v4508 = vld [vmem:[%s10 + $0x4e0] sm:$0xff]
  %v4509 = vld [vmem:[%s10 + $0x4e8] sm:$0xff]
  %v4510 = vld [vmem:[%s10 + $0x4f0] sm:$0xff]
  %v4511 = vld [vmem:[%s10 + $0x4f8] sm:$0xff]
  %v4512 = vld [vmem:[%s10 + $0x500] sm:$0xff]
  %v4513 = vld [vmem:[%s10 + $0x508] sm:$0xff]
  %v4514 = vld [vmem:[%s10 + $0x510] sm:$0xff]
  %v4515 = vld [vmem:[%s10 + $0x518] sm:$0xff]
  %v4516 = vld [vmem:[%s10 + $0x520] sm:$0xff]
  %v4517 = vld [vmem:[%s10 + $0x528] sm:$0xff]
  %v4518 = vld [vmem:[%s10 + $0x530] sm:$0xff]
  %v4519 = vld [vmem:[%s10 + $0x538] sm:$0xff]
  %v4520 = vld [vmem:[%s10 + $0x540] sm:$0xff]
  %v4521 = vld [vmem:[%s10 + $0x548] sm:$0xff]
  %v4522 = vld [vmem:[%s10 + $0x550] sm:$0xff]
  %v4523 = vld [vmem:[%s10 + $0x558] sm:$0xff]
  %v4524 = vld [vmem:[%s10 + $0x560] sm:$0xff]
  %v4525 = vld [vmem:[%s10 + $0x568] sm:$0xff]
  %v4526 = vld [vmem:[%s10 + $0x570] sm:$0xff]
  %v4527 = vld [vmem:[%s10 + $0x578] sm:$0xff]
  %v4528 = vld [vmem:[%s10 + $0x580] sm:$0xff]
  %v4529 = vld [vmem:[%s10 + $0x588] sm:$0xff]
  %v4530 = vld [vmem:[%s10 + $0x590] sm:$0xff]
  %v4531 = vld [vmem:[%s10 + $0x598] sm:$0xff]
  %v4532 = vld [vmem:[%s10 + $0x5a0] sm:$0xff]
  %v4533 = vld [vmem:[%s10 + $0x5a8] sm:$0xff]
  %v4534 = vld [vmem:[%s10 + $0x5b0] sm:$0xff]
  %v4535 = vld [vmem:[%s10 + $0x5b8] sm:$0xff]
  %v4536 = vld [vmem:[%s10 + $0x5c0] sm:$0xff]
  %v4537 = vld [vmem:[%s10 + $0x5c8] sm:$0xff]
  %v4538 = vld [vmem:[%s10 + $0x5d0] sm:$0xff]
  %v4539 = vld [vmem:[%s10 + $0x5d8] sm:$0xff]
  %v4540 = vld [vmem:[%s10 + $0x5e0] sm:$0xff]
  %v4541 = vld [vmem:[%s10 + $0x5e8] sm:$0xff]
  %v4542 = vld [vmem:[%s10 + $0x5f0] sm:$0xff]
  %v4543 = vld [vmem:[%s10 + $0x5f8] sm:$0xff]
  %v4544 = vld [vmem:[%s10 + $0x600] sm:$0xff]
  %v4545 = vld [vmem:[%s10 + $0x608] sm:$0xff]
  %v4546 = vld [vmem:[%s10 + $0x610] sm:$0xff]
  %v4547 = vld [vmem:[%s10 + $0x618] sm:$0xff]
  %v4548 = vld [vmem:[%s10 + $0x620] sm:$0xff]
  %v4549 = vld [vmem:[%s10 + $0x628] sm:$0xff]
  %v4550 = vld [vmem:[%s10 + $0x630] sm:$0xff]
  %v4551 = vld [vmem:[%s10 + $0x638] sm:$0xff]
  %v4552 = vld [vmem:[%s10 + $0x640] sm:$0xff]
  %v4553 = vld [vmem:[%s10 + $0x648] sm:$0xff]
  %v4554 = vld [vmem:[%s10 + $0x650] sm:$0xff]
  %v4555 = vld [vmem:[%s10 + $0x658] sm:$0xff]
  %v4556 = vld [vmem:[%s10 + $0x660] sm:$0xff]
  %v4557 = vld [vmem:[%s10 + $0x668] sm:$0xff]
  %v4558 = vld [vmem:[%s10 + $0x670] sm:$0xff]
  %v4559 = vld [vmem:[%s10 + $0x678] sm:$0xff]
  %v4560 = vld [vmem:[%s10 + $0x680] sm:$0xff]
  %v4561 = vld [vmem:[%s10 + $0x688] sm:$0xff]
  %v4562 = vld [vmem:[%s10 + $0x690] sm:$0xff]
  %v4563 = vld [vmem:[%s10 + $0x698] sm:$0xff]
  %v4564 = vld [vmem:[%s10 + $0x6a0] sm:$0xff]
  %v4565 = vld [vmem:[%s10 + $0x6a8] sm:$0xff]
  %v4566 = vld [vmem:[%s10 + $0x6b0] sm:$0xff]
  %v4567 = vld [vmem:[%s10 + $0x6b8] sm:$0xff]
  %v4568 = vld [vmem:[%s10 + $0x6c0] sm:$0xff]
  %v4569 = vld [vmem:[%s10 + $0x6c8] sm:$0xff]
  %v4570 = vld [vmem:[%s10 + $0x6d0] sm:$0xff]
  %v4571 = vld [vmem:[%s10 + $0x6d8] sm:$0xff]
  %v4572 = vld [vmem:[%s10 + $0x6e0] sm:$0xff]
  %v4573 = vld [vmem:[%s10 + $0x6e8] sm:$0xff]
  %v4574 = vld [vmem:[%s10 + $0x6f0] sm:$0xff]
  %v4575 = vld [vmem:[%s10 + $0x6f8] sm:$0xff]
  %v4576 = vld [vmem:[%s10 + $0x700] sm:$0xff]
  %v4577 = vld [vmem:[%s10 + $0x708] sm:$0xff]
  %v4578 = vld [vmem:[%s10 + $0x710] sm:$0xff]
  %v4579 = vld [vmem:[%s10 + $0x718] sm:$0xff]
  %v4580 = vld [vmem:[%s10 + $0x720] sm:$0xff]
  %v4581 = vld [vmem:[%s10 + $0x728] sm:$0xff]
  %v4582 = vld [vmem:[%s10 + $0x730] sm:$0xff]
  %v4583 = vld [vmem:[%s10 + $0x738] sm:$0xff]
  %v4584 = vld [vmem:[%s10 + $0x740] sm:$0xff]
  %v4585 = vld [vmem:[%s10 + $0x748] sm:$0xff]
  %v4586 = vld [vmem:[%s10 + $0x750] sm:$0xff]
  %v4587 = vld [vmem:[%s10 + $0x758] sm:$0xff]
  %v4588 = vld [vmem:[%s10 + $0x760] sm:$0xff]
  %v4589 = vld [vmem:[%s10 + $0x768] sm:$0xff]
  %v4590 = vld [vmem:[%s10 + $0x770] sm:$0xff]
  %v4591 = vld [vmem:[%s10 + $0x778] sm:$0xff]
  %v4592 = vld [vmem:[%s10 + $0x780] sm:$0xff]
  %v4593 = vld [vmem:[%s10 + $0x788] sm:$0xff]
  %v4594 = vld [vmem:[%s10 + $0x790] sm:$0xff]
  %v4595 = vld [vmem:[%s10 + $0x798] sm:$0xff]
  %v4596 = vld [vmem:[%s10 + $0x7a0] sm:$0xff]
  %v4597 = vld [vmem:[%s10 + $0x7a8] sm:$0xff]
  %v4598 = vld [vmem:[%s10 + $0x7b0] sm:$0xff]
  %v4599 = vld [vmem:[%s10 + $0x7b8] sm:$0xff]
  %v4600 = vld [vmem:[%s10 + $0x7c0] sm:$0xff]
  %v4601 = vld [vmem:[%s10 + $0x7c8] sm:$0xff]
  %v4602 = vld [vmem:[%s10 + $0x7d0] sm:$0xff]
  %v4603 = vld [vmem:[%s10 + $0x7d8] sm:$0xff]
  %v4604 = vld [vmem:[%s10 + $0x7e0] sm:$0xff]
  %v4605 = vld [vmem:[%s10 + $0x7e8] sm:$0xff]
  %v4606 = vld [vmem:[%s10 + $0x7f0] sm:$0xff]
  %v4607 = vld [vmem:[%s10 + $0x7f8] sm:$0xff]
  %v4608 = vld [vmem:[%s11] sm:$0xff]
  %v4610 = vlaneseq
  %v4611 = vshrl.u32 %v4610, 7
  %v4612 = vsub.s32 0, %v4611
  %v4613 = vrot.slane %v4608, %v4612
  %v4614 = vlaneseq
  %v4615 = vshrl.u32 %v4614, 7
  %v4616 = vsub.s32 1, %v4615
  %v4617 = vrot.slane %v4608, %v4616
  %v4618 = vlaneseq
  %v4619 = vshrl.u32 %v4618, 7
  %v4620 = vsub.s32 2, %v4619
  %v4621 = vrot.slane %v4608, %v4620
  %v4622 = vlaneseq
  %v4623 = vshrl.u32 %v4622, 7
  %v4624 = vsub.s32 3, %v4623
  %v4625 = vrot.slane %v4608, %v4624
  %v4626 = vlaneseq
  %v4627 = vshrl.u32 %v4626, 7
  %v4628 = vsub.s32 4, %v4627
  %v4629 = vrot.slane %v4608, %v4628
  %v4630 = vlaneseq
  %v4631 = vshrl.u32 %v4630, 7
  %v4632 = vsub.s32 5, %v4631
  %v4633 = vrot.slane %v4608, %v4632
  %v4634 = vlaneseq
  %v4635 = vshrl.u32 %v4634, 7
  %v4636 = vsub.s32 6, %v4635
  %v4637 = vrot.slane %v4608, %v4636
  %v4638 = vlaneseq
  %v4639 = vshrl.u32 %v4638, 7
  %v4640 = vsub.s32 7, %v4639
  %v4641 = vrot.slane %v4608, %v4640
  %v4906 = vunpack.c.l.b16 %v4352
  %v4907 = vunpack.c.h.b16 %v4352
  %v4908 = vunpack.c.l.b16 %v4353
  %v4909 = vunpack.c.h.b16 %v4353
  %v4910 = vunpack.c.l.b16 %v4354
  %v4911 = vunpack.c.h.b16 %v4354
  %v4912 = vunpack.c.l.b16 %v4355
  %v4913 = vunpack.c.h.b16 %v4355
  %v4914 = vunpack.c.l.b16 %v4356
  %v4915 = vunpack.c.h.b16 %v4356
  %v4916 = vunpack.c.l.b16 %v4357
  %v4917 = vunpack.c.h.b16 %v4357
  %v4918 = vunpack.c.l.b16 %v4358
  %v4919 = vunpack.c.h.b16 %v4358
  %v4920 = vunpack.c.l.b16 %v4359
  %v4921 = vunpack.c.h.b16 %v4359
  %v4922 = vunpack.c.l.b16 %v4360
  %v4923 = vunpack.c.h.b16 %v4360
  %v4924 = vunpack.c.l.b16 %v4361
  %v4925 = vunpack.c.h.b16 %v4361
  %v4926 = vunpack.c.l.b16 %v4362
  %v4927 = vunpack.c.h.b16 %v4362
  %v4928 = vunpack.c.l.b16 %v4363
  %v4929 = vunpack.c.h.b16 %v4363
  %v4930 = vunpack.c.l.b16 %v4364
  %v4931 = vunpack.c.h.b16 %v4364
  %v4932 = vunpack.c.l.b16 %v4365
  %v4933 = vunpack.c.h.b16 %v4365
  %v4934 = vunpack.c.l.b16 %v4366
  %v4935 = vunpack.c.h.b16 %v4366
  %v4936 = vunpack.c.l.b16 %v4367
  %v4937 = vunpack.c.h.b16 %v4367
  %v4938 = vunpack.c.l.b16 %v4368
  %v4939 = vunpack.c.h.b16 %v4368
  %v4940 = vunpack.c.l.b16 %v4369
  %v4941 = vunpack.c.h.b16 %v4369
  %v4942 = vunpack.c.l.b16 %v4370
  %v4943 = vunpack.c.h.b16 %v4370
  %v4944 = vunpack.c.l.b16 %v4371
  %v4945 = vunpack.c.h.b16 %v4371
  %v4946 = vunpack.c.l.b16 %v4372
  %v4947 = vunpack.c.h.b16 %v4372
  %v4948 = vunpack.c.l.b16 %v4373
  %v4949 = vunpack.c.h.b16 %v4373
  %v4950 = vunpack.c.l.b16 %v4374
  %v4951 = vunpack.c.h.b16 %v4374
  %v4952 = vunpack.c.l.b16 %v4375
  %v4953 = vunpack.c.h.b16 %v4375
  %v4954 = vunpack.c.l.b16 %v4376
  %v4955 = vunpack.c.h.b16 %v4376
  %v4956 = vunpack.c.l.b16 %v4377
  %v4957 = vunpack.c.h.b16 %v4377
  %v4958 = vunpack.c.l.b16 %v4378
  %v4959 = vunpack.c.h.b16 %v4378
  %v4960 = vunpack.c.l.b16 %v4379
  %v4961 = vunpack.c.h.b16 %v4379
  %v4962 = vunpack.c.l.b16 %v4380
  %v4963 = vunpack.c.h.b16 %v4380
  %v4964 = vunpack.c.l.b16 %v4381
  %v4965 = vunpack.c.h.b16 %v4381
  %v4966 = vunpack.c.l.b16 %v4382
  %v4967 = vunpack.c.h.b16 %v4382
  %v4968 = vunpack.c.l.b16 %v4383
  %v4969 = vunpack.c.h.b16 %v4383
  %v4970 = vunpack.c.l.b16 %v4384
  %v4971 = vunpack.c.h.b16 %v4384
  %v4972 = vunpack.c.l.b16 %v4385
  %v4973 = vunpack.c.h.b16 %v4385
  %v4974 = vunpack.c.l.b16 %v4386
  %v4975 = vunpack.c.h.b16 %v4386
  %v4976 = vunpack.c.l.b16 %v4387
  %v4977 = vunpack.c.h.b16 %v4387
  %v4978 = vunpack.c.l.b16 %v4388
  %v4979 = vunpack.c.h.b16 %v4388
  %v4980 = vunpack.c.l.b16 %v4389
  %v4981 = vunpack.c.h.b16 %v4389
  %v4982 = vunpack.c.l.b16 %v4390
  %v4983 = vunpack.c.h.b16 %v4390
  %v4984 = vunpack.c.l.b16 %v4391
  %v4985 = vunpack.c.h.b16 %v4391
  %v4986 = vunpack.c.l.b16 %v4392
  %v4987 = vunpack.c.h.b16 %v4392
  %v4988 = vunpack.c.l.b16 %v4393
  %v4989 = vunpack.c.h.b16 %v4393
  %v4990 = vunpack.c.l.b16 %v4394
  %v4991 = vunpack.c.h.b16 %v4394
  %v4992 = vunpack.c.l.b16 %v4395
  %v4993 = vunpack.c.h.b16 %v4395
  %v4994 = vunpack.c.l.b16 %v4396
  %v4995 = vunpack.c.h.b16 %v4396
  %v4996 = vunpack.c.l.b16 %v4397
  %v4997 = vunpack.c.h.b16 %v4397
  %v4998 = vunpack.c.l.b16 %v4398
  %v4999 = vunpack.c.h.b16 %v4398
  %v5000 = vunpack.c.l.b16 %v4399
  %v5001 = vunpack.c.h.b16 %v4399
  %v5002 = vunpack.c.l.b16 %v4400
  %v5003 = vunpack.c.h.b16 %v4400
  %v5004 = vunpack.c.l.b16 %v4401
  %v5005 = vunpack.c.h.b16 %v4401
  %v5006 = vunpack.c.l.b16 %v4402
  %v5007 = vunpack.c.h.b16 %v4402
  %v5008 = vunpack.c.l.b16 %v4403
  %v5009 = vunpack.c.h.b16 %v4403
  %v5010 = vunpack.c.l.b16 %v4404
  %v5011 = vunpack.c.h.b16 %v4404
  %v5012 = vunpack.c.l.b16 %v4405
  %v5013 = vunpack.c.h.b16 %v4405
  %v5014 = vunpack.c.l.b16 %v4406
  %v5015 = vunpack.c.h.b16 %v4406
  %v5016 = vunpack.c.l.b16 %v4407
  %v5017 = vunpack.c.h.b16 %v4407
  %v5018 = vunpack.c.l.b16 %v4408
  %v5019 = vunpack.c.h.b16 %v4408
  %v5020 = vunpack.c.l.b16 %v4409
  %v5021 = vunpack.c.h.b16 %v4409
  %v5022 = vunpack.c.l.b16 %v4410
  %v5023 = vunpack.c.h.b16 %v4410
  %v5024 = vunpack.c.l.b16 %v4411
  %v5025 = vunpack.c.h.b16 %v4411
  %v5026 = vunpack.c.l.b16 %v4412
  %v5027 = vunpack.c.h.b16 %v4412
  %v5028 = vunpack.c.l.b16 %v4413
  %v5029 = vunpack.c.h.b16 %v4413
  %v5030 = vunpack.c.l.b16 %v4414
  %v5031 = vunpack.c.h.b16 %v4414
  %v5032 = vunpack.c.l.b16 %v4415
  %v5033 = vunpack.c.h.b16 %v4415
  %v5034 = vunpack.c.l.b16 %v4416
  %v5035 = vunpack.c.h.b16 %v4416
  %v5036 = vunpack.c.l.b16 %v4417
  %v5037 = vunpack.c.h.b16 %v4417
  %v5038 = vunpack.c.l.b16 %v4418
  %v5039 = vunpack.c.h.b16 %v4418
  %v5040 = vunpack.c.l.b16 %v4419
  %v5041 = vunpack.c.h.b16 %v4419
  %v5042 = vunpack.c.l.b16 %v4420
  %v5043 = vunpack.c.h.b16 %v4420
  %v5044 = vunpack.c.l.b16 %v4421
  %v5045 = vunpack.c.h.b16 %v4421
  %v5046 = vunpack.c.l.b16 %v4422
  %v5047 = vunpack.c.h.b16 %v4422
  %v5048 = vunpack.c.l.b16 %v4423
  %v5049 = vunpack.c.h.b16 %v4423
  %v5050 = vunpack.c.l.b16 %v4424
  %v5051 = vunpack.c.h.b16 %v4424
  %v5052 = vunpack.c.l.b16 %v4425
  %v5053 = vunpack.c.h.b16 %v4425
  %v5054 = vunpack.c.l.b16 %v4426
  %v5055 = vunpack.c.h.b16 %v4426
  %v5056 = vunpack.c.l.b16 %v4427
  %v5057 = vunpack.c.h.b16 %v4427
  %v5058 = vunpack.c.l.b16 %v4428
  %v5059 = vunpack.c.h.b16 %v4428
  %v5060 = vunpack.c.l.b16 %v4429
  %v5061 = vunpack.c.h.b16 %v4429
  %v5062 = vunpack.c.l.b16 %v4430
  %v5063 = vunpack.c.h.b16 %v4430
  %v5064 = vunpack.c.l.b16 %v4431
  %v5065 = vunpack.c.h.b16 %v4431
  %v5066 = vunpack.c.l.b16 %v4432
  %v5067 = vunpack.c.h.b16 %v4432
  %v5068 = vunpack.c.l.b16 %v4433
  %v5069 = vunpack.c.h.b16 %v4433
  %v5070 = vunpack.c.l.b16 %v4434
  %v5071 = vunpack.c.h.b16 %v4434
  %v5072 = vunpack.c.l.b16 %v4435
  %v5073 = vunpack.c.h.b16 %v4435
  %v5074 = vunpack.c.l.b16 %v4436
  %v5075 = vunpack.c.h.b16 %v4436
  %v5076 = vunpack.c.l.b16 %v4437
  %v5077 = vunpack.c.h.b16 %v4437
  %v5078 = vunpack.c.l.b16 %v4438
  %v5079 = vunpack.c.h.b16 %v4438
  %v5080 = vunpack.c.l.b16 %v4439
  %v5081 = vunpack.c.h.b16 %v4439
  %v5082 = vunpack.c.l.b16 %v4440
  %v5083 = vunpack.c.h.b16 %v4440
  %v5084 = vunpack.c.l.b16 %v4441
  %v5085 = vunpack.c.h.b16 %v4441
  %v5086 = vunpack.c.l.b16 %v4442
  %v5087 = vunpack.c.h.b16 %v4442
  %v5088 = vunpack.c.l.b16 %v4443
  %v5089 = vunpack.c.h.b16 %v4443
  %v5090 = vunpack.c.l.b16 %v4444
  %v5091 = vunpack.c.h.b16 %v4444
  %v5092 = vunpack.c.l.b16 %v4445
  %v5093 = vunpack.c.h.b16 %v4445
  %v5094 = vunpack.c.l.b16 %v4446
  %v5095 = vunpack.c.h.b16 %v4446
  %v5096 = vunpack.c.l.b16 %v4447
  %v5097 = vunpack.c.h.b16 %v4447
  %v5098 = vunpack.c.l.b16 %v4448
  %v5099 = vunpack.c.h.b16 %v4448
  %v5100 = vunpack.c.l.b16 %v4449
  %v5101 = vunpack.c.h.b16 %v4449
  %v5102 = vunpack.c.l.b16 %v4450
  %v5103 = vunpack.c.h.b16 %v4450
  %v5104 = vunpack.c.l.b16 %v4451
  %v5105 = vunpack.c.h.b16 %v4451
  %v5106 = vunpack.c.l.b16 %v4452
  %v5107 = vunpack.c.h.b16 %v4452
  %v5108 = vunpack.c.l.b16 %v4453
  %v5109 = vunpack.c.h.b16 %v4453
  %v5110 = vunpack.c.l.b16 %v4454
  %v5111 = vunpack.c.h.b16 %v4454
  %v5112 = vunpack.c.l.b16 %v4455
  %v5113 = vunpack.c.h.b16 %v4455
  %v5114 = vunpack.c.l.b16 %v4456
  %v5115 = vunpack.c.h.b16 %v4456
  %v5116 = vunpack.c.l.b16 %v4457
  %v5117 = vunpack.c.h.b16 %v4457
  %v5118 = vunpack.c.l.b16 %v4458
  %v5119 = vunpack.c.h.b16 %v4458
  %v5120 = vunpack.c.l.b16 %v4459
  %v5121 = vunpack.c.h.b16 %v4459
  %v5122 = vunpack.c.l.b16 %v4460
  %v5123 = vunpack.c.h.b16 %v4460
  %v5124 = vunpack.c.l.b16 %v4461
  %v5125 = vunpack.c.h.b16 %v4461
  %v5126 = vunpack.c.l.b16 %v4462
  %v5127 = vunpack.c.h.b16 %v4462
  %v5128 = vunpack.c.l.b16 %v4463
  %v5129 = vunpack.c.h.b16 %v4463
  %v5130 = vunpack.c.l.b16 %v4464
  %v5131 = vunpack.c.h.b16 %v4464
  %v5132 = vunpack.c.l.b16 %v4465
  %v5133 = vunpack.c.h.b16 %v4465
  %v5134 = vunpack.c.l.b16 %v4466
  %v5135 = vunpack.c.h.b16 %v4466
  %v5136 = vunpack.c.l.b16 %v4467
  %v5137 = vunpack.c.h.b16 %v4467
  %v5138 = vunpack.c.l.b16 %v4468
  %v5139 = vunpack.c.h.b16 %v4468
  %v5140 = vunpack.c.l.b16 %v4469
  %v5141 = vunpack.c.h.b16 %v4469
  %v5142 = vunpack.c.l.b16 %v4470
  %v5143 = vunpack.c.h.b16 %v4470
  %v5144 = vunpack.c.l.b16 %v4471
  %v5145 = vunpack.c.h.b16 %v4471
  %v5146 = vunpack.c.l.b16 %v4472
  %v5147 = vunpack.c.h.b16 %v4472
  %v5148 = vunpack.c.l.b16 %v4473
  %v5149 = vunpack.c.h.b16 %v4473
  %v5150 = vunpack.c.l.b16 %v4474
  %v5151 = vunpack.c.h.b16 %v4474
  %v5152 = vunpack.c.l.b16 %v4475
  %v5153 = vunpack.c.h.b16 %v4475
  %v5154 = vunpack.c.l.b16 %v4476
  %v5155 = vunpack.c.h.b16 %v4476
  %v5156 = vunpack.c.l.b16 %v4477
  %v5157 = vunpack.c.h.b16 %v4477
  %v5158 = vunpack.c.l.b16 %v4478
  %v5159 = vunpack.c.h.b16 %v4478
  %v5160 = vunpack.c.l.b16 %v4479
  %v5161 = vunpack.c.h.b16 %v4479
  %v5162 = vunpack.c.l.b16 %v4480
  %v5163 = vunpack.c.h.b16 %v4480
  %v5164 = vunpack.c.l.b16 %v4481
  %v5165 = vunpack.c.h.b16 %v4481
  %v5166 = vunpack.c.l.b16 %v4482
  %v5167 = vunpack.c.h.b16 %v4482
  %v5168 = vunpack.c.l.b16 %v4483
  %v5169 = vunpack.c.h.b16 %v4483
  %v5170 = vunpack.c.l.b16 %v4484
  %v5171 = vunpack.c.h.b16 %v4484
  %v5172 = vunpack.c.l.b16 %v4485
  %v5173 = vunpack.c.h.b16 %v4485
  %v5174 = vunpack.c.l.b16 %v4486
  %v5175 = vunpack.c.h.b16 %v4486
  %v5176 = vunpack.c.l.b16 %v4487
  %v5177 = vunpack.c.h.b16 %v4487
  %v5178 = vunpack.c.l.b16 %v4488
  %v5179 = vunpack.c.h.b16 %v4488
  %v5180 = vunpack.c.l.b16 %v4489
  %v5181 = vunpack.c.h.b16 %v4489
  %v5182 = vunpack.c.l.b16 %v4490
  %v5183 = vunpack.c.h.b16 %v4490
  %v5184 = vunpack.c.l.b16 %v4491
  %v5185 = vunpack.c.h.b16 %v4491
  %v5186 = vunpack.c.l.b16 %v4492
  %v5187 = vunpack.c.h.b16 %v4492
  %v5188 = vunpack.c.l.b16 %v4493
  %v5189 = vunpack.c.h.b16 %v4493
  %v5190 = vunpack.c.l.b16 %v4494
  %v5191 = vunpack.c.h.b16 %v4494
  %v5192 = vunpack.c.l.b16 %v4495
  %v5193 = vunpack.c.h.b16 %v4495
  %v5194 = vunpack.c.l.b16 %v4496
  %v5195 = vunpack.c.h.b16 %v4496
  %v5196 = vunpack.c.l.b16 %v4497
  %v5197 = vunpack.c.h.b16 %v4497
  %v5198 = vunpack.c.l.b16 %v4498
  %v5199 = vunpack.c.h.b16 %v4498
  %v5200 = vunpack.c.l.b16 %v4499
  %v5201 = vunpack.c.h.b16 %v4499
  %v5202 = vunpack.c.l.b16 %v4500
  %v5203 = vunpack.c.h.b16 %v4500
  %v5204 = vunpack.c.l.b16 %v4501
  %v5205 = vunpack.c.h.b16 %v4501
  %v5206 = vunpack.c.l.b16 %v4502
  %v5207 = vunpack.c.h.b16 %v4502
  %v5208 = vunpack.c.l.b16 %v4503
  %v5209 = vunpack.c.h.b16 %v4503
  %v5210 = vunpack.c.l.b16 %v4504
  %v5211 = vunpack.c.h.b16 %v4504
  %v5212 = vunpack.c.l.b16 %v4505
  %v5213 = vunpack.c.h.b16 %v4505
  %v5214 = vunpack.c.l.b16 %v4506
  %v5215 = vunpack.c.h.b16 %v4506
  %v5216 = vunpack.c.l.b16 %v4507
  %v5217 = vunpack.c.h.b16 %v4507
  %v5218 = vunpack.c.l.b16 %v4508
  %v5219 = vunpack.c.h.b16 %v4508
  %v5220 = vunpack.c.l.b16 %v4509
  %v5221 = vunpack.c.h.b16 %v4509
  %v5222 = vunpack.c.l.b16 %v4510
  %v5223 = vunpack.c.h.b16 %v4510
  %v5224 = vunpack.c.l.b16 %v4511
  %v5225 = vunpack.c.h.b16 %v4511
  %v5226 = vunpack.c.l.b16 %v4512
  %v5227 = vunpack.c.h.b16 %v4512
  %v5228 = vunpack.c.l.b16 %v4513
  %v5229 = vunpack.c.h.b16 %v4513
  %v5230 = vunpack.c.l.b16 %v4514
  %v5231 = vunpack.c.h.b16 %v4514
  %v5232 = vunpack.c.l.b16 %v4515
  %v5233 = vunpack.c.h.b16 %v4515
  %v5234 = vunpack.c.l.b16 %v4516
  %v5235 = vunpack.c.h.b16 %v4516
  %v5236 = vunpack.c.l.b16 %v4517
  %v5237 = vunpack.c.h.b16 %v4517
  %v5238 = vunpack.c.l.b16 %v4518
  %v5239 = vunpack.c.h.b16 %v4518
  %v5240 = vunpack.c.l.b16 %v4519
  %v5241 = vunpack.c.h.b16 %v4519
  %v5242 = vunpack.c.l.b16 %v4520
  %v5243 = vunpack.c.h.b16 %v4520
  %v5244 = vunpack.c.l.b16 %v4521
  %v5245 = vunpack.c.h.b16 %v4521
  %v5246 = vunpack.c.l.b16 %v4522
  %v5247 = vunpack.c.h.b16 %v4522
  %v5248 = vunpack.c.l.b16 %v4523
  %v5249 = vunpack.c.h.b16 %v4523
  %v5250 = vunpack.c.l.b16 %v4524
  %v5251 = vunpack.c.h.b16 %v4524
  %v5252 = vunpack.c.l.b16 %v4525
  %v5253 = vunpack.c.h.b16 %v4525
  %v5254 = vunpack.c.l.b16 %v4526
  %v5255 = vunpack.c.h.b16 %v4526
  %v5256 = vunpack.c.l.b16 %v4527
  %v5257 = vunpack.c.h.b16 %v4527
  %v5258 = vunpack.c.l.b16 %v4528
  %v5259 = vunpack.c.h.b16 %v4528
  %v5260 = vunpack.c.l.b16 %v4529
  %v5261 = vunpack.c.h.b16 %v4529
  %v5262 = vunpack.c.l.b16 %v4530
  %v5263 = vunpack.c.h.b16 %v4530
  %v5264 = vunpack.c.l.b16 %v4531
  %v5265 = vunpack.c.h.b16 %v4531
  %v5266 = vunpack.c.l.b16 %v4532
  %v5267 = vunpack.c.h.b16 %v4532
  %v5268 = vunpack.c.l.b16 %v4533
  %v5269 = vunpack.c.h.b16 %v4533
  %v5270 = vunpack.c.l.b16 %v4534
  %v5271 = vunpack.c.h.b16 %v4534
  %v5272 = vunpack.c.l.b16 %v4535
  %v5273 = vunpack.c.h.b16 %v4535
  %v5274 = vunpack.c.l.b16 %v4536
  %v5275 = vunpack.c.h.b16 %v4536
  %v5276 = vunpack.c.l.b16 %v4537
  %v5277 = vunpack.c.h.b16 %v4537
  %v5278 = vunpack.c.l.b16 %v4538
  %v5279 = vunpack.c.h.b16 %v4538
  %v5280 = vunpack.c.l.b16 %v4539
  %v5281 = vunpack.c.h.b16 %v4539
  %v5282 = vunpack.c.l.b16 %v4540
  %v5283 = vunpack.c.h.b16 %v4540
  %v5284 = vunpack.c.l.b16 %v4541
  %v5285 = vunpack.c.h.b16 %v4541
  %v5286 = vunpack.c.l.b16 %v4542
  %v5287 = vunpack.c.h.b16 %v4542
  %v5288 = vunpack.c.l.b16 %v4543
  %v5289 = vunpack.c.h.b16 %v4543
  %v5290 = vunpack.c.l.b16 %v4544
  %v5291 = vunpack.c.h.b16 %v4544
  %v5292 = vunpack.c.l.b16 %v4545
  %v5293 = vunpack.c.h.b16 %v4545
  %v5294 = vunpack.c.l.b16 %v4546
  %v5295 = vunpack.c.h.b16 %v4546
  %v5296 = vunpack.c.l.b16 %v4547
  %v5297 = vunpack.c.h.b16 %v4547
  %v5298 = vunpack.c.l.b16 %v4548
  %v5299 = vunpack.c.h.b16 %v4548
  %v5300 = vunpack.c.l.b16 %v4549
  %v5301 = vunpack.c.h.b16 %v4549
  %v5302 = vunpack.c.l.b16 %v4550
  %v5303 = vunpack.c.h.b16 %v4550
  %v5304 = vunpack.c.l.b16 %v4551
  %v5305 = vunpack.c.h.b16 %v4551
  %v5306 = vunpack.c.l.b16 %v4552
  %v5307 = vunpack.c.h.b16 %v4552
  %v5308 = vunpack.c.l.b16 %v4553
  %v5309 = vunpack.c.h.b16 %v4553
  %v5310 = vunpack.c.l.b16 %v4554
  %v5311 = vunpack.c.h.b16 %v4554
  %v5312 = vunpack.c.l.b16 %v4555
  %v5313 = vunpack.c.h.b16 %v4555
  %v5314 = vunpack.c.l.b16 %v4556
  %v5315 = vunpack.c.h.b16 %v4556
  %v5316 = vunpack.c.l.b16 %v4557
  %v5317 = vunpack.c.h.b16 %v4557
  %v5318 = vunpack.c.l.b16 %v4558
  %v5319 = vunpack.c.h.b16 %v4558
  %v5320 = vunpack.c.l.b16 %v4559
  %v5321 = vunpack.c.h.b16 %v4559
  %v5322 = vunpack.c.l.b16 %v4560
  %v5323 = vunpack.c.h.b16 %v4560
  %v5324 = vunpack.c.l.b16 %v4561
  %v5325 = vunpack.c.h.b16 %v4561
  %v5326 = vunpack.c.l.b16 %v4562
  %v5327 = vunpack.c.h.b16 %v4562
  %v5328 = vunpack.c.l.b16 %v4563
  %v5329 = vunpack.c.h.b16 %v4563
  %v5330 = vunpack.c.l.b16 %v4564
  %v5331 = vunpack.c.h.b16 %v4564
  %v5332 = vunpack.c.l.b16 %v4565
  %v5333 = vunpack.c.h.b16 %v4565
  %v5334 = vunpack.c.l.b16 %v4566
  %v5335 = vunpack.c.h.b16 %v4566
  %v5336 = vunpack.c.l.b16 %v4567
  %v5337 = vunpack.c.h.b16 %v4567
  %v5338 = vunpack.c.l.b16 %v4568
  %v5339 = vunpack.c.h.b16 %v4568
  %v5340 = vunpack.c.l.b16 %v4569
  %v5341 = vunpack.c.h.b16 %v4569
  %v5342 = vunpack.c.l.b16 %v4570
  %v5343 = vunpack.c.h.b16 %v4570
  %v5344 = vunpack.c.l.b16 %v4571
  %v5345 = vunpack.c.h.b16 %v4571
  %v5346 = vunpack.c.l.b16 %v4572
  %v5347 = vunpack.c.h.b16 %v4572
  %v5348 = vunpack.c.l.b16 %v4573
  %v5349 = vunpack.c.h.b16 %v4573
  %v5350 = vunpack.c.l.b16 %v4574
  %v5351 = vunpack.c.h.b16 %v4574
  %v5352 = vunpack.c.l.b16 %v4575
  %v5353 = vunpack.c.h.b16 %v4575
  %v5354 = vunpack.c.l.b16 %v4576
  %v5355 = vunpack.c.h.b16 %v4576
  %v5356 = vunpack.c.l.b16 %v4577
  %v5357 = vunpack.c.h.b16 %v4577
  %v5358 = vunpack.c.l.b16 %v4578
  %v5359 = vunpack.c.h.b16 %v4578
  %v5360 = vunpack.c.l.b16 %v4579
  %v5361 = vunpack.c.h.b16 %v4579
  %v5362 = vunpack.c.l.b16 %v4580
  %v5363 = vunpack.c.h.b16 %v4580
  %v5364 = vunpack.c.l.b16 %v4581
  %v5365 = vunpack.c.h.b16 %v4581
  %v5366 = vunpack.c.l.b16 %v4582
  %v5367 = vunpack.c.h.b16 %v4582
  %v5368 = vunpack.c.l.b16 %v4583
  %v5369 = vunpack.c.h.b16 %v4583
  %v5370 = vunpack.c.l.b16 %v4584
  %v5371 = vunpack.c.h.b16 %v4584
  %v5372 = vunpack.c.l.b16 %v4585
  %v5373 = vunpack.c.h.b16 %v4585
  %v5374 = vunpack.c.l.b16 %v4586
  %v5375 = vunpack.c.h.b16 %v4586
  %v5376 = vunpack.c.l.b16 %v4587
  %v5377 = vunpack.c.h.b16 %v4587
  %v5378 = vunpack.c.l.b16 %v4588
  %v5379 = vunpack.c.h.b16 %v4588
  %v5380 = vunpack.c.l.b16 %v4589
  %v5381 = vunpack.c.h.b16 %v4589
  %v5382 = vunpack.c.l.b16 %v4590
  %v5383 = vunpack.c.h.b16 %v4590
  %v5384 = vunpack.c.l.b16 %v4591
  %v5385 = vunpack.c.h.b16 %v4591
  %v5386 = vunpack.c.l.b16 %v4592
  %v5387 = vunpack.c.h.b16 %v4592
  %v5388 = vunpack.c.l.b16 %v4593
  %v5389 = vunpack.c.h.b16 %v4593
  %v5390 = vunpack.c.l.b16 %v4594
  %v5391 = vunpack.c.h.b16 %v4594
  %v5392 = vunpack.c.l.b16 %v4595
  %v5393 = vunpack.c.h.b16 %v4595
  %v5394 = vunpack.c.l.b16 %v4596
  %v5395 = vunpack.c.h.b16 %v4596
  %v5396 = vunpack.c.l.b16 %v4597
  %v5397 = vunpack.c.h.b16 %v4597
  %v5398 = vunpack.c.l.b16 %v4598
  %v5399 = vunpack.c.h.b16 %v4598
  %v5400 = vunpack.c.l.b16 %v4599
  %v5401 = vunpack.c.h.b16 %v4599
  %v5402 = vunpack.c.l.b16 %v4600
  %v5403 = vunpack.c.h.b16 %v4600
  %v5404 = vunpack.c.l.b16 %v4601
  %v5405 = vunpack.c.h.b16 %v4601
  %v5406 = vunpack.c.l.b16 %v4602
  %v5407 = vunpack.c.h.b16 %v4602
  %v5408 = vunpack.c.l.b16 %v4603
  %v5409 = vunpack.c.h.b16 %v4603
  %v5410 = vunpack.c.l.b16 %v4604
  %v5411 = vunpack.c.h.b16 %v4604
  %v5412 = vunpack.c.l.b16 %v4605
  %v5413 = vunpack.c.h.b16 %v4605
  %v5414 = vunpack.c.l.b16 %v4606
  %v5415 = vunpack.c.h.b16 %v4606
  %v5416 = vunpack.c.l.b16 %v4607
  %v5417 = vunpack.c.h.b16 %v4607
  %v5418 = vpack.c.b16 %v4914, %v4906
  %v5419 = vpack.c.b16 %v4915, %v4907
  %v5420 = vpack.c.b16 %v4916, %v4908
  %v5421 = vpack.c.b16 %v4917, %v4909
  %v5422 = vpack.c.b16 %v4918, %v4910
  %v5423 = vpack.c.b16 %v4919, %v4911
  %v5424 = vpack.c.b16 %v4920, %v4912
  %v5425 = vpack.c.b16 %v4921, %v4913
  %v5426 = vpack.c.b16 %v4930, %v4922
  %v5427 = vpack.c.b16 %v4931, %v4923
  %v5428 = vpack.c.b16 %v4932, %v4924
  %v5429 = vpack.c.b16 %v4933, %v4925
  %v5430 = vpack.c.b16 %v4934, %v4926
  %v5431 = vpack.c.b16 %v4935, %v4927
  %v5432 = vpack.c.b16 %v4936, %v4928
  %v5433 = vpack.c.b16 %v4937, %v4929
  %v5434 = vpack.c.b16 %v4946, %v4938
  %v5435 = vpack.c.b16 %v4947, %v4939
  %v5436 = vpack.c.b16 %v4948, %v4940
  %v5437 = vpack.c.b16 %v4949, %v4941
  %v5438 = vpack.c.b16 %v4950, %v4942
  %v5439 = vpack.c.b16 %v4951, %v4943
  %v5440 = vpack.c.b16 %v4952, %v4944
  %v5441 = vpack.c.b16 %v4953, %v4945
  %v5442 = vpack.c.b16 %v4962, %v4954
  %v5443 = vpack.c.b16 %v4963, %v4955
  %v5444 = vpack.c.b16 %v4964, %v4956
  %v5445 = vpack.c.b16 %v4965, %v4957
  %v5446 = vpack.c.b16 %v4966, %v4958
  %v5447 = vpack.c.b16 %v4967, %v4959
  %v5448 = vpack.c.b16 %v4968, %v4960
  %v5449 = vpack.c.b16 %v4969, %v4961
  %v5450 = vpack.c.b16 %v4978, %v4970
  %v5451 = vpack.c.b16 %v4979, %v4971
  %v5452 = vpack.c.b16 %v4980, %v4972
  %v5453 = vpack.c.b16 %v4981, %v4973
  %v5454 = vpack.c.b16 %v4982, %v4974
  %v5455 = vpack.c.b16 %v4983, %v4975
  %v5456 = vpack.c.b16 %v4984, %v4976
  %v5457 = vpack.c.b16 %v4985, %v4977
  %v5458 = vpack.c.b16 %v4994, %v4986
  %v5459 = vpack.c.b16 %v4995, %v4987
  %v5460 = vpack.c.b16 %v4996, %v4988
  %v5461 = vpack.c.b16 %v4997, %v4989
  %v5462 = vpack.c.b16 %v4998, %v4990
  %v5463 = vpack.c.b16 %v4999, %v4991
  %v5464 = vpack.c.b16 %v5000, %v4992
  %v5465 = vpack.c.b16 %v5001, %v4993
  %v5466 = vpack.c.b16 %v5010, %v5002
  %v5467 = vpack.c.b16 %v5011, %v5003
  %v5468 = vpack.c.b16 %v5012, %v5004
  %v5469 = vpack.c.b16 %v5013, %v5005
  %v5470 = vpack.c.b16 %v5014, %v5006
  %v5471 = vpack.c.b16 %v5015, %v5007
  %v5472 = vpack.c.b16 %v5016, %v5008
  %v5473 = vpack.c.b16 %v5017, %v5009
  %v5474 = vpack.c.b16 %v5026, %v5018
  %v5475 = vpack.c.b16 %v5027, %v5019
  %v5476 = vpack.c.b16 %v5028, %v5020
  %v5477 = vpack.c.b16 %v5029, %v5021
  %v5478 = vpack.c.b16 %v5030, %v5022
  %v5479 = vpack.c.b16 %v5031, %v5023
  %v5480 = vpack.c.b16 %v5032, %v5024
  %v5481 = vpack.c.b16 %v5033, %v5025
  %v5482 = vpack.c.b16 %v5042, %v5034
  %v5483 = vpack.c.b16 %v5043, %v5035
  %v5484 = vpack.c.b16 %v5044, %v5036
  %v5485 = vpack.c.b16 %v5045, %v5037
  %v5486 = vpack.c.b16 %v5046, %v5038
  %v5487 = vpack.c.b16 %v5047, %v5039
  %v5488 = vpack.c.b16 %v5048, %v5040
  %v5489 = vpack.c.b16 %v5049, %v5041
  %v5490 = vpack.c.b16 %v5058, %v5050
  %v5491 = vpack.c.b16 %v5059, %v5051
  %v5492 = vpack.c.b16 %v5060, %v5052
  %v5493 = vpack.c.b16 %v5061, %v5053
  %v5494 = vpack.c.b16 %v5062, %v5054
  %v5495 = vpack.c.b16 %v5063, %v5055
  %v5496 = vpack.c.b16 %v5064, %v5056
  %v5497 = vpack.c.b16 %v5065, %v5057
  %v5498 = vpack.c.b16 %v5074, %v5066
  %v5499 = vpack.c.b16 %v5075, %v5067
  %v5500 = vpack.c.b16 %v5076, %v5068
  %v5501 = vpack.c.b16 %v5077, %v5069
  %v5502 = vpack.c.b16 %v5078, %v5070
  %v5503 = vpack.c.b16 %v5079, %v5071
  %v5504 = vpack.c.b16 %v5080, %v5072
  %v5505 = vpack.c.b16 %v5081, %v5073
  %v5506 = vpack.c.b16 %v5090, %v5082
  %v5507 = vpack.c.b16 %v5091, %v5083
  %v5508 = vpack.c.b16 %v5092, %v5084
  %v5509 = vpack.c.b16 %v5093, %v5085
  %v5510 = vpack.c.b16 %v5094, %v5086
  %v5511 = vpack.c.b16 %v5095, %v5087
  %v5512 = vpack.c.b16 %v5096, %v5088
  %v5513 = vpack.c.b16 %v5097, %v5089
  %v5514 = vpack.c.b16 %v5106, %v5098
  %v5515 = vpack.c.b16 %v5107, %v5099
  %v5516 = vpack.c.b16 %v5108, %v5100
  %v5517 = vpack.c.b16 %v5109, %v5101
  %v5518 = vpack.c.b16 %v5110, %v5102
  %v5519 = vpack.c.b16 %v5111, %v5103
  %v5520 = vpack.c.b16 %v5112, %v5104
  %v5521 = vpack.c.b16 %v5113, %v5105
  %v5522 = vpack.c.b16 %v5122, %v5114
  %v5523 = vpack.c.b16 %v5123, %v5115
  %v5524 = vpack.c.b16 %v5124, %v5116
  %v5525 = vpack.c.b16 %v5125, %v5117
  %v5526 = vpack.c.b16 %v5126, %v5118
  %v5527 = vpack.c.b16 %v5127, %v5119
  %v5528 = vpack.c.b16 %v5128, %v5120
  %v5529 = vpack.c.b16 %v5129, %v5121
  %v5530 = vpack.c.b16 %v5138, %v5130
  %v5531 = vpack.c.b16 %v5139, %v5131
  %v5532 = vpack.c.b16 %v5140, %v5132
  %v5533 = vpack.c.b16 %v5141, %v5133
  %v5534 = vpack.c.b16 %v5142, %v5134
  %v5535 = vpack.c.b16 %v5143, %v5135
  %v5536 = vpack.c.b16 %v5144, %v5136
  %v5537 = vpack.c.b16 %v5145, %v5137
  %v5538 = vpack.c.b16 %v5154, %v5146
  %v5539 = vpack.c.b16 %v5155, %v5147
  %v5540 = vpack.c.b16 %v5156, %v5148
  %v5541 = vpack.c.b16 %v5157, %v5149
  %v5542 = vpack.c.b16 %v5158, %v5150
  %v5543 = vpack.c.b16 %v5159, %v5151
  %v5544 = vpack.c.b16 %v5160, %v5152
  %v5545 = vpack.c.b16 %v5161, %v5153
  %v5546 = vpack.c.b16 %v5170, %v5162
  %v5547 = vpack.c.b16 %v5171, %v5163
  %v5548 = vpack.c.b16 %v5172, %v5164
  %v5549 = vpack.c.b16 %v5173, %v5165
  %v5550 = vpack.c.b16 %v5174, %v5166
  %v5551 = vpack.c.b16 %v5175, %v5167
  %v5552 = vpack.c.b16 %v5176, %v5168
  %v5553 = vpack.c.b16 %v5177, %v5169
  %v5554 = vpack.c.b16 %v5186, %v5178
  %v5555 = vpack.c.b16 %v5187, %v5179
  %v5556 = vpack.c.b16 %v5188, %v5180
  %v5557 = vpack.c.b16 %v5189, %v5181
  %v5558 = vpack.c.b16 %v5190, %v5182
  %v5559 = vpack.c.b16 %v5191, %v5183
  %v5560 = vpack.c.b16 %v5192, %v5184
  %v5561 = vpack.c.b16 %v5193, %v5185
  %v5562 = vpack.c.b16 %v5202, %v5194
  %v5563 = vpack.c.b16 %v5203, %v5195
  %v5564 = vpack.c.b16 %v5204, %v5196
  %v5565 = vpack.c.b16 %v5205, %v5197
  %v5566 = vpack.c.b16 %v5206, %v5198
  %v5567 = vpack.c.b16 %v5207, %v5199
  %v5568 = vpack.c.b16 %v5208, %v5200
  %v5569 = vpack.c.b16 %v5209, %v5201
  %v5570 = vpack.c.b16 %v5218, %v5210
  %v5571 = vpack.c.b16 %v5219, %v5211
  %v5572 = vpack.c.b16 %v5220, %v5212
  %v5573 = vpack.c.b16 %v5221, %v5213
  %v5574 = vpack.c.b16 %v5222, %v5214
  %v5575 = vpack.c.b16 %v5223, %v5215
  %v5576 = vpack.c.b16 %v5224, %v5216
  %v5577 = vpack.c.b16 %v5225, %v5217
  %v5578 = vpack.c.b16 %v5234, %v5226
  %v5579 = vpack.c.b16 %v5235, %v5227
  %v5580 = vpack.c.b16 %v5236, %v5228
  %v5581 = vpack.c.b16 %v5237, %v5229
  %v5582 = vpack.c.b16 %v5238, %v5230
  %v5583 = vpack.c.b16 %v5239, %v5231
  %v5584 = vpack.c.b16 %v5240, %v5232
  %v5585 = vpack.c.b16 %v5241, %v5233
  %v5586 = vpack.c.b16 %v5250, %v5242
  %v5587 = vpack.c.b16 %v5251, %v5243
  %v5588 = vpack.c.b16 %v5252, %v5244
  %v5589 = vpack.c.b16 %v5253, %v5245
  %v5590 = vpack.c.b16 %v5254, %v5246
  %v5591 = vpack.c.b16 %v5255, %v5247
  %v5592 = vpack.c.b16 %v5256, %v5248
  %v5593 = vpack.c.b16 %v5257, %v5249
  %v5594 = vpack.c.b16 %v5266, %v5258
  %v5595 = vpack.c.b16 %v5267, %v5259
  %v5596 = vpack.c.b16 %v5268, %v5260
  %v5597 = vpack.c.b16 %v5269, %v5261
  %v5598 = vpack.c.b16 %v5270, %v5262
  %v5599 = vpack.c.b16 %v5271, %v5263
  %v5600 = vpack.c.b16 %v5272, %v5264
  %v5601 = vpack.c.b16 %v5273, %v5265
  %v5602 = vpack.c.b16 %v5282, %v5274
  %v5603 = vpack.c.b16 %v5283, %v5275
  %v5604 = vpack.c.b16 %v5284, %v5276
  %v5605 = vpack.c.b16 %v5285, %v5277
  %v5606 = vpack.c.b16 %v5286, %v5278
  %v5607 = vpack.c.b16 %v5287, %v5279
  %v5608 = vpack.c.b16 %v5288, %v5280
  %v5609 = vpack.c.b16 %v5289, %v5281
  %v5610 = vpack.c.b16 %v5298, %v5290
  %v5611 = vpack.c.b16 %v5299, %v5291
  %v5612 = vpack.c.b16 %v5300, %v5292
  %v5613 = vpack.c.b16 %v5301, %v5293
  %v5614 = vpack.c.b16 %v5302, %v5294
  %v5615 = vpack.c.b16 %v5303, %v5295
  %v5616 = vpack.c.b16 %v5304, %v5296
  %v5617 = vpack.c.b16 %v5305, %v5297
  %v5618 = vpack.c.b16 %v5314, %v5306
  %v5619 = vpack.c.b16 %v5315, %v5307
  %v5620 = vpack.c.b16 %v5316, %v5308
  %v5621 = vpack.c.b16 %v5317, %v5309
  %v5622 = vpack.c.b16 %v5318, %v5310
  %v5623 = vpack.c.b16 %v5319, %v5311
  %v5624 = vpack.c.b16 %v5320, %v5312
  %v5625 = vpack.c.b16 %v5321, %v5313
  %v5626 = vpack.c.b16 %v5330, %v5322
  %v5627 = vpack.c.b16 %v5331, %v5323
  %v5628 = vpack.c.b16 %v5332, %v5324
  %v5629 = vpack.c.b16 %v5333, %v5325
  %v5630 = vpack.c.b16 %v5334, %v5326
  %v5631 = vpack.c.b16 %v5335, %v5327
  %v5632 = vpack.c.b16 %v5336, %v5328
  %v5633 = vpack.c.b16 %v5337, %v5329
  %v5634 = vpack.c.b16 %v5346, %v5338
  %v5635 = vpack.c.b16 %v5347, %v5339
  %v5636 = vpack.c.b16 %v5348, %v5340
  %v5637 = vpack.c.b16 %v5349, %v5341
  %v5638 = vpack.c.b16 %v5350, %v5342
  %v5639 = vpack.c.b16 %v5351, %v5343
  %v5640 = vpack.c.b16 %v5352, %v5344
  %v5641 = vpack.c.b16 %v5353, %v5345
  %v5642 = vpack.c.b16 %v5362, %v5354
  %v5643 = vpack.c.b16 %v5363, %v5355
  %v5644 = vpack.c.b16 %v5364, %v5356
  %v5645 = vpack.c.b16 %v5365, %v5357
  %v5646 = vpack.c.b16 %v5366, %v5358
  %v5647 = vpack.c.b16 %v5367, %v5359
  %v5648 = vpack.c.b16 %v5368, %v5360
  %v5649 = vpack.c.b16 %v5369, %v5361
  %v5650 = vpack.c.b16 %v5378, %v5370
  %v5651 = vpack.c.b16 %v5379, %v5371
  %v5652 = vpack.c.b16 %v5380, %v5372
  %v5653 = vpack.c.b16 %v5381, %v5373
  %v5654 = vpack.c.b16 %v5382, %v5374
  %v5655 = vpack.c.b16 %v5383, %v5375
  %v5656 = vpack.c.b16 %v5384, %v5376
  %v5657 = vpack.c.b16 %v5385, %v5377
  %v5658 = vpack.c.b16 %v5394, %v5386
  %v5659 = vpack.c.b16 %v5395, %v5387
  %v5660 = vpack.c.b16 %v5396, %v5388
  %v5661 = vpack.c.b16 %v5397, %v5389
  %v5662 = vpack.c.b16 %v5398, %v5390
  %v5663 = vpack.c.b16 %v5399, %v5391
  %v5664 = vpack.c.b16 %v5400, %v5392
  %v5665 = vpack.c.b16 %v5401, %v5393
  %v5666 = vpack.c.b16 %v5410, %v5402
  %v5667 = vpack.c.b16 %v5411, %v5403
  %v5668 = vpack.c.b16 %v5412, %v5404
  %v5669 = vpack.c.b16 %v5413, %v5405
  %v5670 = vpack.c.b16 %v5414, %v5406
  %v5671 = vpack.c.b16 %v5415, %v5407
  %v5672 = vpack.c.b16 %v5416, %v5408
  %v5673 = vpack.c.b16 %v5417, %v5409
  %5930 = vmatprep.subr.bf16.mxu0 %v5475
  %5931 = vmatpush1.bf16.msra.mxu0 %v5474
  %5932 = vmatprep.subr.bf16.mxu0 %v5467
  %5933 = vmatpush1.bf16.msra.mxu0 %v5466
  %5934 = vmatprep.subr.bf16.mxu0 %v5459
  %5935 = vmatpush1.bf16.msra.mxu0 %v5458
  %5936 = vmatprep.subr.bf16.mxu0 %v5451
  %5937 = vmatpush1.bf16.msra.mxu0 %v5450
  %5938 = vmatprep.subr.bf16.mxu0 %v5443
  %5939 = vmatpush1.bf16.msra.mxu0 %v5442
  %5940 = vmatprep.subr.bf16.mxu0 %v5435
  %5941 = vmatpush1.bf16.msra.mxu0 %v5434
  %5942 = vmatprep.subr.bf16.mxu0 %v5427
  %5943 = vmatpush1.bf16.msra.mxu0 %v5426
  %5944 = vmatprep.subr.bf16.mxu0 %v5419
  %5945 = vmatpush1.bf16.msra.mxu0 %v5418
  %5946 = vmatprep.subr.bf16.mxu0 %v5539
  %5947 = vmatpush2.bf16.msra.mxu0 %v5538
  %5948 = vmatprep.subr.bf16.mxu0 %v5531
  %5949 = vmatpush2.bf16.msra.mxu0 %v5530
  %5950 = vmatprep.subr.bf16.mxu0 %v5523
  %5951 = vmatpush2.bf16.msra.mxu0 %v5522
  %5952 = vmatprep.subr.bf16.mxu0 %v5515
  %5953 = vmatpush2.bf16.msra.mxu0 %v5514
  %5954 = vmatprep.subr.bf16.mxu0 %v5507
  %5955 = vmatpush2.bf16.msra.mxu0 %v5506
  %5956 = vmatprep.subr.bf16.mxu0 %v5499
  %5957 = vmatpush2.bf16.msra.mxu0 %v5498
  %5958 = vmatprep.subr.bf16.mxu0 %v5491
  %5959 = vmatpush2.bf16.msra.mxu0 %v5490
  %5960 = vmatprep.subr.bf16.mxu0 %v5483
  %5961 = vmatpush2.bf16.msra.mxu0 %v5482
  %5962 = vmatprep.mubr.bf16.mxu0 %v53
  %5963 = vmatmul.mubr.bf16.gmra.mxu0 %v52
  %v5964 = vpop.f32.mrf.mxu0
  %v5965 = vadd.f32 %v4613, %v5964
  %v5966 = vpop.f32.mrf.mxu0
  %v5967 = vadd.f32 %v4617, %v5966
  %v5968 = vpop.f32.mrf.mxu0
  %v5969 = vpop.f32.mrf.mxu0
  %5970 = vdwg.mxu0
  %5971 = vmatprep.subr.bf16.mxu0 %v5603
  %5972 = vmatpush1.bf16.msra.mxu0 %v5602
  %5973 = vmatprep.subr.bf16.mxu0 %v5595
  %5974 = vmatpush1.bf16.msra.mxu0 %v5594
  %5975 = vmatprep.subr.bf16.mxu0 %v5587
  %5976 = vmatpush1.bf16.msra.mxu0 %v5586
  %5977 = vmatprep.subr.bf16.mxu0 %v5579
  %5978 = vmatpush1.bf16.msra.mxu0 %v5578
  %5979 = vmatprep.subr.bf16.mxu0 %v5571
  %5980 = vmatpush1.bf16.msra.mxu0 %v5570
  %5981 = vmatprep.subr.bf16.mxu0 %v5563
  %5982 = vmatpush1.bf16.msra.mxu0 %v5562
  %5983 = vmatprep.subr.bf16.mxu0 %v5555
  %5984 = vmatpush1.bf16.msra.mxu0 %v5554
  %5985 = vmatprep.subr.bf16.mxu0 %v5547
  %5986 = vmatpush1.bf16.msra.mxu0 %v5546
  %5987 = vmatprep.subr.bf16.mxu0 %v5667
  %5988 = vmatpush2.bf16.msra.mxu0 %v5666
  %5989 = vmatprep.subr.bf16.mxu0 %v5659
  %5990 = vmatpush2.bf16.msra.mxu0 %v5658
  %5991 = vmatprep.subr.bf16.mxu0 %v5651
  %5992 = vmatpush2.bf16.msra.mxu0 %v5650
  %5993 = vmatprep.subr.bf16.mxu0 %v5643
  %5994 = vmatpush2.bf16.msra.mxu0 %v5642
  %5995 = vmatprep.subr.bf16.mxu0 %v5635
  %5996 = vmatpush2.bf16.msra.mxu0 %v5634
  %5997 = vmatprep.subr.bf16.mxu0 %v5627
  %5998 = vmatpush2.bf16.msra.mxu0 %v5626
  %5999 = vmatprep.subr.bf16.mxu0 %v5619
  %6000 = vmatpush2.bf16.msra.mxu0 %v5618
  %6001 = vmatprep.subr.bf16.mxu0 %v5611
  %6002 = vmatpush2.bf16.msra.mxu0 %v5610
  %6003 = vmatprep.mubr.bf16.mxu0 %v55
  %6004 = vmatmul.mubr.bf16.gmra.mxu0 %v54
  %v6005 = vpop.f32.mrf.mxu0
  %v6006 = vadd.f32 %v5965, %v6005
  %v6007 = vpop.f32.mrf.mxu0
  %v6008 = vadd.f32 %v5967, %v6007
  %v6009 = vpop.f32.mrf.mxu0
  %v6010 = vpop.f32.mrf.mxu0
  %6011 = vdwg.mxu0
  %6012 = vmatprep.subr.bf16.mxu0 %v5477
  %6013 = vmatpush1.bf16.msra.mxu0 %v5476
  %6014 = vmatprep.subr.bf16.mxu0 %v5469
  %6015 = vmatpush1.bf16.msra.mxu0 %v5468
  %6016 = vmatprep.subr.bf16.mxu0 %v5461
  %6017 = vmatpush1.bf16.msra.mxu0 %v5460
  %6018 = vmatprep.subr.bf16.mxu0 %v5453
  %6019 = vmatpush1.bf16.msra.mxu0 %v5452
  %6020 = vmatprep.subr.bf16.mxu0 %v5445
  %6021 = vmatpush1.bf16.msra.mxu0 %v5444
  %6022 = vmatprep.subr.bf16.mxu0 %v5437
  %6023 = vmatpush1.bf16.msra.mxu0 %v5436
  %6024 = vmatprep.subr.bf16.mxu0 %v5429
  %6025 = vmatpush1.bf16.msra.mxu0 %v5428
  %6026 = vmatprep.subr.bf16.mxu0 %v5421
  %6027 = vmatpush1.bf16.msra.mxu0 %v5420
  %6028 = vmatprep.subr.bf16.mxu0 %v5541
  %6029 = vmatpush2.bf16.msra.mxu0 %v5540
  %6030 = vmatprep.subr.bf16.mxu0 %v5533
  %6031 = vmatpush2.bf16.msra.mxu0 %v5532
  %6032 = vmatprep.subr.bf16.mxu0 %v5525
  %6033 = vmatpush2.bf16.msra.mxu0 %v5524
  %6034 = vmatprep.subr.bf16.mxu0 %v5517
  %6035 = vmatpush2.bf16.msra.mxu0 %v5516
  %6036 = vmatprep.subr.bf16.mxu0 %v5509
  %6037 = vmatpush2.bf16.msra.mxu0 %v5508
  %6038 = vmatprep.subr.bf16.mxu0 %v5501
  %6039 = vmatpush2.bf16.msra.mxu0 %v5500
  %6040 = vmatprep.subr.bf16.mxu0 %v5493
  %6041 = vmatpush2.bf16.msra.mxu0 %v5492
  %6042 = vmatprep.subr.bf16.mxu0 %v5485
  %6043 = vmatpush2.bf16.msra.mxu0 %v5484
  %6044 = vmatprep.mubr.bf16.mxu0 %v53
  %6045 = vmatmul.mubr.bf16.gmra.mxu0 %v52
  %v6046 = vpop.f32.mrf.mxu0
  %v6047 = vadd.f32 %v4621, %v6046
  %v6048 = vpop.f32.mrf.mxu0
  %v6049 = vadd.f32 %v4625, %v6048
  %v6050 = vpop.f32.mrf.mxu0
  %v6051 = vpop.f32.mrf.mxu0
  %6052 = vdwg.mxu0
  %6053 = vmatprep.subr.bf16.mxu0 %v5605
  %6054 = vmatpush1.bf16.msra.mxu0 %v5604
  %6055 = vmatprep.subr.bf16.mxu0 %v5597
  %6056 = vmatpush1.bf16.msra.mxu0 %v5596
  %6057 = vmatprep.subr.bf16.mxu0 %v5589
  %6058 = vmatpush1.bf16.msra.mxu0 %v5588
  %6059 = vmatprep.subr.bf16.mxu0 %v5581
  %6060 = vmatpush1.bf16.msra.mxu0 %v5580
  %6061 = vmatprep.subr.bf16.mxu0 %v5573
  %6062 = vmatpush1.bf16.msra.mxu0 %v5572
  %6063 = vmatprep.subr.bf16.mxu0 %v5565
  %6064 = vmatpush1.bf16.msra.mxu0 %v5564
  %6065 = vmatprep.subr.bf16.mxu0 %v5557
  %6066 = vmatpush1.bf16.msra.mxu0 %v5556
  %6067 = vmatprep.subr.bf16.mxu0 %v5549
  %6068 = vmatpush1.bf16.msra.mxu0 %v5548
  %6069 = vmatprep.subr.bf16.mxu0 %v5669
  %6070 = vmatpush2.bf16.msra.mxu0 %v5668
  %6071 = vmatprep.subr.bf16.mxu0 %v5661
  %6072 = vmatpush2.bf16.msra.mxu0 %v5660
  %6073 = vmatprep.subr.bf16.mxu0 %v5653
  %6074 = vmatpush2.bf16.msra.mxu0 %v5652
  %6075 = vmatprep.subr.bf16.mxu0 %v5645
  %6076 = vmatpush2.bf16.msra.mxu0 %v5644
  %6077 = vmatprep.subr.bf16.mxu0 %v5637
  %6078 = vmatpush2.bf16.msra.mxu0 %v5636
  %6079 = vmatprep.subr.bf16.mxu0 %v5629
  %6080 = vmatpush2.bf16.msra.mxu0 %v5628
  %6081 = vmatprep.subr.bf16.mxu0 %v5621
  %6082 = vmatpush2.bf16.msra.mxu0 %v5620
  %6083 = vmatprep.subr.bf16.mxu0 %v5613
  %6084 = vmatpush2.bf16.msra.mxu0 %v5612
  %6085 = vmatprep.mubr.bf16.mxu0 %v55
  %6086 = vmatmul.mubr.bf16.gmra.mxu0 %v54
  %v6087 = vpop.f32.mrf.mxu0
  %v6088 = vadd.f32 %v6047, %v6087
  %v6089 = vpop.f32.mrf.mxu0
  %v6090 = vadd.f32 %v6049, %v6089
  %v6091 = vpop.f32.mrf.mxu0
  %v6092 = vpop.f32.mrf.mxu0
  %6093 = vdwg.mxu0
  %6094 = vmatprep.subr.bf16.mxu0 %v5479
  %6095 = vmatpush1.bf16.msra.mxu0 %v5478
  %6096 = vmatprep.subr.bf16.mxu0 %v5471
  %6097 = vmatpush1.bf16.msra.mxu0 %v5470
  %6098 = vmatprep.subr.bf16.mxu0 %v5463
  %6099 = vmatpush1.bf16.msra.mxu0 %v5462
  %6100 = vmatprep.subr.bf16.mxu0 %v5455
  %6101 = vmatpush1.bf16.msra.mxu0 %v5454
  %6102 = vmatprep.subr.bf16.mxu0 %v5447
  %6103 = vmatpush1.bf16.msra.mxu0 %v5446
  %6104 = vmatprep.subr.bf16.mxu0 %v5439
  %6105 = vmatpush1.bf16.msra.mxu0 %v5438
  %6106 = vmatprep.subr.bf16.mxu0 %v5431
  %6107 = vmatpush1.bf16.msra.mxu0 %v5430
  %6108 = vmatprep.subr.bf16.mxu0 %v5423
  %6109 = vmatpush1.bf16.msra.mxu0 %v5422
  %6110 = vmatprep.subr.bf16.mxu0 %v5543
  %6111 = vmatpush2.bf16.msra.mxu0 %v5542
  %6112 = vmatprep.subr.bf16.mxu0 %v5535
  %6113 = vmatpush2.bf16.msra.mxu0 %v5534
  %6114 = vmatprep.subr.bf16.mxu0 %v5527
  %6115 = vmatpush2.bf16.msra.mxu0 %v5526
  %6116 = vmatprep.subr.bf16.mxu0 %v5519
  %6117 = vmatpush2.bf16.msra.mxu0 %v5518
  %6118 = vmatprep.subr.bf16.mxu0 %v5511
  %6119 = vmatpush2.bf16.msra.mxu0 %v5510
  %6120 = vmatprep.subr.bf16.mxu0 %v5503
  %6121 = vmatpush2.bf16.msra.mxu0 %v5502
  %6122 = vmatprep.subr.bf16.mxu0 %v5495
  %6123 = vmatpush2.bf16.msra.mxu0 %v5494
  %6124 = vmatprep.subr.bf16.mxu0 %v5487
  %6125 = vmatpush2.bf16.msra.mxu0 %v5486
  %6126 = vmatprep.mubr.bf16.mxu0 %v53
  %6127 = vmatmul.mubr.bf16.gmra.mxu0 %v52
  %v6128 = vpop.f32.mrf.mxu0
  %v6129 = vadd.f32 %v4629, %v6128
  %v6130 = vpop.f32.mrf.mxu0
  %v6131 = vadd.f32 %v4633, %v6130
  %v6132 = vpop.f32.mrf.mxu0
  %v6133 = vpop.f32.mrf.mxu0
  %6134 = vdwg.mxu0
  %6135 = vmatprep.subr.bf16.mxu0 %v5607
  %6136 = vmatpush1.bf16.msra.mxu0 %v5606
  %6137 = vmatprep.subr.bf16.mxu0 %v5599
  %6138 = vmatpush1.bf16.msra.mxu0 %v5598
  %6139 = vmatprep.subr.bf16.mxu0 %v5591
  %6140 = vmatpush1.bf16.msra.mxu0 %v5590
  %6141 = vmatprep.subr.bf16.mxu0 %v5583
  %6142 = vmatpush1.bf16.msra.mxu0 %v5582
  %6143 = vmatprep.subr.bf16.mxu0 %v5575
  %6144 = vmatpush1.bf16.msra.mxu0 %v5574
  %6145 = vmatprep.subr.bf16.mxu0 %v5567
  %6146 = vmatpush1.bf16.msra.mxu0 %v5566
  %6147 = vmatprep.subr.bf16.mxu0 %v5559
  %6148 = vmatpush1.bf16.msra.mxu0 %v5558
  %6149 = vmatprep.subr.bf16.mxu0 %v5551
  %6150 = vmatpush1.bf16.msra.mxu0 %v5550
  %6151 = vmatprep.subr.bf16.mxu0 %v5671
  %6152 = vmatpush2.bf16.msra.mxu0 %v5670
  %6153 = vmatprep.subr.bf16.mxu0 %v5663
  %6154 = vmatpush2.bf16.msra.mxu0 %v5662
  %6155 = vmatprep.subr.bf16.mxu0 %v5655
  %6156 = vmatpush2.bf16.msra.mxu0 %v5654
  %6157 = vmatprep.subr.bf16.mxu0 %v5647
  %6158 = vmatpush2.bf16.msra.mxu0 %v5646
  %6159 = vmatprep.subr.bf16.mxu0 %v5639
  %6160 = vmatpush2.bf16.msra.mxu0 %v5638
  %6161 = vmatprep.subr.bf16.mxu0 %v5631
  %6162 = vmatpush2.bf16.msra.mxu0 %v5630
  %6163 = vmatprep.subr.bf16.mxu0 %v5623
  %6164 = vmatpush2.bf16.msra.mxu0 %v5622
  %6165 = vmatprep.subr.bf16.mxu0 %v5615
  %6166 = vmatpush2.bf16.msra.mxu0 %v5614
  %6167 = vmatprep.mubr.bf16.mxu0 %v55
  %6168 = vmatmul.mubr.bf16.gmra.mxu0 %v54
  %v6169 = vpop.f32.mrf.mxu0
  %v6170 = vadd.f32 %v6129, %v6169
  %v6171 = vpop.f32.mrf.mxu0
  %v6172 = vadd.f32 %v6131, %v6171
  %v6173 = vpop.f32.mrf.mxu0
  %v6174 = vpop.f32.mrf.mxu0
  %6175 = vdwg.mxu0
  %6176 = vmatprep.subr.bf16.mxu0 %v5481
  %6177 = vmatpush1.bf16.msra.mxu0 %v5480
  %6178 = vmatprep.subr.bf16.mxu0 %v5473
  %6179 = vmatpush1.bf16.msra.mxu0 %v5472
  %6180 = vmatprep.subr.bf16.mxu0 %v5465
  %6181 = vmatpush1.bf16.msra.mxu0 %v5464
  %6182 = vmatprep.subr.bf16.mxu0 %v5457
  %6183 = vmatpush1.bf16.msra.mxu0 %v5456
  %6184 = vmatprep.subr.bf16.mxu0 %v5449
  %6185 = vmatpush1.bf16.msra.mxu0 %v5448
  %6186 = vmatprep.subr.bf16.mxu0 %v5441
  %6187 = vmatpush1.bf16.msra.mxu0 %v5440
  %6188 = vmatprep.subr.bf16.mxu0 %v5433
  %6189 = vmatpush1.bf16.msra.mxu0 %v5432
  %6190 = vmatprep.subr.bf16.mxu0 %v5425
  %6191 = vmatpush1.bf16.msra.mxu0 %v5424
  %6192 = vmatprep.subr.bf16.mxu0 %v5545
  %6193 = vmatpush2.bf16.msra.mxu0 %v5544
  %6194 = vmatprep.subr.bf16.mxu0 %v5537
  %6195 = vmatpush2.bf16.msra.mxu0 %v5536
  %6196 = vmatprep.subr.bf16.mxu0 %v5529
  %6197 = vmatpush2.bf16.msra.mxu0 %v5528
  %6198 = vmatprep.subr.bf16.mxu0 %v5521
  %6199 = vmatpush2.bf16.msra.mxu0 %v5520
  %6200 = vmatprep.subr.bf16.mxu0 %v5513
  %6201 = vmatpush2.bf16.msra.mxu0 %v5512
  %6202 = vmatprep.subr.bf16.mxu0 %v5505
  %6203 = vmatpush2.bf16.msra.mxu0 %v5504
  %6204 = vmatprep.subr.bf16.mxu0 %v5497
  %6205 = vmatpush2.bf16.msra.mxu0 %v5496
  %6206 = vmatprep.subr.bf16.mxu0 %v5489
  %6207 = vmatpush2.bf16.msra.mxu0 %v5488
  %6208 = vmatprep.mubr.bf16.mxu0 %v53
  %6209 = vmatmul.mubr.bf16.gmra.mxu0 %v52
  %v6210 = vpop.f32.mrf.mxu0
  %v6211 = vadd.f32 %v4637, %v6210
  %v6212 = vpop.f32.mrf.mxu0
  %v6213 = vadd.f32 %v4641, %v6212
  %v6214 = vpop.f32.mrf.mxu0
  %v6215 = vpop.f32.mrf.mxu0
  %6216 = vdwg.mxu0
  %6217 = vmatprep.subr.bf16.mxu0 %v5609
  %6218 = vmatpush1.bf16.msra.mxu0 %v5608
  %6219 = vmatprep.subr.bf16.mxu0 %v5601
  %6220 = vmatpush1.bf16.msra.mxu0 %v5600
  %6221 = vmatprep.subr.bf16.mxu0 %v5593
  %6222 = vmatpush1.bf16.msra.mxu0 %v5592
  %6223 = vmatprep.subr.bf16.mxu0 %v5585
  %6224 = vmatpush1.bf16.msra.mxu0 %v5584
  %6225 = vmatprep.subr.bf16.mxu0 %v5577
  %6226 = vmatpush1.bf16.msra.mxu0 %v5576
  %6227 = vmatprep.subr.bf16.mxu0 %v5569
  %6228 = vmatpush1.bf16.msra.mxu0 %v5568
  %6229 = vmatprep.subr.bf16.mxu0 %v5561
  %6230 = vmatpush1.bf16.msra.mxu0 %v5560
  %6231 = vmatprep.subr.bf16.mxu0 %v5553
  %6232 = vmatpush1.bf16.msra.mxu0 %v5552
  %6233 = vmatprep.subr.bf16.mxu0 %v5673
  %6234 = vmatpush2.bf16.msra.mxu0 %v5672
  %6235 = vmatprep.subr.bf16.mxu0 %v5665
  %6236 = vmatpush2.bf16.msra.mxu0 %v5664
  %6237 = vmatprep.subr.bf16.mxu0 %v5657
  %6238 = vmatpush2.bf16.msra.mxu0 %v5656
  %6239 = vmatprep.subr.bf16.mxu0 %v5649
  %6240 = vmatpush2.bf16.msra.mxu0 %v5648
  %6241 = vmatprep.subr.bf16.mxu0 %v5641
  %6242 = vmatpush2.bf16.msra.mxu0 %v5640
  %6243 = vmatprep.subr.bf16.mxu0 %v5633
  %6244 = vmatpush2.bf16.msra.mxu0 %v5632
  %6245 = vmatprep.subr.bf16.mxu0 %v5625
  %6246 = vmatpush2.bf16.msra.mxu0 %v5624
  %6247 = vmatprep.subr.bf16.mxu0 %v5617
  %6248 = vmatpush2.bf16.msra.mxu0 %v5616
  %6249 = vmatprep.mubr.bf16.mxu0 %v55
  %6250 = vmatmul.mubr.bf16.gmra.mxu0 %v54
  %v6251 = vpop.f32.mrf.mxu0
  %v6252 = vadd.f32 %v6211, %v6251
  %v6253 = vpop.f32.mrf.mxu0
  %v6254 = vadd.f32 %v6213, %v6253
  %v6255 = vpop.f32.mrf.mxu0
  %v6256 = vpop.f32.mrf.mxu0
  %6257 = vdwg.mxu0
  %v6258 = vmul.f32 %v6006, 0.5
  %v6259 = vmul.f32 %v6008, 0.5
  %v6260 = vtanh.pop %v6258
  %v6261 = vtanh.pop %v6259
  %v6262 = vmul.f32 %v6260, 0.5
  %v6263 = vmul.f32 %v6261, 0.5
  %v6264 = vadd.f32 %v6262, 0.5
  %v6265 = vadd.f32 %v6263, 0.5
  %v6266 = vmul.f32 %v6088, 0.5
  %v6267 = vmul.f32 %v6090, 0.5
  %v6268 = vtanh.pop %v6266
  %v6269 = vtanh.pop %v6267
  %v6270 = vmul.f32 %v6268, 0.5
  %v6271 = vmul.f32 %v6269, 0.5
  %v6272 = vadd.f32 %v6270, 0.5
  %v6273 = vadd.f32 %v6271, 0.5
  %v6274 = vtanh.pop %v6170
  %v6275 = vtanh.pop %v6172
  %v6276 = vmul.f32 %v6252, 0.5
  %v6277 = vmul.f32 %v6254, 0.5
  %v6278 = vtanh.pop %v6276
  %v6279 = vtanh.pop %v6277
  %v6280 = vmul.f32 %v6278, 0.5
  %v6281 = vmul.f32 %v6279, 0.5
  %v6282 = vadd.f32 %v6280, 0.5
  %v6283 = vadd.f32 %v6281, 0.5
  %v6284 = vmul.f32 %v6272, %v60
  %v6285 = vmul.f32 %v6273, %v61
  %v6286 = vmul.f32 %v6264, %v6274
  %v6287 = vmul.f32 %v6265, %v6275
  %v6288 = vadd.f32 %v6284, %v6286
  %v6289 = vadd.f32 %v6285, %v6287
  %v6290 = vtanh.pop %v6288
  %v6291 = vtanh.pop %v6289
  %v6292 = vmul.f32 %v6282, %v6290
  %v6293 = vmul.f32 %v6283, %v6291
  %6294 = vst [vmem:[%s13 + $0x20] sm:$0xff] %v6288
  %6295 = vst [vmem:[%s13 + $0x28] sm:$0xff] %v6289
  %6296 = vst [vmem:[%s12 + $0x20] sm:$0xff] %v6292
  %6297 = vst [vmem:[%s12 + $0x28] sm:$0xff] %v6293
  // Predicated region
  $region50: #{decoder_forward.1} parent=0 // pred_check
    _
  $region51: #{decoder_forward.1} parent=0 // pred_check_branch
    %6299 = sbr.rel (0) target = $region53
  $region52: #{decoder_forward.1} parent=0 // pred_region
    _
  $region53: #{decoder_forward.1} parent=0 // pred_fallthru
    _
  // Predicated region
  $region54: #{decoder_forward.1} parent=0 // pred_check
    _
  $region55: #{decoder_forward.1} parent=0 // pred_check_branch
    %6301 = sbr.rel (0) target = $region57
  $region56: #{decoder_forward.1} parent=0 // pred_region
    _
  $region57: #{decoder_forward.1} parent=0 // pred_fallthru
    _
  // Predicated region
  $region58: #{decoder_forward.1} parent=0 // pred_check
    _
  $region59: #{decoder_forward.1} parent=0 // pred_check_branch
    %6303 = sbr.rel (0) target = $region61
  $region60: #{decoder_forward.1} parent=0 // pred_region
    _
  $region61: #{decoder_forward.1} parent=0 // pred_fallthru
    _
  // Predicated region
  $region62: #{decoder_forward.1} parent=0 // pred_check
    _
  $region63: #{decoder_forward.1} parent=0 // pred_check_branch
    %6305 = sbr.rel (0) target = $region65
  $region64: #{decoder_forward.1} parent=0 // pred_region
    _
  $region65: #{decoder_forward.1} parent=0 // pred_fallthru
    _

// kernel: decoder_forward.1
$region0: #{decoder_forward.1}
  #allocation0 [shape = 'u32[]', space=smem, size = 0x4, offset = 0x4, fixed_abs, tag = 'smem constant byte address 0x4 - core index']
  #allocation1 [shape = 'u32[144,128]{1,0:T(1,128)}', space=vmem, size = 0x12000, scoped, tag = 'internal scratch']
  %s0 = inlined_call_operand.vmem [shape: f32[8,384], index: 0, kind: input, shape index: {}]
  %s1 = inlined_call_operand.vmem [shape: f32[8,768], index: 1, kind: input, shape index: {}]
  %s2 = inlined_call_operand.vmem [shape: f32[8,768], index: 2, kind: input, shape index: {}]
  %s3 = inlined_call_operand.vmem [shape: bf16[384,256], index: 3, kind: input, shape index: {}]
  %s4 = inlined_call_operand.vmem [shape: f32[1,256], index: 4, kind: input, shape index: {}]
  %s5 = inlined_call_operand.vmem [shape: bf16[256,1024], index: 5, kind: input, shape index: {}]
  %s6 = inlined_call_operand.vmem [shape: bf16[256,1024], index: 6, kind: input, shape index: {}]
  %s7 = inlined_call_operand.vmem [shape: f32[1,1024], index: 7, kind: input, shape index: {}]
  %s8 = inlined_call_operand.vmem [shape: bf16[512,1024], index: 8, kind: input, shape index: {}]
  %s9 = inlined_call_operand.vmem [shape: f32[1,1024], index: 9, kind: input, shape index: {}]
  %s10 = inlined_call_operand.vmem [shape: bf16[512,1024], index: 10, kind: input, shape index: {}]
  %s11 = inlined_call_operand.vmem [shape: f32[1,1024], index: 11, kind: input, shape index: {}]
  %s12 = inlined_call_operand.vmem [shape: f32[8,768], index: 12, kind: output, shape index: {0}]
  %s13 = inlined_call_operand.vmem [shape: f32[8,768], index: 13, kind: output, shape index: {1}]
  %14 = xla_tuple %s12, %s13
  %s15 = sld [smem:[#allocation0]]
  $region66: #{decoder_forward.1} parent=0
    _
  %s17 = ssub.s32 1, %s15
  %s18 = scalar_select 0, %s17, %s15
  // Predicated region
  $region2: #{decoder_forward.1} parent=0 // pred_check
    _
  $region3: #{decoder_forward.1} parent=0 // pred_check_branch
    %20 = sbr.rel (0) target = $region5
  $region4: #{decoder_forward.1} parent=0 // pred_region
    _
  $region5: #{decoder_forward.1} parent=0 // pred_fallthru
    _
  // Predicated region
  $region6: #{decoder_forward.1} parent=0 // pred_check
    _
  $region7: #{decoder_forward.1} parent=0 // pred_check_branch
    %22 = sbr.rel (0) target = $region9
  $region8: #{decoder_forward.1} parent=0 // pred_region
    _
  $region9: #{decoder_forward.1} parent=0 // pred_fallthru
    _
  // Predicated region
  $region10: #{decoder_forward.1} parent=0 // pred_check
    _
  $region11: #{decoder_forward.1} parent=0 // pred_check_branch
    %24 = sbr.rel (0) target = $region13
  $region12: #{decoder_forward.1} parent=0 // pred_region
    _
  $region13: #{decoder_forward.1} parent=0 // pred_fallthru
    _
  // Predicated region
  $region14: #{decoder_forward.1} parent=0 // pred_check
    _
  $region15: #{decoder_forward.1} parent=0 // pred_check_branch
    %26 = sbr.rel (0) target = $region17
  $region16: #{decoder_forward.1} parent=0 // pred_region
    _
  $region17: #{decoder_forward.1} parent=0 // pred_fallthru
    _
  // Predicated region
  $region18: #{decoder_forward.1} parent=0 // pred_check
    _
  $region19: #{decoder_forward.1} parent=0 // pred_check_branch
    %28 = sbr.rel (0) target = $region21
  $region20: #{decoder_forward.1} parent=0 // pred_region
    _
  $region21: #{decoder_forward.1} parent=0 // pred_fallthru
    _
  // Predicated region
  $region22: #{decoder_forward.1} parent=0 // pred_check
    _
  $region23: #{decoder_forward.1} parent=0 // pred_check_branch
    %30 = sbr.rel (0) target = $region25
  $region24: #{decoder_forward.1} parent=0 // pred_region
    _
  $region25: #{decoder_forward.1} parent=0 // pred_fallthru
    _
  // Predicated region
  $region26: #{decoder_forward.1} parent=0 // pred_check
    _
  $region27: #{decoder_forward.1} parent=0 // pred_check_branch
    %32 = sbr.rel (0) target = $region29
  $region28: #{decoder_forward.1} parent=0 // pred_region
    _
  $region29: #{decoder_forward.1} parent=0 // pred_fallthru
    _
  // Predicated region
  $region30: #{decoder_forward.1} parent=0 // pred_check
    _
  $region31: #{decoder_forward.1} parent=0 // pred_check_branch
    %34 = sbr.rel (0) target = $region33
  $region32: #{decoder_forward.1} parent=0 // pred_region
    _
  $region33: #{decoder_forward.1} parent=0 // pred_fallthru
    _
  // Predicated region
  $region34: #{decoder_forward.1} parent=0 // pred_check
    _
  $region35: #{decoder_forward.1} parent=0 // pred_check_branch
    %36 = sbr.rel (0) target = $region37
  $region36: #{decoder_forward.1} parent=0 // pred_region
    _
  $region37: #{decoder_forward.1} parent=0 // pred_fallthru
    _
  // Predicated region
  $region38: #{decoder_forward.1} parent=0 // pred_check
    _
  $region39: #{decoder_forward.1} parent=0 // pred_check_branch
    %38 = sbr.rel (0) target = $region41
  $region40: #{decoder_forward.1} parent=0 // pred_region
    _
  $region41: #{decoder_forward.1} parent=0 // pred_fallthru
    _
  // Predicated region
  $region42: #{decoder_forward.1} parent=0 // pred_check
    _
  $region43: #{decoder_forward.1} parent=0 // pred_check_branch
    %40 = sbr.rel (0) target = $region45
  $region44: #{decoder_forward.1} parent=0 // pred_region
    _
  $region45: #{decoder_forward.1} parent=0 // pred_fallthru
    _
  // Predicated region
  $region46: #{decoder_forward.1} parent=0 // pred_check
    _
  $region47: #{decoder_forward.1} parent=0 // pred_check_branch
    %42 = sbr.rel (0) target = $region49
  $region48: #{decoder_forward.1} parent=0 // pred_region
    _
  $region49: #{decoder_forward.1} parent=0 // pred_fallthru
    _
  %v44 = vld [vmem:[%s1] sm:$0xff]
  %v45 = vld [vmem:[%s1 + $0x8] sm:$0xff]
  %v46 = vld [vmem:[%s1 + $0x10] sm:$0xff]
  %v47 = vld [vmem:[%s1 + $0x18] sm:$0xff]
  %v48 = vld [vmem:[%s1 + $0x20] sm:$0xff]
  %v49 = vld [vmem:[%s1 + $0x28] sm:$0xff]
  %v50 = vpack.c.bf16 %v44, %v44
  %v51 = vpack.c.bf16 %v45, %v45
  %v52 = vpack.c.bf16 %v46, %v46
  %v53 = vpack.c.bf16 %v47, %v47
  %v54 = vpack.c.bf16 %v48, %v48
  %v55 = vpack.c.bf16 %v49, %v49
  %v56 = vld [vmem:[%s2] sm:$0xff]
  %v57 = vld [vmem:[%s2 + $0x8] sm:$0xff]
  %v58 = vld [vmem:[%s2 + $0x10] sm:$0xff]
  %v59 = vld [vmem:[%s2 + $0x18] sm:$0xff]
  %v60 = vld [vmem:[%s2 + $0x20] sm:$0xff]
  %v61 = vld [vmem:[%s2 + $0x28] sm:$0xff]
  %v62 = vld [vmem:[%s0] sm:$0xff]
  %v63 = vld [vmem:[%s0 + $0x8] sm:$0xff]
  %v64 = vld [vmem:[%s0 + $0x10] sm:$0xff]
  %v65 = vpack.c.bf16 %v62, %v62
  %v66 = vpack.c.bf16 %v63, %v63
  %v67 = vpack.c.bf16 %v64, %v64
  %v68 = vld [vmem:[%s3] sm:$0xff]
  %v69 = vld [vmem:[%s3 + $0x8] sm:$0xff]
  %v70 = vld [vmem:[%s3 + $0x10] sm:$0xff]
  %v71 = vld [vmem:[%s3 + $0x18] sm:$0xff]
  %v72 = vld [vmem:[%s3 + $0x20] sm:$0xff]
  %v73 = vld [vmem:[%s3 + $0x28] sm:$0xff]
  %v74 = vld [vmem:[%s3 + $0x30] sm:$0xff]
  %v75 = vld [vmem:[%s3 + $0x38] sm:$0xff]
  %v76 = vld [vmem:[%s3 + $0x40] sm:$0xff]
  %v77 = vld [vmem:[%s3 + $0x48] sm:$0xff]
  %v78 = vld [vmem:[%s3 + $0x50] sm:$0xff]
  %v79 = vld [vmem:[%s3 + $0x58] sm:$0xff]
  %v80 = vld [vmem:[%s3 + $0x60] sm:$0xff]
  %v81 = vld [vmem:[%s3 + $0x68] sm:$0xff]
  %v82 = vld [vmem:[%s3 + $0x70] sm:$0xff]
  %v83 = vld [vmem:[%s3 + $0x78] sm:$0xff]
  %v84 = vld [vmem:[%s3 + $0x80] sm:$0xff]
  %v85 = vld [vmem:[%s3 + $0x88] sm:$0xff]
  %v86 = vld [vmem:[%s3 + $0x90] sm:$0xff]
  %v87 = vld [vmem:[%s3 + $0x98] sm:$0xff]
  %v88 = vld [vmem:[%s3 + $0xa0] sm:$0xff]
  %v89 = vld [vmem:[%s3 + $0xa8] sm:$0xff]
  %v90 = vld [vmem:[%s3 + $0xb0] sm:$0xff]
  %v91 = vld [vmem:[%s3 + $0xb8] sm:$0xff]
  %v92 = vld [vmem:[%s3 + $0xc0] sm:$0xff]
  %v93 = vld [vmem:[%s3 + $0xc8] sm:$0xff]
  %v94 = vld [vmem:[%s3 + $0xd0] sm:$0xff]
  %v95 = vld [vmem:[%s3 + $0xd8] sm:$0xff]
  %v96 = vld [vmem:[%s3 + $0xe0] sm:$0xff]
  %v97 = vld [vmem:[%s3 + $0xe8] sm:$0xff]
  %v98 = vld [vmem:[%s3 + $0xf0] sm:$0xff]
  %v99 = vld [vmem:[%s3 + $0xf8] sm:$0xff]
  %v100 = vld [vmem:[%s3 + $0x100] sm:$0xff]
  %v101 = vld [vmem:[%s3 + $0x108] sm:$0xff]
  %v102 = vld [vmem:[%s3 + $0x110] sm:$0xff]
  %v103 = vld [vmem:[%s3 + $0x118] sm:$0xff]
  %v104 = vld [vmem:[%s3 + $0x120] sm:$0xff]
  %v105 = vld [vmem:[%s3 + $0x128] sm:$0xff]
  %v106 = vld [vmem:[%s3 + $0x130] sm:$0xff]
  %v107 = vld [vmem:[%s3 + $0x138] sm:$0xff]
  %v108 = vld [vmem:[%s3 + $0x140] sm:$0xff]
  %v109 = vld [vmem:[%s3 + $0x148] sm:$0xff]
  %v110 = vld [vmem:[%s3 + $0x150] sm:$0xff]
  %v111 = vld [vmem:[%s3 + $0x158] sm:$0xff]
  %v112 = vld [vmem:[%s3 + $0x160] sm:$0xff]
  %v113 = vld [vmem:[%s3 + $0x168] sm:$0xff]
  %v114 = vld [vmem:[%s3 + $0x170] sm:$0xff]
  %v115 = vld [vmem:[%s3 + $0x178] sm:$0xff]
  %v116 = vld [vmem:[%s4] sm:$0x3]
  %v118 = vlaneseq
  %v119 = vshrl.u32 %v118, 7
  %v120 = vsub.s32 0, %v119
  %v121 = vrot.slane %v116, %v120
  %v122 = vlaneseq
  %v123 = vshrl.u32 %v122, 7
  %v124 = vsub.s32 1, %v123
  %v125 = vrot.slane %v116, %v124
  %v176 = vunpack.c.l.b16 %v68
  %v177 = vunpack.c.h.b16 %v68
  %v178 = vunpack.c.l.b16 %v69
  %v179 = vunpack.c.h.b16 %v69
  %v180 = vunpack.c.l.b16 %v70
  %v181 = vunpack.c.h.b16 %v70
  %v182 = vunpack.c.l.b16 %v71
  %v183 = vunpack.c.h.b16 %v71
  %v184 = vunpack.c.l.b16 %v72
  %v185 = vunpack.c.h.b16 %v72
  %v186 = vunpack.c.l.b16 %v73
  %v187 = vunpack.c.h.b16 %v73
  %v188 = vunpack.c.l.b16 %v74
  %v189 = vunpack.c.h.b16 %v74
  %v190 = vunpack.c.l.b16 %v75
  %v191 = vunpack.c.h.b16 %v75
  %v192 = vunpack.c.l.b16 %v76
  %v193 = vunpack.c.h.b16 %v76
  %v194 = vunpack.c.l.b16 %v77
  %v195 = vunpack.c.h.b16 %v77
  %v196 = vunpack.c.l.b16 %v78
  %v197 = vunpack.c.h.b16 %v78
  %v198 = vunpack.c.l.b16 %v79
  %v199 = vunpack.c.h.b16 %v79
  %v200 = vunpack.c.l.b16 %v80
  %v201 = vunpack.c.h.b16 %v80
  %v202 = vunpack.c.l.b16 %v81
  %v203 = vunpack.c.h.b16 %v81
  %v204 = vunpack.c.l.b16 %v82
  %v205 = vunpack.c.h.b16 %v82
  %v206 = vunpack.c.l.b16 %v83
  %v207 = vunpack.c.h.b16 %v83
  %v208 = vunpack.c.l.b16 %v84
  %v209 = vunpack.c.h.b16 %v84
  %v210 = vunpack.c.l.b16 %v85
  %v211 = vunpack.c.h.b16 %v85
  %v212 = vunpack.c.l.b16 %v86
  %v213 = vunpack.c.h.b16 %v86
  %v214 = vunpack.c.l.b16 %v87
  %v215 = vunpack.c.h.b16 %v87
  %v216 = vunpack.c.l.b16 %v88
  %v217 = vunpack.c.h.b16 %v88
  %v218 = vunpack.c.l.b16 %v89
  %v219 = vunpack.c.h.b16 %v89
  %v220 = vunpack.c.l.b16 %v90
  %v221 = vunpack.c.h.b16 %v90
  %v222 = vunpack.c.l.b16 %v91
  %v223 = vunpack.c.h.b16 %v91
  %v224 = vunpack.c.l.b16 %v92
  %v225 = vunpack.c.h.b16 %v92
  %v226 = vunpack.c.l.b16 %v93
  %v227 = vunpack.c.h.b16 %v93
  %v228 = vunpack.c.l.b16 %v94
  %v229 = vunpack.c.h.b16 %v94
  %v230 = vunpack.c.l.b16 %v95
  %v231 = vunpack.c.h.b16 %v95
  %v232 = vunpack.c.l.b16 %v96
  %v233 = vunpack.c.h.b16 %v96
  %v234 = vunpack.c.l.b16 %v97
  %v235 = vunpack.c.h.b16 %v97
  %v236 = vunpack.c.l.b16 %v98
  %v237 = vunpack.c.h.b16 %v98
  %v238 = vunpack.c.l.b16 %v99
  %v239 = vunpack.c.h.b16 %v99
  %v240 = vunpack.c.l.b16 %v100
  %v241 = vunpack.c.h.b16 %v100
  %v242 = vunpack.c.l.b16 %v101
  %v243 = vunpack.c.h.b16 %v101
  %v244 = vunpack.c.l.b16 %v102
  %v245 = vunpack.c.h.b16 %v102
  %v246 = vunpack.c.l.b16 %v103
  %v247 = vunpack.c.h.b16 %v103
  %v248 = vunpack.c.l.b16 %v104
  %v249 = vunpack.c.h.b16 %v104
  %v250 = vunpack.c.l.b16 %v105
  %v251 = vunpack.c.h.b16 %v105
  %v252 = vunpack.c.l.b16 %v106
  %v253 = vunpack.c.h.b16 %v106
  %v254 = vunpack.c.l.b16 %v107
  %v255 = vunpack.c.h.b16 %v107
  %v256 = vunpack.c.l.b16 %v108
  %v257 = vunpack.c.h.b16 %v108
  %v258 = vunpack.c.l.b16 %v109
  %v259 = vunpack.c.h.b16 %v109
  %v260 = vunpack.c.l.b16 %v110
  %v261 = vunpack.c.h.b16 %v110
  %v262 = vunpack.c.l.b16 %v111
  %v263 = vunpack.c.h.b16 %v111
  %v264 = vunpack.c.l.b16 %v112
  %v265 = vunpack.c.h.b16 %v112
  %v266 = vunpack.c.l.b16 %v113
  %v267 = vunpack.c.h.b16 %v113
  %v268 = vunpack.c.l.b16 %v114
  %v269 = vunpack.c.h.b16 %v114
  %v270 = vunpack.c.l.b16 %v115
  %v271 = vunpack.c.h.b16 %v115
  %v272 = vpack.c.b16 %v178, %v176
  %v273 = vpack.c.b16 %v179, %v177
  %v274 = vpack.c.b16 %v182, %v180
  %v275 = vpack.c.b16 %v183, %v181
  %v276 = vpack.c.b16 %v186, %v184
  %v277 = vpack.c.b16 %v187, %v185
  %v278 = vpack.c.b16 %v190, %v188
  %v279 = vpack.c.b16 %v191, %v189
  %v280 = vpack.c.b16 %v194, %v192
  %v281 = vpack.c.b16 %v195, %v193
  %v282 = vpack.c.b16 %v198, %v196
  %v283 = vpack.c.b16 %v199, %v197
  %v284 = vpack.c.b16 %v202, %v200
  %v285 = vpack.c.b16 %v203, %v201
  %v286 = vpack.c.b16 %v206, %v204
  %v287 = vpack.c.b16 %v207, %v205
  %v288 = vpack.c.b16 %v210, %v208
  %v289 = vpack.c.b16 %v211, %v209
  %v290 = vpack.c.b16 %v214, %v212
  %v291 = vpack.c.b16 %v215, %v213
  %v292 = vpack.c.b16 %v218, %v216
  %v293 = vpack.c.b16 %v219, %v217
  %v294 = vpack.c.b16 %v222, %v220
  %v295 = vpack.c.b16 %v223, %v221
  %v296 = vpack.c.b16 %v226, %v224
  %v297 = vpack.c.b16 %v227, %v225
  %v298 = vpack.c.b16 %v230, %v228
  %v299 = vpack.c.b16 %v231, %v229
  %v300 = vpack.c.b16 %v234, %v232
  %v301 = vpack.c.b16 %v235, %v233
  %v302 = vpack.c.b16 %v238, %v236
  %v303 = vpack.c.b16 %v239, %v237
  %v304 = vpack.c.b16 %v242, %v240
  %v305 = vpack.c.b16 %v243, %v241
  %v306 = vpack.c.b16 %v246, %v244
  %v307 = vpack.c.b16 %v247, %v245
  %v308 = vpack.c.b16 %v250, %v248
  %v309 = vpack.c.b16 %v251, %v249
  %v310 = vpack.c.b16 %v254, %v252
  %v311 = vpack.c.b16 %v255, %v253
  %v312 = vpack.c.b16 %v258, %v256
  %v313 = vpack.c.b16 %v259, %v257
  %v314 = vpack.c.b16 %v262, %v260
  %v315 = vpack.c.b16 %v263, %v261
  %v316 = vpack.c.b16 %v266, %v264
  %v317 = vpack.c.b16 %v267, %v265
  %v318 = vpack.c.b16 %v270, %v268
  %v319 = vpack.c.b16 %v271, %v269
  %368 = vmatprep.subr.bf16.mxu0 %v287
  %369 = vmatpush1.bf16.msra.mxu0 %v286
  %370 = vmatprep.subr.bf16.mxu0 %v285
  %371 = vmatpush1.bf16.msra.mxu0 %v284
  %372 = vmatprep.subr.bf16.mxu0 %v283
  %373 = vmatpush1.bf16.msra.mxu0 %v282
  %374 = vmatprep.subr.bf16.mxu0 %v281
  %375 = vmatpush1.bf16.msra.mxu0 %v280
  %376 = vmatprep.subr.bf16.mxu0 %v279
  %377 = vmatpush1.bf16.msra.mxu0 %v278
  %378 = vmatprep.subr.bf16.mxu0 %v277
  %379 = vmatpush1.bf16.msra.mxu0 %v276
  %380 = vmatprep.subr.bf16.mxu0 %v275
  %381 = vmatpush1.bf16.msra.mxu0 %v274
  %382 = vmatprep.subr.bf16.mxu0 %v273
  %383 = vmatpush1.bf16.msra.mxu0 %v272
  %384 = vmatprep.subr.bf16.mxu0 %v303
  %385 = vmatpush2.bf16.msra.mxu0 %v302
  %386 = vmatprep.subr.bf16.mxu0 %v301
  %387 = vmatpush2.bf16.msra.mxu0 %v300
  %388 = vmatprep.subr.bf16.mxu0 %v299
  %389 = vmatpush2.bf16.msra.mxu0 %v298
  %390 = vmatprep.subr.bf16.mxu0 %v297
  %391 = vmatpush2.bf16.msra.mxu0 %v296
  %392 = vmatprep.subr.bf16.mxu0 %v295
  %393 = vmatpush2.bf16.msra.mxu0 %v294
  %394 = vmatprep.subr.bf16.mxu0 %v293
  %395 = vmatpush2.bf16.msra.mxu0 %v292
  %396 = vmatprep.subr.bf16.mxu0 %v291
  %397 = vmatpush2.bf16.msra.mxu0 %v290
  %398 = vmatprep.subr.bf16.mxu0 %v289
  %399 = vmatpush2.bf16.msra.mxu0 %v288
  %400 = vmatprep.mubr.bf16.mxu0 %v66
  %401 = vmatmul.mubr.bf16.gmra.mxu0 %v65
  %v402 = vpop.f32.mrf.mxu0
  %v403 = vadd.f32 %v121, %v402
  %v404 = vpop.f32.mrf.mxu0
  %v405 = vadd.f32 %v125, %v404
  %v406 = vpop.f32.mrf.mxu0
  %v407 = vpop.f32.mrf.mxu0
  %408 = vdwg.mxu0
  %409 = vmatprep.subr.bf16.mxu0 %v319
  %410 = vmatpush1.bf16.msra.mxu0 %v318
  %411 = vmatprep.subr.bf16.mxu0 %v317
  %412 = vmatpush1.bf16.msra.mxu0 %v316
  %413 = vmatprep.subr.bf16.mxu0 %v315
  %414 = vmatpush1.bf16.msra.mxu0 %v314
  %415 = vmatprep.subr.bf16.mxu0 %v313
  %416 = vmatpush1.bf16.msra.mxu0 %v312
  %417 = vmatprep.subr.bf16.mxu0 %v311
  %418 = vmatpush1.bf16.msra.mxu0 %v310
  %419 = vmatprep.subr.bf16.mxu0 %v309
  %420 = vmatpush1.bf16.msra.mxu0 %v308
  %421 = vmatprep.subr.bf16.mxu0 %v307
  %422 = vmatpush1.bf16.msra.mxu0 %v306
  %423 = vmatprep.subr.bf16.mxu0 %v305
  %424 = vmatpush1.bf16.msra.mxu0 %v304
  %425 = vmatprep.subr.bf16.mxu0 0
  %426 = vmatpush2.bf16.msra.mxu0 0
  %427 = vmatprep.subr.bf16.mxu0 0
  %428 = vmatpush2.bf16.msra.mxu0 0
  %429 = vmatprep.subr.bf16.mxu0 0
  %430 = vmatpush2.bf16.msra.mxu0 0
  %431 = vmatprep.subr.bf16.mxu0 0
  %432 = vmatpush2.bf16.msra.mxu0 0
  %433 = vmatprep.subr.bf16.mxu0 0
  %434 = vmatpush2.bf16.msra.mxu0 0
  %435 = vmatprep.subr.bf16.mxu0 0
  %436 = vmatpush2.bf16.msra.mxu0 0
  %437 = vmatprep.subr.bf16.mxu0 0
  %438 = vmatpush2.bf16.msra.mxu0 0
  %439 = vmatprep.subr.bf16.mxu0 0
  %440 = vmatpush2.bf16.msra.mxu0 0
  %441 = vmatprep.mubr.bf16.mxu0 0
  %442 = vmatmul.mubr.bf16.gmra.mxu0 %v67
  %v443 = vpop.f32.mrf.mxu0
  %v444 = vadd.f32 %v403, %v443
  %v445 = vpop.f32.mrf.mxu0
  %v446 = vadd.f32 %v405, %v445
  %v447 = vpop.f32.mrf.mxu0
  %v448 = vpop.f32.mrf.mxu0
  %449 = vdwg.mxu0
  %v450 = vpack.c.bf16 %v444, %v444
  %v451 = vpack.c.bf16 %v446, %v446
  %v452 = vld [vmem:[%s5] sm:$0xff]
  %v453 = vld [vmem:[%s5 + $0x8] sm:$0xff]
  %v454 = vld [vmem:[%s5 + $0x10] sm:$0xff]
  %v455 = vld [vmem:[%s5 + $0x18] sm:$0xff]
  %v456 = vld [vmem:[%s5 + $0x20] sm:$0xff]
  %v457 = vld [vmem:[%s5 + $0x28] sm:$0xff]
  %v458 = vld [vmem:[%s5 + $0x30] sm:$0xff]
  %v459 = vld [vmem:[%s5 + $0x38] sm:$0xff]
  %v460 = vld [vmem:[%s5 + $0x40] sm:$0xff]
  %v461 = vld [vmem:[%s5 + $0x48] sm:$0xff]
  %v462 = vld [vmem:[%s5 + $0x50] sm:$0xff]
  %v463 = vld [vmem:[%s5 + $0x58] sm:$0xff]
  %v464 = vld [vmem:[%s5 + $0x60] sm:$0xff]
  %v465 = vld [vmem:[%s5 + $0x68] sm:$0xff]
  %v466 = vld [vmem:[%s5 + $0x70] sm:$0xff]
  %v467 = vld [vmem:[%s5 + $0x78] sm:$0xff]
  %v468 = vld [vmem:[%s5 + $0x80] sm:$0xff]
  %v469 = vld [vmem:[%s5 + $0x88] sm:$0xff]
  %v470 = vld [vmem:[%s5 + $0x90] sm:$0xff]
  %v471 = vld [vmem:[%s5 + $0x98] sm:$0xff]
  %v472 = vld [vmem:[%s5 + $0xa0] sm:$0xff]
  %v473 = vld [vmem:[%s5 + $0xa8] sm:$0xff]
  %v474 = vld [vmem:[%s5 + $0xb0] sm:$0xff]
  %v475 = vld [vmem:[%s5 + $0xb8] sm:$0xff]
  %v476 = vld [vmem:[%s5 + $0xc0] sm:$0xff]
  %v477 = vld [vmem:[%s5 + $0xc8] sm:$0xff]
  %v478 = vld [vmem:[%s5 + $0xd0] sm:$0xff]
  %v479 = vld [vmem:[%s5 + $0xd8] sm:$0xff]
  %v480 = vld [vmem:[%s5 + $0xe0] sm:$0xff]
  %v481 = vld [vmem:[%s5 + $0xe8] sm:$0xff]
  %v482 = vld [vmem:[%s5 + $0xf0] sm:$0xff]
  %v483 = vld [vmem:[%s5 + $0xf8] sm:$0xff]
  %v484 = vld [vmem:[%s5 + $0x100] sm:$0xff]
  %v485 = vld [vmem:[%s5 + $0x108] sm:$0xff]
  %v486 = vld [vmem:[%s5 + $0x110] sm:$0xff]
  %v487 = vld [vmem:[%s5 + $0x118] sm:$0xff]
  %v488 = vld [vmem:[%s5 + $0x120] sm:$0xff]
  %v489 = vld [vmem:[%s5 + $0x128] sm:$0xff]
  %v490 = vld [vmem:[%s5 + $0x130] sm:$0xff]
  %v491 = vld [vmem:[%s5 + $0x138] sm:$0xff]
  %v492 = vld [vmem:[%s5 + $0x140] sm:$0xff]
  %v493 = vld [vmem:[%s5 + $0x148] sm:$0xff]
  %v494 = vld [vmem:[%s5 + $0x150] sm:$0xff]
  %v495 = vld [vmem:[%s5 + $0x158] sm:$0xff]
  %v496 = vld [vmem:[%s5 + $0x160] sm:$0xff]
  %v497 = vld [vmem:[%s5 + $0x168] sm:$0xff]
  %v498 = vld [vmem:[%s5 + $0x170] sm:$0xff]
  %v499 = vld [vmem:[%s5 + $0x178] sm:$0xff]
  %v500 = vld [vmem:[%s5 + $0x180] sm:$0xff]
  %v501 = vld [vmem:[%s5 + $0x188] sm:$0xff]
  %v502 = vld [vmem:[%s5 + $0x190] sm:$0xff]
  %v503 = vld [vmem:[%s5 + $0x198] sm:$0xff]
  %v504 = vld [vmem:[%s5 + $0x1a0] sm:$0xff]
  %v505 = vld [vmem:[%s5 + $0x1a8] sm:$0xff]
  %v506 = vld [vmem:[%s5 + $0x1b0] sm:$0xff]
  %v507 = vld [vmem:[%s5 + $0x1b8] sm:$0xff]
  %v508 = vld [vmem:[%s5 + $0x1c0] sm:$0xff]
  %v509 = vld [vmem:[%s5 + $0x1c8] sm:$0xff]
  %v510 = vld [vmem:[%s5 + $0x1d0] sm:$0xff]
  %v511 = vld [vmem:[%s5 + $0x1d8] sm:$0xff]
  %v512 = vld [vmem:[%s5 + $0x1e0] sm:$0xff]
  %v513 = vld [vmem:[%s5 + $0x1e8] sm:$0xff]
  %v514 = vld [vmem:[%s5 + $0x1f0] sm:$0xff]
  %v515 = vld [vmem:[%s5 + $0x1f8] sm:$0xff]
  %v516 = vld [vmem:[%s5 + $0x200] sm:$0xff]
  %v517 = vld [vmem:[%s5 + $0x208] sm:$0xff]
  %v518 = vld [vmem:[%s5 + $0x210] sm:$0xff]
  %v519 = vld [vmem:[%s5 + $0x218] sm:$0xff]
  %v520 = vld [vmem:[%s5 + $0x220] sm:$0xff]
  %v521 = vld [vmem:[%s5 + $0x228] sm:$0xff]
  %v522 = vld [vmem:[%s5 + $0x230] sm:$0xff]
  %v523 = vld [vmem:[%s5 + $0x238] sm:$0xff]
  %v524 = vld [vmem:[%s5 + $0x240] sm:$0xff]
  %v525 = vld [vmem:[%s5 + $0x248] sm:$0xff]
  %v526 = vld [vmem:[%s5 + $0x250] sm:$0xff]
  %v527 = vld [vmem:[%s5 + $0x258] sm:$0xff]
  %v528 = vld [vmem:[%s5 + $0x260] sm:$0xff]
  %v529 = vld [vmem:[%s5 + $0x268] sm:$0xff]
  %v530 = vld [vmem:[%s5 + $0x270] sm:$0xff]
  %v531 = vld [vmem:[%s5 + $0x278] sm:$0xff]
  %v532 = vld [vmem:[%s5 + $0x280] sm:$0xff]
  %v533 = vld [vmem:[%s5 + $0x288] sm:$0xff]
  %v534 = vld [vmem:[%s5 + $0x290] sm:$0xff]
  %v535 = vld [vmem:[%s5 + $0x298] sm:$0xff]
  %v536 = vld [vmem:[%s5 + $0x2a0] sm:$0xff]
  %v537 = vld [vmem:[%s5 + $0x2a8] sm:$0xff]
  %v538 = vld [vmem:[%s5 + $0x2b0] sm:$0xff]
  %v539 = vld [vmem:[%s5 + $0x2b8] sm:$0xff]
  %v540 = vld [vmem:[%s5 + $0x2c0] sm:$0xff]
  %v541 = vld [vmem:[%s5 + $0x2c8] sm:$0xff]
  %v542 = vld [vmem:[%s5 + $0x2d0] sm:$0xff]
  %v543 = vld [vmem:[%s5 + $0x2d8] sm:$0xff]
  %v544 = vld [vmem:[%s5 + $0x2e0] sm:$0xff]
  %v545 = vld [vmem:[%s5 + $0x2e8] sm:$0xff]
  %v546 = vld [vmem:[%s5 + $0x2f0] sm:$0xff]
  %v547 = vld [vmem:[%s5 + $0x2f8] sm:$0xff]
  %v548 = vld [vmem:[%s5 + $0x300] sm:$0xff]
  %v549 = vld [vmem:[%s5 + $0x308] sm:$0xff]
  %v550 = vld [vmem:[%s5 + $0x310] sm:$0xff]
  %v551 = vld [vmem:[%s5 + $0x318] sm:$0xff]
  %v552 = vld [vmem:[%s5 + $0x320] sm:$0xff]
  %v553 = vld [vmem:[%s5 + $0x328] sm:$0xff]
  %v554 = vld [vmem:[%s5 + $0x330] sm:$0xff]
  %v555 = vld [vmem:[%s5 + $0x338] sm:$0xff]
  %v556 = vld [vmem:[%s5 + $0x340] sm:$0xff]
  %v557 = vld [vmem:[%s5 + $0x348] sm:$0xff]
  %v558 = vld [vmem:[%s5 + $0x350] sm:$0xff]
  %v559 = vld [vmem:[%s5 + $0x358] sm:$0xff]
  %v560 = vld [vmem:[%s5 + $0x360] sm:$0xff]
  %v561 = vld [vmem:[%s5 + $0x368] sm:$0xff]
  %v562 = vld [vmem:[%s5 + $0x370] sm:$0xff]
  %v563 = vld [vmem:[%s5 + $0x378] sm:$0xff]
  %v564 = vld [vmem:[%s5 + $0x380] sm:$0xff]
  %v565 = vld [vmem:[%s5 + $0x388] sm:$0xff]
  %v566 = vld [vmem:[%s5 + $0x390] sm:$0xff]
  %v567 = vld [vmem:[%s5 + $0x398] sm:$0xff]
  %v568 = vld [vmem:[%s5 + $0x3a0] sm:$0xff]
  %v569 = vld [vmem:[%s5 + $0x3a8] sm:$0xff]
  %v570 = vld [vmem:[%s5 + $0x3b0] sm:$0xff]
  %v571 = vld [vmem:[%s5 + $0x3b8] sm:$0xff]
  %v572 = vld [vmem:[%s5 + $0x3c0] sm:$0xff]
  %v573 = vld [vmem:[%s5 + $0x3c8] sm:$0xff]
  %v574 = vld [vmem:[%s5 + $0x3d0] sm:$0xff]
  %v575 = vld [vmem:[%s5 + $0x3d8] sm:$0xff]
  %v576 = vld [vmem:[%s5 + $0x3e0] sm:$0xff]
  %v577 = vld [vmem:[%s5 + $0x3e8] sm:$0xff]
  %v578 = vld [vmem:[%s5 + $0x3f0] sm:$0xff]
  %v579 = vld [vmem:[%s5 + $0x3f8] sm:$0xff]
  %v580 = vld [vmem:[%s6] sm:$0xff]
  %v581 = vld [vmem:[%s6 + $0x8] sm:$0xff]
  %v582 = vld [vmem:[%s6 + $0x10] sm:$0xff]
  %v583 = vld [vmem:[%s6 + $0x18] sm:$0xff]
  %v584 = vld [vmem:[%s6 + $0x20] sm:$0xff]
  %v585 = vld [vmem:[%s6 + $0x28] sm:$0xff]
  %v586 = vld [vmem:[%s6 + $0x30] sm:$0xff]
  %v587 = vld [vmem:[%s6 + $0x38] sm:$0xff]
  %v588 = vld [vmem:[%s6 + $0x40] sm:$0xff]
  %v589 = vld [vmem:[%s6 + $0x48] sm:$0xff]
  %v590 = vld [vmem:[%s6 + $0x50] sm:$0xff]
  %v591 = vld [vmem:[%s6 + $0x58] sm:$0xff]
  %v592 = vld [vmem:[%s6 + $0x60] sm:$0xff]
  %v593 = vld [vmem:[%s6 + $0x68] sm:$0xff]
  %v594 = vld [vmem:[%s6 + $0x70] sm:$0xff]
  %v595 = vld [vmem:[%s6 + $0x78] sm:$0xff]
  %v596 = vld [vmem:[%s6 + $0x80] sm:$0xff]
  %v597 = vld [vmem:[%s6 + $0x88] sm:$0xff]
  %v598 = vld [vmem:[%s6 + $0x90] sm:$0xff]
  %v599 = vld [vmem:[%s6 + $0x98] sm:$0xff]
  %v600 = vld [vmem:[%s6 + $0xa0] sm:$0xff]
  %v601 = vld [vmem:[%s6 + $0xa8] sm:$0xff]
  %v602 = vld [vmem:[%s6 + $0xb0] sm:$0xff]
  %v603 = vld [vmem:[%s6 + $0xb8] sm:$0xff]
  %v604 = vld [vmem:[%s6 + $0xc0] sm:$0xff]
  %v605 = vld [vmem:[%s6 + $0xc8] sm:$0xff]
  %v606 = vld [vmem:[%s6 + $0xd0] sm:$0xff]
  %v607 = vld [vmem:[%s6 + $0xd8] sm:$0xff]
  %v608 = vld [vmem:[%s6 + $0xe0] sm:$0xff]
  %v609 = vld [vmem:[%s6 + $0xe8] sm:$0xff]
  %v610 = vld [vmem:[%s6 + $0xf0] sm:$0xff]
  %v611 = vld [vmem:[%s6 + $0xf8] sm:$0xff]
  %v612 = vld [vmem:[%s6 + $0x100] sm:$0xff]
  %v613 = vld [vmem:[%s6 + $0x108] sm:$0xff]
  %v614 = vld [vmem:[%s6 + $0x110] sm:$0xff]
  %v615 = vld [vmem:[%s6 + $0x118] sm:$0xff]
  %v616 = vld [vmem:[%s6 + $0x120] sm:$0xff]
  %v617 = vld [vmem:[%s6 + $0x128] sm:$0xff]
  %v618 = vld [vmem:[%s6 + $0x130] sm:$0xff]
  %v619 = vld [vmem:[%s6 + $0x138] sm:$0xff]
  %v620 = vld [vmem:[%s6 + $0x140] sm:$0xff]
  %v621 = vld [vmem:[%s6 + $0x148] sm:$0xff]
  %v622 = vld [vmem:[%s6 + $0x150] sm:$0xff]
  %v623 = vld [vmem:[%s6 + $0x158] sm:$0xff]
  %v624 = vld [vmem:[%s6 + $0x160] sm:$0xff]
  %v625 = vld [vmem:[%s6 + $0x168] sm:$0xff]
  %v626 = vld [vmem:[%s6 + $0x170] sm:$0xff]
  %v627 = vld [vmem:[%s6 + $0x178] sm:$0xff]
  %v628 = vld [vmem:[%s6 + $0x180] sm:$0xff]
  %v629 = vld [vmem:[%s6 + $0x188] sm:$0xff]
  %v630 = vld [vmem:[%s6 + $0x190] sm:$0xff]
  %v631 = vld [vmem:[%s6 + $0x198] sm:$0xff]
  %v632 = vld [vmem:[%s6 + $0x1a0] sm:$0xff]
  %v633 = vld [vmem:[%s6 + $0x1a8] sm:$0xff]
  %v634 = vld [vmem:[%s6 + $0x1b0] sm:$0xff]
  %v635 = vld [vmem:[%s6 + $0x1b8] sm:$0xff]
  %v636 = vld [vmem:[%s6 + $0x1c0] sm:$0xff]
  %v637 = vld [vmem:[%s6 + $0x1c8] sm:$0xff]
  %v638 = vld [vmem:[%s6 + $0x1d0] sm:$0xff]
  %v639 = vld [vmem:[%s6 + $0x1d8] sm:$0xff]
  %v640 = vld [vmem:[%s6 + $0x1e0] sm:$0xff]
  %v641 = vld [vmem:[%s6 + $0x1e8] sm:$0xff]
  %v642 = vld [vmem:[%s6 + $0x1f0] sm:$0xff]
  %v643 = vld [vmem:[%s6 + $0x1f8] sm:$0xff]
  %v644 = vld [vmem:[%s6 + $0x200] sm:$0xff]
  %v645 = vld [vmem:[%s6 + $0x208] sm:$0xff]
  %v646 = vld [vmem:[%s6 + $0x210] sm:$0xff]
  %v647 = vld [vmem:[%s6 + $0x218] sm:$0xff]
  %v648 = vld [vmem:[%s6 + $0x220] sm:$0xff]
  %v649 = vld [vmem:[%s6 + $0x228] sm:$0xff]
  %v650 = vld [vmem:[%s6 + $0x230] sm:$0xff]
  %v651 = vld [vmem:[%s6 + $0x238] sm:$0xff]
  %v652 = vld [vmem:[%s6 + $0x240] sm:$0xff]
  %v653 = vld [vmem:[%s6 + $0x248] sm:$0xff]
  %v654 = vld [vmem:[%s6 + $0x250] sm:$0xff]
  %v655 = vld [vmem:[%s6 + $0x258] sm:$0xff]
  %v656 = vld [vmem:[%s6 + $0x260] sm:$0xff]
  %v657 = vld [vmem:[%s6 + $0x268] sm:$0xff]
  %v658 = vld [vmem:[%s6 + $0x270] sm:$0xff]
  %v659 = vld [vmem:[%s6 + $0x278] sm:$0xff]
  %v660 = vld [vmem:[%s6 + $0x280] sm:$0xff]
  %v661 = vld [vmem:[%s6 + $0x288] sm:$0xff]
  %v662 = vld [vmem:[%s6 + $0x290] sm:$0xff]
  %v663 = vld [vmem:[%s6 + $0x298] sm:$0xff]
  %v664 = vld [vmem:[%s6 + $0x2a0] sm:$0xff]
  %v665 = vld [vmem:[%s6 + $0x2a8] sm:$0xff]
  %v666 = vld [vmem:[%s6 + $0x2b0] sm:$0xff]
  %v667 = vld [vmem:[%s6 + $0x2b8] sm:$0xff]
  %v668 = vld [vmem:[%s6 + $0x2c0] sm:$0xff]
  %v669 = vld [vmem:[%s6 + $0x2c8] sm:$0xff]
  %v670 = vld [vmem:[%s6 + $0x2d0] sm:$0xff]
  %v671 = vld [vmem:[%s6 + $0x2d8] sm:$0xff]
  %v672 = vld [vmem:[%s6 + $0x2e0] sm:$0xff]
  %v673 = vld [vmem:[%s6 + $0x2e8] sm:$0xff]
  %v674 = vld [vmem:[%s6 + $0x2f0] sm:$0xff]
  %v675 = vld [vmem:[%s6 + $0x2f8] sm:$0xff]
  %v676 = vld [vmem:[%s6 + $0x300] sm:$0xff]
  %v677 = vld [vmem:[%s6 + $0x308] sm:$0xff]
  %v678 = vld [vmem:[%s6 + $0x310] sm:$0xff]
  %v679 = vld [vmem:[%s6 + $0x318] sm:$0xff]
  %v680 = vld [vmem:[%s6 + $0x320] sm:$0xff]
  %v681 = vld [vmem:[%s6 + $0x328] sm:$0xff]
  %v682 = vld [vmem:[%s6 + $0x330] sm:$0xff]
  %v683 = vld [vmem:[%s6 + $0x338] sm:$0xff]
  %v684 = vld [vmem:[%s6 + $0x340] sm:$0xff]
  %v685 = vld [vmem:[%s6 + $0x348] sm:$0xff]
  %v686 = vld [vmem:[%s6 + $0x350] sm:$0xff]
  %v687 = vld [vmem:[%s6 + $0x358] sm:$0xff]
  %v688 = vld [vmem:[%s6 + $0x360] sm:$0xff]
  %v689 = vld [vmem:[%s6 + $0x368] sm:$0xff]
  %v690 = vld [vmem:[%s6 + $0x370] sm:$0xff]
  %v691 = vld [vmem:[%s6 + $0x378] sm:$0xff]
  %v692 = vld [vmem:[%s6 + $0x380] sm:$0xff]
  %v693 = vld [vmem:[%s6 + $0x388] sm:$0xff]
  %v694 = vld [vmem:[%s6 + $0x390] sm:$0xff]
  %v695 = vld [vmem:[%s6 + $0x398] sm:$0xff]
  %v696 = vld [vmem:[%s6 + $0x3a0] sm:$0xff]
  %v697 = vld [vmem:[%s6 + $0x3a8] sm:$0xff]
  %v698 = vld [vmem:[%s6 + $0x3b0] sm:$0xff]
  %v699 = vld [vmem:[%s6 + $0x3b8] sm:$0xff]
  %v700 = vld [vmem:[%s6 + $0x3c0] sm:$0xff]
  %v701 = vld [vmem:[%s6 + $0x3c8] sm:$0xff]
  %v702 = vld [vmem:[%s6 + $0x3d0] sm:$0xff]
  %v703 = vld [vmem:[%s6 + $0x3d8] sm:$0xff]
  %v704 = vld [vmem:[%s6 + $0x3e0] sm:$0xff]
  %v705 = vld [vmem:[%s6 + $0x3e8] sm:$0xff]
  %v706 = vld [vmem:[%s6 + $0x3f0] sm:$0xff]
  %v707 = vld [vmem:[%s6 + $0x3f8] sm:$0xff]
  %v836 = vunpack.c.l.b16 %v580
  %v837 = vunpack.c.h.b16 %v580
  %v838 = vunpack.c.l.b16 %v581
  %v839 = vunpack.c.h.b16 %v581
  %v840 = vunpack.c.l.b16 %v582
  %v841 = vunpack.c.h.b16 %v582
  %v842 = vunpack.c.l.b16 %v583
  %v843 = vunpack.c.h.b16 %v583
  %v844 = vunpack.c.l.b16 %v584
  %v845 = vunpack.c.h.b16 %v584
  %v846 = vunpack.c.l.b16 %v585
  %v847 = vunpack.c.h.b16 %v585
  %v848 = vunpack.c.l.b16 %v586
  %v849 = vunpack.c.h.b16 %v586
  %v850 = vunpack.c.l.b16 %v587
  %v851 = vunpack.c.h.b16 %v587
  %v852 = vunpack.c.l.b16 %v588
  %v853 = vunpack.c.h.b16 %v588
  %v854 = vunpack.c.l.b16 %v589
  %v855 = vunpack.c.h.b16 %v589
  %v856 = vunpack.c.l.b16 %v590
  %v857 = vunpack.c.h.b16 %v590
  %v858 = vunpack.c.l.b16 %v591
  %v859 = vunpack.c.h.b16 %v591
  %v860 = vunpack.c.l.b16 %v592
  %v861 = vunpack.c.h.b16 %v592
  %v862 = vunpack.c.l.b16 %v593
  %v863 = vunpack.c.h.b16 %v593
  %v864 = vunpack.c.l.b16 %v594
  %v865 = vunpack.c.h.b16 %v594
  %v866 = vunpack.c.l.b16 %v595
  %v867 = vunpack.c.h.b16 %v595
  %v868 = vunpack.c.l.b16 %v596
  %v869 = vunpack.c.h.b16 %v596
  %v870 = vunpack.c.l.b16 %v597
  %v871 = vunpack.c.h.b16 %v597
  %v872 = vunpack.c.l.b16 %v598
  %v873 = vunpack.c.h.b16 %v598
  %v874 = vunpack.c.l.b16 %v599
  %v875 = vunpack.c.h.b16 %v599
  %v876 = vunpack.c.l.b16 %v600
  %v877 = vunpack.c.h.b16 %v600
  %v878 = vunpack.c.l.b16 %v601
  %v879 = vunpack.c.h.b16 %v601
  %v880 = vunpack.c.l.b16 %v602
  %v881 = vunpack.c.h.b16 %v602
  %v882 = vunpack.c.l.b16 %v603
  %v883 = vunpack.c.h.b16 %v603
  %v884 = vunpack.c.l.b16 %v604
  %v885 = vunpack.c.h.b16 %v604
  %v886 = vunpack.c.l.b16 %v605
  %v887 = vunpack.c.h.b16 %v605
  %v888 = vunpack.c.l.b16 %v606
  %v889 = vunpack.c.h.b16 %v606
  %v890 = vunpack.c.l.b16 %v607
  %v891 = vunpack.c.h.b16 %v607
  %v892 = vunpack.c.l.b16 %v608
  %v893 = vunpack.c.h.b16 %v608
  %v894 = vunpack.c.l.b16 %v609
  %v895 = vunpack.c.h.b16 %v609
  %v896 = vunpack.c.l.b16 %v610
  %v897 = vunpack.c.h.b16 %v610
  %v898 = vunpack.c.l.b16 %v611
  %v899 = vunpack.c.h.b16 %v611
  %v900 = vunpack.c.l.b16 %v612
  %v901 = vunpack.c.h.b16 %v612
  %v902 = vunpack.c.l.b16 %v613
  %v903 = vunpack.c.h.b16 %v613
  %v904 = vunpack.c.l.b16 %v614
  %v905 = vunpack.c.h.b16 %v614
  %v906 = vunpack.c.l.b16 %v615
  %v907 = vunpack.c.h.b16 %v615
  %v908 = vunpack.c.l.b16 %v616
  %v909 = vunpack.c.h.b16 %v616
  %v910 = vunpack.c.l.b16 %v617
  %v911 = vunpack.c.h.b16 %v617
  %v912 = vunpack.c.l.b16 %v618
  %v913 = vunpack.c.h.b16 %v618
  %v914 = vunpack.c.l.b16 %v619
  %v915 = vunpack.c.h.b16 %v619
  %v916 = vunpack.c.l.b16 %v620
  %v917 = vunpack.c.h.b16 %v620
  %v918 = vunpack.c.l.b16 %v621
  %v919 = vunpack.c.h.b16 %v621
  %v920 = vunpack.c.l.b16 %v622
  %v921 = vunpack.c.h.b16 %v622
  %v922 = vunpack.c.l.b16 %v623
  %v923 = vunpack.c.h.b16 %v623
  %v924 = vunpack.c.l.b16 %v624
  %v925 = vunpack.c.h.b16 %v624
  %v926 = vunpack.c.l.b16 %v625
  %v927 = vunpack.c.h.b16 %v625
  %v928 = vunpack.c.l.b16 %v626
  %v929 = vunpack.c.h.b16 %v626
  %v930 = vunpack.c.l.b16 %v627
  %v931 = vunpack.c.h.b16 %v627
  %v932 = vunpack.c.l.b16 %v628
  %v933 = vunpack.c.h.b16 %v628
  %v934 = vunpack.c.l.b16 %v629
  %v935 = vunpack.c.h.b16 %v629
  %v936 = vunpack.c.l.b16 %v630
  %v937 = vunpack.c.h.b16 %v630
  %v938 = vunpack.c.l.b16 %v631
  %v939 = vunpack.c.h.b16 %v631
  %v940 = vunpack.c.l.b16 %v632
  %v941 = vunpack.c.h.b16 %v632
  %v942 = vunpack.c.l.b16 %v633
  %v943 = vunpack.c.h.b16 %v633
  %v944 = vunpack.c.l.b16 %v634
  %v945 = vunpack.c.h.b16 %v634
  %v946 = vunpack.c.l.b16 %v635
  %v947 = vunpack.c.h.b16 %v635
  %v948 = vunpack.c.l.b16 %v636
  %v949 = vunpack.c.h.b16 %v636
  %v950 = vunpack.c.l.b16 %v637
  %v951 = vunpack.c.h.b16 %v637
  %v952 = vunpack.c.l.b16 %v638
  %v953 = vunpack.c.h.b16 %v638
  %v954 = vunpack.c.l.b16 %v639
  %v955 = vunpack.c.h.b16 %v639
  %v956 = vunpack.c.l.b16 %v640
  %v957 = vunpack.c.h.b16 %v640
  %v958 = vunpack.c.l.b16 %v641
  %v959 = vunpack.c.h.b16 %v641
  %v960 = vunpack.c.l.b16 %v642
  %v961 = vunpack.c.h.b16 %v642
  %v962 = vunpack.c.l.b16 %v643
  %v963 = vunpack.c.h.b16 %v643
  %v964 = vunpack.c.l.b16 %v644
  %v965 = vunpack.c.h.b16 %v644
  %v966 = vunpack.c.l.b16 %v645
  %v967 = vunpack.c.h.b16 %v645
  %v968 = vunpack.c.l.b16 %v646
  %v969 = vunpack.c.h.b16 %v646
  %v970 = vunpack.c.l.b16 %v647
  %v971 = vunpack.c.h.b16 %v647
  %v972 = vunpack.c.l.b16 %v648
  %v973 = vunpack.c.h.b16 %v648
  %v974 = vunpack.c.l.b16 %v649
  %v975 = vunpack.c.h.b16 %v649
  %v976 = vunpack.c.l.b16 %v650
  %v977 = vunpack.c.h.b16 %v650
  %v978 = vunpack.c.l.b16 %v651
  %v979 = vunpack.c.h.b16 %v651
  %v980 = vunpack.c.l.b16 %v652
  %v981 = vunpack.c.h.b16 %v652
  %v982 = vunpack.c.l.b16 %v653
  %v983 = vunpack.c.h.b16 %v653
  %v984 = vunpack.c.l.b16 %v654
  %v985 = vunpack.c.h.b16 %v654
  %v986 = vunpack.c.l.b16 %v655
  %v987 = vunpack.c.h.b16 %v655
  %v988 = vunpack.c.l.b16 %v656
  %v989 = vunpack.c.h.b16 %v656
  %v990 = vunpack.c.l.b16 %v657
  %v991 = vunpack.c.h.b16 %v657
  %v992 = vunpack.c.l.b16 %v658
  %v993 = vunpack.c.h.b16 %v658
  %v994 = vunpack.c.l.b16 %v659
  %v995 = vunpack.c.h.b16 %v659
  %v996 = vunpack.c.l.b16 %v660
  %v997 = vunpack.c.h.b16 %v660
  %v998 = vunpack.c.l.b16 %v661
  %v999 = vunpack.c.h.b16 %v661
  %v1000 = vunpack.c.l.b16 %v662
  %v1001 = vunpack.c.h.b16 %v662
  %v1002 = vunpack.c.l.b16 %v663
  %v1003 = vunpack.c.h.b16 %v663
  %v1004 = vunpack.c.l.b16 %v664
  %v1005 = vunpack.c.h.b16 %v664
  %v1006 = vunpack.c.l.b16 %v665
  %v1007 = vunpack.c.h.b16 %v665
  %v1008 = vunpack.c.l.b16 %v666
  %v1009 = vunpack.c.h.b16 %v666
  %v1010 = vunpack.c.l.b16 %v667
  %v1011 = vunpack.c.h.b16 %v667
  %v1012 = vunpack.c.l.b16 %v668
  %v1013 = vunpack.c.h.b16 %v668
  %v1014 = vunpack.c.l.b16 %v669
  %v1015 = vunpack.c.h.b16 %v669
  %v1016 = vunpack.c.l.b16 %v670
  %v1017 = vunpack.c.h.b16 %v670
  %v1018 = vunpack.c.l.b16 %v671
  %v1019 = vunpack.c.h.b16 %v671
  %v1020 = vunpack.c.l.b16 %v672
  %v1021 = vunpack.c.h.b16 %v672
  %v1022 = vunpack.c.l.b16 %v673
  %v1023 = vunpack.c.h.b16 %v673
  %v1024 = vunpack.c.l.b16 %v674
  %v1025 = vunpack.c.h.b16 %v674
  %v1026 = vunpack.c.l.b16 %v675
  %v1027 = vunpack.c.h.b16 %v675
  %v1028 = vunpack.c.l.b16 %v676
  %v1029 = vunpack.c.h.b16 %v676
  %v1030 = vunpack.c.l.b16 %v677
  %v1031 = vunpack.c.h.b16 %v677
  %v1032 = vunpack.c.l.b16 %v678
  %v1033 = vunpack.c.h.b16 %v678
  %v1034 = vunpack.c.l.b16 %v679
  %v1035 = vunpack.c.h.b16 %v679
  %v1036 = vunpack.c.l.b16 %v680
  %v1037 = vunpack.c.h.b16 %v680
  %v1038 = vunpack.c.l.b16 %v681
  %v1039 = vunpack.c.h.b16 %v681
  %v1040 = vunpack.c.l.b16 %v682
  %v1041 = vunpack.c.h.b16 %v682
  %v1042 = vunpack.c.l.b16 %v683
  %v1043 = vunpack.c.h.b16 %v683
  %v1044 = vunpack.c.l.b16 %v684
  %v1045 = vunpack.c.h.b16 %v684
  %v1046 = vunpack.c.l.b16 %v685
  %v1047 = vunpack.c.h.b16 %v685
  %v1048 = vunpack.c.l.b16 %v686
  %v1049 = vunpack.c.h.b16 %v686
  %v1050 = vunpack.c.l.b16 %v687
  %v1051 = vunpack.c.h.b16 %v687
  %v1052 = vunpack.c.l.b16 %v688
  %v1053 = vunpack.c.h.b16 %v688
  %v1054 = vunpack.c.l.b16 %v689
  %v1055 = vunpack.c.h.b16 %v689
  %v1056 = vunpack.c.l.b16 %v690
  %v1057 = vunpack.c.h.b16 %v690
  %v1058 = vunpack.c.l.b16 %v691
  %v1059 = vunpack.c.h.b16 %v691
  %v1060 = vunpack.c.l.b16 %v692
  %v1061 = vunpack.c.h.b16 %v692
  %v1062 = vunpack.c.l.b16 %v693
  %v1063 = vunpack.c.h.b16 %v693
  %v1064 = vunpack.c.l.b16 %v694
  %v1065 = vunpack.c.h.b16 %v694
  %v1066 = vunpack.c.l.b16 %v695
  %v1067 = vunpack.c.h.b16 %v695
  %v1068 = vunpack.c.l.b16 %v696
  %v1069 = vunpack.c.h.b16 %v696
  %v1070 = vunpack.c.l.b16 %v697
  %v1071 = vunpack.c.h.b16 %v697
  %v1072 = vunpack.c.l.b16 %v698
  %v1073 = vunpack.c.h.b16 %v698
  %v1074 = vunpack.c.l.b16 %v699
  %v1075 = vunpack.c.h.b16 %v699
  %v1076 = vunpack.c.l.b16 %v700
  %v1077 = vunpack.c.h.b16 %v700
  %v1078 = vunpack.c.l.b16 %v701
  %v1079 = vunpack.c.h.b16 %v701
  %v1080 = vunpack.c.l.b16 %v702
  %v1081 = vunpack.c.h.b16 %v702
  %v1082 = vunpack.c.l.b16 %v703
  %v1083 = vunpack.c.h.b16 %v703
  %v1084 = vunpack.c.l.b16 %v704
  %v1085 = vunpack.c.h.b16 %v704
  %v1086 = vunpack.c.l.b16 %v705
  %v1087 = vunpack.c.h.b16 %v705
  %v1088 = vunpack.c.l.b16 %v706
  %v1089 = vunpack.c.h.b16 %v706
  %v1090 = vunpack.c.l.b16 %v707
  %v1091 = vunpack.c.h.b16 %v707
  %v1092 = vpack.c.b16 %v844, %v836
  %v1093 = vpack.c.b16 %v845, %v837
  %v1094 = vpack.c.b16 %v846, %v838
  %v1095 = vpack.c.b16 %v847, %v839
  %v1096 = vpack.c.b16 %v848, %v840
  %v1097 = vpack.c.b16 %v849, %v841
  %v1098 = vpack.c.b16 %v850, %v842
  %v1099 = vpack.c.b16 %v851, %v843
  %v1100 = vpack.c.b16 %v860, %v852
  %v1101 = vpack.c.b16 %v861, %v853
  %v1102 = vpack.c.b16 %v862, %v854
  %v1103 = vpack.c.b16 %v863, %v855
  %v1104 = vpack.c.b16 %v864, %v856
  %v1105 = vpack.c.b16 %v865, %v857
  %v1106 = vpack.c.b16 %v866, %v858
  %v1107 = vpack.c.b16 %v867, %v859
  %v1108 = vpack.c.b16 %v876, %v868
  %v1109 = vpack.c.b16 %v877, %v869
  %v1110 = vpack.c.b16 %v878, %v870
  %v1111 = vpack.c.b16 %v879, %v871
  %v1112 = vpack.c.b16 %v880, %v872
  %v1113 = vpack.c.b16 %v881, %v873
  %v1114 = vpack.c.b16 %v882, %v874
  %v1115 = vpack.c.b16 %v883, %v875
  %v1116 = vpack.c.b16 %v892, %v884
  %v1117 = vpack.c.b16 %v893, %v885
  %v1118 = vpack.c.b16 %v894, %v886
  %v1119 = vpack.c.b16 %v895, %v887
  %v1120 = vpack.c.b16 %v896, %v888
  %v1121 = vpack.c.b16 %v897, %v889
  %v1122 = vpack.c.b16 %v898, %v890
  %v1123 = vpack.c.b16 %v899, %v891
  %v1124 = vpack.c.b16 %v908, %v900
  %v1125 = vpack.c.b16 %v909, %v901
  %v1126 = vpack.c.b16 %v910, %v902
  %v1127 = vpack.c.b16 %v911, %v903
  %v1128 = vpack.c.b16 %v912, %v904
  %v1129 = vpack.c.b16 %v913, %v905
  %v1130 = vpack.c.b16 %v914, %v906
  %v1131 = vpack.c.b16 %v915, %v907
  %v1132 = vpack.c.b16 %v924, %v916
  %v1133 = vpack.c.b16 %v925, %v917
  %v1134 = vpack.c.b16 %v926, %v918
  %v1135 = vpack.c.b16 %v927, %v919
  %v1136 = vpack.c.b16 %v928, %v920
  %v1137 = vpack.c.b16 %v929, %v921
  %v1138 = vpack.c.b16 %v930, %v922
  %v1139 = vpack.c.b16 %v931, %v923
  %v1140 = vpack.c.b16 %v940, %v932
  %v1141 = vpack.c.b16 %v941, %v933
  %v1142 = vpack.c.b16 %v942, %v934
  %v1143 = vpack.c.b16 %v943, %v935
  %v1144 = vpack.c.b16 %v944, %v936
  %v1145 = vpack.c.b16 %v945, %v937
  %v1146 = vpack.c.b16 %v946, %v938
  %v1147 = vpack.c.b16 %v947, %v939
  %v1148 = vpack.c.b16 %v956, %v948
  %v1149 = vpack.c.b16 %v957, %v949
  %v1150 = vpack.c.b16 %v958, %v950
  %v1151 = vpack.c.b16 %v959, %v951
  %v1152 = vpack.c.b16 %v960, %v952
  %v1153 = vpack.c.b16 %v961, %v953
  %v1154 = vpack.c.b16 %v962, %v954
  %v1155 = vpack.c.b16 %v963, %v955
  %v1156 = vpack.c.b16 %v972, %v964
  %v1157 = vpack.c.b16 %v973, %v965
  %v1158 = vpack.c.b16 %v974, %v966
  %v1159 = vpack.c.b16 %v975, %v967
  %v1160 = vpack.c.b16 %v976, %v968
  %v1161 = vpack.c.b16 %v977, %v969
  %v1162 = vpack.c.b16 %v978, %v970
  %v1163 = vpack.c.b16 %v979, %v971
  %v1164 = vpack.c.b16 %v988, %v980
  %v1165 = vpack.c.b16 %v989, %v981
  %v1166 = vpack.c.b16 %v990, %v982
  %v1167 = vpack.c.b16 %v991, %v983
  %v1168 = vpack.c.b16 %v992, %v984
  %v1169 = vpack.c.b16 %v993, %v985
  %v1170 = vpack.c.b16 %v994, %v986
  %v1171 = vpack.c.b16 %v995, %v987
  %v1172 = vpack.c.b16 %v1004, %v996
  %v1173 = vpack.c.b16 %v1005, %v997
  %v1174 = vpack.c.b16 %v1006, %v998
  %v1175 = vpack.c.b16 %v1007, %v999
  %v1176 = vpack.c.b16 %v1008, %v1000
  %v1177 = vpack.c.b16 %v1009, %v1001
  %v1178 = vpack.c.b16 %v1010, %v1002
  %v1179 = vpack.c.b16 %v1011, %v1003
  %v1180 = vpack.c.b16 %v1020, %v1012
  %v1181 = vpack.c.b16 %v1021, %v1013
  %v1182 = vpack.c.b16 %v1022, %v1014
  %v1183 = vpack.c.b16 %v1023, %v1015
  %v1184 = vpack.c.b16 %v1024, %v1016
  %v1185 = vpack.c.b16 %v1025, %v1017
  %v1186 = vpack.c.b16 %v1026, %v1018
  %v1187 = vpack.c.b16 %v1027, %v1019
  %v1188 = vpack.c.b16 %v1036, %v1028
  %v1189 = vpack.c.b16 %v1037, %v1029
  %v1190 = vpack.c.b16 %v1038, %v1030
  %v1191 = vpack.c.b16 %v1039, %v1031
  %v1192 = vpack.c.b16 %v1040, %v1032
  %v1193 = vpack.c.b16 %v1041, %v1033
  %v1194 = vpack.c.b16 %v1042, %v1034
  %v1195 = vpack.c.b16 %v1043, %v1035
  %v1196 = vpack.c.b16 %v1052, %v1044
  %v1197 = vpack.c.b16 %v1053, %v1045
  %v1198 = vpack.c.b16 %v1054, %v1046
  %v1199 = vpack.c.b16 %v1055, %v1047
  %v1200 = vpack.c.b16 %v1056, %v1048
  %v1201 = vpack.c.b16 %v1057, %v1049
  %v1202 = vpack.c.b16 %v1058, %v1050
  %v1203 = vpack.c.b16 %v1059, %v1051
  %v1204 = vpack.c.b16 %v1068, %v1060
  %v1205 = vpack.c.b16 %v1069, %v1061
  %v1206 = vpack.c.b16 %v1070, %v1062
  %v1207 = vpack.c.b16 %v1071, %v1063
  %v1208 = vpack.c.b16 %v1072, %v1064
  %v1209 = vpack.c.b16 %v1073, %v1065
  %v1210 = vpack.c.b16 %v1074, %v1066
  %v1211 = vpack.c.b16 %v1075, %v1067
  %v1212 = vpack.c.b16 %v1084, %v1076
  %v1213 = vpack.c.b16 %v1085, %v1077
  %v1214 = vpack.c.b16 %v1086, %v1078
  %v1215 = vpack.c.b16 %v1087, %v1079
  %v1216 = vpack.c.b16 %v1088, %v1080
  %v1217 = vpack.c.b16 %v1089, %v1081
  %v1218 = vpack.c.b16 %v1090, %v1082
  %v1219 = vpack.c.b16 %v1091, %v1083
  %1348 = vmatprep.subr.bf16.mxu0 %v1149
  %1349 = vmatpush1.bf16.msra.mxu0 %v1148
  %1350 = vmatprep.subr.bf16.mxu0 %v1141
  %1351 = vmatpush1.bf16.msra.mxu0 %v1140
  %1352 = vmatprep.subr.bf16.mxu0 %v1133
  %1353 = vmatpush1.bf16.msra.mxu0 %v1132
  %1354 = vmatprep.subr.bf16.mxu0 %v1125
  %1355 = vmatpush1.bf16.msra.mxu0 %v1124
  %1356 = vmatprep.subr.bf16.mxu0 %v1117
  %1357 = vmatpush1.bf16.msra.mxu0 %v1116
  %1358 = vmatprep.subr.bf16.mxu0 %v1109
  %1359 = vmatpush1.bf16.msra.mxu0 %v1108
  %1360 = vmatprep.subr.bf16.mxu0 %v1101
  %1361 = vmatpush1.bf16.msra.mxu0 %v1100
  %1362 = vmatprep.subr.bf16.mxu0 %v1093
  %1363 = vmatpush1.bf16.msra.mxu0 %v1092
  %1364 = vmatprep.subr.bf16.mxu0 %v1213
  %1365 = vmatpush2.bf16.msra.mxu0 %v1212
  %1366 = vmatprep.subr.bf16.mxu0 %v1205
  %1367 = vmatpush2.bf16.msra.mxu0 %v1204
  %1368 = vmatprep.subr.bf16.mxu0 %v1197
  %1369 = vmatpush2.bf16.msra.mxu0 %v1196
  %1370 = vmatprep.subr.bf16.mxu0 %v1189
  %1371 = vmatpush2.bf16.msra.mxu0 %v1188
  %1372 = vmatprep.subr.bf16.mxu0 %v1181
  %1373 = vmatpush2.bf16.msra.mxu0 %v1180
  %1374 = vmatprep.subr.bf16.mxu0 %v1173
  %1375 = vmatpush2.bf16.msra.mxu0 %v1172
  %1376 = vmatprep.subr.bf16.mxu0 %v1165
  %1377 = vmatpush2.bf16.msra.mxu0 %v1164
  %1378 = vmatprep.subr.bf16.mxu0 %v1157
  %1379 = vmatpush2.bf16.msra.mxu0 %v1156
  %1380 = vmatprep.mubr.bf16.mxu0 %v51
  %1381 = vmatmul.mubr.bf16.gmra.mxu0 %v50
  %v1382 = vpop.f32.mrf.mxu0
  %v1383 = vadd.f32 0.0, %v1382
  %v1384 = vpop.f32.mrf.mxu0
  %v1385 = vadd.f32 0.0, %v1384
  %v1386 = vpop.f32.mrf.mxu0
  %v1387 = vpop.f32.mrf.mxu0
  %1388 = vdwg.mxu0
  %1389 = vmatprep.subr.bf16.mxu0 %v1151
  %1390 = vmatpush1.bf16.msra.mxu0 %v1150
  %1391 = vmatprep.subr.bf16.mxu0 %v1143
  %1392 = vmatpush1.bf16.msra.mxu0 %v1142
  %1393 = vmatprep.subr.bf16.mxu0 %v1135
  %1394 = vmatpush1.bf16.msra.mxu0 %v1134
  %1395 = vmatprep.subr.bf16.mxu0 %v1127
  %1396 = vmatpush1.bf16.msra.mxu0 %v1126
  %1397 = vmatprep.subr.bf16.mxu0 %v1119
  %1398 = vmatpush1.bf16.msra.mxu0 %v1118
  %1399 = vmatprep.subr.bf16.mxu0 %v1111
  %1400 = vmatpush1.bf16.msra.mxu0 %v1110
  %1401 = vmatprep.subr.bf16.mxu0 %v1103
  %1402 = vmatpush1.bf16.msra.mxu0 %v1102
  %1403 = vmatprep.subr.bf16.mxu0 %v1095
  %1404 = vmatpush1.bf16.msra.mxu0 %v1094
  %1405 = vmatprep.subr.bf16.mxu0 %v1215
  %1406 = vmatpush2.bf16.msra.mxu0 %v1214
  %1407 = vmatprep.subr.bf16.mxu0 %v1207
  %1408 = vmatpush2.bf16.msra.mxu0 %v1206
  %1409 = vmatprep.subr.bf16.mxu0 %v1199
  %1410 = vmatpush2.bf16.msra.mxu0 %v1198
  %1411 = vmatprep.subr.bf16.mxu0 %v1191
  %1412 = vmatpush2.bf16.msra.mxu0 %v1190
  %1413 = vmatprep.subr.bf16.mxu0 %v1183
  %1414 = vmatpush2.bf16.msra.mxu0 %v1182
  %1415 = vmatprep.subr.bf16.mxu0 %v1175
  %1416 = vmatpush2.bf16.msra.mxu0 %v1174
  %1417 = vmatprep.subr.bf16.mxu0 %v1167
  %1418 = vmatpush2.bf16.msra.mxu0 %v1166
  %1419 = vmatprep.subr.bf16.mxu0 %v1159
  %1420 = vmatpush2.bf16.msra.mxu0 %v1158
  %1421 = vmatprep.mubr.bf16.mxu0 %v51
  %1422 = vmatmul.mubr.bf16.gmra.mxu0 %v50
  %v1423 = vpop.f32.mrf.mxu0
  %v1424 = vadd.f32 0.0, %v1423
  %v1425 = vpop.f32.mrf.mxu0
  %v1426 = vadd.f32 0.0, %v1425
  %v1427 = vpop.f32.mrf.mxu0
  %v1428 = vpop.f32.mrf.mxu0
  %1429 = vdwg.mxu0
  %1430 = vmatprep.subr.bf16.mxu0 %v1153
  %1431 = vmatpush1.bf16.msra.mxu0 %v1152
  %1432 = vmatprep.subr.bf16.mxu0 %v1145
  %1433 = vmatpush1.bf16.msra.mxu0 %v1144
  %1434 = vmatprep.subr.bf16.mxu0 %v1137
  %1435 = vmatpush1.bf16.msra.mxu0 %v1136
  %1436 = vmatprep.subr.bf16.mxu0 %v1129
  %1437 = vmatpush1.bf16.msra.mxu0 %v1128
  %1438 = vmatprep.subr.bf16.mxu0 %v1121
  %1439 = vmatpush1.bf16.msra.mxu0 %v1120
  %1440 = vmatprep.subr.bf16.mxu0 %v1113
  %1441 = vmatpush1.bf16.msra.mxu0 %v1112
  %1442 = vmatprep.subr.bf16.mxu0 %v1105
  %1443 = vmatpush1.bf16.msra.mxu0 %v1104
  %1444 = vmatprep.subr.bf16.mxu0 %v1097
  %1445 = vmatpush1.bf16.msra.mxu0 %v1096
  %1446 = vmatprep.subr.bf16.mxu0 %v1217
  %1447 = vmatpush2.bf16.msra.mxu0 %v1216
  %1448 = vmatprep.subr.bf16.mxu0 %v1209
  %1449 = vmatpush2.bf16.msra.mxu0 %v1208
  %1450 = vmatprep.subr.bf16.mxu0 %v1201
  %1451 = vmatpush2.bf16.msra.mxu0 %v1200
  %1452 = vmatprep.subr.bf16.mxu0 %v1193
  %1453 = vmatpush2.bf16.msra.mxu0 %v1192
  %1454 = vmatprep.subr.bf16.mxu0 %v1185
  %1455 = vmatpush2.bf16.msra.mxu0 %v1184
  %1456 = vmatprep.subr.bf16.mxu0 %v1177
  %1457 = vmatpush2.bf16.msra.mxu0 %v1176
  %1458 = vmatprep.subr.bf16.mxu0 %v1169
  %1459 = vmatpush2.bf16.msra.mxu0 %v1168
  %1460 = vmatprep.subr.bf16.mxu0 %v1161
  %1461 = vmatpush2.bf16.msra.mxu0 %v1160
  %1462 = vmatprep.mubr.bf16.mxu0 %v51
  %1463 = vmatmul.mubr.bf16.gmra.mxu0 %v50
  %v1464 = vpop.f32.mrf.mxu0
  %v1465 = vadd.f32 0.0, %v1464
  %v1466 = vpop.f32.mrf.mxu0
  %v1467 = vadd.f32 0.0, %v1466
  %v1468 = vpop.f32.mrf.mxu0
  %v1469 = vpop.f32.mrf.mxu0
  %1470 = vdwg.mxu0
  %1471 = vmatprep.subr.bf16.mxu0 %v1155
  %1472 = vmatpush1.bf16.msra.mxu0 %v1154
  %1473 = vmatprep.subr.bf16.mxu0 %v1147
  %1474 = vmatpush1.bf16.msra.mxu0 %v1146
  %1475 = vmatprep.subr.bf16.mxu0 %v1139
  %1476 = vmatpush1.bf16.msra.mxu0 %v1138
  %1477 = vmatprep.subr.bf16.mxu0 %v1131
  %1478 = vmatpush1.bf16.msra.mxu0 %v1130
  %1479 = vmatprep.subr.bf16.mxu0 %v1123
  %1480 = vmatpush1.bf16.msra.mxu0 %v1122
  %1481 = vmatprep.subr.bf16.mxu0 %v1115
  %1482 = vmatpush1.bf16.msra.mxu0 %v1114
  %1483 = vmatprep.subr.bf16.mxu0 %v1107
  %1484 = vmatpush1.bf16.msra.mxu0 %v1106
  %1485 = vmatprep.subr.bf16.mxu0 %v1099
  %1486 = vmatpush1.bf16.msra.mxu0 %v1098
  %1487 = vmatprep.subr.bf16.mxu0 %v1219
  %1488 = vmatpush2.bf16.msra.mxu0 %v1218
  %1489 = vmatprep.subr.bf16.mxu0 %v1211
  %1490 = vmatpush2.bf16.msra.mxu0 %v1210
  %1491 = vmatprep.subr.bf16.mxu0 %v1203
  %1492 = vmatpush2.bf16.msra.mxu0 %v1202
  %1493 = vmatprep.subr.bf16.mxu0 %v1195
  %1494 = vmatpush2.bf16.msra.mxu0 %v1194
  %1495 = vmatprep.subr.bf16.mxu0 %v1187
  %1496 = vmatpush2.bf16.msra.mxu0 %v1186
  %1497 = vmatprep.subr.bf16.mxu0 %v1179
  %1498 = vmatpush2.bf16.msra.mxu0 %v1178
  %1499 = vmatprep.subr.bf16.mxu0 %v1171
  %1500 = vmatpush2.bf16.msra.mxu0 %v1170
  %1501 = vmatprep.subr.bf16.mxu0 %v1163
  %1502 = vmatpush2.bf16.msra.mxu0 %v1162
  %1503 = vmatprep.mubr.bf16.mxu0 %v51
  %1504 = vmatmul.mubr.bf16.gmra.mxu0 %v50
  %v1505 = vpop.f32.mrf.mxu0
  %v1506 = vadd.f32 0.0, %v1505
  %v1507 = vpop.f32.mrf.mxu0
  %v1508 = vadd.f32 0.0, %v1507
  %v1509 = vpop.f32.mrf.mxu0
  %v1510 = vpop.f32.mrf.mxu0
  %1511 = vdwg.mxu0
  %v1640 = vunpack.c.l.b16 %v452
  %v1641 = vunpack.c.h.b16 %v452
  %v1642 = vunpack.c.l.b16 %v453
  %v1643 = vunpack.c.h.b16 %v453
  %v1644 = vunpack.c.l.b16 %v454
  %v1645 = vunpack.c.h.b16 %v454
  %v1646 = vunpack.c.l.b16 %v455
  %v1647 = vunpack.c.h.b16 %v455
  %v1648 = vunpack.c.l.b16 %v456
  %v1649 = vunpack.c.h.b16 %v456
  %v1650 = vunpack.c.l.b16 %v457
  %v1651 = vunpack.c.h.b16 %v457
  %v1652 = vunpack.c.l.b16 %v458
  %v1653 = vunpack.c.h.b16 %v458
  %v1654 = vunpack.c.l.b16 %v459
  %v1655 = vunpack.c.h.b16 %v459
  %v1656 = vunpack.c.l.b16 %v460
  %v1657 = vunpack.c.h.b16 %v460
  %v1658 = vunpack.c.l.b16 %v461
  %v1659 = vunpack.c.h.b16 %v461
  %v1660 = vunpack.c.l.b16 %v462
  %v1661 = vunpack.c.h.b16 %v462
  %v1662 = vunpack.c.l.b16 %v463
  %v1663 = vunpack.c.h.b16 %v463
  %v1664 = vunpack.c.l.b16 %v464
  %v1665 = vunpack.c.h.b16 %v464
  %v1666 = vunpack.c.l.b16 %v465
  %v1667 = vunpack.c.h.b16 %v465
  %v1668 = vunpack.c.l.b16 %v466
  %v1669 = vunpack.c.h.b16 %v466
  %v1670 = vunpack.c.l.b16 %v467
  %v1671 = vunpack.c.h.b16 %v467
  %v1672 = vunpack.c.l.b16 %v468
  %v1673 = vunpack.c.h.b16 %v468
  %v1674 = vunpack.c.l.b16 %v469
  %v1675 = vunpack.c.h.b16 %v469
  %v1676 = vunpack.c.l.b16 %v470
  %v1677 = vunpack.c.h.b16 %v470
  %v1678 = vunpack.c.l.b16 %v471
  %v1679 = vunpack.c.h.b16 %v471
  %v1680 = vunpack.c.l.b16 %v472
  %v1681 = vunpack.c.h.b16 %v472
  %v1682 = vunpack.c.l.b16 %v473
  %v1683 = vunpack.c.h.b16 %v473
  %v1684 = vunpack.c.l.b16 %v474
  %v1685 = vunpack.c.h.b16 %v474
  %v1686 = vunpack.c.l.b16 %v475
  %v1687 = vunpack.c.h.b16 %v475
  %v1688 = vunpack.c.l.b16 %v476
  %v1689 = vunpack.c.h.b16 %v476
  %v1690 = vunpack.c.l.b16 %v477
  %v1691 = vunpack.c.h.b16 %v477
  %v1692 = vunpack.c.l.b16 %v478
  %v1693 = vunpack.c.h.b16 %v478
  %v1694 = vunpack.c.l.b16 %v479
  %v1695 = vunpack.c.h.b16 %v479
  %v1696 = vunpack.c.l.b16 %v480
  %v1697 = vunpack.c.h.b16 %v480
  %v1698 = vunpack.c.l.b16 %v481
  %v1699 = vunpack.c.h.b16 %v481
  %v1700 = vunpack.c.l.b16 %v482
  %v1701 = vunpack.c.h.b16 %v482
  %v1702 = vunpack.c.l.b16 %v483
  %v1703 = vunpack.c.h.b16 %v483
  %v1704 = vunpack.c.l.b16 %v484
  %v1705 = vunpack.c.h.b16 %v484
  %v1706 = vunpack.c.l.b16 %v485
  %v1707 = vunpack.c.h.b16 %v485
  %v1708 = vunpack.c.l.b16 %v486
  %v1709 = vunpack.c.h.b16 %v486
  %v1710 = vunpack.c.l.b16 %v487
  %v1711 = vunpack.c.h.b16 %v487
  %v1712 = vunpack.c.l.b16 %v488
  %v1713 = vunpack.c.h.b16 %v488
  %v1714 = vunpack.c.l.b16 %v489
  %v1715 = vunpack.c.h.b16 %v489
  %v1716 = vunpack.c.l.b16 %v490
  %v1717 = vunpack.c.h.b16 %v490
  %v1718 = vunpack.c.l.b16 %v491
  %v1719 = vunpack.c.h.b16 %v491
  %v1720 = vunpack.c.l.b16 %v492
  %v1721 = vunpack.c.h.b16 %v492
  %v1722 = vunpack.c.l.b16 %v493
  %v1723 = vunpack.c.h.b16 %v493
  %v1724 = vunpack.c.l.b16 %v494
  %v1725 = vunpack.c.h.b16 %v494
  %v1726 = vunpack.c.l.b16 %v495
  %v1727 = vunpack.c.h.b16 %v495
  %v1728 = vunpack.c.l.b16 %v496
  %v1729 = vunpack.c.h.b16 %v496
  %v1730 = vunpack.c.l.b16 %v497
  %v1731 = vunpack.c.h.b16 %v497
  %v1732 = vunpack.c.l.b16 %v498
  %v1733 = vunpack.c.h.b16 %v498
  %v1734 = vunpack.c.l.b16 %v499
  %v1735 = vunpack.c.h.b16 %v499
  %v1736 = vunpack.c.l.b16 %v500
  %v1737 = vunpack.c.h.b16 %v500
  %v1738 = vunpack.c.l.b16 %v501
  %v1739 = vunpack.c.h.b16 %v501
  %v1740 = vunpack.c.l.b16 %v502
  %v1741 = vunpack.c.h.b16 %v502
  %v1742 = vunpack.c.l.b16 %v503
  %v1743 = vunpack.c.h.b16 %v503
  %v1744 = vunpack.c.l.b16 %v504
  %v1745 = vunpack.c.h.b16 %v504
  %v1746 = vunpack.c.l.b16 %v505
  %v1747 = vunpack.c.h.b16 %v505
  %v1748 = vunpack.c.l.b16 %v506
  %v1749 = vunpack.c.h.b16 %v506
  %v1750 = vunpack.c.l.b16 %v507
  %v1751 = vunpack.c.h.b16 %v507
  %v1752 = vunpack.c.l.b16 %v508
  %v1753 = vunpack.c.h.b16 %v508
  %v1754 = vunpack.c.l.b16 %v509
  %v1755 = vunpack.c.h.b16 %v509
  %v1756 = vunpack.c.l.b16 %v510
  %v1757 = vunpack.c.h.b16 %v510
  %v1758 = vunpack.c.l.b16 %v511
  %v1759 = vunpack.c.h.b16 %v511
  %v1760 = vunpack.c.l.b16 %v512
  %v1761 = vunpack.c.h.b16 %v512
  %v1762 = vunpack.c.l.b16 %v513
  %v1763 = vunpack.c.h.b16 %v513
  %v1764 = vunpack.c.l.b16 %v514
  %v1765 = vunpack.c.h.b16 %v514
  %v1766 = vunpack.c.l.b16 %v515
  %v1767 = vunpack.c.h.b16 %v515
  %v1768 = vunpack.c.l.b16 %v516
  %v1769 = vunpack.c.h.b16 %v516
  %v1770 = vunpack.c.l.b16 %v517
  %v1771 = vunpack.c.h.b16 %v517
  %v1772 = vunpack.c.l.b16 %v518
  %v1773 = vunpack.c.h.b16 %v518
  %v1774 = vunpack.c.l.b16 %v519
  %v1775 = vunpack.c.h.b16 %v519
  %v1776 = vunpack.c.l.b16 %v520
  %v1777 = vunpack.c.h.b16 %v520
  %v1778 = vunpack.c.l.b16 %v521
  %v1779 = vunpack.c.h.b16 %v521
  %v1780 = vunpack.c.l.b16 %v522
  %v1781 = vunpack.c.h.b16 %v522
  %v1782 = vunpack.c.l.b16 %v523
  %v1783 = vunpack.c.h.b16 %v523
  %v1784 = vunpack.c.l.b16 %v524
  %v1785 = vunpack.c.h.b16 %v524
  %v1786 = vunpack.c.l.b16 %v525
  %v1787 = vunpack.c.h.b16 %v525
  %v1788 = vunpack.c.l.b16 %v526
  %v1789 = vunpack.c.h.b16 %v526
  %v1790 = vunpack.c.l.b16 %v527
  %v1791 = vunpack.c.h.b16 %v527
  %v1792 = vunpack.c.l.b16 %v528
  %v1793 = vunpack.c.h.b16 %v528
  %v1794 = vunpack.c.l.b16 %v529
  %v1795 = vunpack.c.h.b16 %v529
  %v1796 = vunpack.c.l.b16 %v530
  %v1797 = vunpack.c.h.b16 %v530
  %v1798 = vunpack.c.l.b16 %v531
  %v1799 = vunpack.c.h.b16 %v531
  %v1800 = vunpack.c.l.b16 %v532
  %v1801 = vunpack.c.h.b16 %v532
  %v1802 = vunpack.c.l.b16 %v533
  %v1803 = vunpack.c.h.b16 %v533
  %v1804 = vunpack.c.l.b16 %v534
  %v1805 = vunpack.c.h.b16 %v534
  %v1806 = vunpack.c.l.b16 %v535
  %v1807 = vunpack.c.h.b16 %v535
  %v1808 = vunpack.c.l.b16 %v536
  %v1809 = vunpack.c.h.b16 %v536
  %v1810 = vunpack.c.l.b16 %v537
  %v1811 = vunpack.c.h.b16 %v537
  %v1812 = vunpack.c.l.b16 %v538
  %v1813 = vunpack.c.h.b16 %v538
  %v1814 = vunpack.c.l.b16 %v539
  %v1815 = vunpack.c.h.b16 %v539
  %v1816 = vunpack.c.l.b16 %v540
  %v1817 = vunpack.c.h.b16 %v540
  %v1818 = vunpack.c.l.b16 %v541
  %v1819 = vunpack.c.h.b16 %v541
  %v1820 = vunpack.c.l.b16 %v542
  %v1821 = vunpack.c.h.b16 %v542
  %v1822 = vunpack.c.l.b16 %v543
  %v1823 = vunpack.c.h.b16 %v543
  %v1824 = vunpack.c.l.b16 %v544
  %v1825 = vunpack.c.h.b16 %v544
  %v1826 = vunpack.c.l.b16 %v545
  %v1827 = vunpack.c.h.b16 %v545
  %v1828 = vunpack.c.l.b16 %v546
  %v1829 = vunpack.c.h.b16 %v546
  %v1830 = vunpack.c.l.b16 %v547
  %v1831 = vunpack.c.h.b16 %v547
  %v1832 = vunpack.c.l.b16 %v548
  %v1833 = vunpack.c.h.b16 %v548
  %v1834 = vunpack.c.l.b16 %v549
  %v1835 = vunpack.c.h.b16 %v549
  %v1836 = vunpack.c.l.b16 %v550
  %v1837 = vunpack.c.h.b16 %v550
  %v1838 = vunpack.c.l.b16 %v551
  %v1839 = vunpack.c.h.b16 %v551
  %v1840 = vunpack.c.l.b16 %v552
  %v1841 = vunpack.c.h.b16 %v552
  %v1842 = vunpack.c.l.b16 %v553
  %v1843 = vunpack.c.h.b16 %v553
  %v1844 = vunpack.c.l.b16 %v554
  %v1845 = vunpack.c.h.b16 %v554
  %v1846 = vunpack.c.l.b16 %v555
  %v1847 = vunpack.c.h.b16 %v555
  %v1848 = vunpack.c.l.b16 %v556
  %v1849 = vunpack.c.h.b16 %v556
  %v1850 = vunpack.c.l.b16 %v557
  %v1851 = vunpack.c.h.b16 %v557
  %v1852 = vunpack.c.l.b16 %v558
  %v1853 = vunpack.c.h.b16 %v558
  %v1854 = vunpack.c.l.b16 %v559
  %v1855 = vunpack.c.h.b16 %v559
  %v1856 = vunpack.c.l.b16 %v560
  %v1857 = vunpack.c.h.b16 %v560
  %v1858 = vunpack.c.l.b16 %v561
  %v1859 = vunpack.c.h.b16 %v561
  %v1860 = vunpack.c.l.b16 %v562
  %v1861 = vunpack.c.h.b16 %v562
  %v1862 = vunpack.c.l.b16 %v563
  %v1863 = vunpack.c.h.b16 %v563
  %v1864 = vunpack.c.l.b16 %v564
  %v1865 = vunpack.c.h.b16 %v564
  %v1866 = vunpack.c.l.b16 %v565
  %v1867 = vunpack.c.h.b16 %v565
  %v1868 = vunpack.c.l.b16 %v566
  %v1869 = vunpack.c.h.b16 %v566
  %v1870 = vunpack.c.l.b16 %v567
  %v1871 = vunpack.c.h.b16 %v567
  %v1872 = vunpack.c.l.b16 %v568
  %v1873 = vunpack.c.h.b16 %v568
  %v1874 = vunpack.c.l.b16 %v569
  %v1875 = vunpack.c.h.b16 %v569
  %v1876 = vunpack.c.l.b16 %v570
  %v1877 = vunpack.c.h.b16 %v570
  %v1878 = vunpack.c.l.b16 %v571
  %v1879 = vunpack.c.h.b16 %v571
  %v1880 = vunpack.c.l.b16 %v572
  %v1881 = vunpack.c.h.b16 %v572
  %v1882 = vunpack.c.l.b16 %v573
  %v1883 = vunpack.c.h.b16 %v573
  %v1884 = vunpack.c.l.b16 %v574
  %v1885 = vunpack.c.h.b16 %v574
  %v1886 = vunpack.c.l.b16 %v575
  %v1887 = vunpack.c.h.b16 %v575
  %v1888 = vunpack.c.l.b16 %v576
  %v1889 = vunpack.c.h.b16 %v576
  %v1890 = vunpack.c.l.b16 %v577
  %v1891 = vunpack.c.h.b16 %v577
  %v1892 = vunpack.c.l.b16 %v578
  %v1893 = vunpack.c.h.b16 %v578
  %v1894 = vunpack.c.l.b16 %v579
  %v1895 = vunpack.c.h.b16 %v579
  %v1896 = vpack.c.b16 %v1648, %v1640
  %v1897 = vpack.c.b16 %v1649, %v1641
  %v1898 = vpack.c.b16 %v1650, %v1642
  %v1899 = vpack.c.b16 %v1651, %v1643
  %v1900 = vpack.c.b16 %v1652, %v1644
  %v1901 = vpack.c.b16 %v1653, %v1645
  %v1902 = vpack.c.b16 %v1654, %v1646
  %v1903 = vpack.c.b16 %v1655, %v1647
  %v1904 = vpack.c.b16 %v1664, %v1656
  %v1905 = vpack.c.b16 %v1665, %v1657
  %v1906 = vpack.c.b16 %v1666, %v1658
  %v1907 = vpack.c.b16 %v1667, %v1659
  %v1908 = vpack.c.b16 %v1668, %v1660
  %v1909 = vpack.c.b16 %v1669, %v1661
  %v1910 = vpack.c.b16 %v1670, %v1662
  %v1911 = vpack.c.b16 %v1671, %v1663
  %v1912 = vpack.c.b16 %v1680, %v1672
  %v1913 = vpack.c.b16 %v1681, %v1673
  %v1914 = vpack.c.b16 %v1682, %v1674
  %v1915 = vpack.c.b16 %v1683, %v1675
  %v1916 = vpack.c.b16 %v1684, %v1676
  %v1917 = vpack.c.b16 %v1685, %v1677
  %v1918 = vpack.c.b16 %v1686, %v1678
  %v1919 = vpack.c.b16 %v1687, %v1679
  %v1920 = vpack.c.b16 %v1696, %v1688
  %v1921 = vpack.c.b16 %v1697, %v1689
  %v1922 = vpack.c.b16 %v1698, %v1690
  %v1923 = vpack.c.b16 %v1699, %v1691
  %v1924 = vpack.c.b16 %v1700, %v1692
  %v1925 = vpack.c.b16 %v1701, %v1693
  %v1926 = vpack.c.b16 %v1702, %v1694
  %v1927 = vpack.c.b16 %v1703, %v1695
  %v1928 = vpack.c.b16 %v1712, %v1704
  %v1929 = vpack.c.b16 %v1713, %v1705
  %v1930 = vpack.c.b16 %v1714, %v1706
  %v1931 = vpack.c.b16 %v1715, %v1707
  %v1932 = vpack.c.b16 %v1716, %v1708
  %v1933 = vpack.c.b16 %v1717, %v1709
  %v1934 = vpack.c.b16 %v1718, %v1710
  %v1935 = vpack.c.b16 %v1719, %v1711
  %v1936 = vpack.c.b16 %v1728, %v1720
  %v1937 = vpack.c.b16 %v1729, %v1721
  %v1938 = vpack.c.b16 %v1730, %v1722
  %v1939 = vpack.c.b16 %v1731, %v1723
  %v1940 = vpack.c.b16 %v1732, %v1724
  %v1941 = vpack.c.b16 %v1733, %v1725
  %v1942 = vpack.c.b16 %v1734, %v1726
  %v1943 = vpack.c.b16 %v1735, %v1727
  %v1944 = vpack.c.b16 %v1744, %v1736
  %v1945 = vpack.c.b16 %v1745, %v1737
  %v1946 = vpack.c.b16 %v1746, %v1738
  %v1947 = vpack.c.b16 %v1747, %v1739
  %v1948 = vpack.c.b16 %v1748, %v1740
  %v1949 = vpack.c.b16 %v1749, %v1741
  %v1950 = vpack.c.b16 %v1750, %v1742
  %v1951 = vpack.c.b16 %v1751, %v1743
  %v1952 = vpack.c.b16 %v1760, %v1752
  %v1953 = vpack.c.b16 %v1761, %v1753
  %v1954 = vpack.c.b16 %v1762, %v1754
  %v1955 = vpack.c.b16 %v1763, %v1755
  %v1956 = vpack.c.b16 %v1764, %v1756
  %v1957 = vpack.c.b16 %v1765, %v1757
  %v1958 = vpack.c.b16 %v1766, %v1758
  %v1959 = vpack.c.b16 %v1767, %v1759
  %v1960 = vpack.c.b16 %v1776, %v1768
  %v1961 = vpack.c.b16 %v1777, %v1769
  %v1962 = vpack.c.b16 %v1778, %v1770
  %v1963 = vpack.c.b16 %v1779, %v1771
  %v1964 = vpack.c.b16 %v1780, %v1772
  %v1965 = vpack.c.b16 %v1781, %v1773
  %v1966 = vpack.c.b16 %v1782, %v1774
  %v1967 = vpack.c.b16 %v1783, %v1775
  %v1968 = vpack.c.b16 %v1792, %v1784
  %v1969 = vpack.c.b16 %v1793, %v1785
  %v1970 = vpack.c.b16 %v1794, %v1786
  %v1971 = vpack.c.b16 %v1795, %v1787
  %v1972 = vpack.c.b16 %v1796, %v1788
  %v1973 = vpack.c.b16 %v1797, %v1789
  %v1974 = vpack.c.b16 %v1798, %v1790
  %v1975 = vpack.c.b16 %v1799, %v1791
  %v1976 = vpack.c.b16 %v1808, %v1800
  %v1977 = vpack.c.b16 %v1809, %v1801
  %v1978 = vpack.c.b16 %v1810, %v1802
  %v1979 = vpack.c.b16 %v1811, %v1803
  %v1980 = vpack.c.b16 %v1812, %v1804
  %v1981 = vpack.c.b16 %v1813, %v1805
  %v1982 = vpack.c.b16 %v1814, %v1806
  %v1983 = vpack.c.b16 %v1815, %v1807
  %v1984 = vpack.c.b16 %v1824, %v1816
  %v1985 = vpack.c.b16 %v1825, %v1817
  %v1986 = vpack.c.b16 %v1826, %v1818
  %v1987 = vpack.c.b16 %v1827, %v1819
  %v1988 = vpack.c.b16 %v1828, %v1820
  %v1989 = vpack.c.b16 %v1829, %v1821
  %v1990 = vpack.c.b16 %v1830, %v1822
  %v1991 = vpack.c.b16 %v1831, %v1823
  %v1992 = vpack.c.b16 %v1840, %v1832
  %v1993 = vpack.c.b16 %v1841, %v1833
  %v1994 = vpack.c.b16 %v1842, %v1834
  %v1995 = vpack.c.b16 %v1843, %v1835
  %v1996 = vpack.c.b16 %v1844, %v1836
  %v1997 = vpack.c.b16 %v1845, %v1837
  %v1998 = vpack.c.b16 %v1846, %v1838
  %v1999 = vpack.c.b16 %v1847, %v1839
  %v2000 = vpack.c.b16 %v1856, %v1848
  %v2001 = vpack.c.b16 %v1857, %v1849
  %v2002 = vpack.c.b16 %v1858, %v1850
  %v2003 = vpack.c.b16 %v1859, %v1851
  %v2004 = vpack.c.b16 %v1860, %v1852
  %v2005 = vpack.c.b16 %v1861, %v1853
  %v2006 = vpack.c.b16 %v1862, %v1854
  %v2007 = vpack.c.b16 %v1863, %v1855
  %v2008 = vpack.c.b16 %v1872, %v1864
  %v2009 = vpack.c.b16 %v1873, %v1865
  %v2010 = vpack.c.b16 %v1874, %v1866
  %v2011 = vpack.c.b16 %v1875, %v1867
  %v2012 = vpack.c.b16 %v1876, %v1868
  %v2013 = vpack.c.b16 %v1877, %v1869
  %v2014 = vpack.c.b16 %v1878, %v1870
  %v2015 = vpack.c.b16 %v1879, %v1871
  %v2016 = vpack.c.b16 %v1888, %v1880
  %v2017 = vpack.c.b16 %v1889, %v1881
  %v2018 = vpack.c.b16 %v1890, %v1882
  %v2019 = vpack.c.b16 %v1891, %v1883
  %v2020 = vpack.c.b16 %v1892, %v1884
  %v2021 = vpack.c.b16 %v1893, %v1885
  %v2022 = vpack.c.b16 %v1894, %v1886
  %v2023 = vpack.c.b16 %v1895, %v1887
  %2152 = vmatprep.subr.bf16.mxu0 %v1953
  %2153 = vmatpush1.bf16.msra.mxu0 %v1952
  %2154 = vmatprep.subr.bf16.mxu0 %v1945
  %2155 = vmatpush1.bf16.msra.mxu0 %v1944
  %2156 = vmatprep.subr.bf16.mxu0 %v1937
  %2157 = vmatpush1.bf16.msra.mxu0 %v1936
  %2158 = vmatprep.subr.bf16.mxu0 %v1929
  %2159 = vmatpush1.bf16.msra.mxu0 %v1928
  %2160 = vmatprep.subr.bf16.mxu0 %v1921
  %2161 = vmatpush1.bf16.msra.mxu0 %v1920
  %2162 = vmatprep.subr.bf16.mxu0 %v1913
  %2163 = vmatpush1.bf16.msra.mxu0 %v1912
  %2164 = vmatprep.subr.bf16.mxu0 %v1905
  %2165 = vmatpush1.bf16.msra.mxu0 %v1904
  %2166 = vmatprep.subr.bf16.mxu0 %v1897
  %2167 = vmatpush1.bf16.msra.mxu0 %v1896
  %2168 = vmatprep.subr.bf16.mxu0 %v2017
  %2169 = vmatpush2.bf16.msra.mxu0 %v2016
  %2170 = vmatprep.subr.bf16.mxu0 %v2009
  %2171 = vmatpush2.bf16.msra.mxu0 %v2008
  %2172 = vmatprep.subr.bf16.mxu0 %v2001
  %2173 = vmatpush2.bf16.msra.mxu0 %v2000
  %2174 = vmatprep.subr.bf16.mxu0 %v1993
  %2175 = vmatpush2.bf16.msra.mxu0 %v1992
  %2176 = vmatprep.subr.bf16.mxu0 %v1985
  %2177 = vmatpush2.bf16.msra.mxu0 %v1984
  %2178 = vmatprep.subr.bf16.mxu0 %v1977
  %2179 = vmatpush2.bf16.msra.mxu0 %v1976
  %2180 = vmatprep.subr.bf16.mxu0 %v1969
  %2181 = vmatpush2.bf16.msra.mxu0 %v1968
  %2182 = vmatprep.subr.bf16.mxu0 %v1961
  %2183 = vmatpush2.bf16.msra.mxu0 %v1960
  %2184 = vmatprep.mubr.bf16.mxu0 %v451
  %2185 = vmatmul.mubr.bf16.gmra.mxu0 %v450
  %v2186 = vpop.f32.mrf.mxu0
  %v2187 = vadd.f32 %v1383, %v2186
  %v2188 = vpop.f32.mrf.mxu0
  %v2189 = vadd.f32 %v1385, %v2188
  %v2190 = vpop.f32.mrf.mxu0
  %v2191 = vpop.f32.mrf.mxu0
  %2192 = vdwg.mxu0
  %2193 = vmatprep.subr.bf16.mxu0 %v1955
  %2194 = vmatpush1.bf16.msra.mxu0 %v1954
  %2195 = vmatprep.subr.bf16.mxu0 %v1947
  %2196 = vmatpush1.bf16.msra.mxu0 %v1946
  %2197 = vmatprep.subr.bf16.mxu0 %v1939
  %2198 = vmatpush1.bf16.msra.mxu0 %v1938
  %2199 = vmatprep.subr.bf16.mxu0 %v1931
  %2200 = vmatpush1.bf16.msra.mxu0 %v1930
  %2201 = vmatprep.subr.bf16.mxu0 %v1923
  %2202 = vmatpush1.bf16.msra.mxu0 %v1922
  %2203 = vmatprep.subr.bf16.mxu0 %v1915
  %2204 = vmatpush1.bf16.msra.mxu0 %v1914
  %2205 = vmatprep.subr.bf16.mxu0 %v1907
  %2206 = vmatpush1.bf16.msra.mxu0 %v1906
  %2207 = vmatprep.subr.bf16.mxu0 %v1899
  %2208 = vmatpush1.bf16.msra.mxu0 %v1898
  %2209 = vmatprep.subr.bf16.mxu0 %v2019
  %2210 = vmatpush2.bf16.msra.mxu0 %v2018
  %2211 = vmatprep.subr.bf16.mxu0 %v2011
  %2212 = vmatpush2.bf16.msra.mxu0 %v2010
  %2213 = vmatprep.subr.bf16.mxu0 %v2003
  %2214 = vmatpush2.bf16.msra.mxu0 %v2002
  %2215 = vmatprep.subr.bf16.mxu0 %v1995
  %2216 = vmatpush2.bf16.msra.mxu0 %v1994
  %2217 = vmatprep.subr.bf16.mxu0 %v1987
  %2218 = vmatpush2.bf16.msra.mxu0 %v1986
  %2219 = vmatprep.subr.bf16.mxu0 %v1979
  %2220 = vmatpush2.bf16.msra.mxu0 %v1978
  %2221 = vmatprep.subr.bf16.mxu0 %v1971
  %2222 = vmatpush2.bf16.msra.mxu0 %v1970
  %2223 = vmatprep.subr.bf16.mxu0 %v1963
  %2224 = vmatpush2.bf16.msra.mxu0 %v1962
  %2225 = vmatprep.mubr.bf16.mxu0 %v451
  %2226 = vmatmul.mubr.bf16.gmra.mxu0 %v450
  %v2227 = vpop.f32.mrf.mxu0
  %v2228 = vadd.f32 %v1424, %v2227
  %v2229 = vpop.f32.mrf.mxu0
  %v2230 = vadd.f32 %v1426, %v2229
  %v2231 = vpop.f32.mrf.mxu0
  %v2232 = vpop.f32.mrf.mxu0
  %2233 = vdwg.mxu0
  %2234 = vmatprep.subr.bf16.mxu0 %v1957
  %2235 = vmatpush1.bf16.msra.mxu0 %v1956
  %2236 = vmatprep.subr.bf16.mxu0 %v1949
  %2237 = vmatpush1.bf16.msra.mxu0 %v1948
  %2238 = vmatprep.subr.bf16.mxu0 %v1941
  %2239 = vmatpush1.bf16.msra.mxu0 %v1940
  %2240 = vmatprep.subr.bf16.mxu0 %v1933
  %2241 = vmatpush1.bf16.msra.mxu0 %v1932
  %2242 = vmatprep.subr.bf16.mxu0 %v1925
  %2243 = vmatpush1.bf16.msra.mxu0 %v1924
  %2244 = vmatprep.subr.bf16.mxu0 %v1917
  %2245 = vmatpush1.bf16.msra.mxu0 %v1916
  %2246 = vmatprep.subr.bf16.mxu0 %v1909
  %2247 = vmatpush1.bf16.msra.mxu0 %v1908
  %2248 = vmatprep.subr.bf16.mxu0 %v1901
  %2249 = vmatpush1.bf16.msra.mxu0 %v1900
  %2250 = vmatprep.subr.bf16.mxu0 %v2021
  %2251 = vmatpush2.bf16.msra.mxu0 %v2020
  %2252 = vmatprep.subr.bf16.mxu0 %v2013
  %2253 = vmatpush2.bf16.msra.mxu0 %v2012
  %2254 = vmatprep.subr.bf16.mxu0 %v2005
  %2255 = vmatpush2.bf16.msra.mxu0 %v2004
  %2256 = vmatprep.subr.bf16.mxu0 %v1997
  %2257 = vmatpush2.bf16.msra.mxu0 %v1996
  %2258 = vmatprep.subr.bf16.mxu0 %v1989
  %2259 = vmatpush2.bf16.msra.mxu0 %v1988
  %2260 = vmatprep.subr.bf16.mxu0 %v1981
  %2261 = vmatpush2.bf16.msra.mxu0 %v1980
  %2262 = vmatprep.subr.bf16.mxu0 %v1973
  %2263 = vmatpush2.bf16.msra.mxu0 %v1972
  %2264 = vmatprep.subr.bf16.mxu0 %v1965
  %2265 = vmatpush2.bf16.msra.mxu0 %v1964
  %2266 = vmatprep.mubr.bf16.mxu0 %v451
  %2267 = vmatmul.mubr.bf16.gmra.mxu0 %v450
  %v2268 = vpop.f32.mrf.mxu0
  %v2269 = vadd.f32 %v1465, %v2268
  %v2270 = vpop.f32.mrf.mxu0
  %v2271 = vadd.f32 %v1467, %v2270
  %v2272 = vpop.f32.mrf.mxu0
  %v2273 = vpop.f32.mrf.mxu0
  %2274 = vdwg.mxu0
  %2275 = vmatprep.subr.bf16.mxu0 %v1959
  %2276 = vmatpush1.bf16.msra.mxu0 %v1958
  %2277 = vmatprep.subr.bf16.mxu0 %v1951
  %2278 = vmatpush1.bf16.msra.mxu0 %v1950
  %2279 = vmatprep.subr.bf16.mxu0 %v1943
  %2280 = vmatpush1.bf16.msra.mxu0 %v1942
  %2281 = vmatprep.subr.bf16.mxu0 %v1935
  %2282 = vmatpush1.bf16.msra.mxu0 %v1934
  %2283 = vmatprep.subr.bf16.mxu0 %v1927
  %2284 = vmatpush1.bf16.msra.mxu0 %v1926
  %2285 = vmatprep.subr.bf16.mxu0 %v1919
  %2286 = vmatpush1.bf16.msra.mxu0 %v1918
  %2287 = vmatprep.subr.bf16.mxu0 %v1911
  %2288 = vmatpush1.bf16.msra.mxu0 %v1910
  %2289 = vmatprep.subr.bf16.mxu0 %v1903
  %2290 = vmatpush1.bf16.msra.mxu0 %v1902
  %2291 = vmatprep.subr.bf16.mxu0 %v2023
  %2292 = vmatpush2.bf16.msra.mxu0 %v2022
  %2293 = vmatprep.subr.bf16.mxu0 %v2015
  %2294 = vmatpush2.bf16.msra.mxu0 %v2014
  %2295 = vmatprep.subr.bf16.mxu0 %v2007
  %2296 = vmatpush2.bf16.msra.mxu0 %v2006
  %2297 = vmatprep.subr.bf16.mxu0 %v1999
  %2298 = vmatpush2.bf16.msra.mxu0 %v1998
  %2299 = vmatprep.subr.bf16.mxu0 %v1991
  %2300 = vmatpush2.bf16.msra.mxu0 %v1990
  %2301 = vmatprep.subr.bf16.mxu0 %v1983
  %2302 = vmatpush2.bf16.msra.mxu0 %v1982
  %2303 = vmatprep.subr.bf16.mxu0 %v1975
  %2304 = vmatpush2.bf16.msra.mxu0 %v1974
  %2305 = vmatprep.subr.bf16.mxu0 %v1967
  %2306 = vmatpush2.bf16.msra.mxu0 %v1966
  %2307 = vmatprep.mubr.bf16.mxu0 %v451
  %2308 = vmatmul.mubr.bf16.gmra.mxu0 %v450
  %v2309 = vpop.f32.mrf.mxu0
  %v2310 = vadd.f32 %v1506, %v2309
  %v2311 = vpop.f32.mrf.mxu0
  %v2312 = vadd.f32 %v1508, %v2311
  %v2313 = vpop.f32.mrf.mxu0
  %v2314 = vpop.f32.mrf.mxu0
  %2315 = vdwg.mxu0
  %v2316 = vld [vmem:[%s7] sm:$0xff]
  %v2318 = vlaneseq
  %v2319 = vshrl.u32 %v2318, 7
  %v2320 = vsub.s32 0, %v2319
  %v2321 = vrot.slane %v2316, %v2320
  %v2322 = vlaneseq
  %v2323 = vshrl.u32 %v2322, 7
  %v2324 = vsub.s32 1, %v2323
  %v2325 = vrot.slane %v2316, %v2324
  %v2326 = vlaneseq
  %v2327 = vshrl.u32 %v2326, 7
  %v2328 = vsub.s32 2, %v2327
  %v2329 = vrot.slane %v2316, %v2328
  %v2330 = vlaneseq
  %v2331 = vshrl.u32 %v2330, 7
  %v2332 = vsub.s32 3, %v2331
  %v2333 = vrot.slane %v2316, %v2332
  %v2334 = vlaneseq
  %v2335 = vshrl.u32 %v2334, 7
  %v2336 = vsub.s32 4, %v2335
  %v2337 = vrot.slane %v2316, %v2336
  %v2338 = vlaneseq
  %v2339 = vshrl.u32 %v2338, 7
  %v2340 = vsub.s32 5, %v2339
  %v2341 = vrot.slane %v2316, %v2340
  %v2342 = vlaneseq
  %v2343 = vshrl.u32 %v2342, 7
  %v2344 = vsub.s32 6, %v2343
  %v2345 = vrot.slane %v2316, %v2344
  %v2346 = vlaneseq
  %v2347 = vshrl.u32 %v2346, 7
  %v2348 = vsub.s32 7, %v2347
  %v2349 = vrot.slane %v2316, %v2348
  %v2358 = vadd.f32 %v2187, %v2321
  %v2359 = vadd.f32 %v2189, %v2325
  %v2360 = vadd.f32 %v2228, %v2329
  %v2361 = vadd.f32 %v2230, %v2333
  %v2362 = vadd.f32 %v2269, %v2337
  %v2363 = vadd.f32 %v2271, %v2341
  %v2364 = vadd.f32 %v2310, %v2345
  %v2365 = vadd.f32 %v2312, %v2349
  %v2366 = vmul.f32 %v2358, 0.5
  %v2367 = vmul.f32 %v2359, 0.5
  %v2368 = vtanh.pop %v2366
  %v2369 = vtanh.pop %v2367
  %v2370 = vmul.f32 %v2368, 0.5
  %v2371 = vmul.f32 %v2369, 0.5
  %v2372 = vadd.f32 %v2370, 0.5
  %v2373 = vadd.f32 %v2371, 0.5
  %v2374 = vmul.f32 %v2360, 0.5
  %v2375 = vmul.f32 %v2361, 0.5
  %v2376 = vtanh.pop %v2374
  %v2377 = vtanh.pop %v2375
  %v2378 = vmul.f32 %v2376, 0.5
  %v2379 = vmul.f32 %v2377, 0.5
  %v2380 = vadd.f32 %v2378, 0.5
  %v2381 = vadd.f32 %v2379, 0.5
  %v2382 = vtanh.pop %v2362
  %v2383 = vtanh.pop %v2363
  %v2384 = vmul.f32 %v2364, 0.5
  %v2385 = vmul.f32 %v2365, 0.5
  %v2386 = vtanh.pop %v2384
  %v2387 = vtanh.pop %v2385
  %v2388 = vmul.f32 %v2386, 0.5
  %v2389 = vmul.f32 %v2387, 0.5
  %v2390 = vadd.f32 %v2388, 0.5
  %v2391 = vadd.f32 %v2389, 0.5
  %v2392 = vmul.f32 %v2380, %v56
  %v2393 = vmul.f32 %v2381, %v57
  %v2394 = vmul.f32 %v2372, %v2382
  %v2395 = vmul.f32 %v2373, %v2383
  %v2396 = vadd.f32 %v2392, %v2394
  %v2397 = vadd.f32 %v2393, %v2395
  %v2398 = vtanh.pop %v2396
  %v2399 = vtanh.pop %v2397
  %v2400 = vmul.f32 %v2390, %v2398
  %v2401 = vmul.f32 %v2391, %v2399
  %2402 = vst [vmem:[%s13] sm:$0xff] %v2396
  %2403 = vst [vmem:[%s13 + $0x8] sm:$0xff] %v2397
  %2404 = vst [vmem:[%s12] sm:$0xff] %v2400
  %2405 = vst [vmem:[%s12 + $0x8] sm:$0xff] %v2401
  %v2406 = vld [vmem:[%s8] sm:$0xff]
  %v2407 = vld [vmem:[%s8 + $0x8] sm:$0xff]
  %v2408 = vld [vmem:[%s8 + $0x10] sm:$0xff]
  %v2409 = vld [vmem:[%s8 + $0x18] sm:$0xff]
  %v2410 = vld [vmem:[%s8 + $0x20] sm:$0xff]
  %v2411 = vld [vmem:[%s8 + $0x28] sm:$0xff]
  %v2412 = vld [vmem:[%s8 + $0x30] sm:$0xff]
  %v2413 = vld [vmem:[%s8 + $0x38] sm:$0xff]
  %v2414 = vld [vmem:[%s8 + $0x40] sm:$0xff]
  %v2415 = vld [vmem:[%s8 + $0x48] sm:$0xff]
  %v2416 = vld [vmem:[%s8 + $0x50] sm:$0xff]
  %v2417 = vld [vmem:[%s8 + $0x58] sm:$0xff]
  %v2418 = vld [vmem:[%s8 + $0x60] sm:$0xff]
  %v2419 = vld [vmem:[%s8 + $0x68] sm:$0xff]
  %v2420 = vld [vmem:[%s8 + $0x70] sm:$0xff]
  %v2421 = vld [vmem:[%s8 + $0x78] sm:$0xff]
  %v2422 = vld [vmem:[%s8 + $0x80] sm:$0xff]
  %v2423 = vld [vmem:[%s8 + $0x88] sm:$0xff]
  %v2424 = vld [vmem:[%s8 + $0x90] sm:$0xff]
  %v2425 = vld [vmem:[%s8 + $0x98] sm:$0xff]
  %v2426 = vld [vmem:[%s8 + $0xa0] sm:$0xff]
  %v2427 = vld [vmem:[%s8 + $0xa8] sm:$0xff]
  %v2428 = vld [vmem:[%s8 + $0xb0] sm:$0xff]
  %v2429 = vld [vmem:[%s8 + $0xb8] sm:$0xff]
  %v2430 = vld [vmem:[%s8 + $0xc0] sm:$0xff]
  %v2431 = vld [vmem:[%s8 + $0xc8] sm:$0xff]
  %v2432 = vld [vmem:[%s8 + $0xd0] sm:$0xff]
  %v2433 = vld [vmem:[%s8 + $0xd8] sm:$0xff]
  %v2434 = vld [vmem:[%s8 + $0xe0] sm:$0xff]
  %v2435 = vld [vmem:[%s8 + $0xe8] sm:$0xff]
  %v2436 = vld [vmem:[%s8 + $0xf0] sm:$0xff]
  %v2437 = vld [vmem:[%s8 + $0xf8] sm:$0xff]
  %v2438 = vld [vmem:[%s8 + $0x100] sm:$0xff]
  %v2439 = vld [vmem:[%s8 + $0x108] sm:$0xff]
  %v2440 = vld [vmem:[%s8 + $0x110] sm:$0xff]
  %v2441 = vld [vmem:[%s8 + $0x118] sm:$0xff]
  %v2442 = vld [vmem:[%s8 + $0x120] sm:$0xff]
  %v2443 = vld [vmem:[%s8 + $0x128] sm:$0xff]
  %v2444 = vld [vmem:[%s8 + $0x130] sm:$0xff]
  %v2445 = vld [vmem:[%s8 + $0x138] sm:$0xff]
  %v2446 = vld [vmem:[%s8 + $0x140] sm:$0xff]
  %v2447 = vld [vmem:[%s8 + $0x148] sm:$0xff]
  %v2448 = vld [vmem:[%s8 + $0x150] sm:$0xff]
  %v2449 = vld [vmem:[%s8 + $0x158] sm:$0xff]
  %v2450 = vld [vmem:[%s8 + $0x160] sm:$0xff]
  %v2451 = vld [vmem:[%s8 + $0x168] sm:$0xff]
  %v2452 = vld [vmem:[%s8 + $0x170] sm:$0xff]
  %v2453 = vld [vmem:[%s8 + $0x178] sm:$0xff]
  %v2454 = vld [vmem:[%s8 + $0x180] sm:$0xff]
  %v2455 = vld [vmem:[%s8 + $0x188] sm:$0xff]
  %v2456 = vld [vmem:[%s8 + $0x190] sm:$0xff]
  %v2457 = vld [vmem:[%s8 + $0x198] sm:$0xff]
  %v2458 = vld [vmem:[%s8 + $0x1a0] sm:$0xff]
  %v2459 = vld [vmem:[%s8 + $0x1a8] sm:$0xff]
  %v2460 = vld [vmem:[%s8 + $0x1b0] sm:$0xff]
  %v2461 = vld [vmem:[%s8 + $0x1b8] sm:$0xff]
  %v2462 = vld [vmem:[%s8 + $0x1c0] sm:$0xff]
  %v2463 = vld [vmem:[%s8 + $0x1c8] sm:$0xff]
  %v2464 = vld [vmem:[%s8 + $0x1d0] sm:$0xff]
  %v2465 = vld [vmem:[%s8 + $0x1d8] sm:$0xff]
  %v2466 = vld [vmem:[%s8 + $0x1e0] sm:$0xff]
  %v2467 = vld [vmem:[%s8 + $0x1e8] sm:$0xff]
  %v2468 = vld [vmem:[%s8 + $0x1f0] sm:$0xff]
  %v2469 = vld [vmem:[%s8 + $0x1f8] sm:$0xff]
  %v2470 = vld [vmem:[%s8 + $0x200] sm:$0xff]
  %v2471 = vld [vmem:[%s8 + $0x208] sm:$0xff]
  %v2472 = vld [vmem:[%s8 + $0x210] sm:$0xff]
  %v2473 = vld [vmem:[%s8 + $0x218] sm:$0xff]
  %v2474 = vld [vmem:[%s8 + $0x220] sm:$0xff]
  %v2475 = vld [vmem:[%s8 + $0x228] sm:$0xff]
  %v2476 = vld [vmem:[%s8 + $0x230] sm:$0xff]
  %v2477 = vld [vmem:[%s8 + $0x238] sm:$0xff]
  %v2478 = vld [vmem:[%s8 + $0x240] sm:$0xff]
  %v2479 = vld [vmem:[%s8 + $0x248] sm:$0xff]
  %v2480 = vld [vmem:[%s8 + $0x250] sm:$0xff]
  %v2481 = vld [vmem:[%s8 + $0x258] sm:$0xff]
  %v2482 = vld [vmem:[%s8 + $0x260] sm:$0xff]
  %v2483 = vld [vmem:[%s8 + $0x268] sm:$0xff]
  %v2484 = vld [vmem:[%s8 + $0x270] sm:$0xff]
  %v2485 = vld [vmem:[%s8 + $0x278] sm:$0xff]
  %v2486 = vld [vmem:[%s8 + $0x280] sm:$0xff]
  %v2487 = vld [vmem:[%s8 + $0x288] sm:$0xff]
  %v2488 = vld [vmem:[%s8 + $0x290] sm:$0xff]
  %v2489 = vld [vmem:[%s8 + $0x298] sm:$0xff]
  %v2490 = vld [vmem:[%s8 + $0x2a0] sm:$0xff]
  %v2491 = vld [vmem:[%s8 + $0x2a8] sm:$0xff]
  %v2492 = vld [vmem:[%s8 + $0x2b0] sm:$0xff]
  %v2493 = vld [vmem:[%s8 + $0x2b8] sm:$0xff]
  %v2494 = vld [vmem:[%s8 + $0x2c0] sm:$0xff]
  %v2495 = vld [vmem:[%s8 + $0x2c8] sm:$0xff]
  %v2496 = vld [vmem:[%s8 + $0x2d0] sm:$0xff]
  %v2497 = vld [vmem:[%s8 + $0x2d8] sm:$0xff]
  %v2498 = vld [vmem:[%s8 + $0x2e0] sm:$0xff]
  %v2499 = vld [vmem:[%s8 + $0x2e8] sm:$0xff]
  %v2500 = vld [vmem:[%s8 + $0x2f0] sm:$0xff]
  %v2501 = vld [vmem:[%s8 + $0x2f8] sm:$0xff]
  %v2502 = vld [vmem:[%s8 + $0x300] sm:$0xff]
  %v2503 = vld [vmem:[%s8 + $0x308] sm:$0xff]
  %v2504 = vld [vmem:[%s8 + $0x310] sm:$0xff]
  %v2505 = vld [vmem:[%s8 + $0x318] sm:$0xff]
  %v2506 = vld [vmem:[%s8 + $0x320] sm:$0xff]
  %v2507 = vld [vmem:[%s8 + $0x328] sm:$0xff]
  %v2508 = vld [vmem:[%s8 + $0x330] sm:$0xff]
  %v2509 = vld [vmem:[%s8 + $0x338] sm:$0xff]
  %v2510 = vld [vmem:[%s8 + $0x340] sm:$0xff]
  %v2511 = vld [vmem:[%s8 + $0x348] sm:$0xff]
  %v2512 = vld [vmem:[%s8 + $0x350] sm:$0xff]
  %v2513 = vld [vmem:[%s8 + $0x358] sm:$0xff]
  %v2514 = vld [vmem:[%s8 + $0x360] sm:$0xff]
  %v2515 = vld [vmem:[%s8 + $0x368] sm:$0xff]
  %v2516 = vld [vmem:[%s8 + $0x370] sm:$0xff]
  %v2517 = vld [vmem:[%s8 + $0x378] sm:$0xff]
  %v2518 = vld [vmem:[%s8 + $0x380] sm:$0xff]
  %v2519 = vld [vmem:[%s8 + $0x388] sm:$0xff]
  %v2520 = vld [vmem:[%s8 + $0x390] sm:$0xff]
  %v2521 = vld [vmem:[%s8 + $0x398] sm:$0xff]
  %v2522 = vld [vmem:[%s8 + $0x3a0] sm:$0xff]
  %v2523 = vld [vmem:[%s8 + $0x3a8] sm:$0xff]
  %v2524 = vld [vmem:[%s8 + $0x3b0] sm:$0xff]
  %v2525 = vld [vmem:[%s8 + $0x3b8] sm:$0xff]
  %v2526 = vld [vmem:[%s8 + $0x3c0] sm:$0xff]
  %v2527 = vld [vmem:[%s8 + $0x3c8] sm:$0xff]
  %v2528 = vld [vmem:[%s8 + $0x3d0] sm:$0xff]
  %v2529 = vld [vmem:[%s8 + $0x3d8] sm:$0xff]
  %v2530 = vld [vmem:[%s8 + $0x3e0] sm:$0xff]
  %v2531 = vld [vmem:[%s8 + $0x3e8] sm:$0xff]
  %v2532 = vld [vmem:[%s8 + $0x3f0] sm:$0xff]
  %v2533 = vld [vmem:[%s8 + $0x3f8] sm:$0xff]
  %v2534 = vld [vmem:[%s8 + $0x400] sm:$0xff]
  %v2535 = vld [vmem:[%s8 + $0x408] sm:$0xff]
  %v2536 = vld [vmem:[%s8 + $0x410] sm:$0xff]
  %v2537 = vld [vmem:[%s8 + $0x418] sm:$0xff]
  %v2538 = vld [vmem:[%s8 + $0x420] sm:$0xff]
  %v2539 = vld [vmem:[%s8 + $0x428] sm:$0xff]
  %v2540 = vld [vmem:[%s8 + $0x430] sm:$0xff]
  %v2541 = vld [vmem:[%s8 + $0x438] sm:$0xff]
  %v2542 = vld [vmem:[%s8 + $0x440] sm:$0xff]
  %v2543 = vld [vmem:[%s8 + $0x448] sm:$0xff]
  %v2544 = vld [vmem:[%s8 + $0x450] sm:$0xff]
  %v2545 = vld [vmem:[%s8 + $0x458] sm:$0xff]
  %v2546 = vld [vmem:[%s8 + $0x460] sm:$0xff]
  %v2547 = vld [vmem:[%s8 + $0x468] sm:$0xff]
  %v2548 = vld [vmem:[%s8 + $0x470] sm:$0xff]
  %v2549 = vld [vmem:[%s8 + $0x478] sm:$0xff]
  %v2550 = vld [vmem:[%s8 + $0x480] sm:$0xff]
  %v2551 = vld [vmem:[%s8 + $0x488] sm:$0xff]
  %v2552 = vld [vmem:[%s8 + $0x490] sm:$0xff]
  %v2553 = vld [vmem:[%s8 + $0x498] sm:$0xff]
  %v2554 = vld [vmem:[%s8 + $0x4a0] sm:$0xff]
  %v2555 = vld [vmem:[%s8 + $0x4a8] sm:$0xff]
  %v2556 = vld [vmem:[%s8 + $0x4b0] sm:$0xff]
  %v2557 = vld [vmem:[%s8 + $0x4b8] sm:$0xff]
  %v2558 = vld [vmem:[%s8 + $0x4c0] sm:$0xff]
  %v2559 = vld [vmem:[%s8 + $0x4c8] sm:$0xff]
  %v2560 = vld [vmem:[%s8 + $0x4d0] sm:$0xff]
  %v2561 = vld [vmem:[%s8 + $0x4d8] sm:$0xff]
  %v2562 = vld [vmem:[%s8 + $0x4e0] sm:$0xff]
  %v2563 = vld [vmem:[%s8 + $0x4e8] sm:$0xff]
  %v2564 = vld [vmem:[%s8 + $0x4f0] sm:$0xff]
  %v2565 = vld [vmem:[%s8 + $0x4f8] sm:$0xff]
  %v2566 = vld [vmem:[%s8 + $0x500] sm:$0xff]
  %v2567 = vld [vmem:[%s8 + $0x508] sm:$0xff]
  %v2568 = vld [vmem:[%s8 + $0x510] sm:$0xff]
  %v2569 = vld [vmem:[%s8 + $0x518] sm:$0xff]
  %v2570 = vld [vmem:[%s8 + $0x520] sm:$0xff]
  %v2571 = vld [vmem:[%s8 + $0x528] sm:$0xff]
  %v2572 = vld [vmem:[%s8 + $0x530] sm:$0xff]
  %v2573 = vld [vmem:[%s8 + $0x538] sm:$0xff]
  %v2574 = vld [vmem:[%s8 + $0x540] sm:$0xff]
  %v2575 = vld [vmem:[%s8 + $0x548] sm:$0xff]
  %v2576 = vld [vmem:[%s8 + $0x550] sm:$0xff]
  %v2577 = vld [vmem:[%s8 + $0x558] sm:$0xff]
  %v2578 = vld [vmem:[%s8 + $0x560] sm:$0xff]
  %v2579 = vld [vmem:[%s8 + $0x568] sm:$0xff]
  %v2580 = vld [vmem:[%s8 + $0x570] sm:$0xff]
  %v2581 = vld [vmem:[%s8 + $0x578] sm:$0xff]
  %v2582 = vld [vmem:[%s8 + $0x580] sm:$0xff]
  %v2583 = vld [vmem:[%s8 + $0x588] sm:$0xff]
  %v2584 = vld [vmem:[%s8 + $0x590] sm:$0xff]
  %v2585 = vld [vmem:[%s8 + $0x598] sm:$0xff]
  %v2586 = vld [vmem:[%s8 + $0x5a0] sm:$0xff]
  %v2587 = vld [vmem:[%s8 + $0x5a8] sm:$0xff]
  %v2588 = vld [vmem:[%s8 + $0x5b0] sm:$0xff]
  %v2589 = vld [vmem:[%s8 + $0x5b8] sm:$0xff]
  %v2590 = vld [vmem:[%s8 + $0x5c0] sm:$0xff]
  %v2591 = vld [vmem:[%s8 + $0x5c8] sm:$0xff]
  %v2592 = vld [vmem:[%s8 + $0x5d0] sm:$0xff]
  %v2593 = vld [vmem:[%s8 + $0x5d8] sm:$0xff]
  %v2594 = vld [vmem:[%s8 + $0x5e0] sm:$0xff]
  %v2595 = vld [vmem:[%s8 + $0x5e8] sm:$0xff]
  %v2596 = vld [vmem:[%s8 + $0x5f0] sm:$0xff]
  %v2597 = vld [vmem:[%s8 + $0x5f8] sm:$0xff]
  %v2598 = vld [vmem:[%s8 + $0x600] sm:$0xff]
  %v2599 = vld [vmem:[%s8 + $0x608] sm:$0xff]
  %v2600 = vld [vmem:[%s8 + $0x610] sm:$0xff]
  %v2601 = vld [vmem:[%s8 + $0x618] sm:$0xff]
  %v2602 = vld [vmem:[%s8 + $0x620] sm:$0xff]
  %v2603 = vld [vmem:[%s8 + $0x628] sm:$0xff]
  %v2604 = vld [vmem:[%s8 + $0x630] sm:$0xff]
  %v2605 = vld [vmem:[%s8 + $0x638] sm:$0xff]
  %v2606 = vld [vmem:[%s8 + $0x640] sm:$0xff]
  %v2607 = vld [vmem:[%s8 + $0x648] sm:$0xff]
  %v2608 = vld [vmem:[%s8 + $0x650] sm:$0xff]
  %v2609 = vld [vmem:[%s8 + $0x658] sm:$0xff]
  %v2610 = vld [vmem:[%s8 + $0x660] sm:$0xff]
  %v2611 = vld [vmem:[%s8 + $0x668] sm:$0xff]
  %v2612 = vld [vmem:[%s8 + $0x670] sm:$0xff]
  %v2613 = vld [vmem:[%s8 + $0x678] sm:$0xff]
  %v2614 = vld [vmem:[%s8 + $0x680] sm:$0xff]
  %v2615 = vld [vmem:[%s8 + $0x688] sm:$0xff]
  %v2616 = vld [vmem:[%s8 + $0x690] sm:$0xff]
  %v2617 = vld [vmem:[%s8 + $0x698] sm:$0xff]
  %v2618 = vld [vmem:[%s8 + $0x6a0] sm:$0xff]
  %v2619 = vld [vmem:[%s8 + $0x6a8] sm:$0xff]
  %v2620 = vld [vmem:[%s8 + $0x6b0] sm:$0xff]
  %v2621 = vld [vmem:[%s8 + $0x6b8] sm:$0xff]
  %v2622 = vld [vmem:[%s8 + $0x6c0] sm:$0xff]
  %v2623 = vld [vmem:[%s8 + $0x6c8] sm:$0xff]
  %v2624 = vld [vmem:[%s8 + $0x6d0] sm:$0xff]
  %v2625 = vld [vmem:[%s8 + $0x6d8] sm:$0xff]
  %v2626 = vld [vmem:[%s8 + $0x6e0] sm:$0xff]
  %v2627 = vld [vmem:[%s8 + $0x6e8] sm:$0xff]
  %v2628 = vld [vmem:[%s8 + $0x6f0] sm:$0xff]
  %v2629 = vld [vmem:[%s8 + $0x6f8] sm:$0xff]
  %v2630 = vld [vmem:[%s8 + $0x700] sm:$0xff]
  %v2631 = vld [vmem:[%s8 + $0x708] sm:$0xff]
  %v2632 = vld [vmem:[%s8 + $0x710] sm:$0xff]
  %v2633 = vld [vmem:[%s8 + $0x718] sm:$0xff]
  %v2634 = vld [vmem:[%s8 + $0x720] sm:$0xff]
  %v2635 = vld [vmem:[%s8 + $0x728] sm:$0xff]
  %v2636 = vld [vmem:[%s8 + $0x730] sm:$0xff]
  %v2637 = vld [vmem:[%s8 + $0x738] sm:$0xff]
  %v2638 = vld [vmem:[%s8 + $0x740] sm:$0xff]
  %v2639 = vld [vmem:[%s8 + $0x748] sm:$0xff]
  %v2640 = vld [vmem:[%s8 + $0x750] sm:$0xff]
  %v2641 = vld [vmem:[%s8 + $0x758] sm:$0xff]
  %v2642 = vld [vmem:[%s8 + $0x760] sm:$0xff]
  %v2643 = vld [vmem:[%s8 + $0x768] sm:$0xff]
  %v2644 = vld [vmem:[%s8 + $0x770] sm:$0xff]
  %v2645 = vld [vmem:[%s8 + $0x778] sm:$0xff]
  %v2646 = vld [vmem:[%s8 + $0x780] sm:$0xff]
  %v2647 = vld [vmem:[%s8 + $0x788] sm:$0xff]
  %v2648 = vld [vmem:[%s8 + $0x790] sm:$0xff]
  %v2649 = vld [vmem:[%s8 + $0x798] sm:$0xff]
  %v2650 = vld [vmem:[%s8 + $0x7a0] sm:$0xff]
  %v2651 = vld [vmem:[%s8 + $0x7a8] sm:$0xff]
  %v2652 = vld [vmem:[%s8 + $0x7b0] sm:$0xff]
  %v2653 = vld [vmem:[%s8 + $0x7b8] sm:$0xff]
  %v2654 = vld [vmem:[%s8 + $0x7c0] sm:$0xff]
  %v2655 = vld [vmem:[%s8 + $0x7c8] sm:$0xff]
  %v2656 = vld [vmem:[%s8 + $0x7d0] sm:$0xff]
  %v2657 = vld [vmem:[%s8 + $0x7d8] sm:$0xff]
  %v2658 = vld [vmem:[%s8 + $0x7e0] sm:$0xff]
  %v2659 = vld [vmem:[%s8 + $0x7e8] sm:$0xff]
  %v2660 = vld [vmem:[%s8 + $0x7f0] sm:$0xff]
  %v2661 = vld [vmem:[%s8 + $0x7f8] sm:$0xff]
  %v2662 = vld [vmem:[%s9] sm:$0xff]
  %v2664 = vlaneseq
  %v2665 = vshrl.u32 %v2664, 7
  %v2666 = vsub.s32 0, %v2665
  %v2667 = vrot.slane %v2662, %v2666
  %v2668 = vlaneseq
  %v2669 = vshrl.u32 %v2668, 7
  %v2670 = vsub.s32 1, %v2669
  %v2671 = vrot.slane %v2662, %v2670
  %v2672 = vlaneseq
  %v2673 = vshrl.u32 %v2672, 7
  %v2674 = vsub.s32 2, %v2673
  %v2675 = vrot.slane %v2662, %v2674
  %v2676 = vlaneseq
  %v2677 = vshrl.u32 %v2676, 7
  %v2678 = vsub.s32 3, %v2677
  %v2679 = vrot.slane %v2662, %v2678
  %v2680 = vlaneseq
  %v2681 = vshrl.u32 %v2680, 7
  %v2682 = vsub.s32 4, %v2681
  %v2683 = vrot.slane %v2662, %v2682
  %v2684 = vlaneseq
  %v2685 = vshrl.u32 %v2684, 7
  %v2686 = vsub.s32 5, %v2685
  %v2687 = vrot.slane %v2662, %v2686
  %v2688 = vlaneseq
  %v2689 = vshrl.u32 %v2688, 7
  %v2690 = vsub.s32 6, %v2689
  %v2691 = vrot.slane %v2662, %v2690
  %v2692 = vlaneseq
  %v2693 = vshrl.u32 %v2692, 7
  %v2694 = vsub.s32 7, %v2693
  %v2695 = vrot.slane %v2662, %v2694
  %v2960 = vunpack.c.l.b16 %v2406
  %v2961 = vunpack.c.h.b16 %v2406
  %v2962 = vunpack.c.l.b16 %v2407
  %v2963 = vunpack.c.h.b16 %v2407
  %v2964 = vunpack.c.l.b16 %v2408
  %v2965 = vunpack.c.h.b16 %v2408
  %v2966 = vunpack.c.l.b16 %v2409
  %v2967 = vunpack.c.h.b16 %v2409
  %v2968 = vunpack.c.l.b16 %v2410
  %v2969 = vunpack.c.h.b16 %v2410
  %v2970 = vunpack.c.l.b16 %v2411
  %v2971 = vunpack.c.h.b16 %v2411
  %v2972 = vunpack.c.l.b16 %v2412
  %v2973 = vunpack.c.h.b16 %v2412
  %v2974 = vunpack.c.l.b16 %v2413
  %v2975 = vunpack.c.h.b16 %v2413
  %v2976 = vunpack.c.l.b16 %v2414
  %v2977 = vunpack.c.h.b16 %v2414
  %v2978 = vunpack.c.l.b16 %v2415
  %v2979 = vunpack.c.h.b16 %v2415
  %v2980 = vunpack.c.l.b16 %v2416
  %v2981 = vunpack.c.h.b16 %v2416
  %v2982 = vunpack.c.l.b16 %v2417
  %v2983 = vunpack.c.h.b16 %v2417
  %v2984 = vunpack.c.l.b16 %v2418
  %v2985 = vunpack.c.h.b16 %v2418
  %v2986 = vunpack.c.l.b16 %v2419
  %v2987 = vunpack.c.h.b16 %v2419
  %v2988 = vunpack.c.l.b16 %v2420
  %v2989 = vunpack.c.h.b16 %v2420
  %v2990 = vunpack.c.l.b16 %v2421
  %v2991 = vunpack.c.h.b16 %v2421
  %v2992 = vunpack.c.l.b16 %v2422
  %v2993 = vunpack.c.h.b16 %v2422
  %v2994 = vunpack.c.l.b16 %v2423
  %v2995 = vunpack.c.h.b16 %v2423
  %v2996 = vunpack.c.l.b16 %v2424
  %v2997 = vunpack.c.h.b16 %v2424
  %v2998 = vunpack.c.l.b16 %v2425
  %v2999 = vunpack.c.h.b16 %v2425
  %v3000 = vunpack.c.l.b16 %v2426
  %v3001 = vunpack.c.h.b16 %v2426
  %v3002 = vunpack.c.l.b16 %v2427
  %v3003 = vunpack.c.h.b16 %v2427
  %v3004 = vunpack.c.l.b16 %v2428
  %v3005 = vunpack.c.h.b16 %v2428
  %v3006 = vunpack.c.l.b16 %v2429
  %v3007 = vunpack.c.h.b16 %v2429
  %v3008 = vunpack.c.l.b16 %v2430
  %v3009 = vunpack.c.h.b16 %v2430
  %v3010 = vunpack.c.l.b16 %v2431
  %v3011 = vunpack.c.h.b16 %v2431
  %v3012 = vunpack.c.l.b16 %v2432
  %v3013 = vunpack.c.h.b16 %v2432
  %v3014 = vunpack.c.l.b16 %v2433
  %v3015 = vunpack.c.h.b16 %v2433
  %v3016 = vunpack.c.l.b16 %v2434
  %v3017 = vunpack.c.h.b16 %v2434
  %v3018 = vunpack.c.l.b16 %v2435
  %v3019 = vunpack.c.h.b16 %v2435
  %v3020 = vunpack.c.l.b16 %v2436
  %v3021 = vunpack.c.h.b16 %v2436
  %v3022 = vunpack.c.l.b16 %v2437
  %v3023 = vunpack.c.h.b16 %v2437
  %v3024 = vunpack.c.l.b16 %v2438
  %v3025 = vunpack.c.h.b16 %v2438
  %v3026 = vunpack.c.l.b16 %v2439
  %v3027 = vunpack.c.h.b16 %v2439
  %v3028 = vunpack.c.l.b16 %v2440
  %v3029 = vunpack.c.h.b16 %v2440
  %v3030 = vunpack.c.l.b16 %v2441
  %v3031 = vunpack.c.h.b16 %v2441
  %v3032 = vunpack.c.l.b16 %v2442
  %v3033 = vunpack.c.h.b16 %v2442
  %v3034 = vunpack.c.l.b16 %v2443
  %v3035 = vunpack.c.h.b16 %v2443
  %v3036 = vunpack.c.l.b16 %v2444
  %v3037 = vunpack.c.h.b16 %v2444
  %v3038 = vunpack.c.l.b16 %v2445
  %v3039 = vunpack.c.h.b16 %v2445
  %v3040 = vunpack.c.l.b16 %v2446
  %v3041 = vunpack.c.h.b16 %v2446
  %v3042 = vunpack.c.l.b16 %v2447
  %v3043 = vunpack.c.h.b16 %v2447
  %v3044 = vunpack.c.l.b16 %v2448
  %v3045 = vunpack.c.h.b16 %v2448
  %v3046 = vunpack.c.l.b16 %v2449
  %v3047 = vunpack.c.h.b16 %v2449
  %v3048 = vunpack.c.l.b16 %v2450
  %v3049 = vunpack.c.h.b16 %v2450
  %v3050 = vunpack.c.l.b16 %v2451
  %v3051 = vunpack.c.h.b16 %v2451
  %v3052 = vunpack.c.l.b16 %v2452
  %v3053 = vunpack.c.h.b16 %v2452
  %v3054 = vunpack.c.l.b16 %v2453
  %v3055 = vunpack.c.h.b16 %v2453
  %v3056 = vunpack.c.l.b16 %v2454
  %v3057 = vunpack.c.h.b16 %v2454
  %v3058 = vunpack.c.l.b16 %v2455
  %v3059 = vunpack.c.h.b16 %v2455
  %v3060 = vunpack.c.l.b16 %v2456
  %v3061 = vunpack.c.h.b16 %v2456
  %v3062 = vunpack.c.l.b16 %v2457
  %v3063 = vunpack.c.h.b16 %v2457
  %v3064 = vunpack.c.l.b16 %v2458
  %v3065 = vunpack.c.h.b16 %v2458
  %v3066 = vunpack.c.l.b16 %v2459
  %v3067 = vunpack.c.h.b16 %v2459
  %v3068 = vunpack.c.l.b16 %v2460
  %v3069 = vunpack.c.h.b16 %v2460
  %v3070 = vunpack.c.l.b16 %v2461
  %v3071 = vunpack.c.h.b16 %v2461
  %v3072 = vunpack.c.l.b16 %v2462
  %v3073 = vunpack.c.h.b16 %v2462
  %v3074 = vunpack.c.l.b16 %v2463
  %v3075 = vunpack.c.h.b16 %v2463
  %v3076 = vunpack.c.l.b16 %v2464
  %v3077 = vunpack.c.h.b16 %v2464
  %v3078 = vunpack.c.l.b16 %v2465
  %v3079 = vunpack.c.h.b16 %v2465
  %v3080 = vunpack.c.l.b16 %v2466
  %v3081 = vunpack.c.h.b16 %v2466
  %v3082 = vunpack.c.l.b16 %v2467
  %v3083 = vunpack.c.h.b16 %v2467
  %v3084 = vunpack.c.l.b16 %v2468
  %v3085 = vunpack.c.h.b16 %v2468
  %v3086 = vunpack.c.l.b16 %v2469
  %v3087 = vunpack.c.h.b16 %v2469
  %v3088 = vunpack.c.l.b16 %v2470
  %v3089 = vunpack.c.h.b16 %v2470
  %v3090 = vunpack.c.l.b16 %v2471
  %v3091 = vunpack.c.h.b16 %v2471
  %v3092 = vunpack.c.l.b16 %v2472
  %v3093 = vunpack.c.h.b16 %v2472
  %v3094 = vunpack.c.l.b16 %v2473
  %v3095 = vunpack.c.h.b16 %v2473
  %v3096 = vunpack.c.l.b16 %v2474
  %v3097 = vunpack.c.h.b16 %v2474
  %v3098 = vunpack.c.l.b16 %v2475
  %v3099 = vunpack.c.h.b16 %v2475
  %v3100 = vunpack.c.l.b16 %v2476
  %v3101 = vunpack.c.h.b16 %v2476
  %v3102 = vunpack.c.l.b16 %v2477
  %v3103 = vunpack.c.h.b16 %v2477
  %v3104 = vunpack.c.l.b16 %v2478
  %v3105 = vunpack.c.h.b16 %v2478
  %v3106 = vunpack.c.l.b16 %v2479
  %v3107 = vunpack.c.h.b16 %v2479
  %v3108 = vunpack.c.l.b16 %v2480
  %v3109 = vunpack.c.h.b16 %v2480
  %v3110 = vunpack.c.l.b16 %v2481
  %v3111 = vunpack.c.h.b16 %v2481
  %v3112 = vunpack.c.l.b16 %v2482
  %v3113 = vunpack.c.h.b16 %v2482
  %v3114 = vunpack.c.l.b16 %v2483
  %v3115 = vunpack.c.h.b16 %v2483
  %v3116 = vunpack.c.l.b16 %v2484
  %v3117 = vunpack.c.h.b16 %v2484
  %v3118 = vunpack.c.l.b16 %v2485
  %v3119 = vunpack.c.h.b16 %v2485
  %v3120 = vunpack.c.l.b16 %v2486
  %v3121 = vunpack.c.h.b16 %v2486
  %v3122 = vunpack.c.l.b16 %v2487
  %v3123 = vunpack.c.h.b16 %v2487
  %v3124 = vunpack.c.l.b16 %v2488
  %v3125 = vunpack.c.h.b16 %v2488
  %v3126 = vunpack.c.l.b16 %v2489
  %v3127 = vunpack.c.h.b16 %v2489
  %v3128 = vunpack.c.l.b16 %v2490
  %v3129 = vunpack.c.h.b16 %v2490
  %v3130 = vunpack.c.l.b16 %v2491
  %v3131 = vunpack.c.h.b16 %v2491
  %v3132 = vunpack.c.l.b16 %v2492
  %v3133 = vunpack.c.h.b16 %v2492
  %v3134 = vunpack.c.l.b16 %v2493
  %v3135 = vunpack.c.h.b16 %v2493
  %v3136 = vunpack.c.l.b16 %v2494
  %v3137 = vunpack.c.h.b16 %v2494
  %v3138 = vunpack.c.l.b16 %v2495
  %v3139 = vunpack.c.h.b16 %v2495
  %v3140 = vunpack.c.l.b16 %v2496
  %v3141 = vunpack.c.h.b16 %v2496
  %v3142 = vunpack.c.l.b16 %v2497
  %v3143 = vunpack.c.h.b16 %v2497
  %v3144 = vunpack.c.l.b16 %v2498
  %v3145 = vunpack.c.h.b16 %v2498
  %v3146 = vunpack.c.l.b16 %v2499
  %v3147 = vunpack.c.h.b16 %v2499
  %v3148 = vunpack.c.l.b16 %v2500
  %v3149 = vunpack.c.h.b16 %v2500
  %v3150 = vunpack.c.l.b16 %v2501
  %v3151 = vunpack.c.h.b16 %v2501
  %v3152 = vunpack.c.l.b16 %v2502
  %v3153 = vunpack.c.h.b16 %v2502
  %v3154 = vunpack.c.l.b16 %v2503
  %v3155 = vunpack.c.h.b16 %v2503
  %v3156 = vunpack.c.l.b16 %v2504
  %v3157 = vunpack.c.h.b16 %v2504
  %v3158 = vunpack.c.l.b16 %v2505
  %v3159 = vunpack.c.h.b16 %v2505
  %v3160 = vunpack.c.l.b16 %v2506
  %v3161 = vunpack.c.h.b16 %v2506
  %v3162 = vunpack.c.l.b16 %v2507
  %v3163 = vunpack.c.h.b16 %v2507
  %v3164 = vunpack.c.l.b16 %v2508
  %v3165 = vunpack.c.h.b16 %v2508
  %v3166 = vunpack.c.l.b16 %v2509
  %v3167 = vunpack.c.h.b16 %v2509
  %v3168 = vunpack.c.l.b16 %v2510
  %v3169 = vunpack.c.h.b16 %v2510
  %v3170 = vunpack.c.l.b16 %v2511
  %v3171 = vunpack.c.h.b16 %v2511
  %v3172 = vunpack.c.l.b16 %v2512
  %v3173 = vunpack.c.h.b16 %v2512
  %v3174 = vunpack.c.l.b16 %v2513
  %v3175 = vunpack.c.h.b16 %v2513
  %v3176 = vunpack.c.l.b16 %v2514
  %v3177 = vunpack.c.h.b16 %v2514
  %v3178 = vunpack.c.l.b16 %v2515
  %v3179 = vunpack.c.h.b16 %v2515
  %v3180 = vunpack.c.l.b16 %v2516
  %v3181 = vunpack.c.h.b16 %v2516
  %v3182 = vunpack.c.l.b16 %v2517
  %v3183 = vunpack.c.h.b16 %v2517
  %v3184 = vunpack.c.l.b16 %v2518
  %v3185 = vunpack.c.h.b16 %v2518
  %v3186 = vunpack.c.l.b16 %v2519
  %v3187 = vunpack.c.h.b16 %v2519
  %v3188 = vunpack.c.l.b16 %v2520
  %v3189 = vunpack.c.h.b16 %v2520
  %v3190 = vunpack.c.l.b16 %v2521
  %v3191 = vunpack.c.h.b16 %v2521
  %v3192 = vunpack.c.l.b16 %v2522
  %v3193 = vunpack.c.h.b16 %v2522
  %v3194 = vunpack.c.l.b16 %v2523
  %v3195 = vunpack.c.h.b16 %v2523
  %v3196 = vunpack.c.l.b16 %v2524
  %v3197 = vunpack.c.h.b16 %v2524
  %v3198 = vunpack.c.l.b16 %v2525
  %v3199 = vunpack.c.h.b16 %v2525
  %v3200 = vunpack.c.l.b16 %v2526
  %v3201 = vunpack.c.h.b16 %v2526
  %v3202 = vunpack.c.l.b16 %v2527
  %v3203 = vunpack.c.h.b16 %v2527
  %v3204 = vunpack.c.l.b16 %v2528
  %v3205 = vunpack.c.h.b16 %v2528
  %v3206 = vunpack.c.l.b16 %v2529
  %v3207 = vunpack.c.h.b16 %v2529
  %v3208 = vunpack.c.l.b16 %v2530
  %v3209 = vunpack.c.h.b16 %v2530
  %v3210 = vunpack.c.l.b16 %v2531
  %v3211 = vunpack.c.h.b16 %v2531
  %v3212 = vunpack.c.l.b16 %v2532
  %v3213 = vunpack.c.h.b16 %v2532
  %v3214 = vunpack.c.l.b16 %v2533
  %v3215 = vunpack.c.h.b16 %v2533
  %v3216 = vunpack.c.l.b16 %v2534
  %v3217 = vunpack.c.h.b16 %v2534
  %v3218 = vunpack.c.l.b16 %v2535
  %v3219 = vunpack.c.h.b16 %v2535
  %v3220 = vunpack.c.l.b16 %v2536
  %v3221 = vunpack.c.h.b16 %v2536
  %v3222 = vunpack.c.l.b16 %v2537
  %v3223 = vunpack.c.h.b16 %v2537
  %v3224 = vunpack.c.l.b16 %v2538
  %v3225 = vunpack.c.h.b16 %v2538
  %v3226 = vunpack.c.l.b16 %v2539
  %v3227 = vunpack.c.h.b16 %v2539
  %v3228 = vunpack.c.l.b16 %v2540
  %v3229 = vunpack.c.h.b16 %v2540
  %v3230 = vunpack.c.l.b16 %v2541
  %v3231 = vunpack.c.h.b16 %v2541
  %v3232 = vunpack.c.l.b16 %v2542
  %v3233 = vunpack.c.h.b16 %v2542
  %v3234 = vunpack.c.l.b16 %v2543
  %v3235 = vunpack.c.h.b16 %v2543
  %v3236 = vunpack.c.l.b16 %v2544
  %v3237 = vunpack.c.h.b16 %v2544
  %v3238 = vunpack.c.l.b16 %v2545
  %v3239 = vunpack.c.h.b16 %v2545
  %v3240 = vunpack.c.l.b16 %v2546
  %v3241 = vunpack.c.h.b16 %v2546
  %v3242 = vunpack.c.l.b16 %v2547
  %v3243 = vunpack.c.h.b16 %v2547
  %v3244 = vunpack.c.l.b16 %v2548
  %v3245 = vunpack.c.h.b16 %v2548
  %v3246 = vunpack.c.l.b16 %v2549
  %v3247 = vunpack.c.h.b16 %v2549
  %v3248 = vunpack.c.l.b16 %v2550
  %v3249 = vunpack.c.h.b16 %v2550
  %v3250 = vunpack.c.l.b16 %v2551
  %v3251 = vunpack.c.h.b16 %v2551
  %v3252 = vunpack.c.l.b16 %v2552
  %v3253 = vunpack.c.h.b16 %v2552
  %v3254 = vunpack.c.l.b16 %v2553
  %v3255 = vunpack.c.h.b16 %v2553
  %v3256 = vunpack.c.l.b16 %v2554
  %v3257 = vunpack.c.h.b16 %v2554
  %v3258 = vunpack.c.l.b16 %v2555
  %v3259 = vunpack.c.h.b16 %v2555
  %v3260 = vunpack.c.l.b16 %v2556
  %v3261 = vunpack.c.h.b16 %v2556
  %v3262 = vunpack.c.l.b16 %v2557
  %v3263 = vunpack.c.h.b16 %v2557
  %v3264 = vunpack.c.l.b16 %v2558
  %v3265 = vunpack.c.h.b16 %v2558
  %v3266 = vunpack.c.l.b16 %v2559
  %v3267 = vunpack.c.h.b16 %v2559
  %v3268 = vunpack.c.l.b16 %v2560
  %v3269 = vunpack.c.h.b16 %v2560
  %v3270 = vunpack.c.l.b16 %v2561
  %v3271 = vunpack.c.h.b16 %v2561
  %v3272 = vunpack.c.l.b16 %v2562
  %v3273 = vunpack.c.h.b16 %v2562
  %v3274 = vunpack.c.l.b16 %v2563
  %v3275 = vunpack.c.h.b16 %v2563
  %v3276 = vunpack.c.l.b16 %v2564
  %v3277 = vunpack.c.h.b16 %v2564
  %v3278 = vunpack.c.l.b16 %v2565
  %v3279 = vunpack.c.h.b16 %v2565
  %v3280 = vunpack.c.l.b16 %v2566
  %v3281 = vunpack.c.h.b16 %v2566
  %v3282 = vunpack.c.l.b16 %v2567
  %v3283 = vunpack.c.h.b16 %v2567
  %v3284 = vunpack.c.l.b16 %v2568
  %v3285 = vunpack.c.h.b16 %v2568
  %v3286 = vunpack.c.l.b16 %v2569
  %v3287 = vunpack.c.h.b16 %v2569
  %v3288 = vunpack.c.l.b16 %v2570
  %v3289 = vunpack.c.h.b16 %v2570
  %v3290 = vunpack.c.l.b16 %v2571
  %v3291 = vunpack.c.h.b16 %v2571
  %v3292 = vunpack.c.l.b16 %v2572
  %v3293 = vunpack.c.h.b16 %v2572
  %v3294 = vunpack.c.l.b16 %v2573
  %v3295 = vunpack.c.h.b16 %v2573
  %v3296 = vunpack.c.l.b16 %v2574
  %v3297 = vunpack.c.h.b16 %v2574
  %v3298 = vunpack.c.l.b16 %v2575
  %v3299 = vunpack.c.h.b16 %v2575
  %v3300 = vunpack.c.l.b16 %v2576
  %v3301 = vunpack.c.h.b16 %v2576
  %v3302 = vunpack.c.l.b16 %v2577
  %v3303 = vunpack.c.h.b16 %v2577
  %v3304 = vunpack.c.l.b16 %v2578
  %v3305 = vunpack.c.h.b16 %v2578
  %v3306 = vunpack.c.l.b16 %v2579
  %v3307 = vunpack.c.h.b16 %v2579
  %v3308 = vunpack.c.l.b16 %v2580
  %v3309 = vunpack.c.h.b16 %v2580
  %v3310 = vunpack.c.l.b16 %v2581
  %v3311 = vunpack.c.h.b16 %v2581
  %v3312 = vunpack.c.l.b16 %v2582
  %v3313 = vunpack.c.h.b16 %v2582
  %v3314 = vunpack.c.l.b16 %v2583
  %v3315 = vunpack.c.h.b16 %v2583
  %v3316 = vunpack.c.l.b16 %v2584
  %v3317 = vunpack.c.h.b16 %v2584
  %v3318 = vunpack.c.l.b16 %v2585
  %v3319 = vunpack.c.h.b16 %v2585
  %v3320 = vunpack.c.l.b16 %v2586
  %v3321 = vunpack.c.h.b16 %v2586
  %v3322 = vunpack.c.l.b16 %v2587
  %v3323 = vunpack.c.h.b16 %v2587
  %v3324 = vunpack.c.l.b16 %v2588
  %v3325 = vunpack.c.h.b16 %v2588
  %v3326 = vunpack.c.l.b16 %v2589
  %v3327 = vunpack.c.h.b16 %v2589
  %v3328 = vunpack.c.l.b16 %v2590
  %v3329 = vunpack.c.h.b16 %v2590
  %v3330 = vunpack.c.l.b16 %v2591
  %v3331 = vunpack.c.h.b16 %v2591
  %v3332 = vunpack.c.l.b16 %v2592
  %v3333 = vunpack.c.h.b16 %v2592
  %v3334 = vunpack.c.l.b16 %v2593
  %v3335 = vunpack.c.h.b16 %v2593
  %v3336 = vunpack.c.l.b16 %v2594
  %v3337 = vunpack.c.h.b16 %v2594
  %v3338 = vunpack.c.l.b16 %v2595
  %v3339 = vunpack.c.h.b16 %v2595
  %v3340 = vunpack.c.l.b16 %v2596
  %v3341 = vunpack.c.h.b16 %v2596
  %v3342 = vunpack.c.l.b16 %v2597
  %v3343 = vunpack.c.h.b16 %v2597
  %v3344 = vunpack.c.l.b16 %v2598
  %v3345 = vunpack.c.h.b16 %v2598
  %v3346 = vunpack.c.l.b16 %v2599
  %v3347 = vunpack.c.h.b16 %v2599
  %v3348 = vunpack.c.l.b16 %v2600
  %v3349 = vunpack.c.h.b16 %v2600
  %v3350 = vunpack.c.l.b16 %v2601
  %v3351 = vunpack.c.h.b16 %v2601
  %v3352 = vunpack.c.l.b16 %v2602
  %v3353 = vunpack.c.h.b16 %v2602
  %v3354 = vunpack.c.l.b16 %v2603
  %v3355 = vunpack.c.h.b16 %v2603
  %v3356 = vunpack.c.l.b16 %v2604
  %v3357 = vunpack.c.h.b16 %v2604
  %v3358 = vunpack.c.l.b16 %v2605
  %v3359 = vunpack.c.h.b16 %v2605
  %v3360 = vunpack.c.l.b16 %v2606
  %v3361 = vunpack.c.h.b16 %v2606
  %v3362 = vunpack.c.l.b16 %v2607
  %v3363 = vunpack.c.h.b16 %v2607
  %v3364 = vunpack.c.l.b16 %v2608
  %v3365 = vunpack.c.h.b16 %v2608
  %v3366 = vunpack.c.l.b16 %v2609
  %v3367 = vunpack.c.h.b16 %v2609
  %v3368 = vunpack.c.l.b16 %v2610
  %v3369 = vunpack.c.h.b16 %v2610
  %v3370 = vunpack.c.l.b16 %v2611
  %v3371 = vunpack.c.h.b16 %v2611
  %v3372 = vunpack.c.l.b16 %v2612
  %v3373 = vunpack.c.h.b16 %v2612
  %v3374 = vunpack.c.l.b16 %v2613
  %v3375 = vunpack.c.h.b16 %v2613
  %v3376 = vunpack.c.l.b16 %v2614
  %v3377 = vunpack.c.h.b16 %v2614
  %v3378 = vunpack.c.l.b16 %v2615
  %v3379 = vunpack.c.h.b16 %v2615
  %v3380 = vunpack.c.l.b16 %v2616
  %v3381 = vunpack.c.h.b16 %v2616
  %v3382 = vunpack.c.l.b16 %v2617
  %v3383 = vunpack.c.h.b16 %v2617
  %v3384 = vunpack.c.l.b16 %v2618
  %v3385 = vunpack.c.h.b16 %v2618
  %v3386 = vunpack.c.l.b16 %v2619
  %v3387 = vunpack.c.h.b16 %v2619
  %v3388 = vunpack.c.l.b16 %v2620
  %v3389 = vunpack.c.h.b16 %v2620
  %v3390 = vunpack.c.l.b16 %v2621
  %v3391 = vunpack.c.h.b16 %v2621
  %v3392 = vunpack.c.l.b16 %v2622
  %v3393 = vunpack.c.h.b16 %v2622
  %v3394 = vunpack.c.l.b16 %v2623
  %v3395 = vunpack.c.h.b16 %v2623
  %v3396 = vunpack.c.l.b16 %v2624
  %v3397 = vunpack.c.h.b16 %v2624
  %v3398 = vunpack.c.l.b16 %v2625
  %v3399 = vunpack.c.h.b16 %v2625
  %v3400 = vunpack.c.l.b16 %v2626
  %v3401 = vunpack.c.h.b16 %v2626
  %v3402 = vunpack.c.l.b16 %v2627
  %v3403 = vunpack.c.h.b16 %v2627
  %v3404 = vunpack.c.l.b16 %v2628
  %v3405 = vunpack.c.h.b16 %v2628
  %v3406 = vunpack.c.l.b16 %v2629
  %v3407 = vunpack.c.h.b16 %v2629
  %v3408 = vunpack.c.l.b16 %v2630
  %v3409 = vunpack.c.h.b16 %v2630
  %v3410 = vunpack.c.l.b16 %v2631
  %v3411 = vunpack.c.h.b16 %v2631
  %v3412 = vunpack.c.l.b16 %v2632
  %v3413 = vunpack.c.h.b16 %v2632
  %v3414 = vunpack.c.l.b16 %v2633
  %v3415 = vunpack.c.h.b16 %v2633
  %v3416 = vunpack.c.l.b16 %v2634
  %v3417 = vunpack.c.h.b16 %v2634
  %v3418 = vunpack.c.l.b16 %v2635
  %v3419 = vunpack.c.h.b16 %v2635
  %v3420 = vunpack.c.l.b16 %v2636
  %v3421 = vunpack.c.h.b16 %v2636
  %v3422 = vunpack.c.l.b16 %v2637
  %v3423 = vunpack.c.h.b16 %v2637
  %v3424 = vunpack.c.l.b16 %v2638
  %v3425 = vunpack.c.h.b16 %v2638
  %v3426 = vunpack.c.l.b16 %v2639
  %v3427 = vunpack.c.h.b16 %v2639
  %v3428 = vunpack.c.l.b16 %v2640
  %v3429 = vunpack.c.h.b16 %v2640
  %v3430 = vunpack.c.l.b16 %v2641
  %v3431 = vunpack.c.h.b16 %v2641
  %v3432 = vunpack.c.l.b16 %v2642
  %v3433 = vunpack.c.h.b16 %v2642
  %v3434 = vunpack.c.l.b16 %v2643
  %v3435 = vunpack.c.h.b16 %v2643
  %v3436 = vunpack.c.l.b16 %v2644
  %v3437 = vunpack.c.h.b16 %v2644
  %v3438 = vunpack.c.l.b16 %v2645
  %v3439 = vunpack.c.h.b16 %v2645
  %v3440 = vunpack.c.l.b16 %v2646
  %v3441 = vunpack.c.h.b16 %v2646
  %v3442 = vunpack.c.l.b16 %v2647
  %v3443 = vunpack.c.h.b16 %v2647
  %v3444 = vunpack.c.l.b16 %v2648
  %v3445 = vunpack.c.h.b16 %v2648
  %v3446 = vunpack.c.l.b16 %v2649
  %v3447 = vunpack.c.h.b16 %v2649
  %v3448 = vunpack.c.l.b16 %v2650
  %v3449 = vunpack.c.h.b16 %v2650
  %v3450 = vunpack.c.l.b16 %v2651
  %v3451 = vunpack.c.h.b16 %v2651
  %v3452 = vunpack.c.l.b16 %v2652
  %v3453 = vunpack.c.h.b16 %v2652
  %v3454 = vunpack.c.l.b16 %v2653
  %v3455 = vunpack.c.h.b16 %v2653
  %v3456 = vunpack.c.l.b16 %v2654
  %v3457 = vunpack.c.h.b16 %v2654
  %v3458 = vunpack.c.l.b16 %v2655
  %v3459 = vunpack.c.h.b16 %v2655
  %v3460 = vunpack.c.l.b16 %v2656
  %v3461 = vunpack.c.h.b16 %v2656
  %v3462 = vunpack.c.l.b16 %v2657
  %v3463 = vunpack.c.h.b16 %v2657
  %v3464 = vunpack.c.l.b16 %v2658
  %v3465 = vunpack.c.h.b16 %v2658
  %v3466 = vunpack.c.l.b16 %v2659
  %v3467 = vunpack.c.h.b16 %v2659
  %v3468 = vunpack.c.l.b16 %v2660
  %v3469 = vunpack.c.h.b16 %v2660
  %v3470 = vunpack.c.l.b16 %v2661
  %v3471 = vunpack.c.h.b16 %v2661
  %v3472 = vpack.c.b16 %v2968, %v2960
  %v3473 = vpack.c.b16 %v2969, %v2961
  %v3474 = vpack.c.b16 %v2970, %v2962
  %v3475 = vpack.c.b16 %v2971, %v2963
  %v3476 = vpack.c.b16 %v2972, %v2964
  %v3477 = vpack.c.b16 %v2973, %v2965
  %v3478 = vpack.c.b16 %v2974, %v2966
  %v3479 = vpack.c.b16 %v2975, %v2967
  %v3480 = vpack.c.b16 %v2984, %v2976
  %v3481 = vpack.c.b16 %v2985, %v2977
  %v3482 = vpack.c.b16 %v2986, %v2978
  %v3483 = vpack.c.b16 %v2987, %v2979
  %v3484 = vpack.c.b16 %v2988, %v2980
  %v3485 = vpack.c.b16 %v2989, %v2981
  %v3486 = vpack.c.b16 %v2990, %v2982
  %v3487 = vpack.c.b16 %v2991, %v2983
  %v3488 = vpack.c.b16 %v3000, %v2992
  %v3489 = vpack.c.b16 %v3001, %v2993
  %v3490 = vpack.c.b16 %v3002, %v2994
  %v3491 = vpack.c.b16 %v3003, %v2995
  %v3492 = vpack.c.b16 %v3004, %v2996
  %v3493 = vpack.c.b16 %v3005, %v2997
  %v3494 = vpack.c.b16 %v3006, %v2998
  %v3495 = vpack.c.b16 %v3007, %v2999
  %v3496 = vpack.c.b16 %v3016, %v3008
  %v3497 = vpack.c.b16 %v3017, %v3009
  %v3498 = vpack.c.b16 %v3018, %v3010
  %v3499 = vpack.c.b16 %v3019, %v3011
  %v3500 = vpack.c.b16 %v3020, %v3012
  %v3501 = vpack.c.b16 %v3021, %v3013
  %v3502 = vpack.c.b16 %v3022, %v3014
  %v3503 = vpack.c.b16 %v3023, %v3015
  %v3504 = vpack.c.b16 %v3032, %v3024
  %v3505 = vpack.c.b16 %v3033, %v3025
  %v3506 = vpack.c.b16 %v3034, %v3026
  %v3507 = vpack.c.b16 %v3035, %v3027
  %v3508 = vpack.c.b16 %v3036, %v3028
  %v3509 = vpack.c.b16 %v3037, %v3029
  %v3510 = vpack.c.b16 %v3038, %v3030
  %v3511 = vpack.c.b16 %v3039, %v3031
  %v3512 = vpack.c.b16 %v3048, %v3040
  %v3513 = vpack.c.b16 %v3049, %v3041
  %v3514 = vpack.c.b16 %v3050, %v3042
  %v3515 = vpack.c.b16 %v3051, %v3043
  %v3516 = vpack.c.b16 %v3052, %v3044
  %v3517 = vpack.c.b16 %v3053, %v3045
  %v3518 = vpack.c.b16 %v3054, %v3046
  %v3519 = vpack.c.b16 %v3055, %v3047
  %v3520 = vpack.c.b16 %v3064, %v3056
  %v3521 = vpack.c.b16 %v3065, %v3057
  %v3522 = vpack.c.b16 %v3066, %v3058
  %v3523 = vpack.c.b16 %v3067, %v3059
  %v3524 = vpack.c.b16 %v3068, %v3060
  %v3525 = vpack.c.b16 %v3069, %v3061
  %v3526 = vpack.c.b16 %v3070, %v3062
  %v3527 = vpack.c.b16 %v3071, %v3063
  %v3528 = vpack.c.b16 %v3080, %v3072
  %v3529 = vpack.c.b16 %v3081, %v3073
  %v3530 = vpack.c.b16 %v3082, %v3074
  %v3531 = vpack.c.b16 %v3083, %v3075
  %v3532 = vpack.c.b16 %v3084, %v3076
  %v3533 = vpack.c.b16 %v3085, %v3077
  %v3534 = vpack.c.b16 %v3086, %v3078
  %v3535 = vpack.c.b16 %v3087, %v3079
  %v3536 = vpack.c.b16 %v3096, %v3088
  %v3537 = vpack.c.b16 %v3097, %v3089
  %v3538 = vpack.c.b16 %v3098, %v3090
  %v3539 = vpack.c.b16 %v3099, %v3091
  %v3540 = vpack.c.b16 %v3100, %v3092
  %v3541 = vpack.c.b16 %v3101, %v3093
  %v3542 = vpack.c.b16 %v3102, %v3094
  %v3543 = vpack.c.b16 %v3103, %v3095
  %v3544 = vpack.c.b16 %v3112, %v3104
  %v3545 = vpack.c.b16 %v3113, %v3105
  %v3546 = vpack.c.b16 %v3114, %v3106
  %v3547 = vpack.c.b16 %v3115, %v3107
  %v3548 = vpack.c.b16 %v3116, %v3108
  %v3549 = vpack.c.b16 %v3117, %v3109
  %v3550 = vpack.c.b16 %v3118, %v3110
  %v3551 = vpack.c.b16 %v3119, %v3111
  %v3552 = vpack.c.b16 %v3128, %v3120
  %v3553 = vpack.c.b16 %v3129, %v3121
  %v3554 = vpack.c.b16 %v3130, %v3122
  %v3555 = vpack.c.b16 %v3131, %v3123
  %v3556 = vpack.c.b16 %v3132, %v3124
  %v3557 = vpack.c.b16 %v3133, %v3125
  %v3558 = vpack.c.b16 %v3134, %v3126
  %v3559 = vpack.c.b16 %v3135, %v3127
  %v3560 = vpack.c.b16 %v3144, %v3136
  %v3561 = vpack.c.b16 %v3145, %v3137
  %v3562 = vpack.c.b16 %v3146, %v3138
  %v3563 = vpack.c.b16 %v3147, %v3139
  %v3564 = vpack.c.b16 %v3148, %v3140
  %v3565 = vpack.c.b16 %v3149, %v3141
  %v3566 = vpack.c.b16 %v3150, %v3142
  %v3567 = vpack.c.b16 %v3151, %v3143
  %v3568 = vpack.c.b16 %v3160, %v3152
  %v3569 = vpack.c.b16 %v3161, %v3153
  %v3570 = vpack.c.b16 %v3162, %v3154
  %v3571 = vpack.c.b16 %v3163, %v3155
  %v3572 = vpack.c.b16 %v3164, %v3156
  %v3573 = vpack.c.b16 %v3165, %v3157
  %v3574 = vpack.c.b16 %v3166, %v3158
  %v3575 = vpack.c.b16 %v3167, %v3159
  %v3576 = vpack.c.b16 %v3176, %v3168
  %v3577 = vpack.c.b16 %v3177, %v3169
  %v3578 = vpack.c.b16 %v3178, %v3170
  %v3579 = vpack.c.b16 %v3179, %v3171
  %v3580 = vpack.c.b16 %v3180, %v3172
  %v3581 = vpack.c.b16 %v3181, %v3173
  %v3582 = vpack.c.b16 %v3182, %v3174
  %v3583 = vpack.c.b16 %v3183, %v3175
  %v3584 = vpack.c.b16 %v3192, %v3184
  %v3585 = vpack.c.b16 %v3193, %v3185
  %v3586 = vpack.c.b16 %v3194, %v3186
  %v3587 = vpack.c.b16 %v3195, %v3187
  %v3588 = vpack.c.b16 %v3196, %v3188
  %v3589 = vpack.c.b16 %v3197, %v3189
  %v3590 = vpack.c.b16 %v3198, %v3190
  %v3591 = vpack.c.b16 %v3199, %v3191
  %v3592 = vpack.c.b16 %v3208, %v3200
  %v3593 = vpack.c.b16 %v3209, %v3201
  %v3594 = vpack.c.b16 %v3210, %v3202
  %v3595 = vpack.c.b16 %v3211, %v3203
  %v3596 = vpack.c.b16 %v3212, %v3204
  %v3597 = vpack.c.b16 %v3213, %v3205
  %v3598 = vpack.c.b16 %v3214, %v3206
  %v3599 = vpack.c.b16 %v3215, %v3207
  %v3600 = vpack.c.b16 %v3224, %v3216
  %v3601 = vpack.c.b16 %v3225, %v3217
  %v3602 = vpack.c.b16 %v3226, %v3218
  %v3603 = vpack.c.b16 %v3227, %v3219
  %v3604 = vpack.c.b16 %v3228, %v3220
  %v3605 = vpack.c.b16 %v3229, %v3221
  %v3606 = vpack.c.b16 %v3230, %v3222
  %v3607 = vpack.c.b16 %v3231, %v3223
  %v3608 = vpack.c.b16 %v3240, %v3232
  %v3609 = vpack.c.b16 %v3241, %v3233
  %v3610 = vpack.c.b16 %v3242, %v3234
  %v3611 = vpack.c.b16 %v3243, %v3235
  %v3612 = vpack.c.b16 %v3244, %v3236
  %v3613 = vpack.c.b16 %v3245, %v3237
  %v3614 = vpack.c.b16 %v3246, %v3238
  %v3615 = vpack.c.b16 %v3247, %v3239
  %v3616 = vpack.c.b16 %v3256, %v3248
  %v3617 = vpack.c.b16 %v3257, %v3249
  %v3618 = vpack.c.b16 %v3258, %v3250
  %v3619 = vpack.c.b16 %v3259, %v3251
  %v3620 = vpack.c.b16 %v3260, %v3252
  %v3621 = vpack.c.b16 %v3261, %v3253
  %v3622 = vpack.c.b16 %v3262, %v3254
  %v3623 = vpack.c.b16 %v3263, %v3255
  %v3624 = vpack.c.b16 %v3272, %v3264
  %v3625 = vpack.c.b16 %v3273, %v3265
  %v3626 = vpack.c.b16 %v3274, %v3266
  %v3627 = vpack.c.b16 %v3275, %v3267
  %v3628 = vpack.c.b16 %v3276, %v3268
  %v3629 = vpack.c.b16 %v3277, %v3269
  %v3630 = vpack.c.b16 %v3278, %v3270
  %v3631 = vpack.c.b16 %v3279, %v3271
  %v3632 = vpack.c.b16 %v3288, %v3280
  %v3633 = vpack.c.b16 %v3289, %v3281
  %v3634 = vpack.c.b16 %v3290, %v3282
  %v3635 = vpack.c.b16 %v3291, %v3283
  %v3636 = vpack.c.b16 %v3292, %v3284
  %v3637 = vpack.c.b16 %v3293, %v3285
  %v3638 = vpack.c.b16 %v3294, %v3286
  %v3639 = vpack.c.b16 %v3295, %v3287
  %v3640 = vpack.c.b16 %v3304, %v3296
  %v3641 = vpack.c.b16 %v3305, %v3297
  %v3642 = vpack.c.b16 %v3306, %v3298
  %v3643 = vpack.c.b16 %v3307, %v3299
  %v3644 = vpack.c.b16 %v3308, %v3300
  %v3645 = vpack.c.b16 %v3309, %v3301
  %v3646 = vpack.c.b16 %v3310, %v3302
  %v3647 = vpack.c.b16 %v3311, %v3303
  %v3648 = vpack.c.b16 %v3320, %v3312
  %v3649 = vpack.c.b16 %v3321, %v3313
  %v3650 = vpack.c.b16 %v3322, %v3314
  %v3651 = vpack.c.b16 %v3323, %v3315
  %v3652 = vpack.c.b16 %v3324, %v3316
  %v3653 = vpack.c.b16 %v3325, %v3317
  %v3654 = vpack.c.b16 %v3326, %v3318
  %v3655 = vpack.c.b16 %v3327, %v3319
  %v3656 = vpack.c.b16 %v3336, %v3328
  %v3657 = vpack.c.b16 %v3337, %v3329
  %v3658 = vpack.c.b16 %v3338, %v3330
  %v3659 = vpack.c.b16 %v3339, %v3331
  %v3660 = vpack.c.b16 %v3340, %v3332
  %v3661 = vpack.c.b16 %v3341, %v3333
  %v3662 = vpack.c.b16 %v3342, %v3334
  %v3663 = vpack.c.b16 %v3343, %v3335
  %v3664 = vpack.c.b16 %v3352, %v3344
  %v3665 = vpack.c.b16 %v3353, %v3345
  %v3666 = vpack.c.b16 %v3354, %v3346
  %v3667 = vpack.c.b16 %v3355, %v3347
  %v3668 = vpack.c.b16 %v3356, %v3348
  %v3669 = vpack.c.b16 %v3357, %v3349
  %v3670 = vpack.c.b16 %v3358, %v3350
  %v3671 = vpack.c.b16 %v3359, %v3351
  %v3672 = vpack.c.b16 %v3368, %v3360
  %v3673 = vpack.c.b16 %v3369, %v3361
  %v3674 = vpack.c.b16 %v3370, %v3362
  %v3675 = vpack.c.b16 %v3371, %v3363
  %v3676 = vpack.c.b16 %v3372, %v3364
  %v3677 = vpack.c.b16 %v3373, %v3365
  %v3678 = vpack.c.b16 %v3374, %v3366
  %v3679 = vpack.c.b16 %v3375, %v3367
  %v3680 = vpack.c.b16 %v3384, %v3376
  %v3681 = vpack.c.b16 %v3385, %v3377
  %v3682 = vpack.c.b16 %v3386, %v3378
  %v3683 = vpack.c.b16 %v3387, %v3379
  %v3684 = vpack.c.b16 %v3388, %v3380
  %v3685 = vpack.c.b16 %v3389, %v3381
  %v3686 = vpack.c.b16 %v3390, %v3382
  %v3687 = vpack.c.b16 %v3391, %v3383
  %v3688 = vpack.c.b16 %v3400, %v3392
  %v3689 = vpack.c.b16 %v3401, %v3393
  %v3690 = vpack.c.b16 %v3402, %v3394
  %v3691 = vpack.c.b16 %v3403, %v3395
  %v3692 = vpack.c.b16 %v3404, %v3396
  %v3693 = vpack.c.b16 %v3405, %v3397
  %v3694 = vpack.c.b16 %v3406, %v3398
  %v3695 = vpack.c.b16 %v3407, %v3399
  %v3696 = vpack.c.b16 %v3416, %v3408
  %v3697 = vpack.c.b16 %v3417, %v3409
  %v3698 = vpack.c.b16 %v3418, %v3410
  %v3699 = vpack.c.b16 %v3419, %v3411
  %v3700 = vpack.c.b16 %v3420, %v3412
  %v3701 = vpack.c.b16 %v3421, %v3413
  %v3702 = vpack.c.b16 %v3422, %v3414
  %v3703 = vpack.c.b16 %v3423, %v3415
  %v3704 = vpack.c.b16 %v3432, %v3424
  %v3705 = vpack.c.b16 %v3433, %v3425
  %v3706 = vpack.c.b16 %v3434, %v3426
  %v3707 = vpack.c.b16 %v3435, %v3427
  %v3708 = vpack.c.b16 %v3436, %v3428
  %v3709 = vpack.c.b16 %v3437, %v3429
  %v3710 = vpack.c.b16 %v3438, %v3430
  %v3711 = vpack.c.b16 %v3439, %v3431
  %v3712 = vpack.c.b16 %v3448, %v3440
  %v3713 = vpack.c.b16 %v3449, %v3441
  %v3714 = vpack.c.b16 %v3450, %v3442
  %v3715 = vpack.c.b16 %v3451, %v3443
  %v3716 = vpack.c.b16 %v3452, %v3444
  %v3717 = vpack.c.b16 %v3453, %v3445
  %v3718 = vpack.c.b16 %v3454, %v3446
  %v3719 = vpack.c.b16 %v3455, %v3447
  %v3720 = vpack.c.b16 %v3464, %v3456
  %v3721 = vpack.c.b16 %v3465, %v3457
  %v3722 = vpack.c.b16 %v3466, %v3458
  %v3723 = vpack.c.b16 %v3467, %v3459
  %v3724 = vpack.c.b16 %v3468, %v3460
  %v3725 = vpack.c.b16 %v3469, %v3461
  %v3726 = vpack.c.b16 %v3470, %v3462
  %v3727 = vpack.c.b16 %v3471, %v3463
  %3984 = vmatprep.subr.bf16.mxu0 %v3529
  %3985 = vmatpush1.bf16.msra.mxu0 %v3528
  %3986 = vmatprep.subr.bf16.mxu0 %v3521
  %3987 = vmatpush1.bf16.msra.mxu0 %v3520
  %3988 = vmatprep.subr.bf16.mxu0 %v3513
  %3989 = vmatpush1.bf16.msra.mxu0 %v3512
  %3990 = vmatprep.subr.bf16.mxu0 %v3505
  %3991 = vmatpush1.bf16.msra.mxu0 %v3504
  %3992 = vmatprep.subr.bf16.mxu0 %v3497
  %3993 = vmatpush1.bf16.msra.mxu0 %v3496
  %3994 = vmatprep.subr.bf16.mxu0 %v3489
  %3995 = vmatpush1.bf16.msra.mxu0 %v3488
  %3996 = vmatprep.subr.bf16.mxu0 %v3481
  %3997 = vmatpush1.bf16.msra.mxu0 %v3480
  %3998 = vmatprep.subr.bf16.mxu0 %v3473
  %3999 = vmatpush1.bf16.msra.mxu0 %v3472
  %4000 = vmatprep.subr.bf16.mxu0 %v3593
  %4001 = vmatpush2.bf16.msra.mxu0 %v3592
  %4002 = vmatprep.subr.bf16.mxu0 %v3585
  %4003 = vmatpush2.bf16.msra.mxu0 %v3584
  %4004 = vmatprep.subr.bf16.mxu0 %v3577
  %4005 = vmatpush2.bf16.msra.mxu0 %v3576
  %4006 = vmatprep.subr.bf16.mxu0 %v3569
  %4007 = vmatpush2.bf16.msra.mxu0 %v3568
  %4008 = vmatprep.subr.bf16.mxu0 %v3561
  %4009 = vmatpush2.bf16.msra.mxu0 %v3560
  %4010 = vmatprep.subr.bf16.mxu0 %v3553
  %4011 = vmatpush2.bf16.msra.mxu0 %v3552
  %4012 = vmatprep.subr.bf16.mxu0 %v3545
  %4013 = vmatpush2.bf16.msra.mxu0 %v3544
  %4014 = vmatprep.subr.bf16.mxu0 %v3537
  %4015 = vmatpush2.bf16.msra.mxu0 %v3536
  %4016 = vmatprep.mubr.bf16.mxu0 %v51
  %4017 = vmatmul.mubr.bf16.gmra.mxu0 %v50
  %v4018 = vpop.f32.mrf.mxu0
  %v4019 = vadd.f32 %v2667, %v4018
  %v4020 = vpop.f32.mrf.mxu0
  %v4021 = vadd.f32 %v2671, %v4020
  %v4022 = vpop.f32.mrf.mxu0
  %v4023 = vpop.f32.mrf.mxu0
  %4024 = vdwg.mxu0
  %4025 = vmatprep.subr.bf16.mxu0 %v3657
  %4026 = vmatpush1.bf16.msra.mxu0 %v3656
  %4027 = vmatprep.subr.bf16.mxu0 %v3649
  %4028 = vmatpush1.bf16.msra.mxu0 %v3648
  %4029 = vmatprep.subr.bf16.mxu0 %v3641
  %4030 = vmatpush1.bf16.msra.mxu0 %v3640
  %4031 = vmatprep.subr.bf16.mxu0 %v3633
  %4032 = vmatpush1.bf16.msra.mxu0 %v3632
  %4033 = vmatprep.subr.bf16.mxu0 %v3625
  %4034 = vmatpush1.bf16.msra.mxu0 %v3624
  %4035 = vmatprep.subr.bf16.mxu0 %v3617
  %4036 = vmatpush1.bf16.msra.mxu0 %v3616
  %4037 = vmatprep.subr.bf16.mxu0 %v3609
  %4038 = vmatpush1.bf16.msra.mxu0 %v3608
  %4039 = vmatprep.subr.bf16.mxu0 %v3601
  %4040 = vmatpush1.bf16.msra.mxu0 %v3600
  %4041 = vmatprep.subr.bf16.mxu0 %v3721
  %4042 = vmatpush2.bf16.msra.mxu0 %v3720
  %4043 = vmatprep.subr.bf16.mxu0 %v3713
  %4044 = vmatpush2.bf16.msra.mxu0 %v3712
  %4045 = vmatprep.subr.bf16.mxu0 %v3705
  %4046 = vmatpush2.bf16.msra.mxu0 %v3704
  %4047 = vmatprep.subr.bf16.mxu0 %v3697
  %4048 = vmatpush2.bf16.msra.mxu0 %v3696
  %4049 = vmatprep.subr.bf16.mxu0 %v3689
  %4050 = vmatpush2.bf16.msra.mxu0 %v3688
  %4051 = vmatprep.subr.bf16.mxu0 %v3681
  %4052 = vmatpush2.bf16.msra.mxu0 %v3680
  %4053 = vmatprep.subr.bf16.mxu0 %v3673
  %4054 = vmatpush2.bf16.msra.mxu0 %v3672
  %4055 = vmatprep.subr.bf16.mxu0 %v3665
  %4056 = vmatpush2.bf16.msra.mxu0 %v3664
  %4057 = vmatprep.mubr.bf16.mxu0 %v53
  %4058 = vmatmul.mubr.bf16.gmra.mxu0 %v52
  %v4059 = vpop.f32.mrf.mxu0
  %v4060 = vadd.f32 %v4019, %v4059
  %v4061 = vpop.f32.mrf.mxu0
  %v4062 = vadd.f32 %v4021, %v4061
  %v4063 = vpop.f32.mrf.mxu0
  %v4064 = vpop.f32.mrf.mxu0
  %4065 = vdwg.mxu0
  %4066 = vmatprep.subr.bf16.mxu0 %v3531
  %4067 = vmatpush1.bf16.msra.mxu0 %v3530
  %4068 = vmatprep.subr.bf16.mxu0 %v3523
  %4069 = vmatpush1.bf16.msra.mxu0 %v3522
  %4070 = vmatprep.subr.bf16.mxu0 %v3515
  %4071 = vmatpush1.bf16.msra.mxu0 %v3514
  %4072 = vmatprep.subr.bf16.mxu0 %v3507
  %4073 = vmatpush1.bf16.msra.mxu0 %v3506
  %4074 = vmatprep.subr.bf16.mxu0 %v3499
  %4075 = vmatpush1.bf16.msra.mxu0 %v3498
  %4076 = vmatprep.subr.bf16.mxu0 %v3491
  %4077 = vmatpush1.bf16.msra.mxu0 %v3490
  %4078 = vmatprep.subr.bf16.mxu0 %v3483
  %4079 = vmatpush1.bf16.msra.mxu0 %v3482
  %4080 = vmatprep.subr.bf16.mxu0 %v3475
  %4081 = vmatpush1.bf16.msra.mxu0 %v3474
  %4082 = vmatprep.subr.bf16.mxu0 %v3595
  %4083 = vmatpush2.bf16.msra.mxu0 %v3594
  %4084 = vmatprep.subr.bf16.mxu0 %v3587
  %4085 = vmatpush2.bf16.msra.mxu0 %v3586
  %4086 = vmatprep.subr.bf16.mxu0 %v3579
  %4087 = vmatpush2.bf16.msra.mxu0 %v3578
  %4088 = vmatprep.subr.bf16.mxu0 %v3571
  %4089 = vmatpush2.bf16.msra.mxu0 %v3570
  %4090 = vmatprep.subr.bf16.mxu0 %v3563
  %4091 = vmatpush2.bf16.msra.mxu0 %v3562
  %4092 = vmatprep.subr.bf16.mxu0 %v3555
  %4093 = vmatpush2.bf16.msra.mxu0 %v3554
  %4094 = vmatprep.subr.bf16.mxu0 %v3547
  %4095 = vmatpush2.bf16.msra.mxu0 %v3546
  %4096 = vmatprep.subr.bf16.mxu0 %v3539
  %4097 = vmatpush2.bf16.msra.mxu0 %v3538
  %4098 = vmatprep.mubr.bf16.mxu0 %v51
  %4099 = vmatmul.mubr.bf16.gmra.mxu0 %v50
  %v4100 = vpop.f32.mrf.mxu0
  %v4101 = vadd.f32 %v2675, %v4100
  %v4102 = vpop.f32.mrf.mxu0
  %v4103 = vadd.f32 %v2679, %v4102
  %v4104 = vpop.f32.mrf.mxu0
  %v4105 = vpop.f32.mrf.mxu0
  %4106 = vdwg.mxu0
  %4107 = vmatprep.subr.bf16.mxu0 %v3659
  %4108 = vmatpush1.bf16.msra.mxu0 %v3658
  %4109 = vmatprep.subr.bf16.mxu0 %v3651
  %4110 = vmatpush1.bf16.msra.mxu0 %v3650
  %4111 = vmatprep.subr.bf16.mxu0 %v3643
  %4112 = vmatpush1.bf16.msra.mxu0 %v3642
  %4113 = vmatprep.subr.bf16.mxu0 %v3635
  %4114 = vmatpush1.bf16.msra.mxu0 %v3634
  %4115 = vmatprep.subr.bf16.mxu0 %v3627
  %4116 = vmatpush1.bf16.msra.mxu0 %v3626
  %4117 = vmatprep.subr.bf16.mxu0 %v3619
  %4118 = vmatpush1.bf16.msra.mxu0 %v3618
  %4119 = vmatprep.subr.bf16.mxu0 %v3611
  %4120 = vmatpush1.bf16.msra.mxu0 %v3610
  %4121 = vmatprep.subr.bf16.mxu0 %v3603
  %4122 = vmatpush1.bf16.msra.mxu0 %v3602
  %4123 = vmatprep.subr.bf16.mxu0 %v3723
  %4124 = vmatpush2.bf16.msra.mxu0 %v3722
  %4125 = vmatprep.subr.bf16.mxu0 %v3715
  %4126 = vmatpush2.bf16.msra.mxu0 %v3714
  %4127 = vmatprep.subr.bf16.mxu0 %v3707
  %4128 = vmatpush2.bf16.msra.mxu0 %v3706
  %4129 = vmatprep.subr.bf16.mxu0 %v3699
  %4130 = vmatpush2.bf16.msra.mxu0 %v3698
  %4131 = vmatprep.subr.bf16.mxu0 %v3691
  %4132 = vmatpush2.bf16.msra.mxu0 %v3690
  %4133 = vmatprep.subr.bf16.mxu0 %v3683
  %4134 = vmatpush2.bf16.msra.mxu0 %v3682
  %4135 = vmatprep.subr.bf16.mxu0 %v3675
  %4136 = vmatpush2.bf16.msra.mxu0 %v3674
  %4137 = vmatprep.subr.bf16.mxu0 %v3667
  %4138 = vmatpush2.bf16.msra.mxu0 %v3666
  %4139 = vmatprep.mubr.bf16.mxu0 %v53
  %4140 = vmatmul.mubr.bf16.gmra.mxu0 %v52
  %v4141 = vpop.f32.mrf.mxu0
  %v4142 = vadd.f32 %v4101, %v4141
  %v4143 = vpop.f32.mrf.mxu0
  %v4144 = vadd.f32 %v4103, %v4143
  %v4145 = vpop.f32.mrf.mxu0
  %v4146 = vpop.f32.mrf.mxu0
  %4147 = vdwg.mxu0
  %4148 = vmatprep.subr.bf16.mxu0 %v3533
  %4149 = vmatpush1.bf16.msra.mxu0 %v3532
  %4150 = vmatprep.subr.bf16.mxu0 %v3525
  %4151 = vmatpush1.bf16.msra.mxu0 %v3524
  %4152 = vmatprep.subr.bf16.mxu0 %v3517
  %4153 = vmatpush1.bf16.msra.mxu0 %v3516
  %4154 = vmatprep.subr.bf16.mxu0 %v3509
  %4155 = vmatpush1.bf16.msra.mxu0 %v3508
  %4156 = vmatprep.subr.bf16.mxu0 %v3501
  %4157 = vmatpush1.bf16.msra.mxu0 %v3500
  %4158 = vmatprep.subr.bf16.mxu0 %v3493
  %4159 = vmatpush1.bf16.msra.mxu0 %v3492
  %4160 = vmatprep.subr.bf16.mxu0 %v3485
  %4161 = vmatpush1.bf16.msra.mxu0 %v3484
  %4162 = vmatprep.subr.bf16.mxu0 %v3477
  %4163 = vmatpush1.bf16.msra.mxu0 %v3476
  %4164 = vmatprep.subr.bf16.mxu0 %v3597
  %4165 = vmatpush2.bf16.msra.mxu0 %v3596
  %4166 = vmatprep.subr.bf16.mxu0 %v3589
  %4167 = vmatpush2.bf16.msra.mxu0 %v3588
  %4168 = vmatprep.subr.bf16.mxu0 %v3581
  %4169 = vmatpush2.bf16.msra.mxu0 %v3580
  %4170 = vmatprep.subr.bf16.mxu0 %v3573
  %4171 = vmatpush2.bf16.msra.mxu0 %v3572
  %4172 = vmatprep.subr.bf16.mxu0 %v3565
  %4173 = vmatpush2.bf16.msra.mxu0 %v3564
  %4174 = vmatprep.subr.bf16.mxu0 %v3557
  %4175 = vmatpush2.bf16.msra.mxu0 %v3556
  %4176 = vmatprep.subr.bf16.mxu0 %v3549
  %4177 = vmatpush2.bf16.msra.mxu0 %v3548
  %4178 = vmatprep.subr.bf16.mxu0 %v3541
  %4179 = vmatpush2.bf16.msra.mxu0 %v3540
  %4180 = vmatprep.mubr.bf16.mxu0 %v51
  %4181 = vmatmul.mubr.bf16.gmra.mxu0 %v50
  %v4182 = vpop.f32.mrf.mxu0
  %v4183 = vadd.f32 %v2683, %v4182
  %v4184 = vpop.f32.mrf.mxu0
  %v4185 = vadd.f32 %v2687, %v4184
  %v4186 = vpop.f32.mrf.mxu0
  %v4187 = vpop.f32.mrf.mxu0
  %4188 = vdwg.mxu0
  %4189 = vmatprep.subr.bf16.mxu0 %v3661
  %4190 = vmatpush1.bf16.msra.mxu0 %v3660
  %4191 = vmatprep.subr.bf16.mxu0 %v3653
  %4192 = vmatpush1.bf16.msra.mxu0 %v3652
  %4193 = vmatprep.subr.bf16.mxu0 %v3645
  %4194 = vmatpush1.bf16.msra.mxu0 %v3644
  %4195 = vmatprep.subr.bf16.mxu0 %v3637
  %4196 = vmatpush1.bf16.msra.mxu0 %v3636
  %4197 = vmatprep.subr.bf16.mxu0 %v3629
  %4198 = vmatpush1.bf16.msra.mxu0 %v3628
  %4199 = vmatprep.subr.bf16.mxu0 %v3621
  %4200 = vmatpush1.bf16.msra.mxu0 %v3620
  %4201 = vmatprep.subr.bf16.mxu0 %v3613
  %4202 = vmatpush1.bf16.msra.mxu0 %v3612
  %4203 = vmatprep.subr.bf16.mxu0 %v3605
  %4204 = vmatpush1.bf16.msra.mxu0 %v3604
  %4205 = vmatprep.subr.bf16.mxu0 %v3725
  %4206 = vmatpush2.bf16.msra.mxu0 %v3724
  %4207 = vmatprep.subr.bf16.mxu0 %v3717
  %4208 = vmatpush2.bf16.msra.mxu0 %v3716
  %4209 = vmatprep.subr.bf16.mxu0 %v3709
  %4210 = vmatpush2.bf16.msra.mxu0 %v3708
  %4211 = vmatprep.subr.bf16.mxu0 %v3701
  %4212 = vmatpush2.bf16.msra.mxu0 %v3700
  %4213 = vmatprep.subr.bf16.mxu0 %v3693
  %4214 = vmatpush2.bf16.msra.mxu0 %v3692
  %4215 = vmatprep.subr.bf16.mxu0 %v3685
  %4216 = vmatpush2.bf16.msra.mxu0 %v3684
  %4217 = vmatprep.subr.bf16.mxu0 %v3677
  %4218 = vmatpush2.bf16.msra.mxu0 %v3676
  %4219 = vmatprep.subr.bf16.mxu0 %v3669
  %4220 = vmatpush2.bf16.msra.mxu0 %v3668
  %4221 = vmatprep.mubr.bf16.mxu0 %v53
  %4222 = vmatmul.mubr.bf16.gmra.mxu0 %v52
  %v4223 = vpop.f32.mrf.mxu0
  %v4224 = vadd.f32 %v4183, %v4223
  %v4225 = vpop.f32.mrf.mxu0
  %v4226 = vadd.f32 %v4185, %v4225
  %v4227 = vpop.f32.mrf.mxu0
  %v4228 = vpop.f32.mrf.mxu0
  %4229 = vdwg.mxu0
  %4230 = vmatprep.subr.bf16.mxu0 %v3535
  %4231 = vmatpush1.bf16.msra.mxu0 %v3534
  %4232 = vmatprep.subr.bf16.mxu0 %v3527
  %4233 = vmatpush1.bf16.msra.mxu0 %v3526
  %4234 = vmatprep.subr.bf16.mxu0 %v3519
  %4235 = vmatpush1.bf16.msra.mxu0 %v3518
  %4236 = vmatprep.subr.bf16.mxu0 %v3511
  %4237 = vmatpush1.bf16.msra.mxu0 %v3510
  %4238 = vmatprep.subr.bf16.mxu0 %v3503
  %4239 = vmatpush1.bf16.msra.mxu0 %v3502
  %4240 = vmatprep.subr.bf16.mxu0 %v3495
  %4241 = vmatpush1.bf16.msra.mxu0 %v3494
  %4242 = vmatprep.subr.bf16.mxu0 %v3487
  %4243 = vmatpush1.bf16.msra.mxu0 %v3486
  %4244 = vmatprep.subr.bf16.mxu0 %v3479
  %4245 = vmatpush1.bf16.msra.mxu0 %v3478
  %4246 = vmatprep.subr.bf16.mxu0 %v3599
  %4247 = vmatpush2.bf16.msra.mxu0 %v3598
  %4248 = vmatprep.subr.bf16.mxu0 %v3591
  %4249 = vmatpush2.bf16.msra.mxu0 %v3590
  %4250 = vmatprep.subr.bf16.mxu0 %v3583
  %4251 = vmatpush2.bf16.msra.mxu0 %v3582
  %4252 = vmatprep.subr.bf16.mxu0 %v3575
  %4253 = vmatpush2.bf16.msra.mxu0 %v3574
  %4254 = vmatprep.subr.bf16.mxu0 %v3567
  %4255 = vmatpush2.bf16.msra.mxu0 %v3566
  %4256 = vmatprep.subr.bf16.mxu0 %v3559
  %4257 = vmatpush2.bf16.msra.mxu0 %v3558
  %4258 = vmatprep.subr.bf16.mxu0 %v3551
  %4259 = vmatpush2.bf16.msra.mxu0 %v3550
  %4260 = vmatprep.subr.bf16.mxu0 %v3543
  %4261 = vmatpush2.bf16.msra.mxu0 %v3542
  %4262 = vmatprep.mubr.bf16.mxu0 %v51
  %4263 = vmatmul.mubr.bf16.gmra.mxu0 %v50
  %v4264 = vpop.f32.mrf.mxu0
  %v4265 = vadd.f32 %v2691, %v4264
  %v4266 = vpop.f32.mrf.mxu0
  %v4267 = vadd.f32 %v2695, %v4266
  %v4268 = vpop.f32.mrf.mxu0
  %v4269 = vpop.f32.mrf.mxu0
  %4270 = vdwg.mxu0
  %4271 = vmatprep.subr.bf16.mxu0 %v3663
  %4272 = vmatpush1.bf16.msra.mxu0 %v3662
  %4273 = vmatprep.subr.bf16.mxu0 %v3655
  %4274 = vmatpush1.bf16.msra.mxu0 %v3654
  %4275 = vmatprep.subr.bf16.mxu0 %v3647
  %4276 = vmatpush1.bf16.msra.mxu0 %v3646
  %4277 = vmatprep.subr.bf16.mxu0 %v3639
  %4278 = vmatpush1.bf16.msra.mxu0 %v3638
  %4279 = vmatprep.subr.bf16.mxu0 %v3631
  %4280 = vmatpush1.bf16.msra.mxu0 %v3630
  %4281 = vmatprep.subr.bf16.mxu0 %v3623
  %4282 = vmatpush1.bf16.msra.mxu0 %v3622
  %4283 = vmatprep.subr.bf16.mxu0 %v3615
  %4284 = vmatpush1.bf16.msra.mxu0 %v3614
  %4285 = vmatprep.subr.bf16.mxu0 %v3607
  %4286 = vmatpush1.bf16.msra.mxu0 %v3606
  %4287 = vmatprep.subr.bf16.mxu0 %v3727
  %4288 = vmatpush2.bf16.msra.mxu0 %v3726
  %4289 = vmatprep.subr.bf16.mxu0 %v3719
  %4290 = vmatpush2.bf16.msra.mxu0 %v3718
  %4291 = vmatprep.subr.bf16.mxu0 %v3711
  %4292 = vmatpush2.bf16.msra.mxu0 %v3710
  %4293 = vmatprep.subr.bf16.mxu0 %v3703
  %4294 = vmatpush2.bf16.msra.mxu0 %v3702
  %4295 = vmatprep.subr.bf16.mxu0 %v3695
  %4296 = vmatpush2.bf16.msra.mxu0 %v3694
  %4297 = vmatprep.subr.bf16.mxu0 %v3687
  %4298 = vmatpush2.bf16.msra.mxu0 %v3686
  %4299 = vmatprep.subr.bf16.mxu0 %v3679
  %4300 = vmatpush2.bf16.msra.mxu0 %v3678
  %4301 = vmatprep.subr.bf16.mxu0 %v3671
  %4302 = vmatpush2.bf16.msra.mxu0 %v3670
  %4303 = vmatprep.mubr.bf16.mxu0 %v53
  %4304 = vmatmul.mubr.bf16.gmra.mxu0 %v52
  %v4305 = vpop.f32.mrf.mxu0
  %v4306 = vadd.f32 %v4265, %v4305
  %v4307 = vpop.f32.mrf.mxu0
  %v4308 = vadd.f32 %v4267, %v4307
  %v4309 = vpop.f32.mrf.mxu0
  %v4310 = vpop.f32.mrf.mxu0
  %4311 = vdwg.mxu0
  %v4312 = vmul.f32 %v4060, 0.5
  %v4313 = vmul.f32 %v4062, 0.5
  %v4314 = vtanh.pop %v4312
  %v4315 = vtanh.pop %v4313
  %v4316 = vmul.f32 %v4314, 0.5
  %v4317 = vmul.f32 %v4315, 0.5
  %v4318 = vadd.f32 %v4316, 0.5
  %v4319 = vadd.f32 %v4317, 0.5
  %v4320 = vmul.f32 %v4142, 0.5
  %v4321 = vmul.f32 %v4144, 0.5
  %v4322 = vtanh.pop %v4320
  %v4323 = vtanh.pop %v4321
  %v4324 = vmul.f32 %v4322, 0.5
  %v4325 = vmul.f32 %v4323, 0.5
  %v4326 = vadd.f32 %v4324, 0.5
  %v4327 = vadd.f32 %v4325, 0.5
  %v4328 = vtanh.pop %v4224
  %v4329 = vtanh.pop %v4226
  %v4330 = vmul.f32 %v4306, 0.5
  %v4331 = vmul.f32 %v4308, 0.5
  %v4332 = vtanh.pop %v4330
  %v4333 = vtanh.pop %v4331
  %v4334 = vmul.f32 %v4332, 0.5
  %v4335 = vmul.f32 %v4333, 0.5
  %v4336 = vadd.f32 %v4334, 0.5
  %v4337 = vadd.f32 %v4335, 0.5
  %v4338 = vmul.f32 %v4326, %v58
  %v4339 = vmul.f32 %v4327, %v59
  %v4340 = vmul.f32 %v4318, %v4328
  %v4341 = vmul.f32 %v4319, %v4329
  %v4342 = vadd.f32 %v4338, %v4340
  %v4343 = vadd.f32 %v4339, %v4341
  %v4344 = vtanh.pop %v4342
  %v4345 = vtanh.pop %v4343
  %v4346 = vmul.f32 %v4336, %v4344
  %v4347 = vmul.f32 %v4337, %v4345
  %4348 = vst [vmem:[%s13 + $0x10] sm:$0xff] %v4342
  %4349 = vst [vmem:[%s13 + $0x18] sm:$0xff] %v4343
  %4350 = vst [vmem:[%s12 + $0x10] sm:$0xff] %v4346
  %4351 = vst [vmem:[%s12 + $0x18] sm:$0xff] %v4347
  %v4352 = vld [vmem:[%s10] sm:$0xff]
  %v4353 = vld [vmem:[%s10 + $0x8] sm:$0xff]
  %v4354 = vld [vmem:[%s10 + $0x10] sm:$0xff]
  %v4355 = vld [vmem:[%s10 + $0x18] sm:$0xff]
  %v4356 = vld [vmem:[%s10 + $0x20] sm:$0xff]
  %v4357 = vld [vmem:[%s10 + $0x28] sm:$0xff]
  %v4358 = vld [vmem:[%s10 + $0x30] sm:$0xff]
  %v4359 = vld [vmem:[%s10 + $0x38] sm:$0xff]
  %v4360 = vld [vmem:[%s10 + $0x40] sm:$0xff]
  %v4361 = vld [vmem:[%s10 + $0x48] sm:$0xff]
  %v4362 = vld [vmem:[%s10 + $0x50] sm:$0xff]
  %v4363 = vld [vmem:[%s10 + $0x58] sm:$0xff]
  %v4364 = vld [vmem:[%s10 + $0x60] sm:$0xff]
  %v4365 = vld [vmem:[%s10 + $0x68] sm:$0xff]
  %v4366 = vld [vmem:[%s10 + $0x70] sm:$0xff]
  %v4367 = vld [vmem:[%s10 + $0x78] sm:$0xff]
  %v4368 = vld [vmem:[%s10 + $0x80] sm:$0xff]
  %v4369 = vld [vmem:[%s10 + $0x88] sm:$0xff]
  %v4370 = vld [vmem:[%s10 + $0x90] sm:$0xff]
  %v4371 = vld [vmem:[%s10 + $0x98] sm:$0xff]
  %v4372 = vld [vmem:[%s10 + $0xa0] sm:$0xff]
  %v4373 = vld [vmem:[%s10 + $0xa8] sm:$0xff]
  %v4374 = vld [vmem:[%s10 + $0xb0] sm:$0xff]
  %v4375 = vld [vmem:[%s10 + $0xb8] sm:$0xff]
  %v4376 = vld [vmem:[%s10 + $0xc0] sm:$0xff]
  %v4377 = vld [vmem:[%s10 + $0xc8] sm:$0xff]
  %v4378 = vld [vmem:[%s10 + $0xd0] sm:$0xff]
  %v4379 = vld [vmem:[%s10 + $0xd8] sm:$0xff]
  %v4380 = vld [vmem:[%s10 + $0xe0] sm:$0xff]
  %v4381 = vld [vmem:[%s10 + $0xe8] sm:$0xff]
  %v4382 = vld [vmem:[%s10 + $0xf0] sm:$0xff]
  %v4383 = vld [vmem:[%s10 + $0xf8] sm:$0xff]
  %v4384 = vld [vmem:[%s10 + $0x100] sm:$0xff]
  %v4385 = vld [vmem:[%s10 + $0x108] sm:$0xff]
  %v4386 = vld [vmem:[%s10 + $0x110] sm:$0xff]
  %v4387 = vld [vmem:[%s10 + $0x118] sm:$0xff]
  %v4388 = vld [vmem:[%s10 + $0x120] sm:$0xff]
  %v4389 = vld [vmem:[%s10 + $0x128] sm:$0xff]
  %v4390 = vld [vmem:[%s10 + $0x130] sm:$0xff]
  %v4391 = vld [vmem:[%s10 + $0x138] sm:$0xff]
  %v4392 = vld [vmem:[%s10 + $0x140] sm:$0xff]
  %v4393 = vld [vmem:[%s10 + $0x148] sm:$0xff]
  %v4394 = vld [vmem:[%s10 + $0x150] sm:$0xff]
  %v4395 = vld [vmem:[%s10 + $0x158] sm:$0xff]
  %v4396 = vld [vmem:[%s10 + $0x160] sm:$0xff]
  %v4397 = vld [vmem:[%s10 + $0x168] sm:$0xff]
  %v4398 = vld [vmem:[%s10 + $0x170] sm:$0xff]
  %v4399 = vld [vmem:[%s10 + $0x178] sm:$0xff]
  %v4400 = vld [vmem:[%s10 + $0x180] sm:$0xff]
  %v4401 = vld [vmem:[%s10 + $0x188] sm:$0xff]
  %v4402 = vld [vmem:[%s10 + $0x190] sm:$0xff]
  %v4403 = vld [vmem:[%s10 + $0x198] sm:$0xff]
  %v4404 = vld [vmem:[%s10 + $0x1a0] sm:$0xff]
  %v4405 = vld [vmem:[%s10 + $0x1a8] sm:$0xff]
  %v4406 = vld [vmem:[%s10 + $0x1b0] sm:$0xff]
  %v4407 = vld [vmem:[%s10 + $0x1b8] sm:$0xff]
  %v4408 = vld [vmem:[%s10 + $0x1c0] sm:$0xff]
  %v4409 = vld [vmem:[%s10 + $0x1c8] sm:$0xff]
  %v4410 = vld [vmem:[%s10 + $0x1d0] sm:$0xff]
  %v4411 = vld [vmem:[%s10 + $0x1d8] sm:$0xff]
  %v4412 = vld [vmem:[%s10 + $0x1e0] sm:$0xff]
  %v4413 = vld [vmem:[%s10 + $0x1e8] sm:$0xff]
  %v4414 = vld [vmem:[%s10 + $0x1f0] sm:$0xff]
  %v4415 = vld [vmem:[%s10 + $0x1f8] sm:$0xff]
  %v4416 = vld [vmem:[%s10 + $0x200] sm:$0xff]
  %v4417 = vld [vmem:[%s10 + $0x208] sm:$0xff]
  %v4418 = vld [vmem:[%s10 + $0x210] sm:$0xff]
  %v4419 = vld [vmem:[%s10 + $0x218] sm:$0xff]
  %v4420 = vld [vmem:[%s10 + $0x220] sm:$0xff]
  %v4421 = vld [vmem:[%s10 + $0x228] sm:$0xff]
  %v4422 = vld [vmem:[%s10 + $0x230] sm:$0xff]
  %v4423 = vld [vmem:[%s10 + $0x238] sm:$0xff]
  %v4424 = vld [vmem:[%s10 + $0x240] sm:$0xff]
  %v4425 = vld [vmem:[%s10 + $0x248] sm:$0xff]
  %v4426 = vld [vmem:[%s10 + $0x250] sm:$0xff]
  %v4427 = vld [vmem:[%s10 + $0x258] sm:$0xff]
  %v4428 = vld [vmem:[%s10 + $0x260] sm:$0xff]
  %v4429 = vld [vmem:[%s10 + $0x268] sm:$0xff]
  %v4430 = vld [vmem:[%s10 + $0x270] sm:$0xff]
  %v4431 = vld [vmem:[%s10 + $0x278] sm:$0xff]
  %v4432 = vld [vmem:[%s10 + $0x280] sm:$0xff]
  %v4433 = vld [vmem:[%s10 + $0x288] sm:$0xff]
  %v4434 = vld [vmem:[%s10 + $0x290] sm:$0xff]
  %v4435 = vld [vmem:[%s10 + $0x298] sm:$0xff]
  %v4436 = vld [vmem:[%s10 + $0x2a0] sm:$0xff]
  %v4437 = vld [vmem:[%s10 + $0x2a8] sm:$0xff]
  %v4438 = vld [vmem:[%s10 + $0x2b0] sm:$0xff]
  %v4439 = vld [vmem:[%s10 + $0x2b8] sm:$0xff]
  %v4440 = vld [vmem:[%s10 + $0x2c0] sm:$0xff]
  %v4441 = vld [vmem:[%s10 + $0x2c8] sm:$0xff]
  %v4442 = vld [vmem:[%s10 + $0x2d0] sm:$0xff]
  %v4443 = vld [vmem:[%s10 + $0x2d8] sm:$0xff]
  %v4444 = vld [vmem:[%s10 + $0x2e0] sm:$0xff]
  %v4445 = vld [vmem:[%s10 + $0x2e8] sm:$0xff]
  %v4446 = vld [vmem:[%s10 + $0x2f0] sm:$0xff]
  %v4447 = vld [vmem:[%s10 + $0x2f8] sm:$0xff]
  %v4448 = vld [vmem:[%s10 + $0x300] sm:$0xff]
  %v4449 = vld [vmem:[%s10 + $0x308] sm:$0xff]
  %v4450 = vld [vmem:[%s10 + $0x310] sm:$0xff]
  %v4451 = vld [vmem:[%s10 + $0x318] sm:$0xff]
  %v4452 = vld [vmem:[%s10 + $0x320] sm:$0xff]
  %v4453 = vld [vmem:[%s10 + $0x328] sm:$0xff]
  %v4454 = vld [vmem:[%s10 + $0x330] sm:$0xff]
  %v4455 = vld [vmem:[%s10 + $0x338] sm:$0xff]
  %v4456 = vld [vmem:[%s10 + $0x340] sm:$0xff]
  %v4457 = vld [vmem:[%s10 + $0x348] sm:$0xff]
  %v4458 = vld [vmem:[%s10 + $0x350] sm:$0xff]
  %v4459 = vld [vmem:[%s10 + $0x358] sm:$0xff]
  %v4460 = vld [vmem:[%s10 + $0x360] sm:$0xff]
  %v4461 = vld [vmem:[%s10 + $0x368] sm:$0xff]
  %v4462 = vld [vmem:[%s10 + $0x370] sm:$0xff]
  %v4463 = vld [vmem:[%s10 + $0x378] sm:$0xff]
  %v4464 = vld [vmem:[%s10 + $0x380] sm:$0xff]
  %v4465 = vld [vmem:[%s10 + $0x388] sm:$0xff]
  %v4466 = vld [vmem:[%s10 + $0x390] sm:$0xff]
  %v4467 = vld [vmem:[%s10 + $0x398] sm:$0xff]
  %v4468 = vld [vmem:[%s10 + $0x3a0] sm:$0xff]
  %v4469 = vld [vmem:[%s10 + $0x3a8] sm:$0xff]
  %v4470 = vld [vmem:[%s10 + $0x3b0] sm:$0xff]
  %v4471 = vld [vmem:[%s10 + $0x3b8] sm:$0xff]
  %v4472 = vld [vmem:[%s10 + $0x3c0] sm:$0xff]
  %v4473 = vld [vmem:[%s10 + $0x3c8] sm:$0xff]
  %v4474 = vld [vmem:[%s10 + $0x3d0] sm:$0xff]
  %v4475 = vld [vmem:[%s10 + $0x3d8] sm:$0xff]
  %v4476 = vld [vmem:[%s10 + $0x3e0] sm:$0xff]
  %v4477 = vld [vmem:[%s10 + $0x3e8] sm:$0xff]
  %v4478 = vld [vmem:[%s10 + $0x3f0] sm:$0xff]
  %v4479 = vld [vmem:[%s10 + $0x3f8] sm:$0xff]
  %v4480 = vld [vmem:[%s10 + $0x400] sm:$0xff]
  %v4481 = vld [vmem:[%s10 + $0x408] sm:$0xff]
  %v4482 = vld [vmem:[%s10 + $0x410] sm:$0xff]
  %v4483 = vld [vmem:[%s10 + $0x418] sm:$0xff]
  %v4484 = vld [vmem:[%s10 + $0x420] sm:$0xff]
  %v4485 = vld [vmem:[%s10 + $0x428] sm:$0xff]
  %v4486 = vld [vmem:[%s10 + $0x430] sm:$0xff]
  %v4487 = vld [vmem:[%s10 + $0x438] sm:$0xff]
  %v4488 = vld [vmem:[%s10 + $0x440] sm:$0xff]
  %v4489 = vld [vmem:[%s10 + $0x448] sm:$0xff]
  %v4490 = vld [vmem:[%s10 + $0x450] sm:$0xff]
  %v4491 = vld [vmem:[%s10 + $0x458] sm:$0xff]
  %v4492 = vld [vmem:[%s10 + $0x460] sm:$0xff]
  %v4493 = vld [vmem:[%s10 + $0x468] sm:$0xff]
  %v4494 = vld [vmem:[%s10 + $0x470] sm:$0xff]
  %v4495 = vld [vmem:[%s10 + $0x478] sm:$0xff]
  %v4496 = vld [vmem:[%s10 + $0x480] sm:$0xff]
  %v4497 = vld [vmem:[%s10 + $0x488] sm:$0xff]
  %v4498 = vld [vmem:[%s10 + $0x490] sm:$0xff]
  %v4499 = vld [vmem:[%s10 + $0x498] sm:$0xff]
  %v4500 = vld [vmem:[%s10 + $0x4a0] sm:$0xff]
  %v4501 = vld [vmem:[%s10 + $0x4a8] sm:$0xff]
  %v4502 = vld [vmem:[%s10 + $0x4b0] sm:$0xff]
  %v4503 = vld [vmem:[%s10 + $0x4b8] sm:$0xff]
  %v4504 = vld [vmem:[%s10 + $0x4c0] sm:$0xff]
  %v4505 = vld [vmem:[%s10 + $0x4c8] sm:$0xff]
  %v4506 = vld [vmem:[%s10 + $0x4d0] sm:$0xff]
  %v4507 = vld [vmem:[%s10 + $0x4d8] sm:$0xff]
  %v4508 = vld [vmem:[%s10 + $0x4e0] sm:$0xff]
  %v4509 = vld [vmem:[%s10 + $0x4e8] sm:$0xff]
  %v4510 = vld [vmem:[%s10 + $0x4f0] sm:$0xff]
  %v4511 = vld [vmem:[%s10 + $0x4f8] sm:$0xff]
  %v4512 = vld [vmem:[%s10 + $0x500] sm:$0xff]
  %v4513 = vld [vmem:[%s10 + $0x508] sm:$0xff]
  %v4514 = vld [vmem:[%s10 + $0x510] sm:$0xff]
  %v4515 = vld [vmem:[%s10 + $0x518] sm:$0xff]
  %v4516 = vld [vmem:[%s10 + $0x520] sm:$0xff]
  %v4517 = vld [vmem:[%s10 + $0x528] sm:$0xff]
  %v4518 = vld [vmem:[%s10 + $0x530] sm:$0xff]
  %v4519 = vld [vmem:[%s10 + $0x538] sm:$0xff]
  %v4520 = vld [vmem:[%s10 + $0x540] sm:$0xff]
  %v4521 = vld [vmem:[%s10 + $0x548] sm:$0xff]
  %v4522 = vld [vmem:[%s10 + $0x550] sm:$0xff]
  %v4523 = vld [vmem:[%s10 + $0x558] sm:$0xff]
  %v4524 = vld [vmem:[%s10 + $0x560] sm:$0xff]
  %v4525 = vld [vmem:[%s10 + $0x568] sm:$0xff]
  %v4526 = vld [vmem:[%s10 + $0x570] sm:$0xff]
  %v4527 = vld [vmem:[%s10 + $0x578] sm:$0xff]
  %v4528 = vld [vmem:[%s10 + $0x580] sm:$0xff]
  %v4529 = vld [vmem:[%s10 + $0x588] sm:$0xff]
  %v4530 = vld [vmem:[%s10 + $0x590] sm:$0xff]
  %v4531 = vld [vmem:[%s10 + $0x598] sm:$0xff]
  %v4532 = vld [vmem:[%s10 + $0x5a0] sm:$0xff]
  %v4533 = vld [vmem:[%s10 + $0x5a8] sm:$0xff]
  %v4534 = vld [vmem:[%s10 + $0x5b0] sm:$0xff]
  %v4535 = vld [vmem:[%s10 + $0x5b8] sm:$0xff]
  %v4536 = vld [vmem:[%s10 + $0x5c0] sm:$0xff]
  %v4537 = vld [vmem:[%s10 + $0x5c8] sm:$0xff]
  %v4538 = vld [vmem:[%s10 + $0x5d0] sm:$0xff]
  %v4539 = vld [vmem:[%s10 + $0x5d8] sm:$0xff]
  %v4540 = vld [vmem:[%s10 + $0x5e0] sm:$0xff]
  %v4541 = vld [vmem:[%s10 + $0x5e8] sm:$0xff]
  %v4542 = vld [vmem:[%s10 + $0x5f0] sm:$0xff]
  %v4543 = vld [vmem:[%s10 + $0x5f8] sm:$0xff]
  %v4544 = vld [vmem:[%s10 + $0x600] sm:$0xff]
  %v4545 = vld [vmem:[%s10 + $0x608] sm:$0xff]
  %v4546 = vld [vmem:[%s10 + $0x610] sm:$0xff]
  %v4547 = vld [vmem:[%s10 + $0x618] sm:$0xff]
  %v4548 = vld [vmem:[%s10 + $0x620] sm:$0xff]
  %v4549 = vld [vmem:[%s10 + $0x628] sm:$0xff]
  %v4550 = vld [vmem:[%s10 + $0x630] sm:$0xff]
  %v4551 = vld [vmem:[%s10 + $0x638] sm:$0xff]
  %v4552 = vld [vmem:[%s10 + $0x640] sm:$0xff]
  %v4553 = vld [vmem:[%s10 + $0x648] sm:$0xff]
  %v4554 = vld [vmem:[%s10 + $0x650] sm:$0xff]
  %v4555 = vld [vmem:[%s10 + $0x658] sm:$0xff]
  %v4556 = vld [vmem:[%s10 + $0x660] sm:$0xff]
  %v4557 = vld [vmem:[%s10 + $0x668] sm:$0xff]
  %v4558 = vld [vmem:[%s10 + $0x670] sm:$0xff]
  %v4559 = vld [vmem:[%s10 + $0x678] sm:$0xff]
  %v4560 = vld [vmem:[%s10 + $0x680] sm:$0xff]
  %v4561 = vld [vmem:[%s10 + $0x688] sm:$0xff]
  %v4562 = vld [vmem:[%s10 + $0x690] sm:$0xff]
  %v4563 = vld [vmem:[%s10 + $0x698] sm:$0xff]
  %v4564 = vld [vmem:[%s10 + $0x6a0] sm:$0xff]
  %v4565 = vld [vmem:[%s10 + $0x6a8] sm:$0xff]
  %v4566 = vld [vmem:[%s10 + $0x6b0] sm:$0xff]
  %v4567 = vld [vmem:[%s10 + $0x6b8] sm:$0xff]
  %v4568 = vld [vmem:[%s10 + $0x6c0] sm:$0xff]
  %v4569 = vld [vmem:[%s10 + $0x6c8] sm:$0xff]
  %v4570 = vld [vmem:[%s10 + $0x6d0] sm:$0xff]
  %v4571 = vld [vmem:[%s10 + $0x6d8] sm:$0xff]
  %v4572 = vld [vmem:[%s10 + $0x6e0] sm:$0xff]
  %v4573 = vld [vmem:[%s10 + $0x6e8] sm:$0xff]
  %v4574 = vld [vmem:[%s10 + $0x6f0] sm:$0xff]
  %v4575 = vld [vmem:[%s10 + $0x6f8] sm:$0xff]
  %v4576 = vld [vmem:[%s10 + $0x700] sm:$0xff]
  %v4577 = vld [vmem:[%s10 + $0x708] sm:$0xff]
  %v4578 = vld [vmem:[%s10 + $0x710] sm:$0xff]
  %v4579 = vld [vmem:[%s10 + $0x718] sm:$0xff]
  %v4580 = vld [vmem:[%s10 + $0x720] sm:$0xff]
  %v4581 = vld [vmem:[%s10 + $0x728] sm:$0xff]
  %v4582 = vld [vmem:[%s10 + $0x730] sm:$0xff]
  %v4583 = vld [vmem:[%s10 + $0x738] sm:$0xff]
  %v4584 = vld [vmem:[%s10 + $0x740] sm:$0xff]
  %v4585 = vld [vmem:[%s10 + $0x748] sm:$0xff]
  %v4586 = vld [vmem:[%s10 + $0x750] sm:$0xff]
  %v4587 = vld [vmem:[%s10 + $0x758] sm:$0xff]
  %v4588 = vld [vmem:[%s10 + $0x760] sm:$0xff]
  %v4589 = vld [vmem:[%s10 + $0x768] sm:$0xff]
  %v4590 = vld [vmem:[%s10 + $0x770] sm:$0xff]
  %v4591 = vld [vmem:[%s10 + $0x778] sm:$0xff]
  %v4592 = vld [vmem:[%s10 + $0x780] sm:$0xff]
  %v4593 = vld [vmem:[%s10 + $0x788] sm:$0xff]
  %v4594 = vld [vmem:[%s10 + $0x790] sm:$0xff]
  %v4595 = vld [vmem:[%s10 + $0x798] sm:$0xff]
  %v4596 = vld [vmem:[%s10 + $0x7a0] sm:$0xff]
  %v4597 = vld [vmem:[%s10 + $0x7a8] sm:$0xff]
  %v4598 = vld [vmem:[%s10 + $0x7b0] sm:$0xff]
  %v4599 = vld [vmem:[%s10 + $0x7b8] sm:$0xff]
  %v4600 = vld [vmem:[%s10 + $0x7c0] sm:$0xff]
  %v4601 = vld [vmem:[%s10 + $0x7c8] sm:$0xff]
  %v4602 = vld [vmem:[%s10 + $0x7d0] sm:$0xff]
  %v4603 = vld [vmem:[%s10 + $0x7d8] sm:$0xff]
  %v4604 = vld [vmem:[%s10 + $0x7e0] sm:$0xff]
  %v4605 = vld [vmem:[%s10 + $0x7e8] sm:$0xff]
  %v4606 = vld [vmem:[%s10 + $0x7f0] sm:$0xff]
  %v4607 = vld [vmem:[%s10 + $0x7f8] sm:$0xff]
  %v4608 = vld [vmem:[%s11] sm:$0xff]
  %v4610 = vlaneseq
  %v4611 = vshrl.u32 %v4610, 7
  %v4612 = vsub.s32 0, %v4611
  %v4613 = vrot.slane %v4608, %v4612
  %v4614 = vlaneseq
  %v4615 = vshrl.u32 %v4614, 7
  %v4616 = vsub.s32 1, %v4615
  %v4617 = vrot.slane %v4608, %v4616
  %v4618 = vlaneseq
  %v4619 = vshrl.u32 %v4618, 7
  %v4620 = vsub.s32 2, %v4619
  %v4621 = vrot.slane %v4608, %v4620
  %v4622 = vlaneseq
  %v4623 = vshrl.u32 %v4622, 7
  %v4624 = vsub.s32 3, %v4623
  %v4625 = vrot.slane %v4608, %v4624
  %v4626 = vlaneseq
  %v4627 = vshrl.u32 %v4626, 7
  %v4628 = vsub.s32 4, %v4627
  %v4629 = vrot.slane %v4608, %v4628
  %v4630 = vlaneseq
  %v4631 = vshrl.u32 %v4630, 7
  %v4632 = vsub.s32 5, %v4631
  %v4633 = vrot.slane %v4608, %v4632
  %v4634 = vlaneseq
  %v4635 = vshrl.u32 %v4634, 7
  %v4636 = vsub.s32 6, %v4635
  %v4637 = vrot.slane %v4608, %v4636
  %v4638 = vlaneseq
  %v4639 = vshrl.u32 %v4638, 7
  %v4640 = vsub.s32 7, %v4639
  %v4641 = vrot.slane %v4608, %v4640
  %v4906 = vunpack.c.l.b16 %v4352
  %v4907 = vunpack.c.h.b16 %v4352
  %v4908 = vunpack.c.l.b16 %v4353
  %v4909 = vunpack.c.h.b16 %v4353
  %v4910 = vunpack.c.l.b16 %v4354
  %v4911 = vunpack.c.h.b16 %v4354
  %v4912 = vunpack.c.l.b16 %v4355
  %v4913 = vunpack.c.h.b16 %v4355
  %v4914 = vunpack.c.l.b16 %v4356
  %v4915 = vunpack.c.h.b16 %v4356
  %v4916 = vunpack.c.l.b16 %v4357
  %v4917 = vunpack.c.h.b16 %v4357
  %v4918 = vunpack.c.l.b16 %v4358
  %v4919 = vunpack.c.h.b16 %v4358
  %v4920 = vunpack.c.l.b16 %v4359
  %v4921 = vunpack.c.h.b16 %v4359
  %v4922 = vunpack.c.l.b16 %v4360
  %v4923 = vunpack.c.h.b16 %v4360
  %v4924 = vunpack.c.l.b16 %v4361
  %v4925 = vunpack.c.h.b16 %v4361
  %v4926 = vunpack.c.l.b16 %v4362
  %v4927 = vunpack.c.h.b16 %v4362
  %v4928 = vunpack.c.l.b16 %v4363
  %v4929 = vunpack.c.h.b16 %v4363
  %v4930 = vunpack.c.l.b16 %v4364
  %v4931 = vunpack.c.h.b16 %v4364
  %v4932 = vunpack.c.l.b16 %v4365
  %v4933 = vunpack.c.h.b16 %v4365
  %v4934 = vunpack.c.l.b16 %v4366
  %v4935 = vunpack.c.h.b16 %v4366
  %v4936 = vunpack.c.l.b16 %v4367
  %v4937 = vunpack.c.h.b16 %v4367
  %v4938 = vunpack.c.l.b16 %v4368
  %v4939 = vunpack.c.h.b16 %v4368
  %v4940 = vunpack.c.l.b16 %v4369
  %v4941 = vunpack.c.h.b16 %v4369
  %v4942 = vunpack.c.l.b16 %v4370
  %v4943 = vunpack.c.h.b16 %v4370
  %v4944 = vunpack.c.l.b16 %v4371
  %v4945 = vunpack.c.h.b16 %v4371
  %v4946 = vunpack.c.l.b16 %v4372
  %v4947 = vunpack.c.h.b16 %v4372
  %v4948 = vunpack.c.l.b16 %v4373
  %v4949 = vunpack.c.h.b16 %v4373
  %v4950 = vunpack.c.l.b16 %v4374
  %v4951 = vunpack.c.h.b16 %v4374
  %v4952 = vunpack.c.l.b16 %v4375
  %v4953 = vunpack.c.h.b16 %v4375
  %v4954 = vunpack.c.l.b16 %v4376
  %v4955 = vunpack.c.h.b16 %v4376
  %v4956 = vunpack.c.l.b16 %v4377
  %v4957 = vunpack.c.h.b16 %v4377
  %v4958 = vunpack.c.l.b16 %v4378
  %v4959 = vunpack.c.h.b16 %v4378
  %v4960 = vunpack.c.l.b16 %v4379
  %v4961 = vunpack.c.h.b16 %v4379
  %v4962 = vunpack.c.l.b16 %v4380
  %v4963 = vunpack.c.h.b16 %v4380
  %v4964 = vunpack.c.l.b16 %v4381
  %v4965 = vunpack.c.h.b16 %v4381
  %v4966 = vunpack.c.l.b16 %v4382
  %v4967 = vunpack.c.h.b16 %v4382
  %v4968 = vunpack.c.l.b16 %v4383
  %v4969 = vunpack.c.h.b16 %v4383
  %v4970 = vunpack.c.l.b16 %v4384
  %v4971 = vunpack.c.h.b16 %v4384
  %v4972 = vunpack.c.l.b16 %v4385
  %v4973 = vunpack.c.h.b16 %v4385
  %v4974 = vunpack.c.l.b16 %v4386
  %v4975 = vunpack.c.h.b16 %v4386
  %v4976 = vunpack.c.l.b16 %v4387
  %v4977 = vunpack.c.h.b16 %v4387
  %v4978 = vunpack.c.l.b16 %v4388
  %v4979 = vunpack.c.h.b16 %v4388
  %v4980 = vunpack.c.l.b16 %v4389
  %v4981 = vunpack.c.h.b16 %v4389
  %v4982 = vunpack.c.l.b16 %v4390
  %v4983 = vunpack.c.h.b16 %v4390
  %v4984 = vunpack.c.l.b16 %v4391
  %v4985 = vunpack.c.h.b16 %v4391
  %v4986 = vunpack.c.l.b16 %v4392
  %v4987 = vunpack.c.h.b16 %v4392
  %v4988 = vunpack.c.l.b16 %v4393
  %v4989 = vunpack.c.h.b16 %v4393
  %v4990 = vunpack.c.l.b16 %v4394
  %v4991 = vunpack.c.h.b16 %v4394
  %v4992 = vunpack.c.l.b16 %v4395
  %v4993 = vunpack.c.h.b16 %v4395
  %v4994 = vunpack.c.l.b16 %v4396
  %v4995 = vunpack.c.h.b16 %v4396
  %v4996 = vunpack.c.l.b16 %v4397
  %v4997 = vunpack.c.h.b16 %v4397
  %v4998 = vunpack.c.l.b16 %v4398
  %v4999 = vunpack.c.h.b16 %v4398
  %v5000 = vunpack.c.l.b16 %v4399
  %v5001 = vunpack.c.h.b16 %v4399
  %v5002 = vunpack.c.l.b16 %v4400
  %v5003 = vunpack.c.h.b16 %v4400
  %v5004 = vunpack.c.l.b16 %v4401
  %v5005 = vunpack.c.h.b16 %v4401
  %v5006 = vunpack.c.l.b16 %v4402
  %v5007 = vunpack.c.h.b16 %v4402
  %v5008 = vunpack.c.l.b16 %v4403
  %v5009 = vunpack.c.h.b16 %v4403
  %v5010 = vunpack.c.l.b16 %v4404
  %v5011 = vunpack.c.h.b16 %v4404
  %v5012 = vunpack.c.l.b16 %v4405
  %v5013 = vunpack.c.h.b16 %v4405
  %v5014 = vunpack.c.l.b16 %v4406
  %v5015 = vunpack.c.h.b16 %v4406
  %v5016 = vunpack.c.l.b16 %v4407
  %v5017 = vunpack.c.h.b16 %v4407
  %v5018 = vunpack.c.l.b16 %v4408
  %v5019 = vunpack.c.h.b16 %v4408
  %v5020 = vunpack.c.l.b16 %v4409
  %v5021 = vunpack.c.h.b16 %v4409
  %v5022 = vunpack.c.l.b16 %v4410
  %v5023 = vunpack.c.h.b16 %v4410
  %v5024 = vunpack.c.l.b16 %v4411
  %v5025 = vunpack.c.h.b16 %v4411
  %v5026 = vunpack.c.l.b16 %v4412
  %v5027 = vunpack.c.h.b16 %v4412
  %v5028 = vunpack.c.l.b16 %v4413
  %v5029 = vunpack.c.h.b16 %v4413
  %v5030 = vunpack.c.l.b16 %v4414
  %v5031 = vunpack.c.h.b16 %v4414
  %v5032 = vunpack.c.l.b16 %v4415
  %v5033 = vunpack.c.h.b16 %v4415
  %v5034 = vunpack.c.l.b16 %v4416
  %v5035 = vunpack.c.h.b16 %v4416
  %v5036 = vunpack.c.l.b16 %v4417
  %v5037 = vunpack.c.h.b16 %v4417
  %v5038 = vunpack.c.l.b16 %v4418
  %v5039 = vunpack.c.h.b16 %v4418
  %v5040 = vunpack.c.l.b16 %v4419
  %v5041 = vunpack.c.h.b16 %v4419
  %v5042 = vunpack.c.l.b16 %v4420
  %v5043 = vunpack.c.h.b16 %v4420
  %v5044 = vunpack.c.l.b16 %v4421
  %v5045 = vunpack.c.h.b16 %v4421
  %v5046 = vunpack.c.l.b16 %v4422
  %v5047 = vunpack.c.h.b16 %v4422
  %v5048 = vunpack.c.l.b16 %v4423
  %v5049 = vunpack.c.h.b16 %v4423
  %v5050 = vunpack.c.l.b16 %v4424
  %v5051 = vunpack.c.h.b16 %v4424
  %v5052 = vunpack.c.l.b16 %v4425
  %v5053 = vunpack.c.h.b16 %v4425
  %v5054 = vunpack.c.l.b16 %v4426
  %v5055 = vunpack.c.h.b16 %v4426
  %v5056 = vunpack.c.l.b16 %v4427
  %v5057 = vunpack.c.h.b16 %v4427
  %v5058 = vunpack.c.l.b16 %v4428
  %v5059 = vunpack.c.h.b16 %v4428
  %v5060 = vunpack.c.l.b16 %v4429
  %v5061 = vunpack.c.h.b16 %v4429
  %v5062 = vunpack.c.l.b16 %v4430
  %v5063 = vunpack.c.h.b16 %v4430
  %v5064 = vunpack.c.l.b16 %v4431
  %v5065 = vunpack.c.h.b16 %v4431
  %v5066 = vunpack.c.l.b16 %v4432
  %v5067 = vunpack.c.h.b16 %v4432
  %v5068 = vunpack.c.l.b16 %v4433
  %v5069 = vunpack.c.h.b16 %v4433
  %v5070 = vunpack.c.l.b16 %v4434
  %v5071 = vunpack.c.h.b16 %v4434
  %v5072 = vunpack.c.l.b16 %v4435
  %v5073 = vunpack.c.h.b16 %v4435
  %v5074 = vunpack.c.l.b16 %v4436
  %v5075 = vunpack.c.h.b16 %v4436
  %v5076 = vunpack.c.l.b16 %v4437
  %v5077 = vunpack.c.h.b16 %v4437
  %v5078 = vunpack.c.l.b16 %v4438
  %v5079 = vunpack.c.h.b16 %v4438
  %v5080 = vunpack.c.l.b16 %v4439
  %v5081 = vunpack.c.h.b16 %v4439
  %v5082 = vunpack.c.l.b16 %v4440
  %v5083 = vunpack.c.h.b16 %v4440
  %v5084 = vunpack.c.l.b16 %v4441
  %v5085 = vunpack.c.h.b16 %v4441
  %v5086 = vunpack.c.l.b16 %v4442
  %v5087 = vunpack.c.h.b16 %v4442
  %v5088 = vunpack.c.l.b16 %v4443
  %v5089 = vunpack.c.h.b16 %v4443
  %v5090 = vunpack.c.l.b16 %v4444
  %v5091 = vunpack.c.h.b16 %v4444
  %v5092 = vunpack.c.l.b16 %v4445
  %v5093 = vunpack.c.h.b16 %v4445
  %v5094 = vunpack.c.l.b16 %v4446
  %v5095 = vunpack.c.h.b16 %v4446
  %v5096 = vunpack.c.l.b16 %v4447
  %v5097 = vunpack.c.h.b16 %v4447
  %v5098 = vunpack.c.l.b16 %v4448
  %v5099 = vunpack.c.h.b16 %v4448
  %v5100 = vunpack.c.l.b16 %v4449
  %v5101 = vunpack.c.h.b16 %v4449
  %v5102 = vunpack.c.l.b16 %v4450
  %v5103 = vunpack.c.h.b16 %v4450
  %v5104 = vunpack.c.l.b16 %v4451
  %v5105 = vunpack.c.h.b16 %v4451
  %v5106 = vunpack.c.l.b16 %v4452
  %v5107 = vunpack.c.h.b16 %v4452
  %v5108 = vunpack.c.l.b16 %v4453
  %v5109 = vunpack.c.h.b16 %v4453
  %v5110 = vunpack.c.l.b16 %v4454
  %v5111 = vunpack.c.h.b16 %v4454
  %v5112 = vunpack.c.l.b16 %v4455
  %v5113 = vunpack.c.h.b16 %v4455
  %v5114 = vunpack.c.l.b16 %v4456
  %v5115 = vunpack.c.h.b16 %v4456
  %v5116 = vunpack.c.l.b16 %v4457
  %v5117 = vunpack.c.h.b16 %v4457
  %v5118 = vunpack.c.l.b16 %v4458
  %v5119 = vunpack.c.h.b16 %v4458
  %v5120 = vunpack.c.l.b16 %v4459
  %v5121 = vunpack.c.h.b16 %v4459
  %v5122 = vunpack.c.l.b16 %v4460
  %v5123 = vunpack.c.h.b16 %v4460
  %v5124 = vunpack.c.l.b16 %v4461
  %v5125 = vunpack.c.h.b16 %v4461
  %v5126 = vunpack.c.l.b16 %v4462
  %v5127 = vunpack.c.h.b16 %v4462
  %v5128 = vunpack.c.l.b16 %v4463
  %v5129 = vunpack.c.h.b16 %v4463
  %v5130 = vunpack.c.l.b16 %v4464
  %v5131 = vunpack.c.h.b16 %v4464
  %v5132 = vunpack.c.l.b16 %v4465
  %v5133 = vunpack.c.h.b16 %v4465
  %v5134 = vunpack.c.l.b16 %v4466
  %v5135 = vunpack.c.h.b16 %v4466
  %v5136 = vunpack.c.l.b16 %v4467
  %v5137 = vunpack.c.h.b16 %v4467
  %v5138 = vunpack.c.l.b16 %v4468
  %v5139 = vunpack.c.h.b16 %v4468
  %v5140 = vunpack.c.l.b16 %v4469
  %v5141 = vunpack.c.h.b16 %v4469
  %v5142 = vunpack.c.l.b16 %v4470
  %v5143 = vunpack.c.h.b16 %v4470
  %v5144 = vunpack.c.l.b16 %v4471
  %v5145 = vunpack.c.h.b16 %v4471
  %v5146 = vunpack.c.l.b16 %v4472
  %v5147 = vunpack.c.h.b16 %v4472
  %v5148 = vunpack.c.l.b16 %v4473
  %v5149 = vunpack.c.h.b16 %v4473
  %v5150 = vunpack.c.l.b16 %v4474
  %v5151 = vunpack.c.h.b16 %v4474
  %v5152 = vunpack.c.l.b16 %v4475
  %v5153 = vunpack.c.h.b16 %v4475
  %v5154 = vunpack.c.l.b16 %v4476
  %v5155 = vunpack.c.h.b16 %v4476
  %v5156 = vunpack.c.l.b16 %v4477
  %v5157 = vunpack.c.h.b16 %v4477
  %v5158 = vunpack.c.l.b16 %v4478
  %v5159 = vunpack.c.h.b16 %v4478
  %v5160 = vunpack.c.l.b16 %v4479
  %v5161 = vunpack.c.h.b16 %v4479
  %v5162 = vunpack.c.l.b16 %v4480
  %v5163 = vunpack.c.h.b16 %v4480
  %v5164 = vunpack.c.l.b16 %v4481
  %v5165 = vunpack.c.h.b16 %v4481
  %v5166 = vunpack.c.l.b16 %v4482
  %v5167 = vunpack.c.h.b16 %v4482
  %v5168 = vunpack.c.l.b16 %v4483
  %v5169 = vunpack.c.h.b16 %v4483
  %v5170 = vunpack.c.l.b16 %v4484
  %v5171 = vunpack.c.h.b16 %v4484
  %v5172 = vunpack.c.l.b16 %v4485
  %v5173 = vunpack.c.h.b16 %v4485
  %v5174 = vunpack.c.l.b16 %v4486
  %v5175 = vunpack.c.h.b16 %v4486
  %v5176 = vunpack.c.l.b16 %v4487
  %v5177 = vunpack.c.h.b16 %v4487
  %v5178 = vunpack.c.l.b16 %v4488
  %v5179 = vunpack.c.h.b16 %v4488
  %v5180 = vunpack.c.l.b16 %v4489
  %v5181 = vunpack.c.h.b16 %v4489
  %v5182 = vunpack.c.l.b16 %v4490
  %v5183 = vunpack.c.h.b16 %v4490
  %v5184 = vunpack.c.l.b16 %v4491
  %v5185 = vunpack.c.h.b16 %v4491
  %v5186 = vunpack.c.l.b16 %v4492
  %v5187 = vunpack.c.h.b16 %v4492
  %v5188 = vunpack.c.l.b16 %v4493
  %v5189 = vunpack.c.h.b16 %v4493
  %v5190 = vunpack.c.l.b16 %v4494
  %v5191 = vunpack.c.h.b16 %v4494
  %v5192 = vunpack.c.l.b16 %v4495
  %v5193 = vunpack.c.h.b16 %v4495
  %v5194 = vunpack.c.l.b16 %v4496
  %v5195 = vunpack.c.h.b16 %v4496
  %v5196 = vunpack.c.l.b16 %v4497
  %v5197 = vunpack.c.h.b16 %v4497
  %v5198 = vunpack.c.l.b16 %v4498
  %v5199 = vunpack.c.h.b16 %v4498
  %v5200 = vunpack.c.l.b16 %v4499
  %v5201 = vunpack.c.h.b16 %v4499
  %v5202 = vunpack.c.l.b16 %v4500
  %v5203 = vunpack.c.h.b16 %v4500
  %v5204 = vunpack.c.l.b16 %v4501
  %v5205 = vunpack.c.h.b16 %v4501
  %v5206 = vunpack.c.l.b16 %v4502
  %v5207 = vunpack.c.h.b16 %v4502
  %v5208 = vunpack.c.l.b16 %v4503
  %v5209 = vunpack.c.h.b16 %v4503
  %v5210 = vunpack.c.l.b16 %v4504
  %v5211 = vunpack.c.h.b16 %v4504
  %v5212 = vunpack.c.l.b16 %v4505
  %v5213 = vunpack.c.h.b16 %v4505
  %v5214 = vunpack.c.l.b16 %v4506
  %v5215 = vunpack.c.h.b16 %v4506
  %v5216 = vunpack.c.l.b16 %v4507
  %v5217 = vunpack.c.h.b16 %v4507
  %v5218 = vunpack.c.l.b16 %v4508
  %v5219 = vunpack.c.h.b16 %v4508
  %v5220 = vunpack.c.l.b16 %v4509
  %v5221 = vunpack.c.h.b16 %v4509
  %v5222 = vunpack.c.l.b16 %v4510
  %v5223 = vunpack.c.h.b16 %v4510
  %v5224 = vunpack.c.l.b16 %v4511
  %v5225 = vunpack.c.h.b16 %v4511
  %v5226 = vunpack.c.l.b16 %v4512
  %v5227 = vunpack.c.h.b16 %v4512
  %v5228 = vunpack.c.l.b16 %v4513
  %v5229 = vunpack.c.h.b16 %v4513
  %v5230 = vunpack.c.l.b16 %v4514
  %v5231 = vunpack.c.h.b16 %v4514
  %v5232 = vunpack.c.l.b16 %v4515
  %v5233 = vunpack.c.h.b16 %v4515
  %v5234 = vunpack.c.l.b16 %v4516
  %v5235 = vunpack.c.h.b16 %v4516
  %v5236 = vunpack.c.l.b16 %v4517
  %v5237 = vunpack.c.h.b16 %v4517
  %v5238 = vunpack.c.l.b16 %v4518
  %v5239 = vunpack.c.h.b16 %v4518
  %v5240 = vunpack.c.l.b16 %v4519
  %v5241 = vunpack.c.h.b16 %v4519
  %v5242 = vunpack.c.l.b16 %v4520
  %v5243 = vunpack.c.h.b16 %v4520
  %v5244 = vunpack.c.l.b16 %v4521
  %v5245 = vunpack.c.h.b16 %v4521
  %v5246 = vunpack.c.l.b16 %v4522
  %v5247 = vunpack.c.h.b16 %v4522
  %v5248 = vunpack.c.l.b16 %v4523
  %v5249 = vunpack.c.h.b16 %v4523
  %v5250 = vunpack.c.l.b16 %v4524
  %v5251 = vunpack.c.h.b16 %v4524
  %v5252 = vunpack.c.l.b16 %v4525
  %v5253 = vunpack.c.h.b16 %v4525
  %v5254 = vunpack.c.l.b16 %v4526
  %v5255 = vunpack.c.h.b16 %v4526
  %v5256 = vunpack.c.l.b16 %v4527
  %v5257 = vunpack.c.h.b16 %v4527
  %v5258 = vunpack.c.l.b16 %v4528
  %v5259 = vunpack.c.h.b16 %v4528
  %v5260 = vunpack.c.l.b16 %v4529
  %v5261 = vunpack.c.h.b16 %v4529
  %v5262 = vunpack.c.l.b16 %v4530
  %v5263 = vunpack.c.h.b16 %v4530
  %v5264 = vunpack.c.l.b16 %v4531
  %v5265 = vunpack.c.h.b16 %v4531
  %v5266 = vunpack.c.l.b16 %v4532
  %v5267 = vunpack.c.h.b16 %v4532
  %v5268 = vunpack.c.l.b16 %v4533
  %v5269 = vunpack.c.h.b16 %v4533
  %v5270 = vunpack.c.l.b16 %v4534
  %v5271 = vunpack.c.h.b16 %v4534
  %v5272 = vunpack.c.l.b16 %v4535
  %v5273 = vunpack.c.h.b16 %v4535
  %v5274 = vunpack.c.l.b16 %v4536
  %v5275 = vunpack.c.h.b16 %v4536
  %v5276 = vunpack.c.l.b16 %v4537
  %v5277 = vunpack.c.h.b16 %v4537
  %v5278 = vunpack.c.l.b16 %v4538
  %v5279 = vunpack.c.h.b16 %v4538
  %v5280 = vunpack.c.l.b16 %v4539
  %v5281 = vunpack.c.h.b16 %v4539
  %v5282 = vunpack.c.l.b16 %v4540
  %v5283 = vunpack.c.h.b16 %v4540
  %v5284 = vunpack.c.l.b16 %v4541
  %v5285 = vunpack.c.h.b16 %v4541
  %v5286 = vunpack.c.l.b16 %v4542
  %v5287 = vunpack.c.h.b16 %v4542
  %v5288 = vunpack.c.l.b16 %v4543
  %v5289 = vunpack.c.h.b16 %v4543
  %v5290 = vunpack.c.l.b16 %v4544
  %v5291 = vunpack.c.h.b16 %v4544
  %v5292 = vunpack.c.l.b16 %v4545
  %v5293 = vunpack.c.h.b16 %v4545
  %v5294 = vunpack.c.l.b16 %v4546
  %v5295 = vunpack.c.h.b16 %v4546
  %v5296 = vunpack.c.l.b16 %v4547
  %v5297 = vunpack.c.h.b16 %v4547
  %v5298 = vunpack.c.l.b16 %v4548
  %v5299 = vunpack.c.h.b16 %v4548
  %v5300 = vunpack.c.l.b16 %v4549
  %v5301 = vunpack.c.h.b16 %v4549
  %v5302 = vunpack.c.l.b16 %v4550
  %v5303 = vunpack.c.h.b16 %v4550
  %v5304 = vunpack.c.l.b16 %v4551
  %v5305 = vunpack.c.h.b16 %v4551
  %v5306 = vunpack.c.l.b16 %v4552
  %v5307 = vunpack.c.h.b16 %v4552
  %v5308 = vunpack.c.l.b16 %v4553
  %v5309 = vunpack.c.h.b16 %v4553
  %v5310 = vunpack.c.l.b16 %v4554
  %v5311 = vunpack.c.h.b16 %v4554
  %v5312 = vunpack.c.l.b16 %v4555
  %v5313 = vunpack.c.h.b16 %v4555
  %v5314 = vunpack.c.l.b16 %v4556
  %v5315 = vunpack.c.h.b16 %v4556
  %v5316 = vunpack.c.l.b16 %v4557
  %v5317 = vunpack.c.h.b16 %v4557
  %v5318 = vunpack.c.l.b16 %v4558
  %v5319 = vunpack.c.h.b16 %v4558
  %v5320 = vunpack.c.l.b16 %v4559
  %v5321 = vunpack.c.h.b16 %v4559
  %v5322 = vunpack.c.l.b16 %v4560
  %v5323 = vunpack.c.h.b16 %v4560
  %v5324 = vunpack.c.l.b16 %v4561
  %v5325 = vunpack.c.h.b16 %v4561
  %v5326 = vunpack.c.l.b16 %v4562
  %v5327 = vunpack.c.h.b16 %v4562
  %v5328 = vunpack.c.l.b16 %v4563
  %v5329 = vunpack.c.h.b16 %v4563
  %v5330 = vunpack.c.l.b16 %v4564
  %v5331 = vunpack.c.h.b16 %v4564
  %v5332 = vunpack.c.l.b16 %v4565
  %v5333 = vunpack.c.h.b16 %v4565
  %v5334 = vunpack.c.l.b16 %v4566
  %v5335 = vunpack.c.h.b16 %v4566
  %v5336 = vunpack.c.l.b16 %v4567
  %v5337 = vunpack.c.h.b16 %v4567
  %v5338 = vunpack.c.l.b16 %v4568
  %v5339 = vunpack.c.h.b16 %v4568
  %v5340 = vunpack.c.l.b16 %v4569
  %v5341 = vunpack.c.h.b16 %v4569
  %v5342 = vunpack.c.l.b16 %v4570
  %v5343 = vunpack.c.h.b16 %v4570
  %v5344 = vunpack.c.l.b16 %v4571
  %v5345 = vunpack.c.h.b16 %v4571
  %v5346 = vunpack.c.l.b16 %v4572
  %v5347 = vunpack.c.h.b16 %v4572
  %v5348 = vunpack.c.l.b16 %v4573
  %v5349 = vunpack.c.h.b16 %v4573
  %v5350 = vunpack.c.l.b16 %v4574
  %v5351 = vunpack.c.h.b16 %v4574
  %v5352 = vunpack.c.l.b16 %v4575
  %v5353 = vunpack.c.h.b16 %v4575
  %v5354 = vunpack.c.l.b16 %v4576
  %v5355 = vunpack.c.h.b16 %v4576
  %v5356 = vunpack.c.l.b16 %v4577
  %v5357 = vunpack.c.h.b16 %v4577
  %v5358 = vunpack.c.l.b16 %v4578
  %v5359 = vunpack.c.h.b16 %v4578
  %v5360 = vunpack.c.l.b16 %v4579
  %v5361 = vunpack.c.h.b16 %v4579
  %v5362 = vunpack.c.l.b16 %v4580
  %v5363 = vunpack.c.h.b16 %v4580
  %v5364 = vunpack.c.l.b16 %v4581
  %v5365 = vunpack.c.h.b16 %v4581
  %v5366 = vunpack.c.l.b16 %v4582
  %v5367 = vunpack.c.h.b16 %v4582
  %v5368 = vunpack.c.l.b16 %v4583
  %v5369 = vunpack.c.h.b16 %v4583
  %v5370 = vunpack.c.l.b16 %v4584
  %v5371 = vunpack.c.h.b16 %v4584
  %v5372 = vunpack.c.l.b16 %v4585
  %v5373 = vunpack.c.h.b16 %v4585
  %v5374 = vunpack.c.l.b16 %v4586
  %v5375 = vunpack.c.h.b16 %v4586
  %v5376 = vunpack.c.l.b16 %v4587
  %v5377 = vunpack.c.h.b16 %v4587
  %v5378 = vunpack.c.l.b16 %v4588
  %v5379 = vunpack.c.h.b16 %v4588
  %v5380 = vunpack.c.l.b16 %v4589
  %v5381 = vunpack.c.h.b16 %v4589
  %v5382 = vunpack.c.l.b16 %v4590
  %v5383 = vunpack.c.h.b16 %v4590
  %v5384 = vunpack.c.l.b16 %v4591
  %v5385 = vunpack.c.h.b16 %v4591
  %v5386 = vunpack.c.l.b16 %v4592
  %v5387 = vunpack.c.h.b16 %v4592
  %v5388 = vunpack.c.l.b16 %v4593
  %v5389 = vunpack.c.h.b16 %v4593
  %v5390 = vunpack.c.l.b16 %v4594
  %v5391 = vunpack.c.h.b16 %v4594
  %v5392 = vunpack.c.l.b16 %v4595
  %v5393 = vunpack.c.h.b16 %v4595
  %v5394 = vunpack.c.l.b16 %v4596
  %v5395 = vunpack.c.h.b16 %v4596
  %v5396 = vunpack.c.l.b16 %v4597
  %v5397 = vunpack.c.h.b16 %v4597
  %v5398 = vunpack.c.l.b16 %v4598
  %v5399 = vunpack.c.h.b16 %v4598
  %v5400 = vunpack.c.l.b16 %v4599
  %v5401 = vunpack.c.h.b16 %v4599
  %v5402 = vunpack.c.l.b16 %v4600
  %v5403 = vunpack.c.h.b16 %v4600
  %v5404 = vunpack.c.l.b16 %v4601
  %v5405 = vunpack.c.h.b16 %v4601
  %v5406 = vunpack.c.l.b16 %v4602
  %v5407 = vunpack.c.h.b16 %v4602
  %v5408 = vunpack.c.l.b16 %v4603
  %v5409 = vunpack.c.h.b16 %v4603
  %v5410 = vunpack.c.l.b16 %v4604
  %v5411 = vunpack.c.h.b16 %v4604
  %v5412 = vunpack.c.l.b16 %v4605
  %v5413 = vunpack.c.h.b16 %v4605
  %v5414 = vunpack.c.l.b16 %v4606
  %v5415 = vunpack.c.h.b16 %v4606
  %v5416 = vunpack.c.l.b16 %v4607
  %v5417 = vunpack.c.h.b16 %v4607
  %v5418 = vpack.c.b16 %v4914, %v4906
  %v5419 = vpack.c.b16 %v4915, %v4907
  %v5420 = vpack.c.b16 %v4916, %v4908
  %v5421 = vpack.c.b16 %v4917, %v4909
  %v5422 = vpack.c.b16 %v4918, %v4910
  %v5423 = vpack.c.b16 %v4919, %v4911
  %v5424 = vpack.c.b16 %v4920, %v4912
  %v5425 = vpack.c.b16 %v4921, %v4913
  %v5426 = vpack.c.b16 %v4930, %v4922
  %v5427 = vpack.c.b16 %v4931, %v4923
  %v5428 = vpack.c.b16 %v4932, %v4924
  %v5429 = vpack.c.b16 %v4933, %v4925
  %v5430 = vpack.c.b16 %v4934, %v4926
  %v5431 = vpack.c.b16 %v4935, %v4927
  %v5432 = vpack.c.b16 %v4936, %v4928
  %v5433 = vpack.c.b16 %v4937, %v4929
  %v5434 = vpack.c.b16 %v4946, %v4938
  %v5435 = vpack.c.b16 %v4947, %v4939
  %v5436 = vpack.c.b16 %v4948, %v4940
  %v5437 = vpack.c.b16 %v4949, %v4941
  %v5438 = vpack.c.b16 %v4950, %v4942
  %v5439 = vpack.c.b16 %v4951, %v4943
  %v5440 = vpack.c.b16 %v4952, %v4944
  %v5441 = vpack.c.b16 %v4953, %v4945
  %v5442 = vpack.c.b16 %v4962, %v4954
  %v5443 = vpack.c.b16 %v4963, %v4955
  %v5444 = vpack.c.b16 %v4964, %v4956
  %v5445 = vpack.c.b16 %v4965, %v4957
  %v5446 = vpack.c.b16 %v4966, %v4958
  %v5447 = vpack.c.b16 %v4967, %v4959
  %v5448 = vpack.c.b16 %v4968, %v4960
  %v5449 = vpack.c.b16 %v4969, %v4961
  %v5450 = vpack.c.b16 %v4978, %v4970
  %v5451 = vpack.c.b16 %v4979, %v4971
  %v5452 = vpack.c.b16 %v4980, %v4972
  %v5453 = vpack.c.b16 %v4981, %v4973
  %v5454 = vpack.c.b16 %v4982, %v4974
  %v5455 = vpack.c.b16 %v4983, %v4975
  %v5456 = vpack.c.b16 %v4984, %v4976
  %v5457 = vpack.c.b16 %v4985, %v4977
  %v5458 = vpack.c.b16 %v4994, %v4986
  %v5459 = vpack.c.b16 %v4995, %v4987
  %v5460 = vpack.c.b16 %v4996, %v4988
  %v5461 = vpack.c.b16 %v4997, %v4989
  %v5462 = vpack.c.b16 %v4998, %v4990
  %v5463 = vpack.c.b16 %v4999, %v4991
  %v5464 = vpack.c.b16 %v5000, %v4992
  %v5465 = vpack.c.b16 %v5001, %v4993
  %v5466 = vpack.c.b16 %v5010, %v5002
  %v5467 = vpack.c.b16 %v5011, %v5003
  %v5468 = vpack.c.b16 %v5012, %v5004
  %v5469 = vpack.c.b16 %v5013, %v5005
  %v5470 = vpack.c.b16 %v5014, %v5006
  %v5471 = vpack.c.b16 %v5015, %v5007
  %v5472 = vpack.c.b16 %v5016, %v5008
  %v5473 = vpack.c.b16 %v5017, %v5009
  %v5474 = vpack.c.b16 %v5026, %v5018
  %v5475 = vpack.c.b16 %v5027, %v5019
  %v5476 = vpack.c.b16 %v5028, %v5020
  %v5477 = vpack.c.b16 %v5029, %v5021
  %v5478 = vpack.c.b16 %v5030, %v5022
  %v5479 = vpack.c.b16 %v5031, %v5023
  %v5480 = vpack.c.b16 %v5032, %v5024
  %v5481 = vpack.c.b16 %v5033, %v5025
  %v5482 = vpack.c.b16 %v5042, %v5034
  %v5483 = vpack.c.b16 %v5043, %v5035
  %v5484 = vpack.c.b16 %v5044, %v5036
  %v5485 = vpack.c.b16 %v5045, %v5037
  %v5486 = vpack.c.b16 %v5046, %v5038
  %v5487 = vpack.c.b16 %v5047, %v5039
  %v5488 = vpack.c.b16 %v5048, %v5040
  %v5489 = vpack.c.b16 %v5049, %v5041
  %v5490 = vpack.c.b16 %v5058, %v5050
  %v5491 = vpack.c.b16 %v5059, %v5051
  %v5492 = vpack.c.b16 %v5060, %v5052
  %v5493 = vpack.c.b16 %v5061, %v5053
  %v5494 = vpack.c.b16 %v5062, %v5054
  %v5495 = vpack.c.b16 %v5063, %v5055
  %v5496 = vpack.c.b16 %v5064, %v5056
  %v5497 = vpack.c.b16 %v5065, %v5057
  %v5498 = vpack.c.b16 %v5074, %v5066
  %v5499 = vpack.c.b16 %v5075, %v5067
  %v5500 = vpack.c.b16 %v5076, %v5068
  %v5501 = vpack.c.b16 %v5077, %v5069
  %v5502 = vpack.c.b16 %v5078, %v5070
  %v5503 = vpack.c.b16 %v5079, %v5071
  %v5504 = vpack.c.b16 %v5080, %v5072
  %v5505 = vpack.c.b16 %v5081, %v5073
  %v5506 = vpack.c.b16 %v5090, %v5082
  %v5507 = vpack.c.b16 %v5091, %v5083
  %v5508 = vpack.c.b16 %v5092, %v5084
  %v5509 = vpack.c.b16 %v5093, %v5085
  %v5510 = vpack.c.b16 %v5094, %v5086
  %v5511 = vpack.c.b16 %v5095, %v5087
  %v5512 = vpack.c.b16 %v5096, %v5088
  %v5513 = vpack.c.b16 %v5097, %v5089
  %v5514 = vpack.c.b16 %v5106, %v5098
  %v5515 = vpack.c.b16 %v5107, %v5099
  %v5516 = vpack.c.b16 %v5108, %v5100
  %v5517 = vpack.c.b16 %v5109, %v5101
  %v5518 = vpack.c.b16 %v5110, %v5102
  %v5519 = vpack.c.b16 %v5111, %v5103
  %v5520 = vpack.c.b16 %v5112, %v5104
  %v5521 = vpack.c.b16 %v5113, %v5105
  %v5522 = vpack.c.b16 %v5122, %v5114
  %v5523 = vpack.c.b16 %v5123, %v5115
  %v5524 = vpack.c.b16 %v5124, %v5116
  %v5525 = vpack.c.b16 %v5125, %v5117
  %v5526 = vpack.c.b16 %v5126, %v5118
  %v5527 = vpack.c.b16 %v5127, %v5119
  %v5528 = vpack.c.b16 %v5128, %v5120
  %v5529 = vpack.c.b16 %v5129, %v5121
  %v5530 = vpack.c.b16 %v5138, %v5130
  %v5531 = vpack.c.b16 %v5139, %v5131
  %v5532 = vpack.c.b16 %v5140, %v5132
  %v5533 = vpack.c.b16 %v5141, %v5133
  %v5534 = vpack.c.b16 %v5142, %v5134
  %v5535 = vpack.c.b16 %v5143, %v5135
  %v5536 = vpack.c.b16 %v5144, %v5136
  %v5537 = vpack.c.b16 %v5145, %v5137
  %v5538 = vpack.c.b16 %v5154, %v5146
  %v5539 = vpack.c.b16 %v5155, %v5147
  %v5540 = vpack.c.b16 %v5156, %v5148
  %v5541 = vpack.c.b16 %v5157, %v5149
  %v5542 = vpack.c.b16 %v5158, %v5150
  %v5543 = vpack.c.b16 %v5159, %v5151
  %v5544 = vpack.c.b16 %v5160, %v5152
  %v5545 = vpack.c.b16 %v5161, %v5153
  %v5546 = vpack.c.b16 %v5170, %v5162
  %v5547 = vpack.c.b16 %v5171, %v5163
  %v5548 = vpack.c.b16 %v5172, %v5164
  %v5549 = vpack.c.b16 %v5173, %v5165
  %v5550 = vpack.c.b16 %v5174, %v5166
  %v5551 = vpack.c.b16 %v5175, %v5167
  %v5552 = vpack.c.b16 %v5176, %v5168
  %v5553 = vpack.c.b16 %v5177, %v5169
  %v5554 = vpack.c.b16 %v5186, %v5178
  %v5555 = vpack.c.b16 %v5187, %v5179
  %v5556 = vpack.c.b16 %v5188, %v5180
  %v5557 = vpack.c.b16 %v5189, %v5181
  %v5558 = vpack.c.b16 %v5190, %v5182
  %v5559 = vpack.c.b16 %v5191, %v5183
  %v5560 = vpack.c.b16 %v5192, %v5184
  %v5561 = vpack.c.b16 %v5193, %v5185
  %v5562 = vpack.c.b16 %v5202, %v5194
  %v5563 = vpack.c.b16 %v5203, %v5195
  %v5564 = vpack.c.b16 %v5204, %v5196
  %v5565 = vpack.c.b16 %v5205, %v5197
  %v5566 = vpack.c.b16 %v5206, %v5198
  %v5567 = vpack.c.b16 %v5207, %v5199
  %v5568 = vpack.c.b16 %v5208, %v5200
  %v5569 = vpack.c.b16 %v5209, %v5201
  %v5570 = vpack.c.b16 %v5218, %v5210
  %v5571 = vpack.c.b16 %v5219, %v5211
  %v5572 = vpack.c.b16 %v5220, %v5212
  %v5573 = vpack.c.b16 %v5221, %v5213
  %v5574 = vpack.c.b16 %v5222, %v5214
  %v5575 = vpack.c.b16 %v5223, %v5215
  %v5576 = vpack.c.b16 %v5224, %v5216
  %v5577 = vpack.c.b16 %v5225, %v5217
  %v5578 = vpack.c.b16 %v5234, %v5226
  %v5579 = vpack.c.b16 %v5235, %v5227
  %v5580 = vpack.c.b16 %v5236, %v5228
  %v5581 = vpack.c.b16 %v5237, %v5229
  %v5582 = vpack.c.b16 %v5238, %v5230
  %v5583 = vpack.c.b16 %v5239, %v5231
  %v5584 = vpack.c.b16 %v5240, %v5232
  %v5585 = vpack.c.b16 %v5241, %v5233
  %v5586 = vpack.c.b16 %v5250, %v5242
  %v5587 = vpack.c.b16 %v5251, %v5243
  %v5588 = vpack.c.b16 %v5252, %v5244
  %v5589 = vpack.c.b16 %v5253, %v5245
  %v5590 = vpack.c.b16 %v5254, %v5246
  %v5591 = vpack.c.b16 %v5255, %v5247
  %v5592 = vpack.c.b16 %v5256, %v5248
  %v5593 = vpack.c.b16 %v5257, %v5249
  %v5594 = vpack.c.b16 %v5266, %v5258
  %v5595 = vpack.c.b16 %v5267, %v5259
  %v5596 = vpack.c.b16 %v5268, %v5260
  %v5597 = vpack.c.b16 %v5269, %v5261
  %v5598 = vpack.c.b16 %v5270, %v5262
  %v5599 = vpack.c.b16 %v5271, %v5263
  %v5600 = vpack.c.b16 %v5272, %v5264
  %v5601 = vpack.c.b16 %v5273, %v5265
  %v5602 = vpack.c.b16 %v5282, %v5274
  %v5603 = vpack.c.b16 %v5283, %v5275
  %v5604 = vpack.c.b16 %v5284, %v5276
  %v5605 = vpack.c.b16 %v5285, %v5277
  %v5606 = vpack.c.b16 %v5286, %v5278
  %v5607 = vpack.c.b16 %v5287, %v5279
  %v5608 = vpack.c.b16 %v5288, %v5280
  %v5609 = vpack.c.b16 %v5289, %v5281
  %v5610 = vpack.c.b16 %v5298, %v5290
  %v5611 = vpack.c.b16 %v5299, %v5291
  %v5612 = vpack.c.b16 %v5300, %v5292
  %v5613 = vpack.c.b16 %v5301, %v5293
  %v5614 = vpack.c.b16 %v5302, %v5294
  %v5615 = vpack.c.b16 %v5303, %v5295
  %v5616 = vpack.c.b16 %v5304, %v5296
  %v5617 = vpack.c.b16 %v5305, %v5297
  %v5618 = vpack.c.b16 %v5314, %v5306
  %v5619 = vpack.c.b16 %v5315, %v5307
  %v5620 = vpack.c.b16 %v5316, %v5308
  %v5621 = vpack.c.b16 %v5317, %v5309
  %v5622 = vpack.c.b16 %v5318, %v5310
  %v5623 = vpack.c.b16 %v5319, %v5311
  %v5624 = vpack.c.b16 %v5320, %v5312
  %v5625 = vpack.c.b16 %v5321, %v5313
  %v5626 = vpack.c.b16 %v5330, %v5322
  %v5627 = vpack.c.b16 %v5331, %v5323
  %v5628 = vpack.c.b16 %v5332, %v5324
  %v5629 = vpack.c.b16 %v5333, %v5325
  %v5630 = vpack.c.b16 %v5334, %v5326
  %v5631 = vpack.c.b16 %v5335, %v5327
  %v5632 = vpack.c.b16 %v5336, %v5328
  %v5633 = vpack.c.b16 %v5337, %v5329
  %v5634 = vpack.c.b16 %v5346, %v5338
  %v5635 = vpack.c.b16 %v5347, %v5339
  %v5636 = vpack.c.b16 %v5348, %v5340
  %v5637 = vpack.c.b16 %v5349, %v5341
  %v5638 = vpack.c.b16 %v5350, %v5342
  %v5639 = vpack.c.b16 %v5351, %v5343
  %v5640 = vpack.c.b16 %v5352, %v5344
  %v5641 = vpack.c.b16 %v5353, %v5345
  %v5642 = vpack.c.b16 %v5362, %v5354
  %v5643 = vpack.c.b16 %v5363, %v5355
  %v5644 = vpack.c.b16 %v5364, %v5356
  %v5645 = vpack.c.b16 %v5365, %v5357
  %v5646 = vpack.c.b16 %v5366, %v5358
  %v5647 = vpack.c.b16 %v5367, %v5359
  %v5648 = vpack.c.b16 %v5368, %v5360
  %v5649 = vpack.c.b16 %v5369, %v5361
  %v5650 = vpack.c.b16 %v5378, %v5370
  %v5651 = vpack.c.b16 %v5379, %v5371
  %v5652 = vpack.c.b16 %v5380, %v5372
  %v5653 = vpack.c.b16 %v5381, %v5373
  %v5654 = vpack.c.b16 %v5382, %v5374
  %v5655 = vpack.c.b16 %v5383, %v5375
  %v5656 = vpack.c.b16 %v5384, %v5376
  %v5657 = vpack.c.b16 %v5385, %v5377
  %v5658 = vpack.c.b16 %v5394, %v5386
  %v5659 = vpack.c.b16 %v5395, %v5387
  %v5660 = vpack.c.b16 %v5396, %v5388
  %v5661 = vpack.c.b16 %v5397, %v5389
  %v5662 = vpack.c.b16 %v5398, %v5390
  %v5663 = vpack.c.b16 %v5399, %v5391
  %v5664 = vpack.c.b16 %v5400, %v5392
  %v5665 = vpack.c.b16 %v5401, %v5393
  %v5666 = vpack.c.b16 %v5410, %v5402
  %v5667 = vpack.c.b16 %v5411, %v5403
  %v5668 = vpack.c.b16 %v5412, %v5404
  %v5669 = vpack.c.b16 %v5413, %v5405
  %v5670 = vpack.c.b16 %v5414, %v5406
  %v5671 = vpack.c.b16 %v5415, %v5407
  %v5672 = vpack.c.b16 %v5416, %v5408
  %v5673 = vpack.c.b16 %v5417, %v5409
  %5930 = vmatprep.subr.bf16.mxu0 %v5475
  %5931 = vmatpush1.bf16.msra.mxu0 %v5474
  %5932 = vmatprep.subr.bf16.mxu0 %v5467
  %5933 = vmatpush1.bf16.msra.mxu0 %v5466
  %5934 = vmatprep.subr.bf16.mxu0 %v5459
  %5935 = vmatpush1.bf16.msra.mxu0 %v5458
  %5936 = vmatprep.subr.bf16.mxu0 %v5451
  %5937 = vmatpush1.bf16.msra.mxu0 %v5450
  %5938 = vmatprep.subr.bf16.mxu0 %v5443
  %5939 = vmatpush1.bf16.msra.mxu0 %v5442
  %5940 = vmatprep.subr.bf16.mxu0 %v5435
  %5941 = vmatpush1.bf16.msra.mxu0 %v5434
  %5942 = vmatprep.subr.bf16.mxu0 %v5427
  %5943 = vmatpush1.bf16.msra.mxu0 %v5426
  %5944 = vmatprep.subr.bf16.mxu0 %v5419
  %5945 = vmatpush1.bf16.msra.mxu0 %v5418
  %5946 = vmatprep.subr.bf16.mxu0 %v5539
  %5947 = vmatpush2.bf16.msra.mxu0 %v5538
  %5948 = vmatprep.subr.bf16.mxu0 %v5531
  %5949 = vmatpush2.bf16.msra.mxu0 %v5530
  %5950 = vmatprep.subr.bf16.mxu0 %v5523
  %5951 = vmatpush2.bf16.msra.mxu0 %v5522
  %5952 = vmatprep.subr.bf16.mxu0 %v5515
  %5953 = vmatpush2.bf16.msra.mxu0 %v5514
  %5954 = vmatprep.subr.bf16.mxu0 %v5507
  %5955 = vmatpush2.bf16.msra.mxu0 %v5506
  %5956 = vmatprep.subr.bf16.mxu0 %v5499
  %5957 = vmatpush2.bf16.msra.mxu0 %v5498
  %5958 = vmatprep.subr.bf16.mxu0 %v5491
  %5959 = vmatpush2.bf16.msra.mxu0 %v5490
  %5960 = vmatprep.subr.bf16.mxu0 %v5483
  %5961 = vmatpush2.bf16.msra.mxu0 %v5482
  %5962 = vmatprep.mubr.bf16.mxu0 %v53
  %5963 = vmatmul.mubr.bf16.gmra.mxu0 %v52
  %v5964 = vpop.f32.mrf.mxu0
  %v5965 = vadd.f32 %v4613, %v5964
  %v5966 = vpop.f32.mrf.mxu0
  %v5967 = vadd.f32 %v4617, %v5966
  %v5968 = vpop.f32.mrf.mxu0
  %v5969 = vpop.f32.mrf.mxu0
  %5970 = vdwg.mxu0
  %5971 = vmatprep.subr.bf16.mxu0 %v5603
  %5972 = vmatpush1.bf16.msra.mxu0 %v5602
  %5973 = vmatprep.subr.bf16.mxu0 %v5595
  %5974 = vmatpush1.bf16.msra.mxu0 %v5594
  %5975 = vmatprep.subr.bf16.mxu0 %v5587
  %5976 = vmatpush1.bf16.msra.mxu0 %v5586
  %5977 = vmatprep.subr.bf16.mxu0 %v5579
  %5978 = vmatpush1.bf16.msra.mxu0 %v5578
  %5979 = vmatprep.subr.bf16.mxu0 %v5571
  %5980 = vmatpush1.bf16.msra.mxu0 %v5570
  %5981 = vmatprep.subr.bf16.mxu0 %v5563
  %5982 = vmatpush1.bf16.msra.mxu0 %v5562
  %5983 = vmatprep.subr.bf16.mxu0 %v5555
  %5984 = vmatpush1.bf16.msra.mxu0 %v5554
  %5985 = vmatprep.subr.bf16.mxu0 %v5547
  %5986 = vmatpush1.bf16.msra.mxu0 %v5546
  %5987 = vmatprep.subr.bf16.mxu0 %v5667
  %5988 = vmatpush2.bf16.msra.mxu0 %v5666
  %5989 = vmatprep.subr.bf16.mxu0 %v5659
  %5990 = vmatpush2.bf16.msra.mxu0 %v5658
  %5991 = vmatprep.subr.bf16.mxu0 %v5651
  %5992 = vmatpush2.bf16.msra.mxu0 %v5650
  %5993 = vmatprep.subr.bf16.mxu0 %v5643
  %5994 = vmatpush2.bf16.msra.mxu0 %v5642
  %5995 = vmatprep.subr.bf16.mxu0 %v5635
  %5996 = vmatpush2.bf16.msra.mxu0 %v5634
  %5997 = vmatprep.subr.bf16.mxu0 %v5627
  %5998 = vmatpush2.bf16.msra.mxu0 %v5626
  %5999 = vmatprep.subr.bf16.mxu0 %v5619
  %6000 = vmatpush2.bf16.msra.mxu0 %v5618
  %6001 = vmatprep.subr.bf16.mxu0 %v5611
  %6002 = vmatpush2.bf16.msra.mxu0 %v5610
  %6003 = vmatprep.mubr.bf16.mxu0 %v55
  %6004 = vmatmul.mubr.bf16.gmra.mxu0 %v54
  %v6005 = vpop.f32.mrf.mxu0
  %v6006 = vadd.f32 %v5965, %v6005
  %v6007 = vpop.f32.mrf.mxu0
  %v6008 = vadd.f32 %v5967, %v6007
  %v6009 = vpop.f32.mrf.mxu0
  %v6010 = vpop.f32.mrf.mxu0
  %6011 = vdwg.mxu0
  %6012 = vmatprep.subr.bf16.mxu0 %v5477
  %6013 = vmatpush1.bf16.msra.mxu0 %v5476
  %6014 = vmatprep.subr.bf16.mxu0 %v5469
  %6015 = vmatpush1.bf16.msra.mxu0 %v5468
  %6016 = vmatprep.subr.bf16.mxu0 %v5461
  %6017 = vmatpush1.bf16.msra.mxu0 %v5460
  %6018 = vmatprep.subr.bf16.mxu0 %v5453
  %6019 = vmatpush1.bf16.msra.mxu0 %v5452
  %6020 = vmatprep.subr.bf16.mxu0 %v5445
  %6021 = vmatpush1.bf16.msra.mxu0 %v5444
  %6022 = vmatprep.subr.bf16.mxu0 %v5437
  %6023 = vmatpush1.bf16.msra.mxu0 %v5436
  %6024 = vmatprep.subr.bf16.mxu0 %v5429
  %6025 = vmatpush1.bf16.msra.mxu0 %v5428
  %6026 = vmatprep.subr.bf16.mxu0 %v5421
  %6027 = vmatpush1.bf16.msra.mxu0 %v5420
  %6028 = vmatprep.subr.bf16.mxu0 %v5541
  %6029 = vmatpush2.bf16.msra.mxu0 %v5540
  %6030 = vmatprep.subr.bf16.mxu0 %v5533
  %6031 = vmatpush2.bf16.msra.mxu0 %v5532
  %6032 = vmatprep.subr.bf16.mxu0 %v5525
  %6033 = vmatpush2.bf16.msra.mxu0 %v5524
  %6034 = vmatprep.subr.bf16.mxu0 %v5517
  %6035 = vmatpush2.bf16.msra.mxu0 %v5516
  %6036 = vmatprep.subr.bf16.mxu0 %v5509
  %6037 = vmatpush2.bf16.msra.mxu0 %v5508
  %6038 = vmatprep.subr.bf16.mxu0 %v5501
  %6039 = vmatpush2.bf16.msra.mxu0 %v5500
  %6040 = vmatprep.subr.bf16.mxu0 %v5493
  %6041 = vmatpush2.bf16.msra.mxu0 %v5492
  %6042 = vmatprep.subr.bf16.mxu0 %v5485
  %6043 = vmatpush2.bf16.msra.mxu0 %v5484
  %6044 = vmatprep.mubr.bf16.mxu0 %v53
  %6045 = vmatmul.mubr.bf16.gmra.mxu0 %v52
  %v6046 = vpop.f32.mrf.mxu0
  %v6047 = vadd.f32 %v4621, %v6046
  %v6048 = vpop.f32.mrf.mxu0
  %v6049 = vadd.f32 %v4625, %v6048
  %v6050 = vpop.f32.mrf.mxu0
  %v6051 = vpop.f32.mrf.mxu0
  %6052 = vdwg.mxu0
  %6053 = vmatprep.subr.bf16.mxu0 %v5605
  %6054 = vmatpush1.bf16.msra.mxu0 %v5604
  %6055 = vmatprep.subr.bf16.mxu0 %v5597
  %6056 = vmatpush1.bf16.msra.mxu0 %v5596
  %6057 = vmatprep.subr.bf16.mxu0 %v5589
  %6058 = vmatpush1.bf16.msra.mxu0 %v5588
  %6059 = vmatprep.subr.bf16.mxu0 %v5581
  %6060 = vmatpush1.bf16.msra.mxu0 %v5580
  %6061 = vmatprep.subr.bf16.mxu0 %v5573
  %6062 = vmatpush1.bf16.msra.mxu0 %v5572
  %6063 = vmatprep.subr.bf16.mxu0 %v5565
  %6064 = vmatpush1.bf16.msra.mxu0 %v5564
  %6065 = vmatprep.subr.bf16.mxu0 %v5557
  %6066 = vmatpush1.bf16.msra.mxu0 %v5556
  %6067 = vmatprep.subr.bf16.mxu0 %v5549
  %6068 = vmatpush1.bf16.msra.mxu0 %v5548
  %6069 = vmatprep.subr.bf16.mxu0 %v5669
  %6070 = vmatpush2.bf16.msra.mxu0 %v5668
  %6071 = vmatprep.subr.bf16.mxu0 %v5661
  %6072 = vmatpush2.bf16.msra.mxu0 %v5660
  %6073 = vmatprep.subr.bf16.mxu0 %v5653
  %6074 = vmatpush2.bf16.msra.mxu0 %v5652
  %6075 = vmatprep.subr.bf16.mxu0 %v5645
  %6076 = vmatpush2.bf16.msra.mxu0 %v5644
  %6077 = vmatprep.subr.bf16.mxu0 %v5637
  %6078 = vmatpush2.bf16.msra.mxu0 %v5636
  %6079 = vmatprep.subr.bf16.mxu0 %v5629
  %6080 = vmatpush2.bf16.msra.mxu0 %v5628
  %6081 = vmatprep.subr.bf16.mxu0 %v5621
  %6082 = vmatpush2.bf16.msra.mxu0 %v5620
  %6083 = vmatprep.subr.bf16.mxu0 %v5613
  %6084 = vmatpush2.bf16.msra.mxu0 %v5612
  %6085 = vmatprep.mubr.bf16.mxu0 %v55
  %6086 = vmatmul.mubr.bf16.gmra.mxu0 %v54
  %v6087 = vpop.f32.mrf.mxu0
  %v6088 = vadd.f32 %v6047, %v6087
  %v6089 = vpop.f32.mrf.mxu0
  %v6090 = vadd.f32 %v6049, %v6089
  %v6091 = vpop.f32.mrf.mxu0
  %v6092 = vpop.f32.mrf.mxu0
  %6093 = vdwg.mxu0
  %6094 = vmatprep.subr.bf16.mxu0 %v5479
  %6095 = vmatpush1.bf16.msra.mxu0 %v5478
  %6096 = vmatprep.subr.bf16.mxu0 %v5471
  %6097 = vmatpush1.bf16.msra.mxu0 %v5470
  %6098 = vmatprep.subr.bf16.mxu0 %v5463
  %6099 = vmatpush1.bf16.msra.mxu0 %v5462
  %6100 = vmatprep.subr.bf16.mxu0 %v5455
  %6101 = vmatpush1.bf16.msra.mxu0 %v5454
  %6102 = vmatprep.subr.bf16.mxu0 %v5447
  %6103 = vmatpush1.bf16.msra.mxu0 %v5446
  %6104 = vmatprep.subr.bf16.mxu0 %v5439
  %6105 = vmatpush1.bf16.msra.mxu0 %v5438
  %6106 = vmatprep.subr.bf16.mxu0 %v5431
  %6107 = vmatpush1.bf16.msra.mxu0 %v5430
  %6108 = vmatprep.subr.bf16.mxu0 %v5423
  %6109 = vmatpush1.bf16.msra.mxu0 %v5422
  %6110 = vmatprep.subr.bf16.mxu0 %v5543
  %6111 = vmatpush2.bf16.msra.mxu0 %v5542
  %6112 = vmatprep.subr.bf16.mxu0 %v5535
  %6113 = vmatpush2.bf16.msra.mxu0 %v5534
  %6114 = vmatprep.subr.bf16.mxu0 %v5527
  %6115 = vmatpush2.bf16.msra.mxu0 %v5526
  %6116 = vmatprep.subr.bf16.mxu0 %v5519
  %6117 = vmatpush2.bf16.msra.mxu0 %v5518
  %6118 = vmatprep.subr.bf16.mxu0 %v5511
  %6119 = vmatpush2.bf16.msra.mxu0 %v5510
  %6120 = vmatprep.subr.bf16.mxu0 %v5503
  %6121 = vmatpush2.bf16.msra.mxu0 %v5502
  %6122 = vmatprep.subr.bf16.mxu0 %v5495
  %6123 = vmatpush2.bf16.msra.mxu0 %v5494
  %6124 = vmatprep.subr.bf16.mxu0 %v5487
  %6125 = vmatpush2.bf16.msra.mxu0 %v5486
  %6126 = vmatprep.mubr.bf16.mxu0 %v53
  %6127 = vmatmul.mubr.bf16.gmra.mxu0 %v52
  %v6128 = vpop.f32.mrf.mxu0
  %v6129 = vadd.f32 %v4629, %v6128
  %v6130 = vpop.f32.mrf.mxu0
  %v6131 = vadd.f32 %v4633, %v6130
  %v6132 = vpop.f32.mrf.mxu0
  %v6133 = vpop.f32.mrf.mxu0
  %6134 = vdwg.mxu0
  %6135 = vmatprep.subr.bf16.mxu0 %v5607
  %6136 = vmatpush1.bf16.msra.mxu0 %v5606
  %6137 = vmatprep.subr.bf16.mxu0 %v5599
  %6138 = vmatpush1.bf16.msra.mxu0 %v5598
  %6139 = vmatprep.subr.bf16.mxu0 %v5591
  %6140 = vmatpush1.bf16.msra.mxu0 %v5590
  %6141 = vmatprep.subr.bf16.mxu0 %v5583
  %6142 = vmatpush1.bf16.msra.mxu0 %v5582
  %6143 = vmatprep.subr.bf16.mxu0 %v5575
  %6144 = vmatpush1.bf16.msra.mxu0 %v5574
  %6145 = vmatprep.subr.bf16.mxu0 %v5567
  %6146 = vmatpush1.bf16.msra.mxu0 %v5566
  %6147 = vmatprep.subr.bf16.mxu0 %v5559
  %6148 = vmatpush1.bf16.msra.mxu0 %v5558
  %6149 = vmatprep.subr.bf16.mxu0 %v5551
  %6150 = vmatpush1.bf16.msra.mxu0 %v5550
  %6151 = vmatprep.subr.bf16.mxu0 %v5671
  %6152 = vmatpush2.bf16.msra.mxu0 %v5670
  %6153 = vmatprep.subr.bf16.mxu0 %v5663
  %6154 = vmatpush2.bf16.msra.mxu0 %v5662
  %6155 = vmatprep.subr.bf16.mxu0 %v5655
  %6156 = vmatpush2.bf16.msra.mxu0 %v5654
  %6157 = vmatprep.subr.bf16.mxu0 %v5647
  %6158 = vmatpush2.bf16.msra.mxu0 %v5646
  %6159 = vmatprep.subr.bf16.mxu0 %v5639
  %6160 = vmatpush2.bf16.msra.mxu0 %v5638
  %6161 = vmatprep.subr.bf16.mxu0 %v5631
  %6162 = vmatpush2.bf16.msra.mxu0 %v5630
  %6163 = vmatprep.subr.bf16.mxu0 %v5623
  %6164 = vmatpush2.bf16.msra.mxu0 %v5622
  %6165 = vmatprep.subr.bf16.mxu0 %v5615
  %6166 = vmatpush2.bf16.msra.mxu0 %v5614
  %6167 = vmatprep.mubr.bf16.mxu0 %v55
  %6168 = vmatmul.mubr.bf16.gmra.mxu0 %v54
  %v6169 = vpop.f32.mrf.mxu0
  %v6170 = vadd.f32 %v6129, %v6169
  %v6171 = vpop.f32.mrf.mxu0
  %v6172 = vadd.f32 %v6131, %v6171
  %v6173 = vpop.f32.mrf.mxu0
  %v6174 = vpop.f32.mrf.mxu0
  %6175 = vdwg.mxu0
  %6176 = vmatprep.subr.bf16.mxu0 %v5481
  %6177 = vmatpush1.bf16.msra.mxu0 %v5480
  %6178 = vmatprep.subr.bf16.mxu0 %v5473
  %6179 = vmatpush1.bf16.msra.mxu0 %v5472
  %6180 = vmatprep.subr.bf16.mxu0 %v5465
  %6181 = vmatpush1.bf16.msra.mxu0 %v5464
  %6182 = vmatprep.subr.bf16.mxu0 %v5457
  %6183 = vmatpush1.bf16.msra.mxu0 %v5456
  %6184 = vmatprep.subr.bf16.mxu0 %v5449
  %6185 = vmatpush1.bf16.msra.mxu0 %v5448
  %6186 = vmatprep.subr.bf16.mxu0 %v5441
  %6187 = vmatpush1.bf16.msra.mxu0 %v5440
  %6188 = vmatprep.subr.bf16.mxu0 %v5433
  %6189 = vmatpush1.bf16.msra.mxu0 %v5432
  %6190 = vmatprep.subr.bf16.mxu0 %v5425
  %6191 = vmatpush1.bf16.msra.mxu0 %v5424
  %6192 = vmatprep.subr.bf16.mxu0 %v5545
  %6193 = vmatpush2.bf16.msra.mxu0 %v5544
  %6194 = vmatprep.subr.bf16.mxu0 %v5537
  %6195 = vmatpush2.bf16.msra.mxu0 %v5536
  %6196 = vmatprep.subr.bf16.mxu0 %v5529
  %6197 = vmatpush2.bf16.msra.mxu0 %v5528
  %6198 = vmatprep.subr.bf16.mxu0 %v5521
  %6199 = vmatpush2.bf16.msra.mxu0 %v5520
  %6200 = vmatprep.subr.bf16.mxu0 %v5513
  %6201 = vmatpush2.bf16.msra.mxu0 %v5512
  %6202 = vmatprep.subr.bf16.mxu0 %v5505
  %6203 = vmatpush2.bf16.msra.mxu0 %v5504
  %6204 = vmatprep.subr.bf16.mxu0 %v5497
  %6205 = vmatpush2.bf16.msra.mxu0 %v5496
  %6206 = vmatprep.subr.bf16.mxu0 %v5489
  %6207 = vmatpush2.bf16.msra.mxu0 %v5488
  %6208 = vmatprep.mubr.bf16.mxu0 %v53
  %6209 = vmatmul.mubr.bf16.gmra.mxu0 %v52
  %v6210 = vpop.f32.mrf.mxu0
  %v6211 = vadd.f32 %v4637, %v6210
  %v6212 = vpop.f32.mrf.mxu0
  %v6213 = vadd.f32 %v4641, %v6212
  %v6214 = vpop.f32.mrf.mxu0
  %v6215 = vpop.f32.mrf.mxu0
  %6216 = vdwg.mxu0
  %6217 = vmatprep.subr.bf16.mxu0 %v5609
  %6218 = vmatpush1.bf16.msra.mxu0 %v5608
  %6219 = vmatprep.subr.bf16.mxu0 %v5601
  %6220 = vmatpush1.bf16.msra.mxu0 %v5600
  %6221 = vmatprep.subr.bf16.mxu0 %v5593
  %6222 = vmatpush1.bf16.msra.mxu0 %v5592
  %6223 = vmatprep.subr.bf16.mxu0 %v5585
  %6224 = vmatpush1.bf16.msra.mxu0 %v5584
  %6225 = vmatprep.subr.bf16.mxu0 %v5577
  %6226 = vmatpush1.bf16.msra.mxu0 %v5576
  %6227 = vmatprep.subr.bf16.mxu0 %v5569
  %6228 = vmatpush1.bf16.msra.mxu0 %v5568
  %6229 = vmatprep.subr.bf16.mxu0 %v5561
  %6230 = vmatpush1.bf16.msra.mxu0 %v5560
  %6231 = vmatprep.subr.bf16.mxu0 %v5553
  %6232 = vmatpush1.bf16.msra.mxu0 %v5552
  %6233 = vmatprep.subr.bf16.mxu0 %v5673
  %6234 = vmatpush2.bf16.msra.mxu0 %v5672
  %6235 = vmatprep.subr.bf16.mxu0 %v5665
  %6236 = vmatpush2.bf16.msra.mxu0 %v5664
  %6237 = vmatprep.subr.bf16.mxu0 %v5657
  %6238 = vmatpush2.bf16.msra.mxu0 %v5656
  %6239 = vmatprep.subr.bf16.mxu0 %v5649
  %6240 = vmatpush2.bf16.msra.mxu0 %v5648
  %6241 = vmatprep.subr.bf16.mxu0 %v5641
  %6242 = vmatpush2.bf16.msra.mxu0 %v5640
  %6243 = vmatprep.subr.bf16.mxu0 %v5633
  %6244 = vmatpush2.bf16.msra.mxu0 %v5632
  %6245 = vmatprep.subr.bf16.mxu0 %v5625
  %6246 = vmatpush2.bf16.msra.mxu0 %v5624
  %6247 = vmatprep.subr.bf16.mxu0 %v5617
  %6248 = vmatpush2.bf16.msra.mxu0 %v5616
  %6249 = vmatprep.mubr.bf16.mxu0 %v55
  %6250 = vmatmul.mubr.bf16.gmra.mxu0 %v54
  %v6251 = vpop.f32.mrf.mxu0
  %v6252 = vadd.f32 %v6211, %v6251
  %v6253 = vpop.f32.mrf.mxu0
  %v6254 = vadd.f32 %v6213, %v6253
  %v6255 = vpop.f32.mrf.mxu0
  %v6256 = vpop.f32.mrf.mxu0
  %6257 = vdwg.mxu0
  %v6258 = vmul.f32 %v6006, 0.5
  %v6259 = vmul.f32 %v6008, 0.5
  %v6260 = vtanh.pop %v6258
  %v6261 = vtanh.pop %v6259
  %v6262 = vmul.f32 %v6260, 0.5
  %v6263 = vmul.f32 %v6261, 0.5
  %v6264 = vadd.f32 %v6262, 0.5
  %v6265 = vadd.f32 %v6263, 0.5
  %v6266 = vmul.f32 %v6088, 0.5
  %v6267 = vmul.f32 %v6090, 0.5
  %v6268 = vtanh.pop %v6266
  %v6269 = vtanh.pop %v6267
  %v6270 = vmul.f32 %v6268, 0.5
  %v6271 = vmul.f32 %v6269, 0.5
  %v6272 = vadd.f32 %v6270, 0.5
  %v6273 = vadd.f32 %v6271, 0.5
  %v6274 = vtanh.pop %v6170
  %v6275 = vtanh.pop %v6172
  %v6276 = vmul.f32 %v6252, 0.5
  %v6277 = vmul.f32 %v6254, 0.5
  %v6278 = vtanh.pop %v6276
  %v6279 = vtanh.pop %v6277
  %v6280 = vmul.f32 %v6278, 0.5
  %v6281 = vmul.f32 %v6279, 0.5
  %v6282 = vadd.f32 %v6280, 0.5
  %v6283 = vadd.f32 %v6281, 0.5
  %v6284 = vmul.f32 %v6272, %v60
  %v6285 = vmul.f32 %v6273, %v61
  %v6286 = vmul.f32 %v6264, %v6274
  %v6287 = vmul.f32 %v6265, %v6275
  %v6288 = vadd.f32 %v6284, %v6286
  %v6289 = vadd.f32 %v6285, %v6287
  %v6290 = vtanh.pop %v6288
  %v6291 = vtanh.pop %v6289
  %v6292 = vmul.f32 %v6282, %v6290
  %v6293 = vmul.f32 %v6283, %v6291
  %6294 = vst [vmem:[%s13 + $0x20] sm:$0xff] %v6288
  %6295 = vst [vmem:[%s13 + $0x28] sm:$0xff] %v6289
  %6296 = vst [vmem:[%s12 + $0x20] sm:$0xff] %v6292
  %6297 = vst [vmem:[%s12 + $0x28] sm:$0xff] %v6293
  // Predicated region
  $region50: #{decoder_forward.1} parent=0 // pred_check
    _
  $region51: #{decoder_forward.1} parent=0 // pred_check_branch
    %6299 = sbr.rel (0) target = $region53
  $region52: #{decoder_forward.1} parent=0 // pred_region
    _
  $region53: #{decoder_forward.1} parent=0 // pred_fallthru
    _
  // Predicated region
  $region54: #{decoder_forward.1} parent=0 // pred_check
    _
  $region55: #{decoder_forward.1} parent=0 // pred_check_branch
    %6301 = sbr.rel (0) target = $region57
  $region56: #{decoder_forward.1} parent=0 // pred_region
    _
  $region57: #{decoder_forward.1} parent=0 // pred_fallthru
    _
  // Predicated region
  $region58: #{decoder_forward.1} parent=0 // pred_check
    _
  $region59: #{decoder_forward.1} parent=0 // pred_check_branch
    %6303 = sbr.rel (0) target = $region61
  $region60: #{decoder_forward.1} parent=0 // pred_region
    _
  $region61: #{decoder_forward.1} parent=0 // pred_fallthru
    _
  // Predicated region
  $region62: #{decoder_forward.1} parent=0 // pred_check
    _
  $region63: #{decoder_forward.1} parent=0 // pred_check_branch
    %6305 = sbr.rel (0) target = $region65
  $region64: #{decoder_forward.1} parent=0 // pred_region
    _
  $region65: #{decoder_forward.1} parent=0 // pred_fallthru
    _

</llo_original>
